<compile_context>
chip_gen: v7x
topology: tpu7x:2x2x1
jax: 0.10.0
libtpu: 0.0.40
codegen_flags: <defaults>
</compile_context>

<pallas_src>
import functools

import jax
import jax.numpy as jnp
from jax.experimental import pallas as pl
from jax.experimental.pallas import tpu as pltpu

IN_DIM = 600
HID = 1024
OUT_DIM = 600
PAD_IN = 640    # 600 padded up to a multiple of 128 (zero rows in W1)
PAD_OUT = 640   # 600 padded up to a multiple of 128 (zero cols in W4/b4)


def _round_up(x, m):
    return ((x + m - 1) // m) * m


def _bpn_kernel(x_ref, w1_ref, b1_ref, w2_ref, b2_ref,
                w3_ref, b3_ref, w4_ref, b4_ref, o_ref):
    # x tile: (TM, PAD_IN) f32. Weights: bf16. Each dot is bf16 x bf16 with f32
    # accumulation on the MXU; bias add + ReLU in f32.
    h = x_ref[...].astype(jnp.bfloat16)

    h = jnp.dot(h, w1_ref[...], preferred_element_type=jnp.float32) + b1_ref[...]
    h = jnp.maximum(h, 0.0)

    h = jnp.dot(h.astype(jnp.bfloat16), w2_ref[...],
                preferred_element_type=jnp.float32) + b2_ref[...]
    h = jnp.maximum(h, 0.0)

    h = jnp.dot(h.astype(jnp.bfloat16), w3_ref[...],
                preferred_element_type=jnp.float32) + b3_ref[...]
    h = jnp.maximum(h, 0.0)

    h = jnp.dot(h.astype(jnp.bfloat16), w4_ref[...],
                preferred_element_type=jnp.float32) + b4_ref[...]
    h = jnp.maximum(h, 0.0)

    o_ref[...] = h.astype(o_ref.dtype)


@jax.jit
def bpn_forward(x, prepared_params):
    """x: any shape (B, ...) that flattens to (B, 600). Returns (B, 100, 6)."""
    B = x.shape[0]
    x2d = x.reshape(B, -1)
    assert x2d.shape[1] == IN_DIM, f"expected flattened dim {IN_DIM}, got {x2d.shape[1]}"

    (w1, b1, w2, b2, w3, b3, w4, b4) = prepared_params

    # Batch tile: 256 rows matches the 256-wide MXU on v6e/v7x; for tiny batches
    # use the smallest legal sublane multiple so we don't burn compute on padding.
    TM = min(256, _round_up(B, 8))
    B_pad = _round_up(B, TM)
    grid = (B_pad // TM,)

    # Zero-pad batch rows (to B_pad) and feature lanes (600 -> 640).
    x_padded = jnp.pad(x2d, ((0, B_pad - B), (0, PAD_IN - IN_DIM)))

    # x / out stream per grid step; weights & biases stay resident (constant map).
    x_spec = pl.BlockSpec((TM, PAD_IN), lambda i: (i, 0))
    out_spec = pl.BlockSpec((TM, PAD_OUT), lambda i: (i, 0))

    def resident(shape):
        return pl.BlockSpec(shape, lambda i: (0, 0))

    in_specs = [
        x_spec,
        resident((PAD_IN, HID)), resident((1, HID)),
        resident((HID, HID)), resident((1, HID)),
        resident((HID, HID)), resident((1, HID)),
        resident((HID, PAD_OUT)), resident((1, PAD_OUT)),
    ]

    flops = 2 * B_pad * (PAD_IN * HID + HID * HID + HID * HID + HID * PAD_OUT)
    weight_bytes = 2 * (PAD_IN * HID + 2 * HID * HID + HID * PAD_OUT)   # bf16
    bias_bytes = 4 * (3 * HID + PAD_OUT)
    io_bytes = 4 * B_pad * (PAD_IN + PAD_OUT)
    cost = pl.CostEstimate(flops=flops, transcendentals=0,
                           bytes_accessed=weight_bytes + bias_bytes + io_bytes)

    out = pl.pallas_call(
        _bpn_kernel,
        out_shape=jax.ShapeDtypeStruct((B_pad, PAD_OUT), jnp.float32),
        grid=grid,
        in_specs=in_specs,
        out_specs=out_spec,
        compiler_params=pltpu.CompilerParams(
            dimension_semantics=("parallel",),
            vmem_limit_bytes=48 << 20,
        ),
        cost_estimate=cost,
    )(x_padded, w1, b1, w2, b2, w3, b3, w4, b4)

    return out[:B, :OUT_DIM].reshape(B, 100, 6)


def init_params(key):
    """Deterministic init matching the nn.Linear shapes (stored transposed, f32)."""
    ks = jax.random.split(key, 8)

    def lin(kw, kb, fan_in, fan_out):
        # PyTorch-style uniform(-1/sqrt(fan_in), 1/sqrt(fan_in))
        bound = 1.0 / jnp.sqrt(jnp.float32(fan_in))
        w = jax.random.uniform(kw, (fan_in, fan_out), jnp.float32, -bound, bound)
        b = jax.random.uniform(kb, (1, fan_out), jnp.float32, -bound, bound)
        return w, b

    w1, b1 = lin(ks[0], ks[1], IN_DIM, HID)
    w2, b2 = lin(ks[2], ks[3], HID, HID)
    w3, b3 = lin(ks[4], ks[5], HID, HID)
    w4, b4 = lin(ks[6], ks[7], HID, OUT_DIM)
    return (w1, b1, w2, b2, w3, b3, w4, b4)


def prepare_params(params):
    """Pad ragged 600 edges to 640 (zero rows/cols) and cast weights to bf16.

    Biases stay f32. Padding is mathematically a no-op on the first 600
    outputs / inputs.
    """
    (w1, b1, w2, b2, w3, b3, w4, b4) = params
    w1p = jnp.pad(w1, ((0, PAD_IN - IN_DIM), (0, 0))).astype(jnp.bfloat16)
    w2p = w2.astype(jnp.bfloat16)
    w3p = w3.astype(jnp.bfloat16)
    w4p = jnp.pad(w4, ((0, 0), (0, PAD_OUT - OUT_DIM))).astype(jnp.bfloat16)
    b4p = jnp.pad(b4, ((0, 0), (0, PAD_OUT - OUT_DIM)))
    return (w1p, b1, w2p, b2, w3p, b3, w4p, b4p)


@jax.jit
def reference_forward(x, prepared_params):
    """Pure-JAX reference using the same padded bf16 weights / bf16 dots."""
    (w1, b1, w2, b2, w3, b3, w4, b4) = prepared_params
    h = x.reshape(x.shape[0], -1)
    h = jnp.pad(h, ((0, 0), (0, PAD_IN - IN_DIM)))

    def layer(h, w, b):
        y = jnp.dot(h.astype(jnp.bfloat16), w,
                    preferred_element_type=jnp.float32) + b
        return jnp.maximum(y, 0.0)

    h = layer(h, w1, b1)
    h = layer(h, w2, b2)
    h = layer(h, w3, b3)
    h = layer(h, w4, b4)
    return h[:, :OUT_DIM].reshape(x.shape[0], 100, 6)


if __name__ == "__main__":
    key = jax.random.PRNGKey(0)
    k_x, k_p = jax.random.split(key)

    B = 2
    x = jax.random.normal(k_x, (B, IN_DIM), dtype=jnp.float32)
    params = init_params(k_p)
    prepared = prepare_params(params)

    out = bpn_forward(x, prepared)
    out = jax.block_until_ready(out)

    assert out.shape == (B, 100, 6), out.shape

    ref = jax.block_until_ready(reference_forward(x, prepared))
    assert jnp.allclose(out, ref, atol=1e-2, rtol=1e-2), "mismatch vs reference"

    print("KERNEL_OK")
</pallas_src>

<mosaic_0001>
module attributes {stable_mosaic.version = 11 : i64} {
  func.func @_bpn_kernel(%arg0: i32, %arg1: memref<8x640xf32, #tpu.memory_space<vmem>>, %arg2: memref<640x1024xbf16, #tpu.memory_space<vmem>>, %arg3: memref<1x1024xf32, #tpu.memory_space<vmem>>, %arg4: memref<1024x1024xbf16, #tpu.memory_space<vmem>>, %arg5: memref<1x1024xf32, #tpu.memory_space<vmem>>, %arg6: memref<1024x1024xbf16, #tpu.memory_space<vmem>>, %arg7: memref<1x1024xf32, #tpu.memory_space<vmem>>, %arg8: memref<1024x640xbf16, #tpu.memory_space<vmem>>, %arg9: memref<1x640xf32, #tpu.memory_space<vmem>>, %arg10: memref<8x640xf32, #tpu.memory_space<vmem>>) attributes {dimension_semantics = [#tpu.dimension_semantics<parallel>], iteration_bounds = array<i64: 1>, scalar_prefetch = 0 : i64, scratch_operands = 0 : i64, tpu.core_type = #tpu.core_type<tc>, window_params = [{transform_indices = @transform_0, window_bounds = array<i64: 8, 640>}, {pipeline_mode = #tpu.pipeline_mode<synchronous>, transform_indices = @transform_1, window_bounds = array<i64: 640, 1024>}, {pipeline_mode = #tpu.pipeline_mode<synchronous>, transform_indices = @transform_2, window_bounds = array<i64: 1, 1024>}, {pipeline_mode = #tpu.pipeline_mode<synchronous>, transform_indices = @transform_3, window_bounds = array<i64: 1024, 1024>}, {pipeline_mode = #tpu.pipeline_mode<synchronous>, transform_indices = @transform_4, window_bounds = array<i64: 1, 1024>}, {pipeline_mode = #tpu.pipeline_mode<synchronous>, transform_indices = @transform_5, window_bounds = array<i64: 1024, 1024>}, {pipeline_mode = #tpu.pipeline_mode<synchronous>, transform_indices = @transform_6, window_bounds = array<i64: 1, 1024>}, {pipeline_mode = #tpu.pipeline_mode<synchronous>, transform_indices = @transform_7, window_bounds = array<i64: 1024, 640>}, {pipeline_mode = #tpu.pipeline_mode<synchronous>, transform_indices = @transform_8, window_bounds = array<i64: 1, 640>}, {transform_indices = @transform_9, window_bounds = array<i64: 8, 640>}]} {
    %c0 = arith.constant 0 : index
    %c0_0 = arith.constant 0 : index
    %0 = vector.load %arg1[%c0, %c0_0] : memref<8x640xf32, #tpu.memory_space<vmem>>, vector<8x640xf32>
    %1 = arith.truncf %0 : vector<8x640xf32> to vector<8x640xbf16>
    %c0_1 = arith.constant 0 : index
    %c0_2 = arith.constant 0 : index
    %2 = vector.load %arg2[%c0_1, %c0_2] : memref<640x1024xbf16, #tpu.memory_space<vmem>>, vector<640x1024xbf16>
    %cst = arith.constant dense<0.000000e+00> : vector<8x1024xf32>
    %3 = tpu.matmul %1, %2, %cst {dimension_numbers = #tpu.dot_dimension_numbers<[1], [0], [0], [1], [0, 0, 1, 1], [], []>} : vector<8x640xbf16>, vector<640x1024xbf16>, vector<8x1024xf32> -> vector<8x1024xf32>
    %c0_3 = arith.constant 0 : index
    %c0_4 = arith.constant 0 : index
    %4 = vector.load %arg3[%c0_3, %c0_4] : memref<1x1024xf32, #tpu.memory_space<vmem>>, vector<1x1024xf32>
    %5 = vector.broadcast %4 : vector<1x1024xf32> to vector<8x1024xf32>
    %6 = arith.addf %3, %5 : vector<8x1024xf32>
    %cst_5 = arith.constant 0.000000e+00 : f32
    %7 = vector.broadcast %cst_5 : f32 to vector<8x1024xf32>
    %8 = arith.maximumf %6, %7 : vector<8x1024xf32>
    %9 = arith.truncf %8 : vector<8x1024xf32> to vector<8x1024xbf16>
    %c0_6 = arith.constant 0 : index
    %c0_7 = arith.constant 0 : index
    %10 = vector.load %arg4[%c0_6, %c0_7] : memref<1024x1024xbf16, #tpu.memory_space<vmem>>, vector<1024x1024xbf16>
    %cst_8 = arith.constant dense<0.000000e+00> : vector<8x1024xf32>
    %11 = tpu.matmul %9, %10, %cst_8 {dimension_numbers = #tpu.dot_dimension_numbers<[1], [0], [0], [1], [0, 0, 1, 1], [], []>} : vector<8x1024xbf16>, vector<1024x1024xbf16>, vector<8x1024xf32> -> vector<8x1024xf32>
    %c0_9 = arith.constant 0 : index
    %c0_10 = arith.constant 0 : index
    %12 = vector.load %arg5[%c0_9, %c0_10] : memref<1x1024xf32, #tpu.memory_space<vmem>>, vector<1x1024xf32>
    %13 = vector.broadcast %12 : vector<1x1024xf32> to vector<8x1024xf32>
    %14 = arith.addf %11, %13 : vector<8x1024xf32>
    %cst_11 = arith.constant 0.000000e+00 : f32
    %15 = vector.broadcast %cst_11 : f32 to vector<8x1024xf32>
    %16 = arith.maximumf %14, %15 : vector<8x1024xf32>
    %17 = arith.truncf %16 : vector<8x1024xf32> to vector<8x1024xbf16>
    %c0_12 = arith.constant 0 : index
    %c0_13 = arith.constant 0 : index
    %18 = vector.load %arg6[%c0_12, %c0_13] : memref<1024x1024xbf16, #tpu.memory_space<vmem>>, vector<1024x1024xbf16>
    %cst_14 = arith.constant dense<0.000000e+00> : vector<8x1024xf32>
    %19 = tpu.matmul %17, %18, %cst_14 {dimension_numbers = #tpu.dot_dimension_numbers<[1], [0], [0], [1], [0, 0, 1, 1], [], []>} : vector<8x1024xbf16>, vector<1024x1024xbf16>, vector<8x1024xf32> -> vector<8x1024xf32>
    %c0_15 = arith.constant 0 : index
    %c0_16 = arith.constant 0 : index
    %20 = vector.load %arg7[%c0_15, %c0_16] : memref<1x1024xf32, #tpu.memory_space<vmem>>, vector<1x1024xf32>
    %21 = vector.broadcast %20 : vector<1x1024xf32> to vector<8x1024xf32>
    %22 = arith.addf %19, %21 : vector<8x1024xf32>
    %cst_17 = arith.constant 0.000000e+00 : f32
    %23 = vector.broadcast %cst_17 : f32 to vector<8x1024xf32>
    %24 = arith.maximumf %22, %23 : vector<8x1024xf32>
    %25 = arith.truncf %24 : vector<8x1024xf32> to vector<8x1024xbf16>
    %c0_18 = arith.constant 0 : index
    %c0_19 = arith.constant 0 : index
    %26 = vector.load %arg8[%c0_18, %c0_19] : memref<1024x640xbf16, #tpu.memory_space<vmem>>, vector<1024x640xbf16>
    %cst_20 = arith.constant dense<0.000000e+00> : vector<8x640xf32>
    %27 = tpu.matmul %25, %26, %cst_20 {dimension_numbers = #tpu.dot_dimension_numbers<[1], [0], [0], [1], [0, 0, 1, 1], [], []>} : vector<8x1024xbf16>, vector<1024x640xbf16>, vector<8x640xf32> -> vector<8x640xf32>
    %c0_21 = arith.constant 0 : index
    %c0_22 = arith.constant 0 : index
    %28 = vector.load %arg9[%c0_21, %c0_22] : memref<1x640xf32, #tpu.memory_space<vmem>>, vector<1x640xf32>
    %29 = vector.broadcast %28 : vector<1x640xf32> to vector<8x640xf32>
    %30 = arith.addf %27, %29 : vector<8x640xf32>
    %cst_23 = arith.constant 0.000000e+00 : f32
    %31 = vector.broadcast %cst_23 : f32 to vector<8x640xf32>
    %32 = arith.maximumf %30, %31 : vector<8x640xf32>
    %c0_24 = arith.constant 0 : index
    %c0_25 = arith.constant 0 : index
    %33 = vector.load %arg10[%c0_24, %c0_25] : memref<8x640xf32, #tpu.memory_space<vmem>>, vector<8x640xf32>
    tpu.vector_store %arg10[%c0_24, %c0_25], %32 {strides = array<i32>} : memref<8x640xf32, #tpu.memory_space<vmem>>, vector<8x640xf32>,
    return
  }
  func.func @transform_0(%arg0: i32) -> (i32, i32) {
    %c0_i32 = arith.constant 0 : i32
    %c0_i32_0 = arith.constant 0 : i32
    return %arg0, %c0_i32 : i32, i32
  }
  func.func @transform_1(%arg0: i32) -> (i32, i32) {
    %c0_i32 = arith.constant 0 : i32
    %c0_i32_0 = arith.constant 0 : i32
    %c0_i32_1 = arith.constant 0 : i32
    return %c0_i32, %c0_i32_0 : i32, i32
  }
  func.func @transform_2(%arg0: i32) -> (i32, i32) {
    %c0_i32 = arith.constant 0 : i32
    %c0_i32_0 = arith.constant 0 : i32
    %c0_i32_1 = arith.constant 0 : i32
    return %c0_i32, %c0_i32_0 : i32, i32
  }
  func.func @transform_3(%arg0: i32) -> (i32, i32) {
    %c0_i32 = arith.constant 0 : i32
    %c0_i32_0 = arith.constant 0 : i32
    %c0_i32_1 = arith.constant 0 : i32
    return %c0_i32, %c0_i32_0 : i32, i32
  }
  func.func @transform_4(%arg0: i32) -> (i32, i32) {
    %c0_i32 = arith.constant 0 : i32
    %c0_i32_0 = arith.constant 0 : i32
    %c0_i32_1 = arith.constant 0 : i32
    return %c0_i32, %c0_i32_0 : i32, i32
  }
  func.func @transform_5(%arg0: i32) -> (i32, i32) {
    %c0_i32 = arith.constant 0 : i32
    %c0_i32_0 = arith.constant 0 : i32
    %c0_i32_1 = arith.constant 0 : i32
    return %c0_i32, %c0_i32_0 : i32, i32
  }
  func.func @transform_6(%arg0: i32) -> (i32, i32) {
    %c0_i32 = arith.constant 0 : i32
    %c0_i32_0 = arith.constant 0 : i32
    %c0_i32_1 = arith.constant 0 : i32
    return %c0_i32, %c0_i32_0 : i32, i32
  }
  func.func @transform_7(%arg0: i32) -> (i32, i32) {
    %c0_i32 = arith.constant 0 : i32
    %c0_i32_0 = arith.constant 0 : i32
    %c0_i32_1 = arith.constant 0 : i32
    return %c0_i32, %c0_i32_0 : i32, i32
  }
  func.func @transform_8(%arg0: i32) -> (i32, i32) {
    %c0_i32 = arith.constant 0 : i32
    %c0_i32_0 = arith.constant 0 : i32
    %c0_i32_1 = arith.constant 0 : i32
    return %c0_i32, %c0_i32_0 : i32, i32
  }
  func.func @transform_9(%arg0: i32) -> (i32, i32) {
    %c0_i32 = arith.constant 0 : i32
    %c0_i32_0 = arith.constant 0 : i32
    return %arg0, %c0_i32 : i32, i32
  }
}

</mosaic_0001>

<llo_original>
// kernel: bpn_forward.1
$region0: #{bpn_forward.1}
  #allocation0 [shape = 'u32[]', space=smem, size = 0x4, offset = 0x4, fixed_abs, tag = 'smem constant byte address 0x4 - core index']
  #allocation1 [shape = 'u32[144,128]{1,0:T(1,128)}', space=vmem, size = 0x12000, scoped, tag = 'internal scratch']
  %s0 = inlined_call_operand.vmem [shape: f32[8,640], index: 0, kind: input, shape index: {}]
  %s1 = inlined_call_operand.hbm [shape: bf16[640,1024], index: 1, kind: input, shape index: {}]
  %s2 = inlined_call_operand.hbm [shape: f32[1,1024], index: 2, kind: input, shape index: {}]
  %s3 = inlined_call_operand.hbm [shape: bf16[1024,1024], index: 3, kind: input, shape index: {}]
  %s4 = inlined_call_operand.hbm [shape: f32[1,1024], index: 4, kind: input, shape index: {}]
  %s5 = inlined_call_operand.hbm [shape: bf16[1024,1024], index: 5, kind: input, shape index: {}]
  %s6 = inlined_call_operand.hbm [shape: f32[1,1024], index: 6, kind: input, shape index: {}]
  %s7 = inlined_call_operand.hbm [shape: bf16[1024,640], index: 7, kind: input, shape index: {}]
  %s8 = inlined_call_operand.hbm [shape: f32[1,640], index: 8, kind: input, shape index: {}]
  %s9 = inlined_call_operand.vmem [shape: f32[8,640], index: 9, kind: output, shape index: {}]
  %s10 = sld [smem:[#allocation0]]
  $region78: #{bpn_forward.1} parent=0
    _
  %s12 = ssub.s32 1, %s10
  %s13 = scalar_select 0, %s12, %s10
  $region1: #{bpn_forward.1} parent=0
    #allocation2 [shape = 'u8[1310720]{0}', space=vmem, size = 0x140000, scoped, tag = 'input window, operand 1, single buffered']
    #allocation3 [shape = 's32[1]{0}', space=sflag, size = 0x4, scoped, tag = 'scoped memory for bpn_forward.1']
    #allocation4 [shape = 'u8[4096]{0}', space=vmem, size = 0x1000, scoped, tag = 'input window, operand 2, single buffered']
    #allocation5 [shape = 's32[1]{0}', space=sflag, size = 0x4, scoped, tag = 'scoped memory for bpn_forward.1']
    #allocation6 [shape = 'u8[2097152]{0}', space=vmem, size = 0x200000, scoped, tag = 'input window, operand 3, single buffered']
    #allocation7 [shape = 'u8[4096]{0}', space=vmem, size = 0x1000, scoped, tag = 'input window, operand 4, single buffered']
    #allocation8 [shape = 's32[1]{0}', space=sflag, size = 0x4, scoped, tag = 'scoped memory for bpn_forward.1']
    #allocation9 [shape = 'u8[2097152]{0}', space=vmem, size = 0x200000, scoped, tag = 'input window, operand 5, single buffered']
    #allocation10 [shape = 'u8[4096]{0}', space=vmem, size = 0x1000, scoped, tag = 'input window, operand 6, single buffered']
    #allocation11 [shape = 's32[1]{0}', space=sflag, size = 0x4, scoped, tag = 'scoped memory for bpn_forward.1']
    #allocation12 [shape = 'u8[1310720]{0}', space=vmem, size = 0x140000, scoped, tag = 'input window, operand 7, single buffered']
    #allocation13 [shape = 'u8[2560]{0}', space=vmem, size = 0xc00, scoped, tag = 'input window, operand 8, single buffered']
    #allocation14 [shape = 's32[1]{0}', space=sflag, size = 0x4, scoped, tag = 'scoped memory for bpn_forward.1']
    %14 = vsyncpa [#allocation3], 0
    %15 = vsyncpa [#allocation5], 0
    %16 = vsyncpa [#allocation8], 0
    %17 = vsyncpa [#allocation11], 0
    %18 = vsyncpa [#allocation14], 0
    // Predicated region
    $region2: #{bpn_forward.1} parent=1 // pred_check
      _
    $region3: #{bpn_forward.1} parent=1 // pred_check_branch
      %20 = sbr.rel (0) target = $region5
    $region4: #{bpn_forward.1} parent=1 // pred_region
      _
    $region5: #{bpn_forward.1} parent=1 // pred_fallthru
      _
    // Predicated region
    $region6: #{bpn_forward.1} parent=1 // pred_check
      _
    $region7: #{bpn_forward.1} parent=1 // pred_check_branch
      %22 = sbr.rel (0) target = $region9
    $region8: #{bpn_forward.1} parent=1 // pred_region
      %s24 = ssub.s32 40960, 40960
      %25 = vsyncadd [#allocation3], %s24
      %s26 = sshll.u32 [#allocation2], 4
      %s27 = int_to_ptr.vmem [resolvable:$true] %s26
      %32 = dma.hbm_to_vmem [thread:$0]  %s1, 40960, %s27, [#allocation3], 512, 512, 32
    $region9: #{bpn_forward.1} parent=1 // pred_fallthru
      _
    // Predicated region
    $region10: #{bpn_forward.1} parent=1 // pred_check
      _
    $region11: #{bpn_forward.1} parent=1 // pred_check_branch
      %34 = sbr.rel (0) target = $region13
    $region12: #{bpn_forward.1} parent=1 // pred_region
      %s36 = ssub.s32 128, 128
      %37 = vsyncadd [#allocation5], %s36
      %s39 = sshll.u32 [#allocation4], 4
      %s40 = int_to_ptr.vmem [resolvable:$true] %s39
      %42 = dma.hbm_to_vmem [thread:$0]  %s2, 128, %s40, [#allocation5]
    $region13: #{bpn_forward.1} parent=1 // pred_fallthru
      _
    // Predicated region
    $region14: #{bpn_forward.1} parent=1 // pred_check
      _
    $region15: #{bpn_forward.1} parent=1 // pred_check_branch
      %44 = sbr.rel (0) target = $region17
    $region16: #{bpn_forward.1} parent=1 // pred_region
      %s46 = ssub.s32 65536, 65536
      %47 = vsyncadd [#allocation5], %s46
      %s48 = sshll.u32 [#allocation6], 4
      %s49 = int_to_ptr.vmem [resolvable:$true] %s48
      %54 = dma.hbm_to_vmem [thread:$0]  %s3, 65536, %s49, [#allocation5], 512, 512, 32
    $region17: #{bpn_forward.1} parent=1 // pred_fallthru
      _
    // Predicated region
    $region18: #{bpn_forward.1} parent=1 // pred_check
      _
    $region19: #{bpn_forward.1} parent=1 // pred_check_branch
      %56 = sbr.rel (0) target = $region21
    $region20: #{bpn_forward.1} parent=1 // pred_region
      %s58 = ssub.s32 128, 128
      %59 = vsyncadd [#allocation8], %s58
      %s61 = sshll.u32 [#allocation7], 4
      %s62 = int_to_ptr.vmem [resolvable:$true] %s61
      %64 = dma.hbm_to_vmem [thread:$0]  %s4, 128, %s62, [#allocation8]
    $region21: #{bpn_forward.1} parent=1 // pred_fallthru
      _
    // Predicated region
    $region22: #{bpn_forward.1} parent=1 // pred_check
      _
    $region23: #{bpn_forward.1} parent=1 // pred_check_branch
      %66 = sbr.rel (0) target = $region25
    $region24: #{bpn_forward.1} parent=1 // pred_region
      %s68 = ssub.s32 65536, 65536
      %69 = vsyncadd [#allocation8], %s68
      %s70 = sshll.u32 [#allocation9], 4
      %s71 = int_to_ptr.vmem [resolvable:$true] %s70
      %76 = dma.hbm_to_vmem [thread:$0]  %s5, 65536, %s71, [#allocation8], 512, 512, 32
    $region25: #{bpn_forward.1} parent=1 // pred_fallthru
      _
    // Predicated region
    $region26: #{bpn_forward.1} parent=1 // pred_check
      _
    $region27: #{bpn_forward.1} parent=1 // pred_check_branch
      %78 = sbr.rel (0) target = $region29
    $region28: #{bpn_forward.1} parent=1 // pred_region
      %s80 = ssub.s32 128, 128
      %81 = vsyncadd [#allocation11], %s80
      %s83 = sshll.u32 [#allocation10], 4
      %s84 = int_to_ptr.vmem [resolvable:$true] %s83
      %86 = dma.hbm_to_vmem [thread:$0]  %s6, 128, %s84, [#allocation11]
    $region29: #{bpn_forward.1} parent=1 // pred_fallthru
      _
    // Predicated region
    $region30: #{bpn_forward.1} parent=1 // pred_check
      _
    $region31: #{bpn_forward.1} parent=1 // pred_check_branch
      %88 = sbr.rel (0) target = $region33
    $region32: #{bpn_forward.1} parent=1 // pred_region
      %s90 = ssub.s32 40960, 40960
      %91 = vsyncadd [#allocation11], %s90
      %s92 = sshll.u32 [#allocation12], 4
      %s93 = int_to_ptr.vmem [resolvable:$true] %s92
      %98 = dma.hbm_to_vmem [thread:$0]  %s7, 40960, %s93, [#allocation11], 320, 320, 20
    $region33: #{bpn_forward.1} parent=1 // pred_fallthru
      _
    // Predicated region
    $region34: #{bpn_forward.1} parent=1 // pred_check
      _
    $region35: #{bpn_forward.1} parent=1 // pred_check_branch
      %100 = sbr.rel (0) target = $region37
    $region36: #{bpn_forward.1} parent=1 // pred_region
      %s102 = ssub.s32 80, 80
      %103 = vsyncadd [#allocation14], %s102
      %s105 = sshll.u32 [#allocation13], 4
      %s106 = int_to_ptr.vmem [resolvable:$true] %s105
      %108 = dma.hbm_to_vmem [thread:$0]  %s8, 80, %s106, [#allocation14]
    $region37: #{bpn_forward.1} parent=1 // pred_fallthru
      _
    // Predicated region
    $region38: #{bpn_forward.1} parent=1 // pred_check
      _
    $region39: #{bpn_forward.1} parent=1 // pred_check_branch
      %110 = sbr.rel (0) target = $region41
    $region40: #{bpn_forward.1} parent=1 // pred_region
      %111 = dma.done [#allocation3], 40960
    $region41: #{bpn_forward.1} parent=1 // pred_fallthru
      _
    // Predicated region
    $region42: #{bpn_forward.1} parent=1 // pred_check
      _
    $region43: #{bpn_forward.1} parent=1 // pred_check_branch
      %113 = sbr.rel (0) target = $region45
    $region44: #{bpn_forward.1} parent=1 // pred_region
      %114 = dma.done [#allocation5], 128
    $region45: #{bpn_forward.1} parent=1 // pred_fallthru
      _
    // Predicated region
    $region46: #{bpn_forward.1} parent=1 // pred_check
      _
    $region47: #{bpn_forward.1} parent=1 // pred_check_branch
      %116 = sbr.rel (0) target = $region49
    $region48: #{bpn_forward.1} parent=1 // pred_region
      %117 = dma.done [#allocation5], 65536
    $region49: #{bpn_forward.1} parent=1 // pred_fallthru
      _
    // Predicated region
    $region50: #{bpn_forward.1} parent=1 // pred_check
      _
    $region51: #{bpn_forward.1} parent=1 // pred_check_branch
      %119 = sbr.rel (0) target = $region53
    $region52: #{bpn_forward.1} parent=1 // pred_region
      %120 = dma.done [#allocation8], 128
    $region53: #{bpn_forward.1} parent=1 // pred_fallthru
      _
    // Predicated region
    $region54: #{bpn_forward.1} parent=1 // pred_check
      _
    $region55: #{bpn_forward.1} parent=1 // pred_check_branch
      %122 = sbr.rel (0) target = $region57
    $region56: #{bpn_forward.1} parent=1 // pred_region
      %123 = dma.done [#allocation8], 65536
    $region57: #{bpn_forward.1} parent=1 // pred_fallthru
      _
    // Predicated region
    $region58: #{bpn_forward.1} parent=1 // pred_check
      _
    $region59: #{bpn_forward.1} parent=1 // pred_check_branch
      %125 = sbr.rel (0) target = $region61
    $region60: #{bpn_forward.1} parent=1 // pred_region
      %126 = dma.done [#allocation11], 128
    $region61: #{bpn_forward.1} parent=1 // pred_fallthru
      _
    // Predicated region
    $region62: #{bpn_forward.1} parent=1 // pred_check
      _
    $region63: #{bpn_forward.1} parent=1 // pred_check_branch
      %128 = sbr.rel (0) target = $region65
    $region64: #{bpn_forward.1} parent=1 // pred_region
      %129 = dma.done [#allocation11], 40960
    $region65: #{bpn_forward.1} parent=1 // pred_fallthru
      _
    // Predicated region
    $region66: #{bpn_forward.1} parent=1 // pred_check
      _
    $region67: #{bpn_forward.1} parent=1 // pred_check_branch
      %131 = sbr.rel (0) target = $region69
    $region68: #{bpn_forward.1} parent=1 // pred_region
      %132 = dma.done [#allocation14], 80
    $region69: #{bpn_forward.1} parent=1 // pred_fallthru
      _
    %v134 = vld [vmem:[%s0] sm:$0xff]
    %v135 = vld [vmem:[%s0 + $0x8] sm:$0xff]
    %v136 = vld [vmem:[%s0 + $0x10] sm:$0xff]
    %v137 = vld [vmem:[%s0 + $0x18] sm:$0xff]
    %v138 = vld [vmem:[%s0 + $0x20] sm:$0xff]
    %v139 = vpack.c.bf16 %v134, %v134
    %v140 = vpack.c.bf16 %v135, %v135
    %v141 = vpack.c.bf16 %v136, %v136
    %v142 = vpack.c.bf16 %v137, %v137
    %v143 = vpack.c.bf16 %v138, %v138
    %v144 = vld [vmem:[#allocation2] sm:$0xff]
    %v145 = vld [vmem:[#allocation2 + $0x8] sm:$0xff]
    %v146 = vld [vmem:[#allocation2 + $0x10] sm:$0xff]
    %v147 = vld [vmem:[#allocation2 + $0x18] sm:$0xff]
    %v148 = vld [vmem:[#allocation2 + $0x20] sm:$0xff]
    %v149 = vld [vmem:[#allocation2 + $0x28] sm:$0xff]
    %v150 = vld [vmem:[#allocation2 + $0x30] sm:$0xff]
    %v151 = vld [vmem:[#allocation2 + $0x38] sm:$0xff]
    %v152 = vld [vmem:[#allocation2 + $0x40] sm:$0xff]
    %v153 = vld [vmem:[#allocation2 + $0x48] sm:$0xff]
    %v154 = vld [vmem:[#allocation2 + $0x50] sm:$0xff]
    %v155 = vld [vmem:[#allocation2 + $0x58] sm:$0xff]
    %v156 = vld [vmem:[#allocation2 + $0x60] sm:$0xff]
    %v157 = vld [vmem:[#allocation2 + $0x68] sm:$0xff]
    %v158 = vld [vmem:[#allocation2 + $0x70] sm:$0xff]
    %v159 = vld [vmem:[#allocation2 + $0x78] sm:$0xff]
    %v160 = vld [vmem:[#allocation2 + $0x80] sm:$0xff]
    %v161 = vld [vmem:[#allocation2 + $0x88] sm:$0xff]
    %v162 = vld [vmem:[#allocation2 + $0x90] sm:$0xff]
    %v163 = vld [vmem:[#allocation2 + $0x98] sm:$0xff]
    %v164 = vld [vmem:[#allocation2 + $0xa0] sm:$0xff]
    %v165 = vld [vmem:[#allocation2 + $0xa8] sm:$0xff]
    %v166 = vld [vmem:[#allocation2 + $0xb0] sm:$0xff]
    %v167 = vld [vmem:[#allocation2 + $0xb8] sm:$0xff]
    %v168 = vld [vmem:[#allocation2 + $0xc0] sm:$0xff]
    %v169 = vld [vmem:[#allocation2 + $0xc8] sm:$0xff]
    %v170 = vld [vmem:[#allocation2 + $0xd0] sm:$0xff]
    %v171 = vld [vmem:[#allocation2 + $0xd8] sm:$0xff]
    %v172 = vld [vmem:[#allocation2 + $0xe0] sm:$0xff]
    %v173 = vld [vmem:[#allocation2 + $0xe8] sm:$0xff]
    %v174 = vld [vmem:[#allocation2 + $0xf0] sm:$0xff]
    %v175 = vld [vmem:[#allocation2 + $0xf8] sm:$0xff]
    %v176 = vld [vmem:[#allocation2 + $0x100] sm:$0xff]
    %v177 = vld [vmem:[#allocation2 + $0x108] sm:$0xff]
    %v178 = vld [vmem:[#allocation2 + $0x110] sm:$0xff]
    %v179 = vld [vmem:[#allocation2 + $0x118] sm:$0xff]
    %v180 = vld [vmem:[#allocation2 + $0x120] sm:$0xff]
    %v181 = vld [vmem:[#allocation2 + $0x128] sm:$0xff]
    %v182 = vld [vmem:[#allocation2 + $0x130] sm:$0xff]
    %v183 = vld [vmem:[#allocation2 + $0x138] sm:$0xff]
    %v184 = vld [vmem:[#allocation2 + $0x140] sm:$0xff]
    %v185 = vld [vmem:[#allocation2 + $0x148] sm:$0xff]
    %v186 = vld [vmem:[#allocation2 + $0x150] sm:$0xff]
    %v187 = vld [vmem:[#allocation2 + $0x158] sm:$0xff]
    %v188 = vld [vmem:[#allocation2 + $0x160] sm:$0xff]
    %v189 = vld [vmem:[#allocation2 + $0x168] sm:$0xff]
    %v190 = vld [vmem:[#allocation2 + $0x170] sm:$0xff]
    %v191 = vld [vmem:[#allocation2 + $0x178] sm:$0xff]
    %v192 = vld [vmem:[#allocation2 + $0x180] sm:$0xff]
    %v193 = vld [vmem:[#allocation2 + $0x188] sm:$0xff]
    %v194 = vld [vmem:[#allocation2 + $0x190] sm:$0xff]
    %v195 = vld [vmem:[#allocation2 + $0x198] sm:$0xff]
    %v196 = vld [vmem:[#allocation2 + $0x1a0] sm:$0xff]
    %v197 = vld [vmem:[#allocation2 + $0x1a8] sm:$0xff]
    %v198 = vld [vmem:[#allocation2 + $0x1b0] sm:$0xff]
    %v199 = vld [vmem:[#allocation2 + $0x1b8] sm:$0xff]
    %v200 = vld [vmem:[#allocation2 + $0x1c0] sm:$0xff]
    %v201 = vld [vmem:[#allocation2 + $0x1c8] sm:$0xff]
    %v202 = vld [vmem:[#allocation2 + $0x1d0] sm:$0xff]
    %v203 = vld [vmem:[#allocation2 + $0x1d8] sm:$0xff]
    %v204 = vld [vmem:[#allocation2 + $0x1e0] sm:$0xff]
    %v205 = vld [vmem:[#allocation2 + $0x1e8] sm:$0xff]
    %v206 = vld [vmem:[#allocation2 + $0x1f0] sm:$0xff]
    %v207 = vld [vmem:[#allocation2 + $0x1f8] sm:$0xff]
    %v208 = vld [vmem:[#allocation2 + $0x200] sm:$0xff]
    %v209 = vld [vmem:[#allocation2 + $0x208] sm:$0xff]
    %v210 = vld [vmem:[#allocation2 + $0x210] sm:$0xff]
    %v211 = vld [vmem:[#allocation2 + $0x218] sm:$0xff]
    %v212 = vld [vmem:[#allocation2 + $0x220] sm:$0xff]
    %v213 = vld [vmem:[#allocation2 + $0x228] sm:$0xff]
    %v214 = vld [vmem:[#allocation2 + $0x230] sm:$0xff]
    %v215 = vld [vmem:[#allocation2 + $0x238] sm:$0xff]
    %v216 = vld [vmem:[#allocation2 + $0x240] sm:$0xff]
    %v217 = vld [vmem:[#allocation2 + $0x248] sm:$0xff]
    %v218 = vld [vmem:[#allocation2 + $0x250] sm:$0xff]
    %v219 = vld [vmem:[#allocation2 + $0x258] sm:$0xff]
    %v220 = vld [vmem:[#allocation2 + $0x260] sm:$0xff]
    %v221 = vld [vmem:[#allocation2 + $0x268] sm:$0xff]
    %v222 = vld [vmem:[#allocation2 + $0x270] sm:$0xff]
    %v223 = vld [vmem:[#allocation2 + $0x278] sm:$0xff]
    %v224 = vld [vmem:[#allocation2 + $0x280] sm:$0xff]
    %v225 = vld [vmem:[#allocation2 + $0x288] sm:$0xff]
    %v226 = vld [vmem:[#allocation2 + $0x290] sm:$0xff]
    %v227 = vld [vmem:[#allocation2 + $0x298] sm:$0xff]
    %v228 = vld [vmem:[#allocation2 + $0x2a0] sm:$0xff]
    %v229 = vld [vmem:[#allocation2 + $0x2a8] sm:$0xff]
    %v230 = vld [vmem:[#allocation2 + $0x2b0] sm:$0xff]
    %v231 = vld [vmem:[#allocation2 + $0x2b8] sm:$0xff]
    %v232 = vld [vmem:[#allocation2 + $0x2c0] sm:$0xff]
    %v233 = vld [vmem:[#allocation2 + $0x2c8] sm:$0xff]
    %v234 = vld [vmem:[#allocation2 + $0x2d0] sm:$0xff]
    %v235 = vld [vmem:[#allocation2 + $0x2d8] sm:$0xff]
    %v236 = vld [vmem:[#allocation2 + $0x2e0] sm:$0xff]
    %v237 = vld [vmem:[#allocation2 + $0x2e8] sm:$0xff]
    %v238 = vld [vmem:[#allocation2 + $0x2f0] sm:$0xff]
    %v239 = vld [vmem:[#allocation2 + $0x2f8] sm:$0xff]
    %v240 = vld [vmem:[#allocation2 + $0x300] sm:$0xff]
    %v241 = vld [vmem:[#allocation2 + $0x308] sm:$0xff]
    %v242 = vld [vmem:[#allocation2 + $0x310] sm:$0xff]
    %v243 = vld [vmem:[#allocation2 + $0x318] sm:$0xff]
    %v244 = vld [vmem:[#allocation2 + $0x320] sm:$0xff]
    %v245 = vld [vmem:[#allocation2 + $0x328] sm:$0xff]
    %v246 = vld [vmem:[#allocation2 + $0x330] sm:$0xff]
    %v247 = vld [vmem:[#allocation2 + $0x338] sm:$0xff]
    %v248 = vld [vmem:[#allocation2 + $0x340] sm:$0xff]
    %v249 = vld [vmem:[#allocation2 + $0x348] sm:$0xff]
    %v250 = vld [vmem:[#allocation2 + $0x350] sm:$0xff]
    %v251 = vld [vmem:[#allocation2 + $0x358] sm:$0xff]
    %v252 = vld [vmem:[#allocation2 + $0x360] sm:$0xff]
    %v253 = vld [vmem:[#allocation2 + $0x368] sm:$0xff]
    %v254 = vld [vmem:[#allocation2 + $0x370] sm:$0xff]
    %v255 = vld [vmem:[#allocation2 + $0x378] sm:$0xff]
    %v256 = vld [vmem:[#allocation2 + $0x380] sm:$0xff]
    %v257 = vld [vmem:[#allocation2 + $0x388] sm:$0xff]
    %v258 = vld [vmem:[#allocation2 + $0x390] sm:$0xff]
    %v259 = vld [vmem:[#allocation2 + $0x398] sm:$0xff]
    %v260 = vld [vmem:[#allocation2 + $0x3a0] sm:$0xff]
    %v261 = vld [vmem:[#allocation2 + $0x3a8] sm:$0xff]
    %v262 = vld [vmem:[#allocation2 + $0x3b0] sm:$0xff]
    %v263 = vld [vmem:[#allocation2 + $0x3b8] sm:$0xff]
    %v264 = vld [vmem:[#allocation2 + $0x3c0] sm:$0xff]
    %v265 = vld [vmem:[#allocation2 + $0x3c8] sm:$0xff]
    %v266 = vld [vmem:[#allocation2 + $0x3d0] sm:$0xff]
    %v267 = vld [vmem:[#allocation2 + $0x3d8] sm:$0xff]
    %v268 = vld [vmem:[#allocation2 + $0x3e0] sm:$0xff]
    %v269 = vld [vmem:[#allocation2 + $0x3e8] sm:$0xff]
    %v270 = vld [vmem:[#allocation2 + $0x3f0] sm:$0xff]
    %v271 = vld [vmem:[#allocation2 + $0x3f8] sm:$0xff]
    %v272 = vld [vmem:[#allocation2 + $0x400] sm:$0xff]
    %v273 = vld [vmem:[#allocation2 + $0x408] sm:$0xff]
    %v274 = vld [vmem:[#allocation2 + $0x410] sm:$0xff]
    %v275 = vld [vmem:[#allocation2 + $0x418] sm:$0xff]
    %v276 = vld [vmem:[#allocation2 + $0x420] sm:$0xff]
    %v277 = vld [vmem:[#allocation2 + $0x428] sm:$0xff]
    %v278 = vld [vmem:[#allocation2 + $0x430] sm:$0xff]
    %v279 = vld [vmem:[#allocation2 + $0x438] sm:$0xff]
    %v280 = vld [vmem:[#allocation2 + $0x440] sm:$0xff]
    %v281 = vld [vmem:[#allocation2 + $0x448] sm:$0xff]
    %v282 = vld [vmem:[#allocation2 + $0x450] sm:$0xff]
    %v283 = vld [vmem:[#allocation2 + $0x458] sm:$0xff]
    %v284 = vld [vmem:[#allocation2 + $0x460] sm:$0xff]
    %v285 = vld [vmem:[#allocation2 + $0x468] sm:$0xff]
    %v286 = vld [vmem:[#allocation2 + $0x470] sm:$0xff]
    %v287 = vld [vmem:[#allocation2 + $0x478] sm:$0xff]
    %v288 = vld [vmem:[#allocation2 + $0x480] sm:$0xff]
    %v289 = vld [vmem:[#allocation2 + $0x488] sm:$0xff]
    %v290 = vld [vmem:[#allocation2 + $0x490] sm:$0xff]
    %v291 = vld [vmem:[#allocation2 + $0x498] sm:$0xff]
    %v292 = vld [vmem:[#allocation2 + $0x4a0] sm:$0xff]
    %v293 = vld [vmem:[#allocation2 + $0x4a8] sm:$0xff]
    %v294 = vld [vmem:[#allocation2 + $0x4b0] sm:$0xff]
    %v295 = vld [vmem:[#allocation2 + $0x4b8] sm:$0xff]
    %v296 = vld [vmem:[#allocation2 + $0x4c0] sm:$0xff]
    %v297 = vld [vmem:[#allocation2 + $0x4c8] sm:$0xff]
    %v298 = vld [vmem:[#allocation2 + $0x4d0] sm:$0xff]
    %v299 = vld [vmem:[#allocation2 + $0x4d8] sm:$0xff]
    %v300 = vld [vmem:[#allocation2 + $0x4e0] sm:$0xff]
    %v301 = vld [vmem:[#allocation2 + $0x4e8] sm:$0xff]
    %v302 = vld [vmem:[#allocation2 + $0x4f0] sm:$0xff]
    %v303 = vld [vmem:[#allocation2 + $0x4f8] sm:$0xff]
    %v304 = vld [vmem:[#allocation2 + $0x500] sm:$0xff]
    %v305 = vld [vmem:[#allocation2 + $0x508] sm:$0xff]
    %v306 = vld [vmem:[#allocation2 + $0x510] sm:$0xff]
    %v307 = vld [vmem:[#allocation2 + $0x518] sm:$0xff]
    %v308 = vld [vmem:[#allocation2 + $0x520] sm:$0xff]
    %v309 = vld [vmem:[#allocation2 + $0x528] sm:$0xff]
    %v310 = vld [vmem:[#allocation2 + $0x530] sm:$0xff]
    %v311 = vld [vmem:[#allocation2 + $0x538] sm:$0xff]
    %v312 = vld [vmem:[#allocation2 + $0x540] sm:$0xff]
    %v313 = vld [vmem:[#allocation2 + $0x548] sm:$0xff]
    %v314 = vld [vmem:[#allocation2 + $0x550] sm:$0xff]
    %v315 = vld [vmem:[#allocation2 + $0x558] sm:$0xff]
    %v316 = vld [vmem:[#allocation2 + $0x560] sm:$0xff]
    %v317 = vld [vmem:[#allocation2 + $0x568] sm:$0xff]
    %v318 = vld [vmem:[#allocation2 + $0x570] sm:$0xff]
    %v319 = vld [vmem:[#allocation2 + $0x578] sm:$0xff]
    %v320 = vld [vmem:[#allocation2 + $0x580] sm:$0xff]
    %v321 = vld [vmem:[#allocation2 + $0x588] sm:$0xff]
    %v322 = vld [vmem:[#allocation2 + $0x590] sm:$0xff]
    %v323 = vld [vmem:[#allocation2 + $0x598] sm:$0xff]
    %v324 = vld [vmem:[#allocation2 + $0x5a0] sm:$0xff]
    %v325 = vld [vmem:[#allocation2 + $0x5a8] sm:$0xff]
    %v326 = vld [vmem:[#allocation2 + $0x5b0] sm:$0xff]
    %v327 = vld [vmem:[#allocation2 + $0x5b8] sm:$0xff]
    %v328 = vld [vmem:[#allocation2 + $0x5c0] sm:$0xff]
    %v329 = vld [vmem:[#allocation2 + $0x5c8] sm:$0xff]
    %v330 = vld [vmem:[#allocation2 + $0x5d0] sm:$0xff]
    %v331 = vld [vmem:[#allocation2 + $0x5d8] sm:$0xff]
    %v332 = vld [vmem:[#allocation2 + $0x5e0] sm:$0xff]
    %v333 = vld [vmem:[#allocation2 + $0x5e8] sm:$0xff]
    %v334 = vld [vmem:[#allocation2 + $0x5f0] sm:$0xff]
    %v335 = vld [vmem:[#allocation2 + $0x5f8] sm:$0xff]
    %v336 = vld [vmem:[#allocation2 + $0x600] sm:$0xff]
    %v337 = vld [vmem:[#allocation2 + $0x608] sm:$0xff]
    %v338 = vld [vmem:[#allocation2 + $0x610] sm:$0xff]
    %v339 = vld [vmem:[#allocation2 + $0x618] sm:$0xff]
    %v340 = vld [vmem:[#allocation2 + $0x620] sm:$0xff]
    %v341 = vld [vmem:[#allocation2 + $0x628] sm:$0xff]
    %v342 = vld [vmem:[#allocation2 + $0x630] sm:$0xff]
    %v343 = vld [vmem:[#allocation2 + $0x638] sm:$0xff]
    %v344 = vld [vmem:[#allocation2 + $0x640] sm:$0xff]
    %v345 = vld [vmem:[#allocation2 + $0x648] sm:$0xff]
    %v346 = vld [vmem:[#allocation2 + $0x650] sm:$0xff]
    %v347 = vld [vmem:[#allocation2 + $0x658] sm:$0xff]
    %v348 = vld [vmem:[#allocation2 + $0x660] sm:$0xff]
    %v349 = vld [vmem:[#allocation2 + $0x668] sm:$0xff]
    %v350 = vld [vmem:[#allocation2 + $0x670] sm:$0xff]
    %v351 = vld [vmem:[#allocation2 + $0x678] sm:$0xff]
    %v352 = vld [vmem:[#allocation2 + $0x680] sm:$0xff]
    %v353 = vld [vmem:[#allocation2 + $0x688] sm:$0xff]
    %v354 = vld [vmem:[#allocation2 + $0x690] sm:$0xff]
    %v355 = vld [vmem:[#allocation2 + $0x698] sm:$0xff]
    %v356 = vld [vmem:[#allocation2 + $0x6a0] sm:$0xff]
    %v357 = vld [vmem:[#allocation2 + $0x6a8] sm:$0xff]
    %v358 = vld [vmem:[#allocation2 + $0x6b0] sm:$0xff]
    %v359 = vld [vmem:[#allocation2 + $0x6b8] sm:$0xff]
    %v360 = vld [vmem:[#allocation2 + $0x6c0] sm:$0xff]
    %v361 = vld [vmem:[#allocation2 + $0x6c8] sm:$0xff]
    %v362 = vld [vmem:[#allocation2 + $0x6d0] sm:$0xff]
    %v363 = vld [vmem:[#allocation2 + $0x6d8] sm:$0xff]
    %v364 = vld [vmem:[#allocation2 + $0x6e0] sm:$0xff]
    %v365 = vld [vmem:[#allocation2 + $0x6e8] sm:$0xff]
    %v366 = vld [vmem:[#allocation2 + $0x6f0] sm:$0xff]
    %v367 = vld [vmem:[#allocation2 + $0x6f8] sm:$0xff]
    %v368 = vld [vmem:[#allocation2 + $0x700] sm:$0xff]
    %v369 = vld [vmem:[#allocation2 + $0x708] sm:$0xff]
    %v370 = vld [vmem:[#allocation2 + $0x710] sm:$0xff]
    %v371 = vld [vmem:[#allocation2 + $0x718] sm:$0xff]
    %v372 = vld [vmem:[#allocation2 + $0x720] sm:$0xff]
    %v373 = vld [vmem:[#allocation2 + $0x728] sm:$0xff]
    %v374 = vld [vmem:[#allocation2 + $0x730] sm:$0xff]
    %v375 = vld [vmem:[#allocation2 + $0x738] sm:$0xff]
    %v376 = vld [vmem:[#allocation2 + $0x740] sm:$0xff]
    %v377 = vld [vmem:[#allocation2 + $0x748] sm:$0xff]
    %v378 = vld [vmem:[#allocation2 + $0x750] sm:$0xff]
    %v379 = vld [vmem:[#allocation2 + $0x758] sm:$0xff]
    %v380 = vld [vmem:[#allocation2 + $0x760] sm:$0xff]
    %v381 = vld [vmem:[#allocation2 + $0x768] sm:$0xff]
    %v382 = vld [vmem:[#allocation2 + $0x770] sm:$0xff]
    %v383 = vld [vmem:[#allocation2 + $0x778] sm:$0xff]
    %v384 = vld [vmem:[#allocation2 + $0x780] sm:$0xff]
    %v385 = vld [vmem:[#allocation2 + $0x788] sm:$0xff]
    %v386 = vld [vmem:[#allocation2 + $0x790] sm:$0xff]
    %v387 = vld [vmem:[#allocation2 + $0x798] sm:$0xff]
    %v388 = vld [vmem:[#allocation2 + $0x7a0] sm:$0xff]
    %v389 = vld [vmem:[#allocation2 + $0x7a8] sm:$0xff]
    %v390 = vld [vmem:[#allocation2 + $0x7b0] sm:$0xff]
    %v391 = vld [vmem:[#allocation2 + $0x7b8] sm:$0xff]
    %v392 = vld [vmem:[#allocation2 + $0x7c0] sm:$0xff]
    %v393 = vld [vmem:[#allocation2 + $0x7c8] sm:$0xff]
    %v394 = vld [vmem:[#allocation2 + $0x7d0] sm:$0xff]
    %v395 = vld [vmem:[#allocation2 + $0x7d8] sm:$0xff]
    %v396 = vld [vmem:[#allocation2 + $0x7e0] sm:$0xff]
    %v397 = vld [vmem:[#allocation2 + $0x7e8] sm:$0xff]
    %v398 = vld [vmem:[#allocation2 + $0x7f0] sm:$0xff]
    %v399 = vld [vmem:[#allocation2 + $0x7f8] sm:$0xff]
    %v400 = vld [vmem:[#allocation2 + $0x800] sm:$0xff]
    %v401 = vld [vmem:[#allocation2 + $0x808] sm:$0xff]
    %v402 = vld [vmem:[#allocation2 + $0x810] sm:$0xff]
    %v403 = vld [vmem:[#allocation2 + $0x818] sm:$0xff]
    %v404 = vld [vmem:[#allocation2 + $0x820] sm:$0xff]
    %v405 = vld [vmem:[#allocation2 + $0x828] sm:$0xff]
    %v406 = vld [vmem:[#allocation2 + $0x830] sm:$0xff]
    %v407 = vld [vmem:[#allocation2 + $0x838] sm:$0xff]
    %v408 = vld [vmem:[#allocation2 + $0x840] sm:$0xff]
    %v409 = vld [vmem:[#allocation2 + $0x848] sm:$0xff]
    %v410 = vld [vmem:[#allocation2 + $0x850] sm:$0xff]
    %v411 = vld [vmem:[#allocation2 + $0x858] sm:$0xff]
    %v412 = vld [vmem:[#allocation2 + $0x860] sm:$0xff]
    %v413 = vld [vmem:[#allocation2 + $0x868] sm:$0xff]
    %v414 = vld [vmem:[#allocation2 + $0x870] sm:$0xff]
    %v415 = vld [vmem:[#allocation2 + $0x878] sm:$0xff]
    %v416 = vld [vmem:[#allocation2 + $0x880] sm:$0xff]
    %v417 = vld [vmem:[#allocation2 + $0x888] sm:$0xff]
    %v418 = vld [vmem:[#allocation2 + $0x890] sm:$0xff]
    %v419 = vld [vmem:[#allocation2 + $0x898] sm:$0xff]
    %v420 = vld [vmem:[#allocation2 + $0x8a0] sm:$0xff]
    %v421 = vld [vmem:[#allocation2 + $0x8a8] sm:$0xff]
    %v422 = vld [vmem:[#allocation2 + $0x8b0] sm:$0xff]
    %v423 = vld [vmem:[#allocation2 + $0x8b8] sm:$0xff]
    %v424 = vld [vmem:[#allocation2 + $0x8c0] sm:$0xff]
    %v425 = vld [vmem:[#allocation2 + $0x8c8] sm:$0xff]
    %v426 = vld [vmem:[#allocation2 + $0x8d0] sm:$0xff]
    %v427 = vld [vmem:[#allocation2 + $0x8d8] sm:$0xff]
    %v428 = vld [vmem:[#allocation2 + $0x8e0] sm:$0xff]
    %v429 = vld [vmem:[#allocation2 + $0x8e8] sm:$0xff]
    %v430 = vld [vmem:[#allocation2 + $0x8f0] sm:$0xff]
    %v431 = vld [vmem:[#allocation2 + $0x8f8] sm:$0xff]
    %v432 = vld [vmem:[#allocation2 + $0x900] sm:$0xff]
    %v433 = vld [vmem:[#allocation2 + $0x908] sm:$0xff]
    %v434 = vld [vmem:[#allocation2 + $0x910] sm:$0xff]
    %v435 = vld [vmem:[#allocation2 + $0x918] sm:$0xff]
    %v436 = vld [vmem:[#allocation2 + $0x920] sm:$0xff]
    %v437 = vld [vmem:[#allocation2 + $0x928] sm:$0xff]
    %v438 = vld [vmem:[#allocation2 + $0x930] sm:$0xff]
    %v439 = vld [vmem:[#allocation2 + $0x938] sm:$0xff]
    %v440 = vld [vmem:[#allocation2 + $0x940] sm:$0xff]
    %v441 = vld [vmem:[#allocation2 + $0x948] sm:$0xff]
    %v442 = vld [vmem:[#allocation2 + $0x950] sm:$0xff]
    %v443 = vld [vmem:[#allocation2 + $0x958] sm:$0xff]
    %v444 = vld [vmem:[#allocation2 + $0x960] sm:$0xff]
    %v445 = vld [vmem:[#allocation2 + $0x968] sm:$0xff]
    %v446 = vld [vmem:[#allocation2 + $0x970] sm:$0xff]
    %v447 = vld [vmem:[#allocation2 + $0x978] sm:$0xff]
    %v448 = vld [vmem:[#allocation2 + $0x980] sm:$0xff]
    %v449 = vld [vmem:[#allocation2 + $0x988] sm:$0xff]
    %v450 = vld [vmem:[#allocation2 + $0x990] sm:$0xff]
    %v451 = vld [vmem:[#allocation2 + $0x998] sm:$0xff]
    %v452 = vld [vmem:[#allocation2 + $0x9a0] sm:$0xff]
    %v453 = vld [vmem:[#allocation2 + $0x9a8] sm:$0xff]
    %v454 = vld [vmem:[#allocation2 + $0x9b0] sm:$0xff]
    %v455 = vld [vmem:[#allocation2 + $0x9b8] sm:$0xff]
    %v456 = vld [vmem:[#allocation2 + $0x9c0] sm:$0xff]
    %v457 = vld [vmem:[#allocation2 + $0x9c8] sm:$0xff]
    %v458 = vld [vmem:[#allocation2 + $0x9d0] sm:$0xff]
    %v459 = vld [vmem:[#allocation2 + $0x9d8] sm:$0xff]
    %v460 = vld [vmem:[#allocation2 + $0x9e0] sm:$0xff]
    %v461 = vld [vmem:[#allocation2 + $0x9e8] sm:$0xff]
    %v462 = vld [vmem:[#allocation2 + $0x9f0] sm:$0xff]
    %v463 = vld [vmem:[#allocation2 + $0x9f8] sm:$0xff]
    %v464 = vld [vmem:[#allocation4] sm:$0xff]
    %v466 = vlaneseq
    %v467 = vshrl.u32 %v466, 7
    %v468 = vsub.s32 0, %v467
    %v469 = vrot.slane %v464, %v468
    %v470 = vlaneseq
    %v471 = vshrl.u32 %v470, 7
    %v472 = vsub.s32 1, %v471
    %v473 = vrot.slane %v464, %v472
    %v474 = vlaneseq
    %v475 = vshrl.u32 %v474, 7
    %v476 = vsub.s32 2, %v475
    %v477 = vrot.slane %v464, %v476
    %v478 = vlaneseq
    %v479 = vshrl.u32 %v478, 7
    %v480 = vsub.s32 3, %v479
    %v481 = vrot.slane %v464, %v480
    %v482 = vlaneseq
    %v483 = vshrl.u32 %v482, 7
    %v484 = vsub.s32 4, %v483
    %v485 = vrot.slane %v464, %v484
    %v486 = vlaneseq
    %v487 = vshrl.u32 %v486, 7
    %v488 = vsub.s32 5, %v487
    %v489 = vrot.slane %v464, %v488
    %v490 = vlaneseq
    %v491 = vshrl.u32 %v490, 7
    %v492 = vsub.s32 6, %v491
    %v493 = vrot.slane %v464, %v492
    %v494 = vlaneseq
    %v495 = vshrl.u32 %v494, 7
    %v496 = vsub.s32 7, %v495
    %v497 = vrot.slane %v464, %v496
    %v826 = vunpack.c.l.b16 %v144
    %v827 = vunpack.c.h.b16 %v144
    %v828 = vunpack.c.l.b16 %v145
    %v829 = vunpack.c.h.b16 %v145
    %v830 = vunpack.c.l.b16 %v146
    %v831 = vunpack.c.h.b16 %v146
    %v832 = vunpack.c.l.b16 %v147
    %v833 = vunpack.c.h.b16 %v147
    %v834 = vunpack.c.l.b16 %v148
    %v835 = vunpack.c.h.b16 %v148
    %v836 = vunpack.c.l.b16 %v149
    %v837 = vunpack.c.h.b16 %v149
    %v838 = vunpack.c.l.b16 %v150
    %v839 = vunpack.c.h.b16 %v150
    %v840 = vunpack.c.l.b16 %v151
    %v841 = vunpack.c.h.b16 %v151
    %v842 = vunpack.c.l.b16 %v152
    %v843 = vunpack.c.h.b16 %v152
    %v844 = vunpack.c.l.b16 %v153
    %v845 = vunpack.c.h.b16 %v153
    %v846 = vunpack.c.l.b16 %v154
    %v847 = vunpack.c.h.b16 %v154
    %v848 = vunpack.c.l.b16 %v155
    %v849 = vunpack.c.h.b16 %v155
    %v850 = vunpack.c.l.b16 %v156
    %v851 = vunpack.c.h.b16 %v156
    %v852 = vunpack.c.l.b16 %v157
    %v853 = vunpack.c.h.b16 %v157
    %v854 = vunpack.c.l.b16 %v158
    %v855 = vunpack.c.h.b16 %v158
    %v856 = vunpack.c.l.b16 %v159
    %v857 = vunpack.c.h.b16 %v159
    %v858 = vunpack.c.l.b16 %v160
    %v859 = vunpack.c.h.b16 %v160
    %v860 = vunpack.c.l.b16 %v161
    %v861 = vunpack.c.h.b16 %v161
    %v862 = vunpack.c.l.b16 %v162
    %v863 = vunpack.c.h.b16 %v162
    %v864 = vunpack.c.l.b16 %v163
    %v865 = vunpack.c.h.b16 %v163
    %v866 = vunpack.c.l.b16 %v164
    %v867 = vunpack.c.h.b16 %v164
    %v868 = vunpack.c.l.b16 %v165
    %v869 = vunpack.c.h.b16 %v165
    %v870 = vunpack.c.l.b16 %v166
    %v871 = vunpack.c.h.b16 %v166
    %v872 = vunpack.c.l.b16 %v167
    %v873 = vunpack.c.h.b16 %v167
    %v874 = vunpack.c.l.b16 %v168
    %v875 = vunpack.c.h.b16 %v168
    %v876 = vunpack.c.l.b16 %v169
    %v877 = vunpack.c.h.b16 %v169
    %v878 = vunpack.c.l.b16 %v170
    %v879 = vunpack.c.h.b16 %v170
    %v880 = vunpack.c.l.b16 %v171
    %v881 = vunpack.c.h.b16 %v171
    %v882 = vunpack.c.l.b16 %v172
    %v883 = vunpack.c.h.b16 %v172
    %v884 = vunpack.c.l.b16 %v173
    %v885 = vunpack.c.h.b16 %v173
    %v886 = vunpack.c.l.b16 %v174
    %v887 = vunpack.c.h.b16 %v174
    %v888 = vunpack.c.l.b16 %v175
    %v889 = vunpack.c.h.b16 %v175
    %v890 = vunpack.c.l.b16 %v176
    %v891 = vunpack.c.h.b16 %v176
    %v892 = vunpack.c.l.b16 %v177
    %v893 = vunpack.c.h.b16 %v177
    %v894 = vunpack.c.l.b16 %v178
    %v895 = vunpack.c.h.b16 %v178
    %v896 = vunpack.c.l.b16 %v179
    %v897 = vunpack.c.h.b16 %v179
    %v898 = vunpack.c.l.b16 %v180
    %v899 = vunpack.c.h.b16 %v180
    %v900 = vunpack.c.l.b16 %v181
    %v901 = vunpack.c.h.b16 %v181
    %v902 = vunpack.c.l.b16 %v182
    %v903 = vunpack.c.h.b16 %v182
    %v904 = vunpack.c.l.b16 %v183
    %v905 = vunpack.c.h.b16 %v183
    %v906 = vunpack.c.l.b16 %v184
    %v907 = vunpack.c.h.b16 %v184
    %v908 = vunpack.c.l.b16 %v185
    %v909 = vunpack.c.h.b16 %v185
    %v910 = vunpack.c.l.b16 %v186
    %v911 = vunpack.c.h.b16 %v186
    %v912 = vunpack.c.l.b16 %v187
    %v913 = vunpack.c.h.b16 %v187
    %v914 = vunpack.c.l.b16 %v188
    %v915 = vunpack.c.h.b16 %v188
    %v916 = vunpack.c.l.b16 %v189
    %v917 = vunpack.c.h.b16 %v189
    %v918 = vunpack.c.l.b16 %v190
    %v919 = vunpack.c.h.b16 %v190
    %v920 = vunpack.c.l.b16 %v191
    %v921 = vunpack.c.h.b16 %v191
    %v922 = vunpack.c.l.b16 %v192
    %v923 = vunpack.c.h.b16 %v192
    %v924 = vunpack.c.l.b16 %v193
    %v925 = vunpack.c.h.b16 %v193
    %v926 = vunpack.c.l.b16 %v194
    %v927 = vunpack.c.h.b16 %v194
    %v928 = vunpack.c.l.b16 %v195
    %v929 = vunpack.c.h.b16 %v195
    %v930 = vunpack.c.l.b16 %v196
    %v931 = vunpack.c.h.b16 %v196
    %v932 = vunpack.c.l.b16 %v197
    %v933 = vunpack.c.h.b16 %v197
    %v934 = vunpack.c.l.b16 %v198
    %v935 = vunpack.c.h.b16 %v198
    %v936 = vunpack.c.l.b16 %v199
    %v937 = vunpack.c.h.b16 %v199
    %v938 = vunpack.c.l.b16 %v200
    %v939 = vunpack.c.h.b16 %v200
    %v940 = vunpack.c.l.b16 %v201
    %v941 = vunpack.c.h.b16 %v201
    %v942 = vunpack.c.l.b16 %v202
    %v943 = vunpack.c.h.b16 %v202
    %v944 = vunpack.c.l.b16 %v203
    %v945 = vunpack.c.h.b16 %v203
    %v946 = vunpack.c.l.b16 %v204
    %v947 = vunpack.c.h.b16 %v204
    %v948 = vunpack.c.l.b16 %v205
    %v949 = vunpack.c.h.b16 %v205
    %v950 = vunpack.c.l.b16 %v206
    %v951 = vunpack.c.h.b16 %v206
    %v952 = vunpack.c.l.b16 %v207
    %v953 = vunpack.c.h.b16 %v207
    %v954 = vunpack.c.l.b16 %v208
    %v955 = vunpack.c.h.b16 %v208
    %v956 = vunpack.c.l.b16 %v209
    %v957 = vunpack.c.h.b16 %v209
    %v958 = vunpack.c.l.b16 %v210
    %v959 = vunpack.c.h.b16 %v210
    %v960 = vunpack.c.l.b16 %v211
    %v961 = vunpack.c.h.b16 %v211
    %v962 = vunpack.c.l.b16 %v212
    %v963 = vunpack.c.h.b16 %v212
    %v964 = vunpack.c.l.b16 %v213
    %v965 = vunpack.c.h.b16 %v213
    %v966 = vunpack.c.l.b16 %v214
    %v967 = vunpack.c.h.b16 %v214
    %v968 = vunpack.c.l.b16 %v215
    %v969 = vunpack.c.h.b16 %v215
    %v970 = vunpack.c.l.b16 %v216
    %v971 = vunpack.c.h.b16 %v216
    %v972 = vunpack.c.l.b16 %v217
    %v973 = vunpack.c.h.b16 %v217
    %v974 = vunpack.c.l.b16 %v218
    %v975 = vunpack.c.h.b16 %v218
    %v976 = vunpack.c.l.b16 %v219
    %v977 = vunpack.c.h.b16 %v219
    %v978 = vunpack.c.l.b16 %v220
    %v979 = vunpack.c.h.b16 %v220
    %v980 = vunpack.c.l.b16 %v221
    %v981 = vunpack.c.h.b16 %v221
    %v982 = vunpack.c.l.b16 %v222
    %v983 = vunpack.c.h.b16 %v222
    %v984 = vunpack.c.l.b16 %v223
    %v985 = vunpack.c.h.b16 %v223
    %v986 = vunpack.c.l.b16 %v224
    %v987 = vunpack.c.h.b16 %v224
    %v988 = vunpack.c.l.b16 %v225
    %v989 = vunpack.c.h.b16 %v225
    %v990 = vunpack.c.l.b16 %v226
    %v991 = vunpack.c.h.b16 %v226
    %v992 = vunpack.c.l.b16 %v227
    %v993 = vunpack.c.h.b16 %v227
    %v994 = vunpack.c.l.b16 %v228
    %v995 = vunpack.c.h.b16 %v228
    %v996 = vunpack.c.l.b16 %v229
    %v997 = vunpack.c.h.b16 %v229
    %v998 = vunpack.c.l.b16 %v230
    %v999 = vunpack.c.h.b16 %v230
    %v1000 = vunpack.c.l.b16 %v231
    %v1001 = vunpack.c.h.b16 %v231
    %v1002 = vunpack.c.l.b16 %v232
    %v1003 = vunpack.c.h.b16 %v232
    %v1004 = vunpack.c.l.b16 %v233
    %v1005 = vunpack.c.h.b16 %v233
    %v1006 = vunpack.c.l.b16 %v234
    %v1007 = vunpack.c.h.b16 %v234
    %v1008 = vunpack.c.l.b16 %v235
    %v1009 = vunpack.c.h.b16 %v235
    %v1010 = vunpack.c.l.b16 %v236
    %v1011 = vunpack.c.h.b16 %v236
    %v1012 = vunpack.c.l.b16 %v237
    %v1013 = vunpack.c.h.b16 %v237
    %v1014 = vunpack.c.l.b16 %v238
    %v1015 = vunpack.c.h.b16 %v238
    %v1016 = vunpack.c.l.b16 %v239
    %v1017 = vunpack.c.h.b16 %v239
    %v1018 = vunpack.c.l.b16 %v240
    %v1019 = vunpack.c.h.b16 %v240
    %v1020 = vunpack.c.l.b16 %v241
    %v1021 = vunpack.c.h.b16 %v241
    %v1022 = vunpack.c.l.b16 %v242
    %v1023 = vunpack.c.h.b16 %v242
    %v1024 = vunpack.c.l.b16 %v243
    %v1025 = vunpack.c.h.b16 %v243
    %v1026 = vunpack.c.l.b16 %v244
    %v1027 = vunpack.c.h.b16 %v244
    %v1028 = vunpack.c.l.b16 %v245
    %v1029 = vunpack.c.h.b16 %v245
    %v1030 = vunpack.c.l.b16 %v246
    %v1031 = vunpack.c.h.b16 %v246
    %v1032 = vunpack.c.l.b16 %v247
    %v1033 = vunpack.c.h.b16 %v247
    %v1034 = vunpack.c.l.b16 %v248
    %v1035 = vunpack.c.h.b16 %v248
    %v1036 = vunpack.c.l.b16 %v249
    %v1037 = vunpack.c.h.b16 %v249
    %v1038 = vunpack.c.l.b16 %v250
    %v1039 = vunpack.c.h.b16 %v250
    %v1040 = vunpack.c.l.b16 %v251
    %v1041 = vunpack.c.h.b16 %v251
    %v1042 = vunpack.c.l.b16 %v252
    %v1043 = vunpack.c.h.b16 %v252
    %v1044 = vunpack.c.l.b16 %v253
    %v1045 = vunpack.c.h.b16 %v253
    %v1046 = vunpack.c.l.b16 %v254
    %v1047 = vunpack.c.h.b16 %v254
    %v1048 = vunpack.c.l.b16 %v255
    %v1049 = vunpack.c.h.b16 %v255
    %v1050 = vunpack.c.l.b16 %v256
    %v1051 = vunpack.c.h.b16 %v256
    %v1052 = vunpack.c.l.b16 %v257
    %v1053 = vunpack.c.h.b16 %v257
    %v1054 = vunpack.c.l.b16 %v258
    %v1055 = vunpack.c.h.b16 %v258
    %v1056 = vunpack.c.l.b16 %v259
    %v1057 = vunpack.c.h.b16 %v259
    %v1058 = vunpack.c.l.b16 %v260
    %v1059 = vunpack.c.h.b16 %v260
    %v1060 = vunpack.c.l.b16 %v261
    %v1061 = vunpack.c.h.b16 %v261
    %v1062 = vunpack.c.l.b16 %v262
    %v1063 = vunpack.c.h.b16 %v262
    %v1064 = vunpack.c.l.b16 %v263
    %v1065 = vunpack.c.h.b16 %v263
    %v1066 = vunpack.c.l.b16 %v264
    %v1067 = vunpack.c.h.b16 %v264
    %v1068 = vunpack.c.l.b16 %v265
    %v1069 = vunpack.c.h.b16 %v265
    %v1070 = vunpack.c.l.b16 %v266
    %v1071 = vunpack.c.h.b16 %v266
    %v1072 = vunpack.c.l.b16 %v267
    %v1073 = vunpack.c.h.b16 %v267
    %v1074 = vunpack.c.l.b16 %v268
    %v1075 = vunpack.c.h.b16 %v268
    %v1076 = vunpack.c.l.b16 %v269
    %v1077 = vunpack.c.h.b16 %v269
    %v1078 = vunpack.c.l.b16 %v270
    %v1079 = vunpack.c.h.b16 %v270
    %v1080 = vunpack.c.l.b16 %v271
    %v1081 = vunpack.c.h.b16 %v271
    %v1082 = vunpack.c.l.b16 %v272
    %v1083 = vunpack.c.h.b16 %v272
    %v1084 = vunpack.c.l.b16 %v273
    %v1085 = vunpack.c.h.b16 %v273
    %v1086 = vunpack.c.l.b16 %v274
    %v1087 = vunpack.c.h.b16 %v274
    %v1088 = vunpack.c.l.b16 %v275
    %v1089 = vunpack.c.h.b16 %v275
    %v1090 = vunpack.c.l.b16 %v276
    %v1091 = vunpack.c.h.b16 %v276
    %v1092 = vunpack.c.l.b16 %v277
    %v1093 = vunpack.c.h.b16 %v277
    %v1094 = vunpack.c.l.b16 %v278
    %v1095 = vunpack.c.h.b16 %v278
    %v1096 = vunpack.c.l.b16 %v279
    %v1097 = vunpack.c.h.b16 %v279
    %v1098 = vunpack.c.l.b16 %v280
    %v1099 = vunpack.c.h.b16 %v280
    %v1100 = vunpack.c.l.b16 %v281
    %v1101 = vunpack.c.h.b16 %v281
    %v1102 = vunpack.c.l.b16 %v282
    %v1103 = vunpack.c.h.b16 %v282
    %v1104 = vunpack.c.l.b16 %v283
    %v1105 = vunpack.c.h.b16 %v283
    %v1106 = vunpack.c.l.b16 %v284
    %v1107 = vunpack.c.h.b16 %v284
    %v1108 = vunpack.c.l.b16 %v285
    %v1109 = vunpack.c.h.b16 %v285
    %v1110 = vunpack.c.l.b16 %v286
    %v1111 = vunpack.c.h.b16 %v286
    %v1112 = vunpack.c.l.b16 %v287
    %v1113 = vunpack.c.h.b16 %v287
    %v1114 = vunpack.c.l.b16 %v288
    %v1115 = vunpack.c.h.b16 %v288
    %v1116 = vunpack.c.l.b16 %v289
    %v1117 = vunpack.c.h.b16 %v289
    %v1118 = vunpack.c.l.b16 %v290
    %v1119 = vunpack.c.h.b16 %v290
    %v1120 = vunpack.c.l.b16 %v291
    %v1121 = vunpack.c.h.b16 %v291
    %v1122 = vunpack.c.l.b16 %v292
    %v1123 = vunpack.c.h.b16 %v292
    %v1124 = vunpack.c.l.b16 %v293
    %v1125 = vunpack.c.h.b16 %v293
    %v1126 = vunpack.c.l.b16 %v294
    %v1127 = vunpack.c.h.b16 %v294
    %v1128 = vunpack.c.l.b16 %v295
    %v1129 = vunpack.c.h.b16 %v295
    %v1130 = vunpack.c.l.b16 %v296
    %v1131 = vunpack.c.h.b16 %v296
    %v1132 = vunpack.c.l.b16 %v297
    %v1133 = vunpack.c.h.b16 %v297
    %v1134 = vunpack.c.l.b16 %v298
    %v1135 = vunpack.c.h.b16 %v298
    %v1136 = vunpack.c.l.b16 %v299
    %v1137 = vunpack.c.h.b16 %v299
    %v1138 = vunpack.c.l.b16 %v300
    %v1139 = vunpack.c.h.b16 %v300
    %v1140 = vunpack.c.l.b16 %v301
    %v1141 = vunpack.c.h.b16 %v301
    %v1142 = vunpack.c.l.b16 %v302
    %v1143 = vunpack.c.h.b16 %v302
    %v1144 = vunpack.c.l.b16 %v303
    %v1145 = vunpack.c.h.b16 %v303
    %v1146 = vunpack.c.l.b16 %v304
    %v1147 = vunpack.c.h.b16 %v304
    %v1148 = vunpack.c.l.b16 %v305
    %v1149 = vunpack.c.h.b16 %v305
    %v1150 = vunpack.c.l.b16 %v306
    %v1151 = vunpack.c.h.b16 %v306
    %v1152 = vunpack.c.l.b16 %v307
    %v1153 = vunpack.c.h.b16 %v307
    %v1154 = vunpack.c.l.b16 %v308
    %v1155 = vunpack.c.h.b16 %v308
    %v1156 = vunpack.c.l.b16 %v309
    %v1157 = vunpack.c.h.b16 %v309
    %v1158 = vunpack.c.l.b16 %v310
    %v1159 = vunpack.c.h.b16 %v310
    %v1160 = vunpack.c.l.b16 %v311
    %v1161 = vunpack.c.h.b16 %v311
    %v1162 = vunpack.c.l.b16 %v312
    %v1163 = vunpack.c.h.b16 %v312
    %v1164 = vunpack.c.l.b16 %v313
    %v1165 = vunpack.c.h.b16 %v313
    %v1166 = vunpack.c.l.b16 %v314
    %v1167 = vunpack.c.h.b16 %v314
    %v1168 = vunpack.c.l.b16 %v315
    %v1169 = vunpack.c.h.b16 %v315
    %v1170 = vunpack.c.l.b16 %v316
    %v1171 = vunpack.c.h.b16 %v316
    %v1172 = vunpack.c.l.b16 %v317
    %v1173 = vunpack.c.h.b16 %v317
    %v1174 = vunpack.c.l.b16 %v318
    %v1175 = vunpack.c.h.b16 %v318
    %v1176 = vunpack.c.l.b16 %v319
    %v1177 = vunpack.c.h.b16 %v319
    %v1178 = vunpack.c.l.b16 %v320
    %v1179 = vunpack.c.h.b16 %v320
    %v1180 = vunpack.c.l.b16 %v321
    %v1181 = vunpack.c.h.b16 %v321
    %v1182 = vunpack.c.l.b16 %v322
    %v1183 = vunpack.c.h.b16 %v322
    %v1184 = vunpack.c.l.b16 %v323
    %v1185 = vunpack.c.h.b16 %v323
    %v1186 = vunpack.c.l.b16 %v324
    %v1187 = vunpack.c.h.b16 %v324
    %v1188 = vunpack.c.l.b16 %v325
    %v1189 = vunpack.c.h.b16 %v325
    %v1190 = vunpack.c.l.b16 %v326
    %v1191 = vunpack.c.h.b16 %v326
    %v1192 = vunpack.c.l.b16 %v327
    %v1193 = vunpack.c.h.b16 %v327
    %v1194 = vunpack.c.l.b16 %v328
    %v1195 = vunpack.c.h.b16 %v328
    %v1196 = vunpack.c.l.b16 %v329
    %v1197 = vunpack.c.h.b16 %v329
    %v1198 = vunpack.c.l.b16 %v330
    %v1199 = vunpack.c.h.b16 %v330
    %v1200 = vunpack.c.l.b16 %v331
    %v1201 = vunpack.c.h.b16 %v331
    %v1202 = vunpack.c.l.b16 %v332
    %v1203 = vunpack.c.h.b16 %v332
    %v1204 = vunpack.c.l.b16 %v333
    %v1205 = vunpack.c.h.b16 %v333
    %v1206 = vunpack.c.l.b16 %v334
    %v1207 = vunpack.c.h.b16 %v334
    %v1208 = vunpack.c.l.b16 %v335
    %v1209 = vunpack.c.h.b16 %v335
    %v1210 = vunpack.c.l.b16 %v336
    %v1211 = vunpack.c.h.b16 %v336
    %v1212 = vunpack.c.l.b16 %v337
    %v1213 = vunpack.c.h.b16 %v337
    %v1214 = vunpack.c.l.b16 %v338
    %v1215 = vunpack.c.h.b16 %v338
    %v1216 = vunpack.c.l.b16 %v339
    %v1217 = vunpack.c.h.b16 %v339
    %v1218 = vunpack.c.l.b16 %v340
    %v1219 = vunpack.c.h.b16 %v340
    %v1220 = vunpack.c.l.b16 %v341
    %v1221 = vunpack.c.h.b16 %v341
    %v1222 = vunpack.c.l.b16 %v342
    %v1223 = vunpack.c.h.b16 %v342
    %v1224 = vunpack.c.l.b16 %v343
    %v1225 = vunpack.c.h.b16 %v343
    %v1226 = vunpack.c.l.b16 %v344
    %v1227 = vunpack.c.h.b16 %v344
    %v1228 = vunpack.c.l.b16 %v345
    %v1229 = vunpack.c.h.b16 %v345
    %v1230 = vunpack.c.l.b16 %v346
    %v1231 = vunpack.c.h.b16 %v346
    %v1232 = vunpack.c.l.b16 %v347
    %v1233 = vunpack.c.h.b16 %v347
    %v1234 = vunpack.c.l.b16 %v348
    %v1235 = vunpack.c.h.b16 %v348
    %v1236 = vunpack.c.l.b16 %v349
    %v1237 = vunpack.c.h.b16 %v349
    %v1238 = vunpack.c.l.b16 %v350
    %v1239 = vunpack.c.h.b16 %v350
    %v1240 = vunpack.c.l.b16 %v351
    %v1241 = vunpack.c.h.b16 %v351
    %v1242 = vunpack.c.l.b16 %v352
    %v1243 = vunpack.c.h.b16 %v352
    %v1244 = vunpack.c.l.b16 %v353
    %v1245 = vunpack.c.h.b16 %v353
    %v1246 = vunpack.c.l.b16 %v354
    %v1247 = vunpack.c.h.b16 %v354
    %v1248 = vunpack.c.l.b16 %v355
    %v1249 = vunpack.c.h.b16 %v355
    %v1250 = vunpack.c.l.b16 %v356
    %v1251 = vunpack.c.h.b16 %v356
    %v1252 = vunpack.c.l.b16 %v357
    %v1253 = vunpack.c.h.b16 %v357
    %v1254 = vunpack.c.l.b16 %v358
    %v1255 = vunpack.c.h.b16 %v358
    %v1256 = vunpack.c.l.b16 %v359
    %v1257 = vunpack.c.h.b16 %v359
    %v1258 = vunpack.c.l.b16 %v360
    %v1259 = vunpack.c.h.b16 %v360
    %v1260 = vunpack.c.l.b16 %v361
    %v1261 = vunpack.c.h.b16 %v361
    %v1262 = vunpack.c.l.b16 %v362
    %v1263 = vunpack.c.h.b16 %v362
    %v1264 = vunpack.c.l.b16 %v363
    %v1265 = vunpack.c.h.b16 %v363
    %v1266 = vunpack.c.l.b16 %v364
    %v1267 = vunpack.c.h.b16 %v364
    %v1268 = vunpack.c.l.b16 %v365
    %v1269 = vunpack.c.h.b16 %v365
    %v1270 = vunpack.c.l.b16 %v366
    %v1271 = vunpack.c.h.b16 %v366
    %v1272 = vunpack.c.l.b16 %v367
    %v1273 = vunpack.c.h.b16 %v367
    %v1274 = vunpack.c.l.b16 %v368
    %v1275 = vunpack.c.h.b16 %v368
    %v1276 = vunpack.c.l.b16 %v369
    %v1277 = vunpack.c.h.b16 %v369
    %v1278 = vunpack.c.l.b16 %v370
    %v1279 = vunpack.c.h.b16 %v370
    %v1280 = vunpack.c.l.b16 %v371
    %v1281 = vunpack.c.h.b16 %v371
    %v1282 = vunpack.c.l.b16 %v372
    %v1283 = vunpack.c.h.b16 %v372
    %v1284 = vunpack.c.l.b16 %v373
    %v1285 = vunpack.c.h.b16 %v373
    %v1286 = vunpack.c.l.b16 %v374
    %v1287 = vunpack.c.h.b16 %v374
    %v1288 = vunpack.c.l.b16 %v375
    %v1289 = vunpack.c.h.b16 %v375
    %v1290 = vunpack.c.l.b16 %v376
    %v1291 = vunpack.c.h.b16 %v376
    %v1292 = vunpack.c.l.b16 %v377
    %v1293 = vunpack.c.h.b16 %v377
    %v1294 = vunpack.c.l.b16 %v378
    %v1295 = vunpack.c.h.b16 %v378
    %v1296 = vunpack.c.l.b16 %v379
    %v1297 = vunpack.c.h.b16 %v379
    %v1298 = vunpack.c.l.b16 %v380
    %v1299 = vunpack.c.h.b16 %v380
    %v1300 = vunpack.c.l.b16 %v381
    %v1301 = vunpack.c.h.b16 %v381
    %v1302 = vunpack.c.l.b16 %v382
    %v1303 = vunpack.c.h.b16 %v382
    %v1304 = vunpack.c.l.b16 %v383
    %v1305 = vunpack.c.h.b16 %v383
    %v1306 = vunpack.c.l.b16 %v384
    %v1307 = vunpack.c.h.b16 %v384
    %v1308 = vunpack.c.l.b16 %v385
    %v1309 = vunpack.c.h.b16 %v385
    %v1310 = vunpack.c.l.b16 %v386
    %v1311 = vunpack.c.h.b16 %v386
    %v1312 = vunpack.c.l.b16 %v387
    %v1313 = vunpack.c.h.b16 %v387
    %v1314 = vunpack.c.l.b16 %v388
    %v1315 = vunpack.c.h.b16 %v388
    %v1316 = vunpack.c.l.b16 %v389
    %v1317 = vunpack.c.h.b16 %v389
    %v1318 = vunpack.c.l.b16 %v390
    %v1319 = vunpack.c.h.b16 %v390
    %v1320 = vunpack.c.l.b16 %v391
    %v1321 = vunpack.c.h.b16 %v391
    %v1322 = vunpack.c.l.b16 %v392
    %v1323 = vunpack.c.h.b16 %v392
    %v1324 = vunpack.c.l.b16 %v393
    %v1325 = vunpack.c.h.b16 %v393
    %v1326 = vunpack.c.l.b16 %v394
    %v1327 = vunpack.c.h.b16 %v394
    %v1328 = vunpack.c.l.b16 %v395
    %v1329 = vunpack.c.h.b16 %v395
    %v1330 = vunpack.c.l.b16 %v396
    %v1331 = vunpack.c.h.b16 %v396
    %v1332 = vunpack.c.l.b16 %v397
    %v1333 = vunpack.c.h.b16 %v397
    %v1334 = vunpack.c.l.b16 %v398
    %v1335 = vunpack.c.h.b16 %v398
    %v1336 = vunpack.c.l.b16 %v399
    %v1337 = vunpack.c.h.b16 %v399
    %v1338 = vunpack.c.l.b16 %v400
    %v1339 = vunpack.c.h.b16 %v400
    %v1340 = vunpack.c.l.b16 %v401
    %v1341 = vunpack.c.h.b16 %v401
    %v1342 = vunpack.c.l.b16 %v402
    %v1343 = vunpack.c.h.b16 %v402
    %v1344 = vunpack.c.l.b16 %v403
    %v1345 = vunpack.c.h.b16 %v403
    %v1346 = vunpack.c.l.b16 %v404
    %v1347 = vunpack.c.h.b16 %v404
    %v1348 = vunpack.c.l.b16 %v405
    %v1349 = vunpack.c.h.b16 %v405
    %v1350 = vunpack.c.l.b16 %v406
    %v1351 = vunpack.c.h.b16 %v406
    %v1352 = vunpack.c.l.b16 %v407
    %v1353 = vunpack.c.h.b16 %v407
    %v1354 = vunpack.c.l.b16 %v408
    %v1355 = vunpack.c.h.b16 %v408
    %v1356 = vunpack.c.l.b16 %v409
    %v1357 = vunpack.c.h.b16 %v409
    %v1358 = vunpack.c.l.b16 %v410
    %v1359 = vunpack.c.h.b16 %v410
    %v1360 = vunpack.c.l.b16 %v411
    %v1361 = vunpack.c.h.b16 %v411
    %v1362 = vunpack.c.l.b16 %v412
    %v1363 = vunpack.c.h.b16 %v412
    %v1364 = vunpack.c.l.b16 %v413
    %v1365 = vunpack.c.h.b16 %v413
    %v1366 = vunpack.c.l.b16 %v414
    %v1367 = vunpack.c.h.b16 %v414
    %v1368 = vunpack.c.l.b16 %v415
    %v1369 = vunpack.c.h.b16 %v415
    %v1370 = vunpack.c.l.b16 %v416
    %v1371 = vunpack.c.h.b16 %v416
    %v1372 = vunpack.c.l.b16 %v417
    %v1373 = vunpack.c.h.b16 %v417
    %v1374 = vunpack.c.l.b16 %v418
    %v1375 = vunpack.c.h.b16 %v418
    %v1376 = vunpack.c.l.b16 %v419
    %v1377 = vunpack.c.h.b16 %v419
    %v1378 = vunpack.c.l.b16 %v420
    %v1379 = vunpack.c.h.b16 %v420
    %v1380 = vunpack.c.l.b16 %v421
    %v1381 = vunpack.c.h.b16 %v421
    %v1382 = vunpack.c.l.b16 %v422
    %v1383 = vunpack.c.h.b16 %v422
    %v1384 = vunpack.c.l.b16 %v423
    %v1385 = vunpack.c.h.b16 %v423
    %v1386 = vunpack.c.l.b16 %v424
    %v1387 = vunpack.c.h.b16 %v424
    %v1388 = vunpack.c.l.b16 %v425
    %v1389 = vunpack.c.h.b16 %v425
    %v1390 = vunpack.c.l.b16 %v426
    %v1391 = vunpack.c.h.b16 %v426
    %v1392 = vunpack.c.l.b16 %v427
    %v1393 = vunpack.c.h.b16 %v427
    %v1394 = vunpack.c.l.b16 %v428
    %v1395 = vunpack.c.h.b16 %v428
    %v1396 = vunpack.c.l.b16 %v429
    %v1397 = vunpack.c.h.b16 %v429
    %v1398 = vunpack.c.l.b16 %v430
    %v1399 = vunpack.c.h.b16 %v430
    %v1400 = vunpack.c.l.b16 %v431
    %v1401 = vunpack.c.h.b16 %v431
    %v1402 = vunpack.c.l.b16 %v432
    %v1403 = vunpack.c.h.b16 %v432
    %v1404 = vunpack.c.l.b16 %v433
    %v1405 = vunpack.c.h.b16 %v433
    %v1406 = vunpack.c.l.b16 %v434
    %v1407 = vunpack.c.h.b16 %v434
    %v1408 = vunpack.c.l.b16 %v435
    %v1409 = vunpack.c.h.b16 %v435
    %v1410 = vunpack.c.l.b16 %v436
    %v1411 = vunpack.c.h.b16 %v436
    %v1412 = vunpack.c.l.b16 %v437
    %v1413 = vunpack.c.h.b16 %v437
    %v1414 = vunpack.c.l.b16 %v438
    %v1415 = vunpack.c.h.b16 %v438
    %v1416 = vunpack.c.l.b16 %v439
    %v1417 = vunpack.c.h.b16 %v439
    %v1418 = vunpack.c.l.b16 %v440
    %v1419 = vunpack.c.h.b16 %v440
    %v1420 = vunpack.c.l.b16 %v441
    %v1421 = vunpack.c.h.b16 %v441
    %v1422 = vunpack.c.l.b16 %v442
    %v1423 = vunpack.c.h.b16 %v442
    %v1424 = vunpack.c.l.b16 %v443
    %v1425 = vunpack.c.h.b16 %v443
    %v1426 = vunpack.c.l.b16 %v444
    %v1427 = vunpack.c.h.b16 %v444
    %v1428 = vunpack.c.l.b16 %v445
    %v1429 = vunpack.c.h.b16 %v445
    %v1430 = vunpack.c.l.b16 %v446
    %v1431 = vunpack.c.h.b16 %v446
    %v1432 = vunpack.c.l.b16 %v447
    %v1433 = vunpack.c.h.b16 %v447
    %v1434 = vunpack.c.l.b16 %v448
    %v1435 = vunpack.c.h.b16 %v448
    %v1436 = vunpack.c.l.b16 %v449
    %v1437 = vunpack.c.h.b16 %v449
    %v1438 = vunpack.c.l.b16 %v450
    %v1439 = vunpack.c.h.b16 %v450
    %v1440 = vunpack.c.l.b16 %v451
    %v1441 = vunpack.c.h.b16 %v451
    %v1442 = vunpack.c.l.b16 %v452
    %v1443 = vunpack.c.h.b16 %v452
    %v1444 = vunpack.c.l.b16 %v453
    %v1445 = vunpack.c.h.b16 %v453
    %v1446 = vunpack.c.l.b16 %v454
    %v1447 = vunpack.c.h.b16 %v454
    %v1448 = vunpack.c.l.b16 %v455
    %v1449 = vunpack.c.h.b16 %v455
    %v1450 = vunpack.c.l.b16 %v456
    %v1451 = vunpack.c.h.b16 %v456
    %v1452 = vunpack.c.l.b16 %v457
    %v1453 = vunpack.c.h.b16 %v457
    %v1454 = vunpack.c.l.b16 %v458
    %v1455 = vunpack.c.h.b16 %v458
    %v1456 = vunpack.c.l.b16 %v459
    %v1457 = vunpack.c.h.b16 %v459
    %v1458 = vunpack.c.l.b16 %v460
    %v1459 = vunpack.c.h.b16 %v460
    %v1460 = vunpack.c.l.b16 %v461
    %v1461 = vunpack.c.h.b16 %v461
    %v1462 = vunpack.c.l.b16 %v462
    %v1463 = vunpack.c.h.b16 %v462
    %v1464 = vunpack.c.l.b16 %v463
    %v1465 = vunpack.c.h.b16 %v463
    %v1466 = vpack.c.b16 %v834, %v826
    %v1467 = vpack.c.b16 %v835, %v827
    %v1468 = vpack.c.b16 %v836, %v828
    %v1469 = vpack.c.b16 %v837, %v829
    %v1470 = vpack.c.b16 %v838, %v830
    %v1471 = vpack.c.b16 %v839, %v831
    %v1472 = vpack.c.b16 %v840, %v832
    %v1473 = vpack.c.b16 %v841, %v833
    %v1474 = vpack.c.b16 %v850, %v842
    %v1475 = vpack.c.b16 %v851, %v843
    %v1476 = vpack.c.b16 %v852, %v844
    %v1477 = vpack.c.b16 %v853, %v845
    %v1478 = vpack.c.b16 %v854, %v846
    %v1479 = vpack.c.b16 %v855, %v847
    %v1480 = vpack.c.b16 %v856, %v848
    %v1481 = vpack.c.b16 %v857, %v849
    %v1482 = vpack.c.b16 %v866, %v858
    %v1483 = vpack.c.b16 %v867, %v859
    %v1484 = vpack.c.b16 %v868, %v860
    %v1485 = vpack.c.b16 %v869, %v861
    %v1486 = vpack.c.b16 %v870, %v862
    %v1487 = vpack.c.b16 %v871, %v863
    %v1488 = vpack.c.b16 %v872, %v864
    %v1489 = vpack.c.b16 %v873, %v865
    %v1490 = vpack.c.b16 %v882, %v874
    %v1491 = vpack.c.b16 %v883, %v875
    %v1492 = vpack.c.b16 %v884, %v876
    %v1493 = vpack.c.b16 %v885, %v877
    %v1494 = vpack.c.b16 %v886, %v878
    %v1495 = vpack.c.b16 %v887, %v879
    %v1496 = vpack.c.b16 %v888, %v880
    %v1497 = vpack.c.b16 %v889, %v881
    %v1498 = vpack.c.b16 %v898, %v890
    %v1499 = vpack.c.b16 %v899, %v891
    %v1500 = vpack.c.b16 %v900, %v892
    %v1501 = vpack.c.b16 %v901, %v893
    %v1502 = vpack.c.b16 %v902, %v894
    %v1503 = vpack.c.b16 %v903, %v895
    %v1504 = vpack.c.b16 %v904, %v896
    %v1505 = vpack.c.b16 %v905, %v897
    %v1506 = vpack.c.b16 %v914, %v906
    %v1507 = vpack.c.b16 %v915, %v907
    %v1508 = vpack.c.b16 %v916, %v908
    %v1509 = vpack.c.b16 %v917, %v909
    %v1510 = vpack.c.b16 %v918, %v910
    %v1511 = vpack.c.b16 %v919, %v911
    %v1512 = vpack.c.b16 %v920, %v912
    %v1513 = vpack.c.b16 %v921, %v913
    %v1514 = vpack.c.b16 %v930, %v922
    %v1515 = vpack.c.b16 %v931, %v923
    %v1516 = vpack.c.b16 %v932, %v924
    %v1517 = vpack.c.b16 %v933, %v925
    %v1518 = vpack.c.b16 %v934, %v926
    %v1519 = vpack.c.b16 %v935, %v927
    %v1520 = vpack.c.b16 %v936, %v928
    %v1521 = vpack.c.b16 %v937, %v929
    %v1522 = vpack.c.b16 %v946, %v938
    %v1523 = vpack.c.b16 %v947, %v939
    %v1524 = vpack.c.b16 %v948, %v940
    %v1525 = vpack.c.b16 %v949, %v941
    %v1526 = vpack.c.b16 %v950, %v942
    %v1527 = vpack.c.b16 %v951, %v943
    %v1528 = vpack.c.b16 %v952, %v944
    %v1529 = vpack.c.b16 %v953, %v945
    %v1530 = vpack.c.b16 %v962, %v954
    %v1531 = vpack.c.b16 %v963, %v955
    %v1532 = vpack.c.b16 %v964, %v956
    %v1533 = vpack.c.b16 %v965, %v957
    %v1534 = vpack.c.b16 %v966, %v958
    %v1535 = vpack.c.b16 %v967, %v959
    %v1536 = vpack.c.b16 %v968, %v960
    %v1537 = vpack.c.b16 %v969, %v961
    %v1538 = vpack.c.b16 %v978, %v970
    %v1539 = vpack.c.b16 %v979, %v971
    %v1540 = vpack.c.b16 %v980, %v972
    %v1541 = vpack.c.b16 %v981, %v973
    %v1542 = vpack.c.b16 %v982, %v974
    %v1543 = vpack.c.b16 %v983, %v975
    %v1544 = vpack.c.b16 %v984, %v976
    %v1545 = vpack.c.b16 %v985, %v977
    %v1546 = vpack.c.b16 %v994, %v986
    %v1547 = vpack.c.b16 %v995, %v987
    %v1548 = vpack.c.b16 %v996, %v988
    %v1549 = vpack.c.b16 %v997, %v989
    %v1550 = vpack.c.b16 %v998, %v990
    %v1551 = vpack.c.b16 %v999, %v991
    %v1552 = vpack.c.b16 %v1000, %v992
    %v1553 = vpack.c.b16 %v1001, %v993
    %v1554 = vpack.c.b16 %v1010, %v1002
    %v1555 = vpack.c.b16 %v1011, %v1003
    %v1556 = vpack.c.b16 %v1012, %v1004
    %v1557 = vpack.c.b16 %v1013, %v1005
    %v1558 = vpack.c.b16 %v1014, %v1006
    %v1559 = vpack.c.b16 %v1015, %v1007
    %v1560 = vpack.c.b16 %v1016, %v1008
    %v1561 = vpack.c.b16 %v1017, %v1009
    %v1562 = vpack.c.b16 %v1026, %v1018
    %v1563 = vpack.c.b16 %v1027, %v1019
    %v1564 = vpack.c.b16 %v1028, %v1020
    %v1565 = vpack.c.b16 %v1029, %v1021
    %v1566 = vpack.c.b16 %v1030, %v1022
    %v1567 = vpack.c.b16 %v1031, %v1023
    %v1568 = vpack.c.b16 %v1032, %v1024
    %v1569 = vpack.c.b16 %v1033, %v1025
    %v1570 = vpack.c.b16 %v1042, %v1034
    %v1571 = vpack.c.b16 %v1043, %v1035
    %v1572 = vpack.c.b16 %v1044, %v1036
    %v1573 = vpack.c.b16 %v1045, %v1037
    %v1574 = vpack.c.b16 %v1046, %v1038
    %v1575 = vpack.c.b16 %v1047, %v1039
    %v1576 = vpack.c.b16 %v1048, %v1040
    %v1577 = vpack.c.b16 %v1049, %v1041
    %v1578 = vpack.c.b16 %v1058, %v1050
    %v1579 = vpack.c.b16 %v1059, %v1051
    %v1580 = vpack.c.b16 %v1060, %v1052
    %v1581 = vpack.c.b16 %v1061, %v1053
    %v1582 = vpack.c.b16 %v1062, %v1054
    %v1583 = vpack.c.b16 %v1063, %v1055
    %v1584 = vpack.c.b16 %v1064, %v1056
    %v1585 = vpack.c.b16 %v1065, %v1057
    %v1586 = vpack.c.b16 %v1074, %v1066
    %v1587 = vpack.c.b16 %v1075, %v1067
    %v1588 = vpack.c.b16 %v1076, %v1068
    %v1589 = vpack.c.b16 %v1077, %v1069
    %v1590 = vpack.c.b16 %v1078, %v1070
    %v1591 = vpack.c.b16 %v1079, %v1071
    %v1592 = vpack.c.b16 %v1080, %v1072
    %v1593 = vpack.c.b16 %v1081, %v1073
    %v1594 = vpack.c.b16 %v1090, %v1082
    %v1595 = vpack.c.b16 %v1091, %v1083
    %v1596 = vpack.c.b16 %v1092, %v1084
    %v1597 = vpack.c.b16 %v1093, %v1085
    %v1598 = vpack.c.b16 %v1094, %v1086
    %v1599 = vpack.c.b16 %v1095, %v1087
    %v1600 = vpack.c.b16 %v1096, %v1088
    %v1601 = vpack.c.b16 %v1097, %v1089
    %v1602 = vpack.c.b16 %v1106, %v1098
    %v1603 = vpack.c.b16 %v1107, %v1099
    %v1604 = vpack.c.b16 %v1108, %v1100
    %v1605 = vpack.c.b16 %v1109, %v1101
    %v1606 = vpack.c.b16 %v1110, %v1102
    %v1607 = vpack.c.b16 %v1111, %v1103
    %v1608 = vpack.c.b16 %v1112, %v1104
    %v1609 = vpack.c.b16 %v1113, %v1105
    %v1610 = vpack.c.b16 %v1122, %v1114
    %v1611 = vpack.c.b16 %v1123, %v1115
    %v1612 = vpack.c.b16 %v1124, %v1116
    %v1613 = vpack.c.b16 %v1125, %v1117
    %v1614 = vpack.c.b16 %v1126, %v1118
    %v1615 = vpack.c.b16 %v1127, %v1119
    %v1616 = vpack.c.b16 %v1128, %v1120
    %v1617 = vpack.c.b16 %v1129, %v1121
    %v1618 = vpack.c.b16 %v1138, %v1130
    %v1619 = vpack.c.b16 %v1139, %v1131
    %v1620 = vpack.c.b16 %v1140, %v1132
    %v1621 = vpack.c.b16 %v1141, %v1133
    %v1622 = vpack.c.b16 %v1142, %v1134
    %v1623 = vpack.c.b16 %v1143, %v1135
    %v1624 = vpack.c.b16 %v1144, %v1136
    %v1625 = vpack.c.b16 %v1145, %v1137
    %v1626 = vpack.c.b16 %v1154, %v1146
    %v1627 = vpack.c.b16 %v1155, %v1147
    %v1628 = vpack.c.b16 %v1156, %v1148
    %v1629 = vpack.c.b16 %v1157, %v1149
    %v1630 = vpack.c.b16 %v1158, %v1150
    %v1631 = vpack.c.b16 %v1159, %v1151
    %v1632 = vpack.c.b16 %v1160, %v1152
    %v1633 = vpack.c.b16 %v1161, %v1153
    %v1634 = vpack.c.b16 %v1170, %v1162
    %v1635 = vpack.c.b16 %v1171, %v1163
    %v1636 = vpack.c.b16 %v1172, %v1164
    %v1637 = vpack.c.b16 %v1173, %v1165
    %v1638 = vpack.c.b16 %v1174, %v1166
    %v1639 = vpack.c.b16 %v1175, %v1167
    %v1640 = vpack.c.b16 %v1176, %v1168
    %v1641 = vpack.c.b16 %v1177, %v1169
    %v1642 = vpack.c.b16 %v1186, %v1178
    %v1643 = vpack.c.b16 %v1187, %v1179
    %v1644 = vpack.c.b16 %v1188, %v1180
    %v1645 = vpack.c.b16 %v1189, %v1181
    %v1646 = vpack.c.b16 %v1190, %v1182
    %v1647 = vpack.c.b16 %v1191, %v1183
    %v1648 = vpack.c.b16 %v1192, %v1184
    %v1649 = vpack.c.b16 %v1193, %v1185
    %v1650 = vpack.c.b16 %v1202, %v1194
    %v1651 = vpack.c.b16 %v1203, %v1195
    %v1652 = vpack.c.b16 %v1204, %v1196
    %v1653 = vpack.c.b16 %v1205, %v1197
    %v1654 = vpack.c.b16 %v1206, %v1198
    %v1655 = vpack.c.b16 %v1207, %v1199
    %v1656 = vpack.c.b16 %v1208, %v1200
    %v1657 = vpack.c.b16 %v1209, %v1201
    %v1658 = vpack.c.b16 %v1218, %v1210
    %v1659 = vpack.c.b16 %v1219, %v1211
    %v1660 = vpack.c.b16 %v1220, %v1212
    %v1661 = vpack.c.b16 %v1221, %v1213
    %v1662 = vpack.c.b16 %v1222, %v1214
    %v1663 = vpack.c.b16 %v1223, %v1215
    %v1664 = vpack.c.b16 %v1224, %v1216
    %v1665 = vpack.c.b16 %v1225, %v1217
    %v1666 = vpack.c.b16 %v1234, %v1226
    %v1667 = vpack.c.b16 %v1235, %v1227
    %v1668 = vpack.c.b16 %v1236, %v1228
    %v1669 = vpack.c.b16 %v1237, %v1229
    %v1670 = vpack.c.b16 %v1238, %v1230
    %v1671 = vpack.c.b16 %v1239, %v1231
    %v1672 = vpack.c.b16 %v1240, %v1232
    %v1673 = vpack.c.b16 %v1241, %v1233
    %v1674 = vpack.c.b16 %v1250, %v1242
    %v1675 = vpack.c.b16 %v1251, %v1243
    %v1676 = vpack.c.b16 %v1252, %v1244
    %v1677 = vpack.c.b16 %v1253, %v1245
    %v1678 = vpack.c.b16 %v1254, %v1246
    %v1679 = vpack.c.b16 %v1255, %v1247
    %v1680 = vpack.c.b16 %v1256, %v1248
    %v1681 = vpack.c.b16 %v1257, %v1249
    %v1682 = vpack.c.b16 %v1266, %v1258
    %v1683 = vpack.c.b16 %v1267, %v1259
    %v1684 = vpack.c.b16 %v1268, %v1260
    %v1685 = vpack.c.b16 %v1269, %v1261
    %v1686 = vpack.c.b16 %v1270, %v1262
    %v1687 = vpack.c.b16 %v1271, %v1263
    %v1688 = vpack.c.b16 %v1272, %v1264
    %v1689 = vpack.c.b16 %v1273, %v1265
    %v1690 = vpack.c.b16 %v1282, %v1274
    %v1691 = vpack.c.b16 %v1283, %v1275
    %v1692 = vpack.c.b16 %v1284, %v1276
    %v1693 = vpack.c.b16 %v1285, %v1277
    %v1694 = vpack.c.b16 %v1286, %v1278
    %v1695 = vpack.c.b16 %v1287, %v1279
    %v1696 = vpack.c.b16 %v1288, %v1280
    %v1697 = vpack.c.b16 %v1289, %v1281
    %v1698 = vpack.c.b16 %v1298, %v1290
    %v1699 = vpack.c.b16 %v1299, %v1291
    %v1700 = vpack.c.b16 %v1300, %v1292
    %v1701 = vpack.c.b16 %v1301, %v1293
    %v1702 = vpack.c.b16 %v1302, %v1294
    %v1703 = vpack.c.b16 %v1303, %v1295
    %v1704 = vpack.c.b16 %v1304, %v1296
    %v1705 = vpack.c.b16 %v1305, %v1297
    %v1706 = vpack.c.b16 %v1314, %v1306
    %v1707 = vpack.c.b16 %v1315, %v1307
    %v1708 = vpack.c.b16 %v1316, %v1308
    %v1709 = vpack.c.b16 %v1317, %v1309
    %v1710 = vpack.c.b16 %v1318, %v1310
    %v1711 = vpack.c.b16 %v1319, %v1311
    %v1712 = vpack.c.b16 %v1320, %v1312
    %v1713 = vpack.c.b16 %v1321, %v1313
    %v1714 = vpack.c.b16 %v1330, %v1322
    %v1715 = vpack.c.b16 %v1331, %v1323
    %v1716 = vpack.c.b16 %v1332, %v1324
    %v1717 = vpack.c.b16 %v1333, %v1325
    %v1718 = vpack.c.b16 %v1334, %v1326
    %v1719 = vpack.c.b16 %v1335, %v1327
    %v1720 = vpack.c.b16 %v1336, %v1328
    %v1721 = vpack.c.b16 %v1337, %v1329
    %v1722 = vpack.c.b16 %v1346, %v1338
    %v1723 = vpack.c.b16 %v1347, %v1339
    %v1724 = vpack.c.b16 %v1348, %v1340
    %v1725 = vpack.c.b16 %v1349, %v1341
    %v1726 = vpack.c.b16 %v1350, %v1342
    %v1727 = vpack.c.b16 %v1351, %v1343
    %v1728 = vpack.c.b16 %v1352, %v1344
    %v1729 = vpack.c.b16 %v1353, %v1345
    %v1730 = vpack.c.b16 %v1362, %v1354
    %v1731 = vpack.c.b16 %v1363, %v1355
    %v1732 = vpack.c.b16 %v1364, %v1356
    %v1733 = vpack.c.b16 %v1365, %v1357
    %v1734 = vpack.c.b16 %v1366, %v1358
    %v1735 = vpack.c.b16 %v1367, %v1359
    %v1736 = vpack.c.b16 %v1368, %v1360
    %v1737 = vpack.c.b16 %v1369, %v1361
    %v1738 = vpack.c.b16 %v1378, %v1370
    %v1739 = vpack.c.b16 %v1379, %v1371
    %v1740 = vpack.c.b16 %v1380, %v1372
    %v1741 = vpack.c.b16 %v1381, %v1373
    %v1742 = vpack.c.b16 %v1382, %v1374
    %v1743 = vpack.c.b16 %v1383, %v1375
    %v1744 = vpack.c.b16 %v1384, %v1376
    %v1745 = vpack.c.b16 %v1385, %v1377
    %v1746 = vpack.c.b16 %v1394, %v1386
    %v1747 = vpack.c.b16 %v1395, %v1387
    %v1748 = vpack.c.b16 %v1396, %v1388
    %v1749 = vpack.c.b16 %v1397, %v1389
    %v1750 = vpack.c.b16 %v1398, %v1390
    %v1751 = vpack.c.b16 %v1399, %v1391
    %v1752 = vpack.c.b16 %v1400, %v1392
    %v1753 = vpack.c.b16 %v1401, %v1393
    %v1754 = vpack.c.b16 %v1410, %v1402
    %v1755 = vpack.c.b16 %v1411, %v1403
    %v1756 = vpack.c.b16 %v1412, %v1404
    %v1757 = vpack.c.b16 %v1413, %v1405
    %v1758 = vpack.c.b16 %v1414, %v1406
    %v1759 = vpack.c.b16 %v1415, %v1407
    %v1760 = vpack.c.b16 %v1416, %v1408
    %v1761 = vpack.c.b16 %v1417, %v1409
    %v1762 = vpack.c.b16 %v1426, %v1418
    %v1763 = vpack.c.b16 %v1427, %v1419
    %v1764 = vpack.c.b16 %v1428, %v1420
    %v1765 = vpack.c.b16 %v1429, %v1421
    %v1766 = vpack.c.b16 %v1430, %v1422
    %v1767 = vpack.c.b16 %v1431, %v1423
    %v1768 = vpack.c.b16 %v1432, %v1424
    %v1769 = vpack.c.b16 %v1433, %v1425
    %v1770 = vpack.c.b16 %v1442, %v1434
    %v1771 = vpack.c.b16 %v1443, %v1435
    %v1772 = vpack.c.b16 %v1444, %v1436
    %v1773 = vpack.c.b16 %v1445, %v1437
    %v1774 = vpack.c.b16 %v1446, %v1438
    %v1775 = vpack.c.b16 %v1447, %v1439
    %v1776 = vpack.c.b16 %v1448, %v1440
    %v1777 = vpack.c.b16 %v1449, %v1441
    %v1778 = vpack.c.b16 %v1458, %v1450
    %v1779 = vpack.c.b16 %v1459, %v1451
    %v1780 = vpack.c.b16 %v1460, %v1452
    %v1781 = vpack.c.b16 %v1461, %v1453
    %v1782 = vpack.c.b16 %v1462, %v1454
    %v1783 = vpack.c.b16 %v1463, %v1455
    %v1784 = vpack.c.b16 %v1464, %v1456
    %v1785 = vpack.c.b16 %v1465, %v1457
    %2106 = vmatprep.subr.bf16.mxu0 %v1467
    %2107 = vmatpush1.bf16.msra.mxu0 %v1466
    %2108 = vmatprep.subr.bf16.mxu0 %v1475
    %2109 = vmatpush1.bf16.msra.mxu0 %v1474
    %2110 = vmatprep.subr.bf16.mxu0 %v1483
    %2111 = vmatpush1.bf16.msra.mxu0 %v1482
    %2112 = vmatprep.subr.bf16.mxu0 %v1491
    %2113 = vmatpush1.bf16.msra.mxu0 %v1490
    %2114 = vmatprep.subr.bf16.mxu0 %v1499
    %2115 = vmatpush1.bf16.msra.mxu0 %v1498
    %2116 = vmatprep.subr.bf16.mxu0 %v1507
    %2117 = vmatpush1.bf16.msra.mxu0 %v1506
    %2118 = vmatprep.subr.bf16.mxu0 %v1515
    %2119 = vmatpush1.bf16.msra.mxu0 %v1514
    %2120 = vmatprep.subr.bf16.mxu0 %v1523
    %2121 = vmatpush1.bf16.msra.mxu0 %v1522
    %2122 = vmatprep.subr.bf16.mxu0 %v1531
    %2123 = vmatpush1.bf16.msra.mxu0 %v1530
    %2124 = vmatprep.subr.bf16.mxu0 %v1539
    %2125 = vmatpush1.bf16.msra.mxu0 %v1538
    %2126 = vmatprep.subr.bf16.mxu0 %v1547
    %2127 = vmatpush1.bf16.msra.mxu0 %v1546
    %2128 = vmatprep.subr.bf16.mxu0 %v1555
    %2129 = vmatpush1.bf16.msra.mxu0 %v1554
    %2130 = vmatprep.subr.bf16.mxu0 %v1563
    %2131 = vmatpush1.bf16.msra.mxu0 %v1562
    %2132 = vmatprep.subr.bf16.mxu0 %v1571
    %2133 = vmatpush1.bf16.msra.mxu0 %v1570
    %2134 = vmatprep.subr.bf16.mxu0 %v1579
    %2135 = vmatpush1.bf16.msra.mxu0 %v1578
    %2136 = vmatprep.subr.bf16.mxu0 %v1587
    %2137 = vmatpush1.bf16.msra.mxu0 %v1586
    %2138 = vmatprep.mubr.bf16.mxu0 %v140
    %2139 = vmatmul.mubr.bf16.gmra.mrb[0].mxu0 %v139
    %v2140 = vpop.f32.mrb[0].mxu0
    %v2141 = vadd.f32 %v469, %v2140
    %v2142 = vpop.f32.mrb[0].mxu0
    %v2143 = vadd.f32 %v473, %v2142
    %v2144 = vpop.f32.mrb[0].mxu0
    %v2145 = vpop.f32.mrb[0].mxu0
    %2146 = vdwg.mxu0
    %2147 = vmatprep.subr.bf16.mxu0 %v1595
    %2148 = vmatpush1.bf16.msra.mxu0 %v1594
    %2149 = vmatprep.subr.bf16.mxu0 %v1603
    %2150 = vmatpush1.bf16.msra.mxu0 %v1602
    %2151 = vmatprep.subr.bf16.mxu0 %v1611
    %2152 = vmatpush1.bf16.msra.mxu0 %v1610
    %2153 = vmatprep.subr.bf16.mxu0 %v1619
    %2154 = vmatpush1.bf16.msra.mxu0 %v1618
    %2155 = vmatprep.subr.bf16.mxu0 %v1627
    %2156 = vmatpush1.bf16.msra.mxu0 %v1626
    %2157 = vmatprep.subr.bf16.mxu0 %v1635
    %2158 = vmatpush1.bf16.msra.mxu0 %v1634
    %2159 = vmatprep.subr.bf16.mxu0 %v1643
    %2160 = vmatpush1.bf16.msra.mxu0 %v1642
    %2161 = vmatprep.subr.bf16.mxu0 %v1651
    %2162 = vmatpush1.bf16.msra.mxu0 %v1650
    %2163 = vmatprep.subr.bf16.mxu0 %v1659
    %2164 = vmatpush1.bf16.msra.mxu0 %v1658
    %2165 = vmatprep.subr.bf16.mxu0 %v1667
    %2166 = vmatpush1.bf16.msra.mxu0 %v1666
    %2167 = vmatprep.subr.bf16.mxu0 %v1675
    %2168 = vmatpush1.bf16.msra.mxu0 %v1674
    %2169 = vmatprep.subr.bf16.mxu0 %v1683
    %2170 = vmatpush1.bf16.msra.mxu0 %v1682
    %2171 = vmatprep.subr.bf16.mxu0 %v1691
    %2172 = vmatpush1.bf16.msra.mxu0 %v1690
    %2173 = vmatprep.subr.bf16.mxu0 %v1699
    %2174 = vmatpush1.bf16.msra.mxu0 %v1698
    %2175 = vmatprep.subr.bf16.mxu0 %v1707
    %2176 = vmatpush1.bf16.msra.mxu0 %v1706
    %2177 = vmatprep.subr.bf16.mxu0 %v1715
    %2178 = vmatpush1.bf16.msra.mxu0 %v1714
    %2179 = vmatprep.mubr.bf16.mxu0 %v142
    %2180 = vmatmul.mubr.bf16.gmra.mrb[0].mxu0 %v141
    %v2181 = vpop.f32.mrb[0].mxu0
    %v2182 = vadd.f32 %v2141, %v2181
    %v2183 = vpop.f32.mrb[0].mxu0
    %v2184 = vadd.f32 %v2143, %v2183
    %v2185 = vpop.f32.mrb[0].mxu0
    %v2186 = vpop.f32.mrb[0].mxu0
    %2187 = vdwg.mxu0
    %2188 = vmatprep.subr.bf16.mxu0 %v1723
    %2189 = vmatpush1.bf16.msra.mxu0 %v1722
    %2190 = vmatprep.subr.bf16.mxu0 %v1731
    %2191 = vmatpush1.bf16.msra.mxu0 %v1730
    %2192 = vmatprep.subr.bf16.mxu0 %v1739
    %2193 = vmatpush1.bf16.msra.mxu0 %v1738
    %2194 = vmatprep.subr.bf16.mxu0 %v1747
    %2195 = vmatpush1.bf16.msra.mxu0 %v1746
    %2196 = vmatprep.subr.bf16.mxu0 %v1755
    %2197 = vmatpush1.bf16.msra.mxu0 %v1754
    %2198 = vmatprep.subr.bf16.mxu0 %v1763
    %2199 = vmatpush1.bf16.msra.mxu0 %v1762
    %2200 = vmatprep.subr.bf16.mxu0 %v1771
    %2201 = vmatpush1.bf16.msra.mxu0 %v1770
    %2202 = vmatprep.subr.bf16.mxu0 %v1779
    %2203 = vmatpush1.bf16.msra.mxu0 %v1778
    %2204 = vmatprep.subr.bf16.mxu0 0
    %2205 = vmatpush1.bf16.msra.mxu0 0
    %2206 = vmatprep.subr.bf16.mxu0 0
    %2207 = vmatpush1.bf16.msra.mxu0 0
    %2208 = vmatprep.subr.bf16.mxu0 0
    %2209 = vmatpush1.bf16.msra.mxu0 0
    %2210 = vmatprep.subr.bf16.mxu0 0
    %2211 = vmatpush1.bf16.msra.mxu0 0
    %2212 = vmatprep.subr.bf16.mxu0 0
    %2213 = vmatpush1.bf16.msra.mxu0 0
    %2214 = vmatprep.subr.bf16.mxu0 0
    %2215 = vmatpush1.bf16.msra.mxu0 0
    %2216 = vmatprep.subr.bf16.mxu0 0
    %2217 = vmatpush1.bf16.msra.mxu0 0
    %2218 = vmatprep.subr.bf16.mxu0 0
    %2219 = vmatpush1.bf16.msra.mxu0 0
    %2220 = vmatprep.mubr.bf16.mxu0 0
    %2221 = vmatmul.mubr.bf16.gmra.mrb[0].mxu0 %v143
    %v2222 = vpop.f32.mrb[0].mxu0
    %v2223 = vadd.f32 %v2182, %v2222
    %v2224 = vpop.f32.mrb[0].mxu0
    %v2225 = vadd.f32 %v2184, %v2224
    %v2226 = vpop.f32.mrb[0].mxu0
    %v2227 = vpop.f32.mrb[0].mxu0
    %2228 = vdwg.mxu0
    %2229 = vmatprep.subr.bf16.mxu0 %v1469
    %2230 = vmatpush1.bf16.msra.mxu0 %v1468
    %2231 = vmatprep.subr.bf16.mxu0 %v1477
    %2232 = vmatpush1.bf16.msra.mxu0 %v1476
    %2233 = vmatprep.subr.bf16.mxu0 %v1485
    %2234 = vmatpush1.bf16.msra.mxu0 %v1484
    %2235 = vmatprep.subr.bf16.mxu0 %v1493
    %2236 = vmatpush1.bf16.msra.mxu0 %v1492
    %2237 = vmatprep.subr.bf16.mxu0 %v1501
    %2238 = vmatpush1.bf16.msra.mxu0 %v1500
    %2239 = vmatprep.subr.bf16.mxu0 %v1509
    %2240 = vmatpush1.bf16.msra.mxu0 %v1508
    %2241 = vmatprep.subr.bf16.mxu0 %v1517
    %2242 = vmatpush1.bf16.msra.mxu0 %v1516
    %2243 = vmatprep.subr.bf16.mxu0 %v1525
    %2244 = vmatpush1.bf16.msra.mxu0 %v1524
    %2245 = vmatprep.subr.bf16.mxu0 %v1533
    %2246 = vmatpush1.bf16.msra.mxu0 %v1532
    %2247 = vmatprep.subr.bf16.mxu0 %v1541
    %2248 = vmatpush1.bf16.msra.mxu0 %v1540
    %2249 = vmatprep.subr.bf16.mxu0 %v1549
    %2250 = vmatpush1.bf16.msra.mxu0 %v1548
    %2251 = vmatprep.subr.bf16.mxu0 %v1557
    %2252 = vmatpush1.bf16.msra.mxu0 %v1556
    %2253 = vmatprep.subr.bf16.mxu0 %v1565
    %2254 = vmatpush1.bf16.msra.mxu0 %v1564
    %2255 = vmatprep.subr.bf16.mxu0 %v1573
    %2256 = vmatpush1.bf16.msra.mxu0 %v1572
    %2257 = vmatprep.subr.bf16.mxu0 %v1581
    %2258 = vmatpush1.bf16.msra.mxu0 %v1580
    %2259 = vmatprep.subr.bf16.mxu0 %v1589
    %2260 = vmatpush1.bf16.msra.mxu0 %v1588
    %2261 = vmatprep.mubr.bf16.mxu0 %v140
    %2262 = vmatmul.mubr.bf16.gmra.mrb[0].mxu0 %v139
    %v2263 = vpop.f32.mrb[0].mxu0
    %v2264 = vadd.f32 %v477, %v2263
    %v2265 = vpop.f32.mrb[0].mxu0
    %v2266 = vadd.f32 %v481, %v2265
    %v2267 = vpop.f32.mrb[0].mxu0
    %v2268 = vpop.f32.mrb[0].mxu0
    %2269 = vdwg.mxu0
    %2270 = vmatprep.subr.bf16.mxu0 %v1597
    %2271 = vmatpush1.bf16.msra.mxu0 %v1596
    %2272 = vmatprep.subr.bf16.mxu0 %v1605
    %2273 = vmatpush1.bf16.msra.mxu0 %v1604
    %2274 = vmatprep.subr.bf16.mxu0 %v1613
    %2275 = vmatpush1.bf16.msra.mxu0 %v1612
    %2276 = vmatprep.subr.bf16.mxu0 %v1621
    %2277 = vmatpush1.bf16.msra.mxu0 %v1620
    %2278 = vmatprep.subr.bf16.mxu0 %v1629
    %2279 = vmatpush1.bf16.msra.mxu0 %v1628
    %2280 = vmatprep.subr.bf16.mxu0 %v1637
    %2281 = vmatpush1.bf16.msra.mxu0 %v1636
    %2282 = vmatprep.subr.bf16.mxu0 %v1645
    %2283 = vmatpush1.bf16.msra.mxu0 %v1644
    %2284 = vmatprep.subr.bf16.mxu0 %v1653
    %2285 = vmatpush1.bf16.msra.mxu0 %v1652
    %2286 = vmatprep.subr.bf16.mxu0 %v1661
    %2287 = vmatpush1.bf16.msra.mxu0 %v1660
    %2288 = vmatprep.subr.bf16.mxu0 %v1669
    %2289 = vmatpush1.bf16.msra.mxu0 %v1668
    %2290 = vmatprep.subr.bf16.mxu0 %v1677
    %2291 = vmatpush1.bf16.msra.mxu0 %v1676
    %2292 = vmatprep.subr.bf16.mxu0 %v1685
    %2293 = vmatpush1.bf16.msra.mxu0 %v1684
    %2294 = vmatprep.subr.bf16.mxu0 %v1693
    %2295 = vmatpush1.bf16.msra.mxu0 %v1692
    %2296 = vmatprep.subr.bf16.mxu0 %v1701
    %2297 = vmatpush1.bf16.msra.mxu0 %v1700
    %2298 = vmatprep.subr.bf16.mxu0 %v1709
    %2299 = vmatpush1.bf16.msra.mxu0 %v1708
    %2300 = vmatprep.subr.bf16.mxu0 %v1717
    %2301 = vmatpush1.bf16.msra.mxu0 %v1716
    %2302 = vmatprep.mubr.bf16.mxu0 %v142
    %2303 = vmatmul.mubr.bf16.gmra.mrb[0].mxu0 %v141
    %v2304 = vpop.f32.mrb[0].mxu0
    %v2305 = vadd.f32 %v2264, %v2304
    %v2306 = vpop.f32.mrb[0].mxu0
    %v2307 = vadd.f32 %v2266, %v2306
    %v2308 = vpop.f32.mrb[0].mxu0
    %v2309 = vpop.f32.mrb[0].mxu0
    %2310 = vdwg.mxu0
    %2311 = vmatprep.subr.bf16.mxu0 %v1725
    %2312 = vmatpush1.bf16.msra.mxu0 %v1724
    %2313 = vmatprep.subr.bf16.mxu0 %v1733
    %2314 = vmatpush1.bf16.msra.mxu0 %v1732
    %2315 = vmatprep.subr.bf16.mxu0 %v1741
    %2316 = vmatpush1.bf16.msra.mxu0 %v1740
    %2317 = vmatprep.subr.bf16.mxu0 %v1749
    %2318 = vmatpush1.bf16.msra.mxu0 %v1748
    %2319 = vmatprep.subr.bf16.mxu0 %v1757
    %2320 = vmatpush1.bf16.msra.mxu0 %v1756
    %2321 = vmatprep.subr.bf16.mxu0 %v1765
    %2322 = vmatpush1.bf16.msra.mxu0 %v1764
    %2323 = vmatprep.subr.bf16.mxu0 %v1773
    %2324 = vmatpush1.bf16.msra.mxu0 %v1772
    %2325 = vmatprep.subr.bf16.mxu0 %v1781
    %2326 = vmatpush1.bf16.msra.mxu0 %v1780
    %2327 = vmatprep.subr.bf16.mxu0 0
    %2328 = vmatpush1.bf16.msra.mxu0 0
    %2329 = vmatprep.subr.bf16.mxu0 0
    %2330 = vmatpush1.bf16.msra.mxu0 0
    %2331 = vmatprep.subr.bf16.mxu0 0
    %2332 = vmatpush1.bf16.msra.mxu0 0
    %2333 = vmatprep.subr.bf16.mxu0 0
    %2334 = vmatpush1.bf16.msra.mxu0 0
    %2335 = vmatprep.subr.bf16.mxu0 0
    %2336 = vmatpush1.bf16.msra.mxu0 0
    %2337 = vmatprep.subr.bf16.mxu0 0
    %2338 = vmatpush1.bf16.msra.mxu0 0
    %2339 = vmatprep.subr.bf16.mxu0 0
    %2340 = vmatpush1.bf16.msra.mxu0 0
    %2341 = vmatprep.subr.bf16.mxu0 0
    %2342 = vmatpush1.bf16.msra.mxu0 0
    %2343 = vmatprep.mubr.bf16.mxu0 0
    %2344 = vmatmul.mubr.bf16.gmra.mrb[0].mxu0 %v143
    %v2345 = vpop.f32.mrb[0].mxu0
    %v2346 = vadd.f32 %v2305, %v2345
    %v2347 = vpop.f32.mrb[0].mxu0
    %v2348 = vadd.f32 %v2307, %v2347
    %v2349 = vpop.f32.mrb[0].mxu0
    %v2350 = vpop.f32.mrb[0].mxu0
    %2351 = vdwg.mxu0
    %2352 = vmatprep.subr.bf16.mxu0 %v1471
    %2353 = vmatpush1.bf16.msra.mxu0 %v1470
    %2354 = vmatprep.subr.bf16.mxu0 %v1479
    %2355 = vmatpush1.bf16.msra.mxu0 %v1478
    %2356 = vmatprep.subr.bf16.mxu0 %v1487
    %2357 = vmatpush1.bf16.msra.mxu0 %v1486
    %2358 = vmatprep.subr.bf16.mxu0 %v1495
    %2359 = vmatpush1.bf16.msra.mxu0 %v1494
    %2360 = vmatprep.subr.bf16.mxu0 %v1503
    %2361 = vmatpush1.bf16.msra.mxu0 %v1502
    %2362 = vmatprep.subr.bf16.mxu0 %v1511
    %2363 = vmatpush1.bf16.msra.mxu0 %v1510
    %2364 = vmatprep.subr.bf16.mxu0 %v1519
    %2365 = vmatpush1.bf16.msra.mxu0 %v1518
    %2366 = vmatprep.subr.bf16.mxu0 %v1527
    %2367 = vmatpush1.bf16.msra.mxu0 %v1526
    %2368 = vmatprep.subr.bf16.mxu0 %v1535
    %2369 = vmatpush1.bf16.msra.mxu0 %v1534
    %2370 = vmatprep.subr.bf16.mxu0 %v1543
    %2371 = vmatpush1.bf16.msra.mxu0 %v1542
    %2372 = vmatprep.subr.bf16.mxu0 %v1551
    %2373 = vmatpush1.bf16.msra.mxu0 %v1550
    %2374 = vmatprep.subr.bf16.mxu0 %v1559
    %2375 = vmatpush1.bf16.msra.mxu0 %v1558
    %2376 = vmatprep.subr.bf16.mxu0 %v1567
    %2377 = vmatpush1.bf16.msra.mxu0 %v1566
    %2378 = vmatprep.subr.bf16.mxu0 %v1575
    %2379 = vmatpush1.bf16.msra.mxu0 %v1574
    %2380 = vmatprep.subr.bf16.mxu0 %v1583
    %2381 = vmatpush1.bf16.msra.mxu0 %v1582
    %2382 = vmatprep.subr.bf16.mxu0 %v1591
    %2383 = vmatpush1.bf16.msra.mxu0 %v1590
    %2384 = vmatprep.mubr.bf16.mxu0 %v140
    %2385 = vmatmul.mubr.bf16.gmra.mrb[0].mxu0 %v139
    %v2386 = vpop.f32.mrb[0].mxu0
    %v2387 = vadd.f32 %v485, %v2386
    %v2388 = vpop.f32.mrb[0].mxu0
    %v2389 = vadd.f32 %v489, %v2388
    %v2390 = vpop.f32.mrb[0].mxu0
    %v2391 = vpop.f32.mrb[0].mxu0
    %2392 = vdwg.mxu0
    %2393 = vmatprep.subr.bf16.mxu0 %v1599
    %2394 = vmatpush1.bf16.msra.mxu0 %v1598
    %2395 = vmatprep.subr.bf16.mxu0 %v1607
    %2396 = vmatpush1.bf16.msra.mxu0 %v1606
    %2397 = vmatprep.subr.bf16.mxu0 %v1615
    %2398 = vmatpush1.bf16.msra.mxu0 %v1614
    %2399 = vmatprep.subr.bf16.mxu0 %v1623
    %2400 = vmatpush1.bf16.msra.mxu0 %v1622
    %2401 = vmatprep.subr.bf16.mxu0 %v1631
    %2402 = vmatpush1.bf16.msra.mxu0 %v1630
    %2403 = vmatprep.subr.bf16.mxu0 %v1639
    %2404 = vmatpush1.bf16.msra.mxu0 %v1638
    %2405 = vmatprep.subr.bf16.mxu0 %v1647
    %2406 = vmatpush1.bf16.msra.mxu0 %v1646
    %2407 = vmatprep.subr.bf16.mxu0 %v1655
    %2408 = vmatpush1.bf16.msra.mxu0 %v1654
    %2409 = vmatprep.subr.bf16.mxu0 %v1663
    %2410 = vmatpush1.bf16.msra.mxu0 %v1662
    %2411 = vmatprep.subr.bf16.mxu0 %v1671
    %2412 = vmatpush1.bf16.msra.mxu0 %v1670
    %2413 = vmatprep.subr.bf16.mxu0 %v1679
    %2414 = vmatpush1.bf16.msra.mxu0 %v1678
    %2415 = vmatprep.subr.bf16.mxu0 %v1687
    %2416 = vmatpush1.bf16.msra.mxu0 %v1686
    %2417 = vmatprep.subr.bf16.mxu0 %v1695
    %2418 = vmatpush1.bf16.msra.mxu0 %v1694
    %2419 = vmatprep.subr.bf16.mxu0 %v1703
    %2420 = vmatpush1.bf16.msra.mxu0 %v1702
    %2421 = vmatprep.subr.bf16.mxu0 %v1711
    %2422 = vmatpush1.bf16.msra.mxu0 %v1710
    %2423 = vmatprep.subr.bf16.mxu0 %v1719
    %2424 = vmatpush1.bf16.msra.mxu0 %v1718
    %2425 = vmatprep.mubr.bf16.mxu0 %v142
    %2426 = vmatmul.mubr.bf16.gmra.mrb[0].mxu0 %v141
    %v2427 = vpop.f32.mrb[0].mxu0
    %v2428 = vadd.f32 %v2387, %v2427
    %v2429 = vpop.f32.mrb[0].mxu0
    %v2430 = vadd.f32 %v2389, %v2429
    %v2431 = vpop.f32.mrb[0].mxu0
    %v2432 = vpop.f32.mrb[0].mxu0
    %2433 = vdwg.mxu0
    %2434 = vmatprep.subr.bf16.mxu0 %v1727
    %2435 = vmatpush1.bf16.msra.mxu0 %v1726
    %2436 = vmatprep.subr.bf16.mxu0 %v1735
    %2437 = vmatpush1.bf16.msra.mxu0 %v1734
    %2438 = vmatprep.subr.bf16.mxu0 %v1743
    %2439 = vmatpush1.bf16.msra.mxu0 %v1742
    %2440 = vmatprep.subr.bf16.mxu0 %v1751
    %2441 = vmatpush1.bf16.msra.mxu0 %v1750
    %2442 = vmatprep.subr.bf16.mxu0 %v1759
    %2443 = vmatpush1.bf16.msra.mxu0 %v1758
    %2444 = vmatprep.subr.bf16.mxu0 %v1767
    %2445 = vmatpush1.bf16.msra.mxu0 %v1766
    %2446 = vmatprep.subr.bf16.mxu0 %v1775
    %2447 = vmatpush1.bf16.msra.mxu0 %v1774
    %2448 = vmatprep.subr.bf16.mxu0 %v1783
    %2449 = vmatpush1.bf16.msra.mxu0 %v1782
    %2450 = vmatprep.subr.bf16.mxu0 0
    %2451 = vmatpush1.bf16.msra.mxu0 0
    %2452 = vmatprep.subr.bf16.mxu0 0
    %2453 = vmatpush1.bf16.msra.mxu0 0
    %2454 = vmatprep.subr.bf16.mxu0 0
    %2455 = vmatpush1.bf16.msra.mxu0 0
    %2456 = vmatprep.subr.bf16.mxu0 0
    %2457 = vmatpush1.bf16.msra.mxu0 0
    %2458 = vmatprep.subr.bf16.mxu0 0
    %2459 = vmatpush1.bf16.msra.mxu0 0
    %2460 = vmatprep.subr.bf16.mxu0 0
    %2461 = vmatpush1.bf16.msra.mxu0 0
    %2462 = vmatprep.subr.bf16.mxu0 0
    %2463 = vmatpush1.bf16.msra.mxu0 0
    %2464 = vmatprep.subr.bf16.mxu0 0
    %2465 = vmatpush1.bf16.msra.mxu0 0
    %2466 = vmatprep.mubr.bf16.mxu0 0
    %2467 = vmatmul.mubr.bf16.gmra.mrb[0].mxu0 %v143
    %v2468 = vpop.f32.mrb[0].mxu0
    %v2469 = vadd.f32 %v2428, %v2468
    %v2470 = vpop.f32.mrb[0].mxu0
    %v2471 = vadd.f32 %v2430, %v2470
    %v2472 = vpop.f32.mrb[0].mxu0
    %v2473 = vpop.f32.mrb[0].mxu0
    %2474 = vdwg.mxu0
    %2475 = vmatprep.subr.bf16.mxu0 %v1473
    %2476 = vmatpush1.bf16.msra.mxu0 %v1472
    %2477 = vmatprep.subr.bf16.mxu0 %v1481
    %2478 = vmatpush1.bf16.msra.mxu0 %v1480
    %2479 = vmatprep.subr.bf16.mxu0 %v1489
    %2480 = vmatpush1.bf16.msra.mxu0 %v1488
    %2481 = vmatprep.subr.bf16.mxu0 %v1497
    %2482 = vmatpush1.bf16.msra.mxu0 %v1496
    %2483 = vmatprep.subr.bf16.mxu0 %v1505
    %2484 = vmatpush1.bf16.msra.mxu0 %v1504
    %2485 = vmatprep.subr.bf16.mxu0 %v1513
    %2486 = vmatpush1.bf16.msra.mxu0 %v1512
    %2487 = vmatprep.subr.bf16.mxu0 %v1521
    %2488 = vmatpush1.bf16.msra.mxu0 %v1520
    %2489 = vmatprep.subr.bf16.mxu0 %v1529
    %2490 = vmatpush1.bf16.msra.mxu0 %v1528
    %2491 = vmatprep.subr.bf16.mxu0 %v1537
    %2492 = vmatpush1.bf16.msra.mxu0 %v1536
    %2493 = vmatprep.subr.bf16.mxu0 %v1545
    %2494 = vmatpush1.bf16.msra.mxu0 %v1544
    %2495 = vmatprep.subr.bf16.mxu0 %v1553
    %2496 = vmatpush1.bf16.msra.mxu0 %v1552
    %2497 = vmatprep.subr.bf16.mxu0 %v1561
    %2498 = vmatpush1.bf16.msra.mxu0 %v1560
    %2499 = vmatprep.subr.bf16.mxu0 %v1569
    %2500 = vmatpush1.bf16.msra.mxu0 %v1568
    %2501 = vmatprep.subr.bf16.mxu0 %v1577
    %2502 = vmatpush1.bf16.msra.mxu0 %v1576
    %2503 = vmatprep.subr.bf16.mxu0 %v1585
    %2504 = vmatpush1.bf16.msra.mxu0 %v1584
    %2505 = vmatprep.subr.bf16.mxu0 %v1593
    %2506 = vmatpush1.bf16.msra.mxu0 %v1592
    %2507 = vmatprep.mubr.bf16.mxu0 %v140
    %2508 = vmatmul.mubr.bf16.gmra.mrb[0].mxu0 %v139
    %v2509 = vpop.f32.mrb[0].mxu0
    %v2510 = vadd.f32 %v493, %v2509
    %v2511 = vpop.f32.mrb[0].mxu0
    %v2512 = vadd.f32 %v497, %v2511
    %v2513 = vpop.f32.mrb[0].mxu0
    %v2514 = vpop.f32.mrb[0].mxu0
    %2515 = vdwg.mxu0
    %2516 = vmatprep.subr.bf16.mxu0 %v1601
    %2517 = vmatpush1.bf16.msra.mxu0 %v1600
    %2518 = vmatprep.subr.bf16.mxu0 %v1609
    %2519 = vmatpush1.bf16.msra.mxu0 %v1608
    %2520 = vmatprep.subr.bf16.mxu0 %v1617
    %2521 = vmatpush1.bf16.msra.mxu0 %v1616
    %2522 = vmatprep.subr.bf16.mxu0 %v1625
    %2523 = vmatpush1.bf16.msra.mxu0 %v1624
    %2524 = vmatprep.subr.bf16.mxu0 %v1633
    %2525 = vmatpush1.bf16.msra.mxu0 %v1632
    %2526 = vmatprep.subr.bf16.mxu0 %v1641
    %2527 = vmatpush1.bf16.msra.mxu0 %v1640
    %2528 = vmatprep.subr.bf16.mxu0 %v1649
    %2529 = vmatpush1.bf16.msra.mxu0 %v1648
    %2530 = vmatprep.subr.bf16.mxu0 %v1657
    %2531 = vmatpush1.bf16.msra.mxu0 %v1656
    %2532 = vmatprep.subr.bf16.mxu0 %v1665
    %2533 = vmatpush1.bf16.msra.mxu0 %v1664
    %2534 = vmatprep.subr.bf16.mxu0 %v1673
    %2535 = vmatpush1.bf16.msra.mxu0 %v1672
    %2536 = vmatprep.subr.bf16.mxu0 %v1681
    %2537 = vmatpush1.bf16.msra.mxu0 %v1680
    %2538 = vmatprep.subr.bf16.mxu0 %v1689
    %2539 = vmatpush1.bf16.msra.mxu0 %v1688
    %2540 = vmatprep.subr.bf16.mxu0 %v1697
    %2541 = vmatpush1.bf16.msra.mxu0 %v1696
    %2542 = vmatprep.subr.bf16.mxu0 %v1705
    %2543 = vmatpush1.bf16.msra.mxu0 %v1704
    %2544 = vmatprep.subr.bf16.mxu0 %v1713
    %2545 = vmatpush1.bf16.msra.mxu0 %v1712
    %2546 = vmatprep.subr.bf16.mxu0 %v1721
    %2547 = vmatpush1.bf16.msra.mxu0 %v1720
    %2548 = vmatprep.mubr.bf16.mxu0 %v142
    %2549 = vmatmul.mubr.bf16.gmra.mrb[0].mxu0 %v141
    %v2550 = vpop.f32.mrb[0].mxu0
    %v2551 = vadd.f32 %v2510, %v2550
    %v2552 = vpop.f32.mrb[0].mxu0
    %v2553 = vadd.f32 %v2512, %v2552
    %v2554 = vpop.f32.mrb[0].mxu0
    %v2555 = vpop.f32.mrb[0].mxu0
    %2556 = vdwg.mxu0
    %2557 = vmatprep.subr.bf16.mxu0 %v1729
    %2558 = vmatpush1.bf16.msra.mxu0 %v1728
    %2559 = vmatprep.subr.bf16.mxu0 %v1737
    %2560 = vmatpush1.bf16.msra.mxu0 %v1736
    %2561 = vmatprep.subr.bf16.mxu0 %v1745
    %2562 = vmatpush1.bf16.msra.mxu0 %v1744
    %2563 = vmatprep.subr.bf16.mxu0 %v1753
    %2564 = vmatpush1.bf16.msra.mxu0 %v1752
    %2565 = vmatprep.subr.bf16.mxu0 %v1761
    %2566 = vmatpush1.bf16.msra.mxu0 %v1760
    %2567 = vmatprep.subr.bf16.mxu0 %v1769
    %2568 = vmatpush1.bf16.msra.mxu0 %v1768
    %2569 = vmatprep.subr.bf16.mxu0 %v1777
    %2570 = vmatpush1.bf16.msra.mxu0 %v1776
    %2571 = vmatprep.subr.bf16.mxu0 %v1785
    %2572 = vmatpush1.bf16.msra.mxu0 %v1784
    %2573 = vmatprep.subr.bf16.mxu0 0
    %2574 = vmatpush1.bf16.msra.mxu0 0
    %2575 = vmatprep.subr.bf16.mxu0 0
    %2576 = vmatpush1.bf16.msra.mxu0 0
    %2577 = vmatprep.subr.bf16.mxu0 0
    %2578 = vmatpush1.bf16.msra.mxu0 0
    %2579 = vmatprep.subr.bf16.mxu0 0
    %2580 = vmatpush1.bf16.msra.mxu0 0
    %2581 = vmatprep.subr.bf16.mxu0 0
    %2582 = vmatpush1.bf16.msra.mxu0 0
    %2583 = vmatprep.subr.bf16.mxu0 0
    %2584 = vmatpush1.bf16.msra.mxu0 0
    %2585 = vmatprep.subr.bf16.mxu0 0
    %2586 = vmatpush1.bf16.msra.mxu0 0
    %2587 = vmatprep.subr.bf16.mxu0 0
    %2588 = vmatpush1.bf16.msra.mxu0 0
    %2589 = vmatprep.mubr.bf16.mxu0 0
    %2590 = vmatmul.mubr.bf16.gmra.mrb[0].mxu0 %v143
    %v2591 = vpop.f32.mrb[0].mxu0
    %v2592 = vadd.f32 %v2551, %v2591
    %v2593 = vpop.f32.mrb[0].mxu0
    %v2594 = vadd.f32 %v2553, %v2593
    %v2595 = vpop.f32.mrb[0].mxu0
    %v2596 = vpop.f32.mrb[0].mxu0
    %2597 = vdwg.mxu0
    %v2598 = vmax.f32 %v2223, 0.0
    %v2599 = vmax.f32 %v2225, 0.0
    %v2600 = vmax.f32 %v2346, 0.0
    %v2601 = vmax.f32 %v2348, 0.0
    %v2602 = vmax.f32 %v2469, 0.0
    %v2603 = vmax.f32 %v2471, 0.0
    %v2604 = vmax.f32 %v2592, 0.0
    %v2605 = vmax.f32 %v2594, 0.0
    %v2606 = vpack.c.bf16 %v2598, %v2598
    %v2607 = vpack.c.bf16 %v2599, %v2599
    %v2608 = vpack.c.bf16 %v2600, %v2600
    %v2609 = vpack.c.bf16 %v2601, %v2601
    %v2610 = vpack.c.bf16 %v2602, %v2602
    %v2611 = vpack.c.bf16 %v2603, %v2603
    %v2612 = vpack.c.bf16 %v2604, %v2604
    %v2613 = vpack.c.bf16 %v2605, %v2605
    %v2614 = vld [vmem:[#allocation6] sm:$0xff]
    %v2615 = vld [vmem:[#allocation6 + $0x8] sm:$0xff]
    %v2616 = vld [vmem:[#allocation6 + $0x10] sm:$0xff]
    %v2617 = vld [vmem:[#allocation6 + $0x18] sm:$0xff]
    %v2618 = vld [vmem:[#allocation6 + $0x20] sm:$0xff]
    %v2619 = vld [vmem:[#allocation6 + $0x28] sm:$0xff]
    %v2620 = vld [vmem:[#allocation6 + $0x30] sm:$0xff]
    %v2621 = vld [vmem:[#allocation6 + $0x38] sm:$0xff]
    %v2622 = vld [vmem:[#allocation6 + $0x40] sm:$0xff]
    %v2623 = vld [vmem:[#allocation6 + $0x48] sm:$0xff]
    %v2624 = vld [vmem:[#allocation6 + $0x50] sm:$0xff]
    %v2625 = vld [vmem:[#allocation6 + $0x58] sm:$0xff]
    %v2626 = vld [vmem:[#allocation6 + $0x60] sm:$0xff]
    %v2627 = vld [vmem:[#allocation6 + $0x68] sm:$0xff]
    %v2628 = vld [vmem:[#allocation6 + $0x70] sm:$0xff]
    %v2629 = vld [vmem:[#allocation6 + $0x78] sm:$0xff]
    %v2630 = vld [vmem:[#allocation6 + $0x80] sm:$0xff]
    %v2631 = vld [vmem:[#allocation6 + $0x88] sm:$0xff]
    %v2632 = vld [vmem:[#allocation6 + $0x90] sm:$0xff]
    %v2633 = vld [vmem:[#allocation6 + $0x98] sm:$0xff]
    %v2634 = vld [vmem:[#allocation6 + $0xa0] sm:$0xff]
    %v2635 = vld [vmem:[#allocation6 + $0xa8] sm:$0xff]
    %v2636 = vld [vmem:[#allocation6 + $0xb0] sm:$0xff]
    %v2637 = vld [vmem:[#allocation6 + $0xb8] sm:$0xff]
    %v2638 = vld [vmem:[#allocation6 + $0xc0] sm:$0xff]
    %v2639 = vld [vmem:[#allocation6 + $0xc8] sm:$0xff]
    %v2640 = vld [vmem:[#allocation6 + $0xd0] sm:$0xff]
    %v2641 = vld [vmem:[#allocation6 + $0xd8] sm:$0xff]
    %v2642 = vld [vmem:[#allocation6 + $0xe0] sm:$0xff]
    %v2643 = vld [vmem:[#allocation6 + $0xe8] sm:$0xff]
    %v2644 = vld [vmem:[#allocation6 + $0xf0] sm:$0xff]
    %v2645 = vld [vmem:[#allocation6 + $0xf8] sm:$0xff]
    %v2646 = vld [vmem:[#allocation6 + $0x100] sm:$0xff]
    %v2647 = vld [vmem:[#allocation6 + $0x108] sm:$0xff]
    %v2648 = vld [vmem:[#allocation6 + $0x110] sm:$0xff]
    %v2649 = vld [vmem:[#allocation6 + $0x118] sm:$0xff]
    %v2650 = vld [vmem:[#allocation6 + $0x120] sm:$0xff]
    %v2651 = vld [vmem:[#allocation6 + $0x128] sm:$0xff]
    %v2652 = vld [vmem:[#allocation6 + $0x130] sm:$0xff]
    %v2653 = vld [vmem:[#allocation6 + $0x138] sm:$0xff]
    %v2654 = vld [vmem:[#allocation6 + $0x140] sm:$0xff]
    %v2655 = vld [vmem:[#allocation6 + $0x148] sm:$0xff]
    %v2656 = vld [vmem:[#allocation6 + $0x150] sm:$0xff]
    %v2657 = vld [vmem:[#allocation6 + $0x158] sm:$0xff]
    %v2658 = vld [vmem:[#allocation6 + $0x160] sm:$0xff]
    %v2659 = vld [vmem:[#allocation6 + $0x168] sm:$0xff]
    %v2660 = vld [vmem:[#allocation6 + $0x170] sm:$0xff]
    %v2661 = vld [vmem:[#allocation6 + $0x178] sm:$0xff]
    %v2662 = vld [vmem:[#allocation6 + $0x180] sm:$0xff]
    %v2663 = vld [vmem:[#allocation6 + $0x188] sm:$0xff]
    %v2664 = vld [vmem:[#allocation6 + $0x190] sm:$0xff]
    %v2665 = vld [vmem:[#allocation6 + $0x198] sm:$0xff]
    %v2666 = vld [vmem:[#allocation6 + $0x1a0] sm:$0xff]
    %v2667 = vld [vmem:[#allocation6 + $0x1a8] sm:$0xff]
    %v2668 = vld [vmem:[#allocation6 + $0x1b0] sm:$0xff]
    %v2669 = vld [vmem:[#allocation6 + $0x1b8] sm:$0xff]
    %v2670 = vld [vmem:[#allocation6 + $0x1c0] sm:$0xff]
    %v2671 = vld [vmem:[#allocation6 + $0x1c8] sm:$0xff]
    %v2672 = vld [vmem:[#allocation6 + $0x1d0] sm:$0xff]
    %v2673 = vld [vmem:[#allocation6 + $0x1d8] sm:$0xff]
    %v2674 = vld [vmem:[#allocation6 + $0x1e0] sm:$0xff]
    %v2675 = vld [vmem:[#allocation6 + $0x1e8] sm:$0xff]
    %v2676 = vld [vmem:[#allocation6 + $0x1f0] sm:$0xff]
    %v2677 = vld [vmem:[#allocation6 + $0x1f8] sm:$0xff]
    %v2678 = vld [vmem:[#allocation6 + $0x200] sm:$0xff]
    %v2679 = vld [vmem:[#allocation6 + $0x208] sm:$0xff]
    %v2680 = vld [vmem:[#allocation6 + $0x210] sm:$0xff]
    %v2681 = vld [vmem:[#allocation6 + $0x218] sm:$0xff]
    %v2682 = vld [vmem:[#allocation6 + $0x220] sm:$0xff]
    %v2683 = vld [vmem:[#allocation6 + $0x228] sm:$0xff]
    %v2684 = vld [vmem:[#allocation6 + $0x230] sm:$0xff]
    %v2685 = vld [vmem:[#allocation6 + $0x238] sm:$0xff]
    %v2686 = vld [vmem:[#allocation6 + $0x240] sm:$0xff]
    %v2687 = vld [vmem:[#allocation6 + $0x248] sm:$0xff]
    %v2688 = vld [vmem:[#allocation6 + $0x250] sm:$0xff]
    %v2689 = vld [vmem:[#allocation6 + $0x258] sm:$0xff]
    %v2690 = vld [vmem:[#allocation6 + $0x260] sm:$0xff]
    %v2691 = vld [vmem:[#allocation6 + $0x268] sm:$0xff]
    %v2692 = vld [vmem:[#allocation6 + $0x270] sm:$0xff]
    %v2693 = vld [vmem:[#allocation6 + $0x278] sm:$0xff]
    %v2694 = vld [vmem:[#allocation6 + $0x280] sm:$0xff]
    %v2695 = vld [vmem:[#allocation6 + $0x288] sm:$0xff]
    %v2696 = vld [vmem:[#allocation6 + $0x290] sm:$0xff]
    %v2697 = vld [vmem:[#allocation6 + $0x298] sm:$0xff]
    %v2698 = vld [vmem:[#allocation6 + $0x2a0] sm:$0xff]
    %v2699 = vld [vmem:[#allocation6 + $0x2a8] sm:$0xff]
    %v2700 = vld [vmem:[#allocation6 + $0x2b0] sm:$0xff]
    %v2701 = vld [vmem:[#allocation6 + $0x2b8] sm:$0xff]
    %v2702 = vld [vmem:[#allocation6 + $0x2c0] sm:$0xff]
    %v2703 = vld [vmem:[#allocation6 + $0x2c8] sm:$0xff]
    %v2704 = vld [vmem:[#allocation6 + $0x2d0] sm:$0xff]
    %v2705 = vld [vmem:[#allocation6 + $0x2d8] sm:$0xff]
    %v2706 = vld [vmem:[#allocation6 + $0x2e0] sm:$0xff]
    %v2707 = vld [vmem:[#allocation6 + $0x2e8] sm:$0xff]
    %v2708 = vld [vmem:[#allocation6 + $0x2f0] sm:$0xff]
    %v2709 = vld [vmem:[#allocation6 + $0x2f8] sm:$0xff]
    %v2710 = vld [vmem:[#allocation6 + $0x300] sm:$0xff]
    %v2711 = vld [vmem:[#allocation6 + $0x308] sm:$0xff]
    %v2712 = vld [vmem:[#allocation6 + $0x310] sm:$0xff]
    %v2713 = vld [vmem:[#allocation6 + $0x318] sm:$0xff]
    %v2714 = vld [vmem:[#allocation6 + $0x320] sm:$0xff]
    %v2715 = vld [vmem:[#allocation6 + $0x328] sm:$0xff]
    %v2716 = vld [vmem:[#allocation6 + $0x330] sm:$0xff]
    %v2717 = vld [vmem:[#allocation6 + $0x338] sm:$0xff]
    %v2718 = vld [vmem:[#allocation6 + $0x340] sm:$0xff]
    %v2719 = vld [vmem:[#allocation6 + $0x348] sm:$0xff]
    %v2720 = vld [vmem:[#allocation6 + $0x350] sm:$0xff]
    %v2721 = vld [vmem:[#allocation6 + $0x358] sm:$0xff]
    %v2722 = vld [vmem:[#allocation6 + $0x360] sm:$0xff]
    %v2723 = vld [vmem:[#allocation6 + $0x368] sm:$0xff]
    %v2724 = vld [vmem:[#allocation6 + $0x370] sm:$0xff]
    %v2725 = vld [vmem:[#allocation6 + $0x378] sm:$0xff]
    %v2726 = vld [vmem:[#allocation6 + $0x380] sm:$0xff]
    %v2727 = vld [vmem:[#allocation6 + $0x388] sm:$0xff]
    %v2728 = vld [vmem:[#allocation6 + $0x390] sm:$0xff]
    %v2729 = vld [vmem:[#allocation6 + $0x398] sm:$0xff]
    %v2730 = vld [vmem:[#allocation6 + $0x3a0] sm:$0xff]
    %v2731 = vld [vmem:[#allocation6 + $0x3a8] sm:$0xff]
    %v2732 = vld [vmem:[#allocation6 + $0x3b0] sm:$0xff]
    %v2733 = vld [vmem:[#allocation6 + $0x3b8] sm:$0xff]
    %v2734 = vld [vmem:[#allocation6 + $0x3c0] sm:$0xff]
    %v2735 = vld [vmem:[#allocation6 + $0x3c8] sm:$0xff]
    %v2736 = vld [vmem:[#allocation6 + $0x3d0] sm:$0xff]
    %v2737 = vld [vmem:[#allocation6 + $0x3d8] sm:$0xff]
    %v2738 = vld [vmem:[#allocation6 + $0x3e0] sm:$0xff]
    %v2739 = vld [vmem:[#allocation6 + $0x3e8] sm:$0xff]
    %v2740 = vld [vmem:[#allocation6 + $0x3f0] sm:$0xff]
    %v2741 = vld [vmem:[#allocation6 + $0x3f8] sm:$0xff]
    %v2742 = vld [vmem:[#allocation6 + $0x400] sm:$0xff]
    %v2743 = vld [vmem:[#allocation6 + $0x408] sm:$0xff]
    %v2744 = vld [vmem:[#allocation6 + $0x410] sm:$0xff]
    %v2745 = vld [vmem:[#allocation6 + $0x418] sm:$0xff]
    %v2746 = vld [vmem:[#allocation6 + $0x420] sm:$0xff]
    %v2747 = vld [vmem:[#allocation6 + $0x428] sm:$0xff]
    %v2748 = vld [vmem:[#allocation6 + $0x430] sm:$0xff]
    %v2749 = vld [vmem:[#allocation6 + $0x438] sm:$0xff]
    %v2750 = vld [vmem:[#allocation6 + $0x440] sm:$0xff]
    %v2751 = vld [vmem:[#allocation6 + $0x448] sm:$0xff]
    %v2752 = vld [vmem:[#allocation6 + $0x450] sm:$0xff]
    %v2753 = vld [vmem:[#allocation6 + $0x458] sm:$0xff]
    %v2754 = vld [vmem:[#allocation6 + $0x460] sm:$0xff]
    %v2755 = vld [vmem:[#allocation6 + $0x468] sm:$0xff]
    %v2756 = vld [vmem:[#allocation6 + $0x470] sm:$0xff]
    %v2757 = vld [vmem:[#allocation6 + $0x478] sm:$0xff]
    %v2758 = vld [vmem:[#allocation6 + $0x480] sm:$0xff]
    %v2759 = vld [vmem:[#allocation6 + $0x488] sm:$0xff]
    %v2760 = vld [vmem:[#allocation6 + $0x490] sm:$0xff]
    %v2761 = vld [vmem:[#allocation6 + $0x498] sm:$0xff]
    %v2762 = vld [vmem:[#allocation6 + $0x4a0] sm:$0xff]
    %v2763 = vld [vmem:[#allocation6 + $0x4a8] sm:$0xff]
    %v2764 = vld [vmem:[#allocation6 + $0x4b0] sm:$0xff]
    %v2765 = vld [vmem:[#allocation6 + $0x4b8] sm:$0xff]
    %v2766 = vld [vmem:[#allocation6 + $0x4c0] sm:$0xff]
    %v2767 = vld [vmem:[#allocation6 + $0x4c8] sm:$0xff]
    %v2768 = vld [vmem:[#allocation6 + $0x4d0] sm:$0xff]
    %v2769 = vld [vmem:[#allocation6 + $0x4d8] sm:$0xff]
    %v2770 = vld [vmem:[#allocation6 + $0x4e0] sm:$0xff]
    %v2771 = vld [vmem:[#allocation6 + $0x4e8] sm:$0xff]
    %v2772 = vld [vmem:[#allocation6 + $0x4f0] sm:$0xff]
    %v2773 = vld [vmem:[#allocation6 + $0x4f8] sm:$0xff]
    %v2774 = vld [vmem:[#allocation6 + $0x500] sm:$0xff]
    %v2775 = vld [vmem:[#allocation6 + $0x508] sm:$0xff]
    %v2776 = vld [vmem:[#allocation6 + $0x510] sm:$0xff]
    %v2777 = vld [vmem:[#allocation6 + $0x518] sm:$0xff]
    %v2778 = vld [vmem:[#allocation6 + $0x520] sm:$0xff]
    %v2779 = vld [vmem:[#allocation6 + $0x528] sm:$0xff]
    %v2780 = vld [vmem:[#allocation6 + $0x530] sm:$0xff]
    %v2781 = vld [vmem:[#allocation6 + $0x538] sm:$0xff]
    %v2782 = vld [vmem:[#allocation6 + $0x540] sm:$0xff]
    %v2783 = vld [vmem:[#allocation6 + $0x548] sm:$0xff]
    %v2784 = vld [vmem:[#allocation6 + $0x550] sm:$0xff]
    %v2785 = vld [vmem:[#allocation6 + $0x558] sm:$0xff]
    %v2786 = vld [vmem:[#allocation6 + $0x560] sm:$0xff]
    %v2787 = vld [vmem:[#allocation6 + $0x568] sm:$0xff]
    %v2788 = vld [vmem:[#allocation6 + $0x570] sm:$0xff]
    %v2789 = vld [vmem:[#allocation6 + $0x578] sm:$0xff]
    %v2790 = vld [vmem:[#allocation6 + $0x580] sm:$0xff]
    %v2791 = vld [vmem:[#allocation6 + $0x588] sm:$0xff]
    %v2792 = vld [vmem:[#allocation6 + $0x590] sm:$0xff]
    %v2793 = vld [vmem:[#allocation6 + $0x598] sm:$0xff]
    %v2794 = vld [vmem:[#allocation6 + $0x5a0] sm:$0xff]
    %v2795 = vld [vmem:[#allocation6 + $0x5a8] sm:$0xff]
    %v2796 = vld [vmem:[#allocation6 + $0x5b0] sm:$0xff]
    %v2797 = vld [vmem:[#allocation6 + $0x5b8] sm:$0xff]
    %v2798 = vld [vmem:[#allocation6 + $0x5c0] sm:$0xff]
    %v2799 = vld [vmem:[#allocation6 + $0x5c8] sm:$0xff]
    %v2800 = vld [vmem:[#allocation6 + $0x5d0] sm:$0xff]
    %v2801 = vld [vmem:[#allocation6 + $0x5d8] sm:$0xff]
    %v2802 = vld [vmem:[#allocation6 + $0x5e0] sm:$0xff]
    %v2803 = vld [vmem:[#allocation6 + $0x5e8] sm:$0xff]
    %v2804 = vld [vmem:[#allocation6 + $0x5f0] sm:$0xff]
    %v2805 = vld [vmem:[#allocation6 + $0x5f8] sm:$0xff]
    %v2806 = vld [vmem:[#allocation6 + $0x600] sm:$0xff]
    %v2807 = vld [vmem:[#allocation6 + $0x608] sm:$0xff]
    %v2808 = vld [vmem:[#allocation6 + $0x610] sm:$0xff]
    %v2809 = vld [vmem:[#allocation6 + $0x618] sm:$0xff]
    %v2810 = vld [vmem:[#allocation6 + $0x620] sm:$0xff]
    %v2811 = vld [vmem:[#allocation6 + $0x628] sm:$0xff]
    %v2812 = vld [vmem:[#allocation6 + $0x630] sm:$0xff]
    %v2813 = vld [vmem:[#allocation6 + $0x638] sm:$0xff]
    %v2814 = vld [vmem:[#allocation6 + $0x640] sm:$0xff]
    %v2815 = vld [vmem:[#allocation6 + $0x648] sm:$0xff]
    %v2816 = vld [vmem:[#allocation6 + $0x650] sm:$0xff]
    %v2817 = vld [vmem:[#allocation6 + $0x658] sm:$0xff]
    %v2818 = vld [vmem:[#allocation6 + $0x660] sm:$0xff]
    %v2819 = vld [vmem:[#allocation6 + $0x668] sm:$0xff]
    %v2820 = vld [vmem:[#allocation6 + $0x670] sm:$0xff]
    %v2821 = vld [vmem:[#allocation6 + $0x678] sm:$0xff]
    %v2822 = vld [vmem:[#allocation6 + $0x680] sm:$0xff]
    %v2823 = vld [vmem:[#allocation6 + $0x688] sm:$0xff]
    %v2824 = vld [vmem:[#allocation6 + $0x690] sm:$0xff]
    %v2825 = vld [vmem:[#allocation6 + $0x698] sm:$0xff]
    %v2826 = vld [vmem:[#allocation6 + $0x6a0] sm:$0xff]
    %v2827 = vld [vmem:[#allocation6 + $0x6a8] sm:$0xff]
    %v2828 = vld [vmem:[#allocation6 + $0x6b0] sm:$0xff]
    %v2829 = vld [vmem:[#allocation6 + $0x6b8] sm:$0xff]
    %v2830 = vld [vmem:[#allocation6 + $0x6c0] sm:$0xff]
    %v2831 = vld [vmem:[#allocation6 + $0x6c8] sm:$0xff]
    %v2832 = vld [vmem:[#allocation6 + $0x6d0] sm:$0xff]
    %v2833 = vld [vmem:[#allocation6 + $0x6d8] sm:$0xff]
    %v2834 = vld [vmem:[#allocation6 + $0x6e0] sm:$0xff]
    %v2835 = vld [vmem:[#allocation6 + $0x6e8] sm:$0xff]
    %v2836 = vld [vmem:[#allocation6 + $0x6f0] sm:$0xff]
    %v2837 = vld [vmem:[#allocation6 + $0x6f8] sm:$0xff]
    %v2838 = vld [vmem:[#allocation6 + $0x700] sm:$0xff]
    %v2839 = vld [vmem:[#allocation6 + $0x708] sm:$0xff]
    %v2840 = vld [vmem:[#allocation6 + $0x710] sm:$0xff]
    %v2841 = vld [vmem:[#allocation6 + $0x718] sm:$0xff]
    %v2842 = vld [vmem:[#allocation6 + $0x720] sm:$0xff]
    %v2843 = vld [vmem:[#allocation6 + $0x728] sm:$0xff]
    %v2844 = vld [vmem:[#allocation6 + $0x730] sm:$0xff]
    %v2845 = vld [vmem:[#allocation6 + $0x738] sm:$0xff]
    %v2846 = vld [vmem:[#allocation6 + $0x740] sm:$0xff]
    %v2847 = vld [vmem:[#allocation6 + $0x748] sm:$0xff]
    %v2848 = vld [vmem:[#allocation6 + $0x750] sm:$0xff]
    %v2849 = vld [vmem:[#allocation6 + $0x758] sm:$0xff]
    %v2850 = vld [vmem:[#allocation6 + $0x760] sm:$0xff]
    %v2851 = vld [vmem:[#allocation6 + $0x768] sm:$0xff]
    %v2852 = vld [vmem:[#allocation6 + $0x770] sm:$0xff]
    %v2853 = vld [vmem:[#allocation6 + $0x778] sm:$0xff]
    %v2854 = vld [vmem:[#allocation6 + $0x780] sm:$0xff]
    %v2855 = vld [vmem:[#allocation6 + $0x788] sm:$0xff]
    %v2856 = vld [vmem:[#allocation6 + $0x790] sm:$0xff]
    %v2857 = vld [vmem:[#allocation6 + $0x798] sm:$0xff]
    %v2858 = vld [vmem:[#allocation6 + $0x7a0] sm:$0xff]
    %v2859 = vld [vmem:[#allocation6 + $0x7a8] sm:$0xff]
    %v2860 = vld [vmem:[#allocation6 + $0x7b0] sm:$0xff]
    %v2861 = vld [vmem:[#allocation6 + $0x7b8] sm:$0xff]
    %v2862 = vld [vmem:[#allocation6 + $0x7c0] sm:$0xff]
    %v2863 = vld [vmem:[#allocation6 + $0x7c8] sm:$0xff]
    %v2864 = vld [vmem:[#allocation6 + $0x7d0] sm:$0xff]
    %v2865 = vld [vmem:[#allocation6 + $0x7d8] sm:$0xff]
    %v2866 = vld [vmem:[#allocation6 + $0x7e0] sm:$0xff]
    %v2867 = vld [vmem:[#allocation6 + $0x7e8] sm:$0xff]
    %v2868 = vld [vmem:[#allocation6 + $0x7f0] sm:$0xff]
    %v2869 = vld [vmem:[#allocation6 + $0x7f8] sm:$0xff]
    %v2870 = vld [vmem:[#allocation6 + $0x800] sm:$0xff]
    %v2871 = vld [vmem:[#allocation6 + $0x808] sm:$0xff]
    %v2872 = vld [vmem:[#allocation6 + $0x810] sm:$0xff]
    %v2873 = vld [vmem:[#allocation6 + $0x818] sm:$0xff]
    %v2874 = vld [vmem:[#allocation6 + $0x820] sm:$0xff]
    %v2875 = vld [vmem:[#allocation6 + $0x828] sm:$0xff]
    %v2876 = vld [vmem:[#allocation6 + $0x830] sm:$0xff]
    %v2877 = vld [vmem:[#allocation6 + $0x838] sm:$0xff]
    %v2878 = vld [vmem:[#allocation6 + $0x840] sm:$0xff]
    %v2879 = vld [vmem:[#allocation6 + $0x848] sm:$0xff]
    %v2880 = vld [vmem:[#allocation6 + $0x850] sm:$0xff]
    %v2881 = vld [vmem:[#allocation6 + $0x858] sm:$0xff]
    %v2882 = vld [vmem:[#allocation6 + $0x860] sm:$0xff]
    %v2883 = vld [vmem:[#allocation6 + $0x868] sm:$0xff]
    %v2884 = vld [vmem:[#allocation6 + $0x870] sm:$0xff]
    %v2885 = vld [vmem:[#allocation6 + $0x878] sm:$0xff]
    %v2886 = vld [vmem:[#allocation6 + $0x880] sm:$0xff]
    %v2887 = vld [vmem:[#allocation6 + $0x888] sm:$0xff]
    %v2888 = vld [vmem:[#allocation6 + $0x890] sm:$0xff]
    %v2889 = vld [vmem:[#allocation6 + $0x898] sm:$0xff]
    %v2890 = vld [vmem:[#allocation6 + $0x8a0] sm:$0xff]
    %v2891 = vld [vmem:[#allocation6 + $0x8a8] sm:$0xff]
    %v2892 = vld [vmem:[#allocation6 + $0x8b0] sm:$0xff]
    %v2893 = vld [vmem:[#allocation6 + $0x8b8] sm:$0xff]
    %v2894 = vld [vmem:[#allocation6 + $0x8c0] sm:$0xff]
    %v2895 = vld [vmem:[#allocation6 + $0x8c8] sm:$0xff]
    %v2896 = vld [vmem:[#allocation6 + $0x8d0] sm:$0xff]
    %v2897 = vld [vmem:[#allocation6 + $0x8d8] sm:$0xff]
    %v2898 = vld [vmem:[#allocation6 + $0x8e0] sm:$0xff]
    %v2899 = vld [vmem:[#allocation6 + $0x8e8] sm:$0xff]
    %v2900 = vld [vmem:[#allocation6 + $0x8f0] sm:$0xff]
    %v2901 = vld [vmem:[#allocation6 + $0x8f8] sm:$0xff]
    %v2902 = vld [vmem:[#allocation6 + $0x900] sm:$0xff]
    %v2903 = vld [vmem:[#allocation6 + $0x908] sm:$0xff]
    %v2904 = vld [vmem:[#allocation6 + $0x910] sm:$0xff]
    %v2905 = vld [vmem:[#allocation6 + $0x918] sm:$0xff]
    %v2906 = vld [vmem:[#allocation6 + $0x920] sm:$0xff]
    %v2907 = vld [vmem:[#allocation6 + $0x928] sm:$0xff]
    %v2908 = vld [vmem:[#allocation6 + $0x930] sm:$0xff]
    %v2909 = vld [vmem:[#allocation6 + $0x938] sm:$0xff]
    %v2910 = vld [vmem:[#allocation6 + $0x940] sm:$0xff]
    %v2911 = vld [vmem:[#allocation6 + $0x948] sm:$0xff]
    %v2912 = vld [vmem:[#allocation6 + $0x950] sm:$0xff]
    %v2913 = vld [vmem:[#allocation6 + $0x958] sm:$0xff]
    %v2914 = vld [vmem:[#allocation6 + $0x960] sm:$0xff]
    %v2915 = vld [vmem:[#allocation6 + $0x968] sm:$0xff]
    %v2916 = vld [vmem:[#allocation6 + $0x970] sm:$0xff]
    %v2917 = vld [vmem:[#allocation6 + $0x978] sm:$0xff]
    %v2918 = vld [vmem:[#allocation6 + $0x980] sm:$0xff]
    %v2919 = vld [vmem:[#allocation6 + $0x988] sm:$0xff]
    %v2920 = vld [vmem:[#allocation6 + $0x990] sm:$0xff]
    %v2921 = vld [vmem:[#allocation6 + $0x998] sm:$0xff]
    %v2922 = vld [vmem:[#allocation6 + $0x9a0] sm:$0xff]
    %v2923 = vld [vmem:[#allocation6 + $0x9a8] sm:$0xff]
    %v2924 = vld [vmem:[#allocation6 + $0x9b0] sm:$0xff]
    %v2925 = vld [vmem:[#allocation6 + $0x9b8] sm:$0xff]
    %v2926 = vld [vmem:[#allocation6 + $0x9c0] sm:$0xff]
    %v2927 = vld [vmem:[#allocation6 + $0x9c8] sm:$0xff]
    %v2928 = vld [vmem:[#allocation6 + $0x9d0] sm:$0xff]
    %v2929 = vld [vmem:[#allocation6 + $0x9d8] sm:$0xff]
    %v2930 = vld [vmem:[#allocation6 + $0x9e0] sm:$0xff]
    %v2931 = vld [vmem:[#allocation6 + $0x9e8] sm:$0xff]
    %v2932 = vld [vmem:[#allocation6 + $0x9f0] sm:$0xff]
    %v2933 = vld [vmem:[#allocation6 + $0x9f8] sm:$0xff]
    %v2934 = vld [vmem:[#allocation6 + $0xa00] sm:$0xff]
    %v2935 = vld [vmem:[#allocation6 + $0xa08] sm:$0xff]
    %v2936 = vld [vmem:[#allocation6 + $0xa10] sm:$0xff]
    %v2937 = vld [vmem:[#allocation6 + $0xa18] sm:$0xff]
    %v2938 = vld [vmem:[#allocation6 + $0xa20] sm:$0xff]
    %v2939 = vld [vmem:[#allocation6 + $0xa28] sm:$0xff]
    %v2940 = vld [vmem:[#allocation6 + $0xa30] sm:$0xff]
    %v2941 = vld [vmem:[#allocation6 + $0xa38] sm:$0xff]
    %v2942 = vld [vmem:[#allocation6 + $0xa40] sm:$0xff]
    %v2943 = vld [vmem:[#allocation6 + $0xa48] sm:$0xff]
    %v2944 = vld [vmem:[#allocation6 + $0xa50] sm:$0xff]
    %v2945 = vld [vmem:[#allocation6 + $0xa58] sm:$0xff]
    %v2946 = vld [vmem:[#allocation6 + $0xa60] sm:$0xff]
    %v2947 = vld [vmem:[#allocation6 + $0xa68] sm:$0xff]
    %v2948 = vld [vmem:[#allocation6 + $0xa70] sm:$0xff]
    %v2949 = vld [vmem:[#allocation6 + $0xa78] sm:$0xff]
    %v2950 = vld [vmem:[#allocation6 + $0xa80] sm:$0xff]
    %v2951 = vld [vmem:[#allocation6 + $0xa88] sm:$0xff]
    %v2952 = vld [vmem:[#allocation6 + $0xa90] sm:$0xff]
    %v2953 = vld [vmem:[#allocation6 + $0xa98] sm:$0xff]
    %v2954 = vld [vmem:[#allocation6 + $0xaa0] sm:$0xff]
    %v2955 = vld [vmem:[#allocation6 + $0xaa8] sm:$0xff]
    %v2956 = vld [vmem:[#allocation6 + $0xab0] sm:$0xff]
    %v2957 = vld [vmem:[#allocation6 + $0xab8] sm:$0xff]
    %v2958 = vld [vmem:[#allocation6 + $0xac0] sm:$0xff]
    %v2959 = vld [vmem:[#allocation6 + $0xac8] sm:$0xff]
    %v2960 = vld [vmem:[#allocation6 + $0xad0] sm:$0xff]
    %v2961 = vld [vmem:[#allocation6 + $0xad8] sm:$0xff]
    %v2962 = vld [vmem:[#allocation6 + $0xae0] sm:$0xff]
    %v2963 = vld [vmem:[#allocation6 + $0xae8] sm:$0xff]
    %v2964 = vld [vmem:[#allocation6 + $0xaf0] sm:$0xff]
    %v2965 = vld [vmem:[#allocation6 + $0xaf8] sm:$0xff]
    %v2966 = vld [vmem:[#allocation6 + $0xb00] sm:$0xff]
    %v2967 = vld [vmem:[#allocation6 + $0xb08] sm:$0xff]
    %v2968 = vld [vmem:[#allocation6 + $0xb10] sm:$0xff]
    %v2969 = vld [vmem:[#allocation6 + $0xb18] sm:$0xff]
    %v2970 = vld [vmem:[#allocation6 + $0xb20] sm:$0xff]
    %v2971 = vld [vmem:[#allocation6 + $0xb28] sm:$0xff]
    %v2972 = vld [vmem:[#allocation6 + $0xb30] sm:$0xff]
    %v2973 = vld [vmem:[#allocation6 + $0xb38] sm:$0xff]
    %v2974 = vld [vmem:[#allocation6 + $0xb40] sm:$0xff]
    %v2975 = vld [vmem:[#allocation6 + $0xb48] sm:$0xff]
    %v2976 = vld [vmem:[#allocation6 + $0xb50] sm:$0xff]
    %v2977 = vld [vmem:[#allocation6 + $0xb58] sm:$0xff]
    %v2978 = vld [vmem:[#allocation6 + $0xb60] sm:$0xff]
    %v2979 = vld [vmem:[#allocation6 + $0xb68] sm:$0xff]
    %v2980 = vld [vmem:[#allocation6 + $0xb70] sm:$0xff]
    %v2981 = vld [vmem:[#allocation6 + $0xb78] sm:$0xff]
    %v2982 = vld [vmem:[#allocation6 + $0xb80] sm:$0xff]
    %v2983 = vld [vmem:[#allocation6 + $0xb88] sm:$0xff]
    %v2984 = vld [vmem:[#allocation6 + $0xb90] sm:$0xff]
    %v2985 = vld [vmem:[#allocation6 + $0xb98] sm:$0xff]
    %v2986 = vld [vmem:[#allocation6 + $0xba0] sm:$0xff]
    %v2987 = vld [vmem:[#allocation6 + $0xba8] sm:$0xff]
    %v2988 = vld [vmem:[#allocation6 + $0xbb0] sm:$0xff]
    %v2989 = vld [vmem:[#allocation6 + $0xbb8] sm:$0xff]
    %v2990 = vld [vmem:[#allocation6 + $0xbc0] sm:$0xff]
    %v2991 = vld [vmem:[#allocation6 + $0xbc8] sm:$0xff]
    %v2992 = vld [vmem:[#allocation6 + $0xbd0] sm:$0xff]
    %v2993 = vld [vmem:[#allocation6 + $0xbd8] sm:$0xff]
    %v2994 = vld [vmem:[#allocation6 + $0xbe0] sm:$0xff]
    %v2995 = vld [vmem:[#allocation6 + $0xbe8] sm:$0xff]
    %v2996 = vld [vmem:[#allocation6 + $0xbf0] sm:$0xff]
    %v2997 = vld [vmem:[#allocation6 + $0xbf8] sm:$0xff]
    %v2998 = vld [vmem:[#allocation6 + $0xc00] sm:$0xff]
    %v2999 = vld [vmem:[#allocation6 + $0xc08] sm:$0xff]
    %v3000 = vld [vmem:[#allocation6 + $0xc10] sm:$0xff]
    %v3001 = vld [vmem:[#allocation6 + $0xc18] sm:$0xff]
    %v3002 = vld [vmem:[#allocation6 + $0xc20] sm:$0xff]
    %v3003 = vld [vmem:[#allocation6 + $0xc28] sm:$0xff]
    %v3004 = vld [vmem:[#allocation6 + $0xc30] sm:$0xff]
    %v3005 = vld [vmem:[#allocation6 + $0xc38] sm:$0xff]
    %v3006 = vld [vmem:[#allocation6 + $0xc40] sm:$0xff]
    %v3007 = vld [vmem:[#allocation6 + $0xc48] sm:$0xff]
    %v3008 = vld [vmem:[#allocation6 + $0xc50] sm:$0xff]
    %v3009 = vld [vmem:[#allocation6 + $0xc58] sm:$0xff]
    %v3010 = vld [vmem:[#allocation6 + $0xc60] sm:$0xff]
    %v3011 = vld [vmem:[#allocation6 + $0xc68] sm:$0xff]
    %v3012 = vld [vmem:[#allocation6 + $0xc70] sm:$0xff]
    %v3013 = vld [vmem:[#allocation6 + $0xc78] sm:$0xff]
    %v3014 = vld [vmem:[#allocation6 + $0xc80] sm:$0xff]
    %v3015 = vld [vmem:[#allocation6 + $0xc88] sm:$0xff]
    %v3016 = vld [vmem:[#allocation6 + $0xc90] sm:$0xff]
    %v3017 = vld [vmem:[#allocation6 + $0xc98] sm:$0xff]
    %v3018 = vld [vmem:[#allocation6 + $0xca0] sm:$0xff]
    %v3019 = vld [vmem:[#allocation6 + $0xca8] sm:$0xff]
    %v3020 = vld [vmem:[#allocation6 + $0xcb0] sm:$0xff]
    %v3021 = vld [vmem:[#allocation6 + $0xcb8] sm:$0xff]
    %v3022 = vld [vmem:[#allocation6 + $0xcc0] sm:$0xff]
    %v3023 = vld [vmem:[#allocation6 + $0xcc8] sm:$0xff]
    %v3024 = vld [vmem:[#allocation6 + $0xcd0] sm:$0xff]
    %v3025 = vld [vmem:[#allocation6 + $0xcd8] sm:$0xff]
    %v3026 = vld [vmem:[#allocation6 + $0xce0] sm:$0xff]
    %v3027 = vld [vmem:[#allocation6 + $0xce8] sm:$0xff]
    %v3028 = vld [vmem:[#allocation6 + $0xcf0] sm:$0xff]
    %v3029 = vld [vmem:[#allocation6 + $0xcf8] sm:$0xff]
    %v3030 = vld [vmem:[#allocation6 + $0xd00] sm:$0xff]
    %v3031 = vld [vmem:[#allocation6 + $0xd08] sm:$0xff]
    %v3032 = vld [vmem:[#allocation6 + $0xd10] sm:$0xff]
    %v3033 = vld [vmem:[#allocation6 + $0xd18] sm:$0xff]
    %v3034 = vld [vmem:[#allocation6 + $0xd20] sm:$0xff]
    %v3035 = vld [vmem:[#allocation6 + $0xd28] sm:$0xff]
    %v3036 = vld [vmem:[#allocation6 + $0xd30] sm:$0xff]
    %v3037 = vld [vmem:[#allocation6 + $0xd38] sm:$0xff]
    %v3038 = vld [vmem:[#allocation6 + $0xd40] sm:$0xff]
    %v3039 = vld [vmem:[#allocation6 + $0xd48] sm:$0xff]
    %v3040 = vld [vmem:[#allocation6 + $0xd50] sm:$0xff]
    %v3041 = vld [vmem:[#allocation6 + $0xd58] sm:$0xff]
    %v3042 = vld [vmem:[#allocation6 + $0xd60] sm:$0xff]
    %v3043 = vld [vmem:[#allocation6 + $0xd68] sm:$0xff]
    %v3044 = vld [vmem:[#allocation6 + $0xd70] sm:$0xff]
    %v3045 = vld [vmem:[#allocation6 + $0xd78] sm:$0xff]
    %v3046 = vld [vmem:[#allocation6 + $0xd80] sm:$0xff]
    %v3047 = vld [vmem:[#allocation6 + $0xd88] sm:$0xff]
    %v3048 = vld [vmem:[#allocation6 + $0xd90] sm:$0xff]
    %v3049 = vld [vmem:[#allocation6 + $0xd98] sm:$0xff]
    %v3050 = vld [vmem:[#allocation6 + $0xda0] sm:$0xff]
    %v3051 = vld [vmem:[#allocation6 + $0xda8] sm:$0xff]
    %v3052 = vld [vmem:[#allocation6 + $0xdb0] sm:$0xff]
    %v3053 = vld [vmem:[#allocation6 + $0xdb8] sm:$0xff]
    %v3054 = vld [vmem:[#allocation6 + $0xdc0] sm:$0xff]
    %v3055 = vld [vmem:[#allocation6 + $0xdc8] sm:$0xff]
    %v3056 = vld [vmem:[#allocation6 + $0xdd0] sm:$0xff]
    %v3057 = vld [vmem:[#allocation6 + $0xdd8] sm:$0xff]
    %v3058 = vld [vmem:[#allocation6 + $0xde0] sm:$0xff]
    %v3059 = vld [vmem:[#allocation6 + $0xde8] sm:$0xff]
    %v3060 = vld [vmem:[#allocation6 + $0xdf0] sm:$0xff]
    %v3061 = vld [vmem:[#allocation6 + $0xdf8] sm:$0xff]
    %v3062 = vld [vmem:[#allocation6 + $0xe00] sm:$0xff]
    %v3063 = vld [vmem:[#allocation6 + $0xe08] sm:$0xff]
    %v3064 = vld [vmem:[#allocation6 + $0xe10] sm:$0xff]
    %v3065 = vld [vmem:[#allocation6 + $0xe18] sm:$0xff]
    %v3066 = vld [vmem:[#allocation6 + $0xe20] sm:$0xff]
    %v3067 = vld [vmem:[#allocation6 + $0xe28] sm:$0xff]
    %v3068 = vld [vmem:[#allocation6 + $0xe30] sm:$0xff]
    %v3069 = vld [vmem:[#allocation6 + $0xe38] sm:$0xff]
    %v3070 = vld [vmem:[#allocation6 + $0xe40] sm:$0xff]
    %v3071 = vld [vmem:[#allocation6 + $0xe48] sm:$0xff]
    %v3072 = vld [vmem:[#allocation6 + $0xe50] sm:$0xff]
    %v3073 = vld [vmem:[#allocation6 + $0xe58] sm:$0xff]
    %v3074 = vld [vmem:[#allocation6 + $0xe60] sm:$0xff]
    %v3075 = vld [vmem:[#allocation6 + $0xe68] sm:$0xff]
    %v3076 = vld [vmem:[#allocation6 + $0xe70] sm:$0xff]
    %v3077 = vld [vmem:[#allocation6 + $0xe78] sm:$0xff]
    %v3078 = vld [vmem:[#allocation6 + $0xe80] sm:$0xff]
    %v3079 = vld [vmem:[#allocation6 + $0xe88] sm:$0xff]
    %v3080 = vld [vmem:[#allocation6 + $0xe90] sm:$0xff]
    %v3081 = vld [vmem:[#allocation6 + $0xe98] sm:$0xff]
    %v3082 = vld [vmem:[#allocation6 + $0xea0] sm:$0xff]
    %v3083 = vld [vmem:[#allocation6 + $0xea8] sm:$0xff]
    %v3084 = vld [vmem:[#allocation6 + $0xeb0] sm:$0xff]
    %v3085 = vld [vmem:[#allocation6 + $0xeb8] sm:$0xff]
    %v3086 = vld [vmem:[#allocation6 + $0xec0] sm:$0xff]
    %v3087 = vld [vmem:[#allocation6 + $0xec8] sm:$0xff]
    %v3088 = vld [vmem:[#allocation6 + $0xed0] sm:$0xff]
    %v3089 = vld [vmem:[#allocation6 + $0xed8] sm:$0xff]
    %v3090 = vld [vmem:[#allocation6 + $0xee0] sm:$0xff]
    %v3091 = vld [vmem:[#allocation6 + $0xee8] sm:$0xff]
    %v3092 = vld [vmem:[#allocation6 + $0xef0] sm:$0xff]
    %v3093 = vld [vmem:[#allocation6 + $0xef8] sm:$0xff]
    %v3094 = vld [vmem:[#allocation6 + $0xf00] sm:$0xff]
    %v3095 = vld [vmem:[#allocation6 + $0xf08] sm:$0xff]
    %v3096 = vld [vmem:[#allocation6 + $0xf10] sm:$0xff]
    %v3097 = vld [vmem:[#allocation6 + $0xf18] sm:$0xff]
    %v3098 = vld [vmem:[#allocation6 + $0xf20] sm:$0xff]
    %v3099 = vld [vmem:[#allocation6 + $0xf28] sm:$0xff]
    %v3100 = vld [vmem:[#allocation6 + $0xf30] sm:$0xff]
    %v3101 = vld [vmem:[#allocation6 + $0xf38] sm:$0xff]
    %v3102 = vld [vmem:[#allocation6 + $0xf40] sm:$0xff]
    %v3103 = vld [vmem:[#allocation6 + $0xf48] sm:$0xff]
    %v3104 = vld [vmem:[#allocation6 + $0xf50] sm:$0xff]
    %v3105 = vld [vmem:[#allocation6 + $0xf58] sm:$0xff]
    %v3106 = vld [vmem:[#allocation6 + $0xf60] sm:$0xff]
    %v3107 = vld [vmem:[#allocation6 + $0xf68] sm:$0xff]
    %v3108 = vld [vmem:[#allocation6 + $0xf70] sm:$0xff]
    %v3109 = vld [vmem:[#allocation6 + $0xf78] sm:$0xff]
    %v3110 = vld [vmem:[#allocation6 + $0xf80] sm:$0xff]
    %v3111 = vld [vmem:[#allocation6 + $0xf88] sm:$0xff]
    %v3112 = vld [vmem:[#allocation6 + $0xf90] sm:$0xff]
    %v3113 = vld [vmem:[#allocation6 + $0xf98] sm:$0xff]
    %v3114 = vld [vmem:[#allocation6 + $0xfa0] sm:$0xff]
    %v3115 = vld [vmem:[#allocation6 + $0xfa8] sm:$0xff]
    %v3116 = vld [vmem:[#allocation6 + $0xfb0] sm:$0xff]
    %v3117 = vld [vmem:[#allocation6 + $0xfb8] sm:$0xff]
    %v3118 = vld [vmem:[#allocation6 + $0xfc0] sm:$0xff]
    %v3119 = vld [vmem:[#allocation6 + $0xfc8] sm:$0xff]
    %v3120 = vld [vmem:[#allocation6 + $0xfd0] sm:$0xff]
    %v3121 = vld [vmem:[#allocation6 + $0xfd8] sm:$0xff]
    %v3122 = vld [vmem:[#allocation6 + $0xfe0] sm:$0xff]
    %v3123 = vld [vmem:[#allocation6 + $0xfe8] sm:$0xff]
    %v3124 = vld [vmem:[#allocation6 + $0xff0] sm:$0xff]
    %v3125 = vld [vmem:[#allocation6 + $0xff8] sm:$0xff]
    %v3126 = vld [vmem:[#allocation7] sm:$0xff]
    %v3128 = vlaneseq
    %v3129 = vshrl.u32 %v3128, 7
    %v3130 = vsub.s32 0, %v3129
    %v3131 = vrot.slane %v3126, %v3130
    %v3132 = vlaneseq
    %v3133 = vshrl.u32 %v3132, 7
    %v3134 = vsub.s32 1, %v3133
    %v3135 = vrot.slane %v3126, %v3134
    %v3136 = vlaneseq
    %v3137 = vshrl.u32 %v3136, 7
    %v3138 = vsub.s32 2, %v3137
    %v3139 = vrot.slane %v3126, %v3138
    %v3140 = vlaneseq
    %v3141 = vshrl.u32 %v3140, 7
    %v3142 = vsub.s32 3, %v3141
    %v3143 = vrot.slane %v3126, %v3142
    %v3144 = vlaneseq
    %v3145 = vshrl.u32 %v3144, 7
    %v3146 = vsub.s32 4, %v3145
    %v3147 = vrot.slane %v3126, %v3146
    %v3148 = vlaneseq
    %v3149 = vshrl.u32 %v3148, 7
    %v3150 = vsub.s32 5, %v3149
    %v3151 = vrot.slane %v3126, %v3150
    %v3152 = vlaneseq
    %v3153 = vshrl.u32 %v3152, 7
    %v3154 = vsub.s32 6, %v3153
    %v3155 = vrot.slane %v3126, %v3154
    %v3156 = vlaneseq
    %v3157 = vshrl.u32 %v3156, 7
    %v3158 = vsub.s32 7, %v3157
    %v3159 = vrot.slane %v3126, %v3158
    %v3680 = vunpack.c.l.b16 %v2614
    %v3681 = vunpack.c.h.b16 %v2614
    %v3682 = vunpack.c.l.b16 %v2615
    %v3683 = vunpack.c.h.b16 %v2615
    %v3684 = vunpack.c.l.b16 %v2616
    %v3685 = vunpack.c.h.b16 %v2616
    %v3686 = vunpack.c.l.b16 %v2617
    %v3687 = vunpack.c.h.b16 %v2617
    %v3688 = vunpack.c.l.b16 %v2618
    %v3689 = vunpack.c.h.b16 %v2618
    %v3690 = vunpack.c.l.b16 %v2619
    %v3691 = vunpack.c.h.b16 %v2619
    %v3692 = vunpack.c.l.b16 %v2620
    %v3693 = vunpack.c.h.b16 %v2620
    %v3694 = vunpack.c.l.b16 %v2621
    %v3695 = vunpack.c.h.b16 %v2621
    %v3696 = vunpack.c.l.b16 %v2622
    %v3697 = vunpack.c.h.b16 %v2622
    %v3698 = vunpack.c.l.b16 %v2623
    %v3699 = vunpack.c.h.b16 %v2623
    %v3700 = vunpack.c.l.b16 %v2624
    %v3701 = vunpack.c.h.b16 %v2624
    %v3702 = vunpack.c.l.b16 %v2625
    %v3703 = vunpack.c.h.b16 %v2625
    %v3704 = vunpack.c.l.b16 %v2626
    %v3705 = vunpack.c.h.b16 %v2626
    %v3706 = vunpack.c.l.b16 %v2627
    %v3707 = vunpack.c.h.b16 %v2627
    %v3708 = vunpack.c.l.b16 %v2628
    %v3709 = vunpack.c.h.b16 %v2628
    %v3710 = vunpack.c.l.b16 %v2629
    %v3711 = vunpack.c.h.b16 %v2629
    %v3712 = vunpack.c.l.b16 %v2630
    %v3713 = vunpack.c.h.b16 %v2630
    %v3714 = vunpack.c.l.b16 %v2631
    %v3715 = vunpack.c.h.b16 %v2631
    %v3716 = vunpack.c.l.b16 %v2632
    %v3717 = vunpack.c.h.b16 %v2632
    %v3718 = vunpack.c.l.b16 %v2633
    %v3719 = vunpack.c.h.b16 %v2633
    %v3720 = vunpack.c.l.b16 %v2634
    %v3721 = vunpack.c.h.b16 %v2634
    %v3722 = vunpack.c.l.b16 %v2635
    %v3723 = vunpack.c.h.b16 %v2635
    %v3724 = vunpack.c.l.b16 %v2636
    %v3725 = vunpack.c.h.b16 %v2636
    %v3726 = vunpack.c.l.b16 %v2637
    %v3727 = vunpack.c.h.b16 %v2637
    %v3728 = vunpack.c.l.b16 %v2638
    %v3729 = vunpack.c.h.b16 %v2638
    %v3730 = vunpack.c.l.b16 %v2639
    %v3731 = vunpack.c.h.b16 %v2639
    %v3732 = vunpack.c.l.b16 %v2640
    %v3733 = vunpack.c.h.b16 %v2640
    %v3734 = vunpack.c.l.b16 %v2641
    %v3735 = vunpack.c.h.b16 %v2641
    %v3736 = vunpack.c.l.b16 %v2642
    %v3737 = vunpack.c.h.b16 %v2642
    %v3738 = vunpack.c.l.b16 %v2643
    %v3739 = vunpack.c.h.b16 %v2643
    %v3740 = vunpack.c.l.b16 %v2644
    %v3741 = vunpack.c.h.b16 %v2644
    %v3742 = vunpack.c.l.b16 %v2645
    %v3743 = vunpack.c.h.b16 %v2645
    %v3744 = vunpack.c.l.b16 %v2646
    %v3745 = vunpack.c.h.b16 %v2646
    %v3746 = vunpack.c.l.b16 %v2647
    %v3747 = vunpack.c.h.b16 %v2647
    %v3748 = vunpack.c.l.b16 %v2648
    %v3749 = vunpack.c.h.b16 %v2648
    %v3750 = vunpack.c.l.b16 %v2649
    %v3751 = vunpack.c.h.b16 %v2649
    %v3752 = vunpack.c.l.b16 %v2650
    %v3753 = vunpack.c.h.b16 %v2650
    %v3754 = vunpack.c.l.b16 %v2651
    %v3755 = vunpack.c.h.b16 %v2651
    %v3756 = vunpack.c.l.b16 %v2652
    %v3757 = vunpack.c.h.b16 %v2652
    %v3758 = vunpack.c.l.b16 %v2653
    %v3759 = vunpack.c.h.b16 %v2653
    %v3760 = vunpack.c.l.b16 %v2654
    %v3761 = vunpack.c.h.b16 %v2654
    %v3762 = vunpack.c.l.b16 %v2655
    %v3763 = vunpack.c.h.b16 %v2655
    %v3764 = vunpack.c.l.b16 %v2656
    %v3765 = vunpack.c.h.b16 %v2656
    %v3766 = vunpack.c.l.b16 %v2657
    %v3767 = vunpack.c.h.b16 %v2657
    %v3768 = vunpack.c.l.b16 %v2658
    %v3769 = vunpack.c.h.b16 %v2658
    %v3770 = vunpack.c.l.b16 %v2659
    %v3771 = vunpack.c.h.b16 %v2659
    %v3772 = vunpack.c.l.b16 %v2660
    %v3773 = vunpack.c.h.b16 %v2660
    %v3774 = vunpack.c.l.b16 %v2661
    %v3775 = vunpack.c.h.b16 %v2661
    %v3776 = vunpack.c.l.b16 %v2662
    %v3777 = vunpack.c.h.b16 %v2662
    %v3778 = vunpack.c.l.b16 %v2663
    %v3779 = vunpack.c.h.b16 %v2663
    %v3780 = vunpack.c.l.b16 %v2664
    %v3781 = vunpack.c.h.b16 %v2664
    %v3782 = vunpack.c.l.b16 %v2665
    %v3783 = vunpack.c.h.b16 %v2665
    %v3784 = vunpack.c.l.b16 %v2666
    %v3785 = vunpack.c.h.b16 %v2666
    %v3786 = vunpack.c.l.b16 %v2667
    %v3787 = vunpack.c.h.b16 %v2667
    %v3788 = vunpack.c.l.b16 %v2668
    %v3789 = vunpack.c.h.b16 %v2668
    %v3790 = vunpack.c.l.b16 %v2669
    %v3791 = vunpack.c.h.b16 %v2669
    %v3792 = vunpack.c.l.b16 %v2670
    %v3793 = vunpack.c.h.b16 %v2670
    %v3794 = vunpack.c.l.b16 %v2671
    %v3795 = vunpack.c.h.b16 %v2671
    %v3796 = vunpack.c.l.b16 %v2672
    %v3797 = vunpack.c.h.b16 %v2672
    %v3798 = vunpack.c.l.b16 %v2673
    %v3799 = vunpack.c.h.b16 %v2673
    %v3800 = vunpack.c.l.b16 %v2674
    %v3801 = vunpack.c.h.b16 %v2674
    %v3802 = vunpack.c.l.b16 %v2675
    %v3803 = vunpack.c.h.b16 %v2675
    %v3804 = vunpack.c.l.b16 %v2676
    %v3805 = vunpack.c.h.b16 %v2676
    %v3806 = vunpack.c.l.b16 %v2677
    %v3807 = vunpack.c.h.b16 %v2677
    %v3808 = vunpack.c.l.b16 %v2678
    %v3809 = vunpack.c.h.b16 %v2678
    %v3810 = vunpack.c.l.b16 %v2679
    %v3811 = vunpack.c.h.b16 %v2679
    %v3812 = vunpack.c.l.b16 %v2680
    %v3813 = vunpack.c.h.b16 %v2680
    %v3814 = vunpack.c.l.b16 %v2681
    %v3815 = vunpack.c.h.b16 %v2681
    %v3816 = vunpack.c.l.b16 %v2682
    %v3817 = vunpack.c.h.b16 %v2682
    %v3818 = vunpack.c.l.b16 %v2683
    %v3819 = vunpack.c.h.b16 %v2683
    %v3820 = vunpack.c.l.b16 %v2684
    %v3821 = vunpack.c.h.b16 %v2684
    %v3822 = vunpack.c.l.b16 %v2685
    %v3823 = vunpack.c.h.b16 %v2685
    %v3824 = vunpack.c.l.b16 %v2686
    %v3825 = vunpack.c.h.b16 %v2686
    %v3826 = vunpack.c.l.b16 %v2687
    %v3827 = vunpack.c.h.b16 %v2687
    %v3828 = vunpack.c.l.b16 %v2688
    %v3829 = vunpack.c.h.b16 %v2688
    %v3830 = vunpack.c.l.b16 %v2689
    %v3831 = vunpack.c.h.b16 %v2689
    %v3832 = vunpack.c.l.b16 %v2690
    %v3833 = vunpack.c.h.b16 %v2690
    %v3834 = vunpack.c.l.b16 %v2691
    %v3835 = vunpack.c.h.b16 %v2691
    %v3836 = vunpack.c.l.b16 %v2692
    %v3837 = vunpack.c.h.b16 %v2692
    %v3838 = vunpack.c.l.b16 %v2693
    %v3839 = vunpack.c.h.b16 %v2693
    %v3840 = vunpack.c.l.b16 %v2694
    %v3841 = vunpack.c.h.b16 %v2694
    %v3842 = vunpack.c.l.b16 %v2695
    %v3843 = vunpack.c.h.b16 %v2695
    %v3844 = vunpack.c.l.b16 %v2696
    %v3845 = vunpack.c.h.b16 %v2696
    %v3846 = vunpack.c.l.b16 %v2697
    %v3847 = vunpack.c.h.b16 %v2697
    %v3848 = vunpack.c.l.b16 %v2698
    %v3849 = vunpack.c.h.b16 %v2698
    %v3850 = vunpack.c.l.b16 %v2699
    %v3851 = vunpack.c.h.b16 %v2699
    %v3852 = vunpack.c.l.b16 %v2700
    %v3853 = vunpack.c.h.b16 %v2700
    %v3854 = vunpack.c.l.b16 %v2701
    %v3855 = vunpack.c.h.b16 %v2701
    %v3856 = vunpack.c.l.b16 %v2702
    %v3857 = vunpack.c.h.b16 %v2702
    %v3858 = vunpack.c.l.b16 %v2703
    %v3859 = vunpack.c.h.b16 %v2703
    %v3860 = vunpack.c.l.b16 %v2704
    %v3861 = vunpack.c.h.b16 %v2704
    %v3862 = vunpack.c.l.b16 %v2705
    %v3863 = vunpack.c.h.b16 %v2705
    %v3864 = vunpack.c.l.b16 %v2706
    %v3865 = vunpack.c.h.b16 %v2706
    %v3866 = vunpack.c.l.b16 %v2707
    %v3867 = vunpack.c.h.b16 %v2707
    %v3868 = vunpack.c.l.b16 %v2708
    %v3869 = vunpack.c.h.b16 %v2708
    %v3870 = vunpack.c.l.b16 %v2709
    %v3871 = vunpack.c.h.b16 %v2709
    %v3872 = vunpack.c.l.b16 %v2710
    %v3873 = vunpack.c.h.b16 %v2710
    %v3874 = vunpack.c.l.b16 %v2711
    %v3875 = vunpack.c.h.b16 %v2711
    %v3876 = vunpack.c.l.b16 %v2712
    %v3877 = vunpack.c.h.b16 %v2712
    %v3878 = vunpack.c.l.b16 %v2713
    %v3879 = vunpack.c.h.b16 %v2713
    %v3880 = vunpack.c.l.b16 %v2714
    %v3881 = vunpack.c.h.b16 %v2714
    %v3882 = vunpack.c.l.b16 %v2715
    %v3883 = vunpack.c.h.b16 %v2715
    %v3884 = vunpack.c.l.b16 %v2716
    %v3885 = vunpack.c.h.b16 %v2716
    %v3886 = vunpack.c.l.b16 %v2717
    %v3887 = vunpack.c.h.b16 %v2717
    %v3888 = vunpack.c.l.b16 %v2718
    %v3889 = vunpack.c.h.b16 %v2718
    %v3890 = vunpack.c.l.b16 %v2719
    %v3891 = vunpack.c.h.b16 %v2719
    %v3892 = vunpack.c.l.b16 %v2720
    %v3893 = vunpack.c.h.b16 %v2720
    %v3894 = vunpack.c.l.b16 %v2721
    %v3895 = vunpack.c.h.b16 %v2721
    %v3896 = vunpack.c.l.b16 %v2722
    %v3897 = vunpack.c.h.b16 %v2722
    %v3898 = vunpack.c.l.b16 %v2723
    %v3899 = vunpack.c.h.b16 %v2723
    %v3900 = vunpack.c.l.b16 %v2724
    %v3901 = vunpack.c.h.b16 %v2724
    %v3902 = vunpack.c.l.b16 %v2725
    %v3903 = vunpack.c.h.b16 %v2725
    %v3904 = vunpack.c.l.b16 %v2726
    %v3905 = vunpack.c.h.b16 %v2726
    %v3906 = vunpack.c.l.b16 %v2727
    %v3907 = vunpack.c.h.b16 %v2727
    %v3908 = vunpack.c.l.b16 %v2728
    %v3909 = vunpack.c.h.b16 %v2728
    %v3910 = vunpack.c.l.b16 %v2729
    %v3911 = vunpack.c.h.b16 %v2729
    %v3912 = vunpack.c.l.b16 %v2730
    %v3913 = vunpack.c.h.b16 %v2730
    %v3914 = vunpack.c.l.b16 %v2731
    %v3915 = vunpack.c.h.b16 %v2731
    %v3916 = vunpack.c.l.b16 %v2732
    %v3917 = vunpack.c.h.b16 %v2732
    %v3918 = vunpack.c.l.b16 %v2733
    %v3919 = vunpack.c.h.b16 %v2733
    %v3920 = vunpack.c.l.b16 %v2734
    %v3921 = vunpack.c.h.b16 %v2734
    %v3922 = vunpack.c.l.b16 %v2735
    %v3923 = vunpack.c.h.b16 %v2735
    %v3924 = vunpack.c.l.b16 %v2736
    %v3925 = vunpack.c.h.b16 %v2736
    %v3926 = vunpack.c.l.b16 %v2737
    %v3927 = vunpack.c.h.b16 %v2737
    %v3928 = vunpack.c.l.b16 %v2738
    %v3929 = vunpack.c.h.b16 %v2738
    %v3930 = vunpack.c.l.b16 %v2739
    %v3931 = vunpack.c.h.b16 %v2739
    %v3932 = vunpack.c.l.b16 %v2740
    %v3933 = vunpack.c.h.b16 %v2740
    %v3934 = vunpack.c.l.b16 %v2741
    %v3935 = vunpack.c.h.b16 %v2741
    %v3936 = vunpack.c.l.b16 %v2742
    %v3937 = vunpack.c.h.b16 %v2742
    %v3938 = vunpack.c.l.b16 %v2743
    %v3939 = vunpack.c.h.b16 %v2743
    %v3940 = vunpack.c.l.b16 %v2744
    %v3941 = vunpack.c.h.b16 %v2744
    %v3942 = vunpack.c.l.b16 %v2745
    %v3943 = vunpack.c.h.b16 %v2745
    %v3944 = vunpack.c.l.b16 %v2746
    %v3945 = vunpack.c.h.b16 %v2746
    %v3946 = vunpack.c.l.b16 %v2747
    %v3947 = vunpack.c.h.b16 %v2747
    %v3948 = vunpack.c.l.b16 %v2748
    %v3949 = vunpack.c.h.b16 %v2748
    %v3950 = vunpack.c.l.b16 %v2749
    %v3951 = vunpack.c.h.b16 %v2749
    %v3952 = vunpack.c.l.b16 %v2750
    %v3953 = vunpack.c.h.b16 %v2750
    %v3954 = vunpack.c.l.b16 %v2751
    %v3955 = vunpack.c.h.b16 %v2751
    %v3956 = vunpack.c.l.b16 %v2752
    %v3957 = vunpack.c.h.b16 %v2752
    %v3958 = vunpack.c.l.b16 %v2753
    %v3959 = vunpack.c.h.b16 %v2753
    %v3960 = vunpack.c.l.b16 %v2754
    %v3961 = vunpack.c.h.b16 %v2754
    %v3962 = vunpack.c.l.b16 %v2755
    %v3963 = vunpack.c.h.b16 %v2755
    %v3964 = vunpack.c.l.b16 %v2756
    %v3965 = vunpack.c.h.b16 %v2756
    %v3966 = vunpack.c.l.b16 %v2757
    %v3967 = vunpack.c.h.b16 %v2757
    %v3968 = vunpack.c.l.b16 %v2758
    %v3969 = vunpack.c.h.b16 %v2758
    %v3970 = vunpack.c.l.b16 %v2759
    %v3971 = vunpack.c.h.b16 %v2759
    %v3972 = vunpack.c.l.b16 %v2760
    %v3973 = vunpack.c.h.b16 %v2760
    %v3974 = vunpack.c.l.b16 %v2761
    %v3975 = vunpack.c.h.b16 %v2761
    %v3976 = vunpack.c.l.b16 %v2762
    %v3977 = vunpack.c.h.b16 %v2762
    %v3978 = vunpack.c.l.b16 %v2763
    %v3979 = vunpack.c.h.b16 %v2763
    %v3980 = vunpack.c.l.b16 %v2764
    %v3981 = vunpack.c.h.b16 %v2764
    %v3982 = vunpack.c.l.b16 %v2765
    %v3983 = vunpack.c.h.b16 %v2765
    %v3984 = vunpack.c.l.b16 %v2766
    %v3985 = vunpack.c.h.b16 %v2766
    %v3986 = vunpack.c.l.b16 %v2767
    %v3987 = vunpack.c.h.b16 %v2767
    %v3988 = vunpack.c.l.b16 %v2768
    %v3989 = vunpack.c.h.b16 %v2768
    %v3990 = vunpack.c.l.b16 %v2769
    %v3991 = vunpack.c.h.b16 %v2769
    %v3992 = vunpack.c.l.b16 %v2770
    %v3993 = vunpack.c.h.b16 %v2770
    %v3994 = vunpack.c.l.b16 %v2771
    %v3995 = vunpack.c.h.b16 %v2771
    %v3996 = vunpack.c.l.b16 %v2772
    %v3997 = vunpack.c.h.b16 %v2772
    %v3998 = vunpack.c.l.b16 %v2773
    %v3999 = vunpack.c.h.b16 %v2773
    %v4000 = vunpack.c.l.b16 %v2774
    %v4001 = vunpack.c.h.b16 %v2774
    %v4002 = vunpack.c.l.b16 %v2775
    %v4003 = vunpack.c.h.b16 %v2775
    %v4004 = vunpack.c.l.b16 %v2776
    %v4005 = vunpack.c.h.b16 %v2776
    %v4006 = vunpack.c.l.b16 %v2777
    %v4007 = vunpack.c.h.b16 %v2777
    %v4008 = vunpack.c.l.b16 %v2778
    %v4009 = vunpack.c.h.b16 %v2778
    %v4010 = vunpack.c.l.b16 %v2779
    %v4011 = vunpack.c.h.b16 %v2779
    %v4012 = vunpack.c.l.b16 %v2780
    %v4013 = vunpack.c.h.b16 %v2780
    %v4014 = vunpack.c.l.b16 %v2781
    %v4015 = vunpack.c.h.b16 %v2781
    %v4016 = vunpack.c.l.b16 %v2782
    %v4017 = vunpack.c.h.b16 %v2782
    %v4018 = vunpack.c.l.b16 %v2783
    %v4019 = vunpack.c.h.b16 %v2783
    %v4020 = vunpack.c.l.b16 %v2784
    %v4021 = vunpack.c.h.b16 %v2784
    %v4022 = vunpack.c.l.b16 %v2785
    %v4023 = vunpack.c.h.b16 %v2785
    %v4024 = vunpack.c.l.b16 %v2786
    %v4025 = vunpack.c.h.b16 %v2786
    %v4026 = vunpack.c.l.b16 %v2787
    %v4027 = vunpack.c.h.b16 %v2787
    %v4028 = vunpack.c.l.b16 %v2788
    %v4029 = vunpack.c.h.b16 %v2788
    %v4030 = vunpack.c.l.b16 %v2789
    %v4031 = vunpack.c.h.b16 %v2789
    %v4032 = vunpack.c.l.b16 %v2790
    %v4033 = vunpack.c.h.b16 %v2790
    %v4034 = vunpack.c.l.b16 %v2791
    %v4035 = vunpack.c.h.b16 %v2791
    %v4036 = vunpack.c.l.b16 %v2792
    %v4037 = vunpack.c.h.b16 %v2792
    %v4038 = vunpack.c.l.b16 %v2793
    %v4039 = vunpack.c.h.b16 %v2793
    %v4040 = vunpack.c.l.b16 %v2794
    %v4041 = vunpack.c.h.b16 %v2794
    %v4042 = vunpack.c.l.b16 %v2795
    %v4043 = vunpack.c.h.b16 %v2795
    %v4044 = vunpack.c.l.b16 %v2796
    %v4045 = vunpack.c.h.b16 %v2796
    %v4046 = vunpack.c.l.b16 %v2797
    %v4047 = vunpack.c.h.b16 %v2797
    %v4048 = vunpack.c.l.b16 %v2798
    %v4049 = vunpack.c.h.b16 %v2798
    %v4050 = vunpack.c.l.b16 %v2799
    %v4051 = vunpack.c.h.b16 %v2799
    %v4052 = vunpack.c.l.b16 %v2800
    %v4053 = vunpack.c.h.b16 %v2800
    %v4054 = vunpack.c.l.b16 %v2801
    %v4055 = vunpack.c.h.b16 %v2801
    %v4056 = vunpack.c.l.b16 %v2802
    %v4057 = vunpack.c.h.b16 %v2802
    %v4058 = vunpack.c.l.b16 %v2803
    %v4059 = vunpack.c.h.b16 %v2803
    %v4060 = vunpack.c.l.b16 %v2804
    %v4061 = vunpack.c.h.b16 %v2804
    %v4062 = vunpack.c.l.b16 %v2805
    %v4063 = vunpack.c.h.b16 %v2805
    %v4064 = vunpack.c.l.b16 %v2806
    %v4065 = vunpack.c.h.b16 %v2806
    %v4066 = vunpack.c.l.b16 %v2807
    %v4067 = vunpack.c.h.b16 %v2807
    %v4068 = vunpack.c.l.b16 %v2808
    %v4069 = vunpack.c.h.b16 %v2808
    %v4070 = vunpack.c.l.b16 %v2809
    %v4071 = vunpack.c.h.b16 %v2809
    %v4072 = vunpack.c.l.b16 %v2810
    %v4073 = vunpack.c.h.b16 %v2810
    %v4074 = vunpack.c.l.b16 %v2811
    %v4075 = vunpack.c.h.b16 %v2811
    %v4076 = vunpack.c.l.b16 %v2812
    %v4077 = vunpack.c.h.b16 %v2812
    %v4078 = vunpack.c.l.b16 %v2813
    %v4079 = vunpack.c.h.b16 %v2813
    %v4080 = vunpack.c.l.b16 %v2814
    %v4081 = vunpack.c.h.b16 %v2814
    %v4082 = vunpack.c.l.b16 %v2815
    %v4083 = vunpack.c.h.b16 %v2815
    %v4084 = vunpack.c.l.b16 %v2816
    %v4085 = vunpack.c.h.b16 %v2816
    %v4086 = vunpack.c.l.b16 %v2817
    %v4087 = vunpack.c.h.b16 %v2817
    %v4088 = vunpack.c.l.b16 %v2818
    %v4089 = vunpack.c.h.b16 %v2818
    %v4090 = vunpack.c.l.b16 %v2819
    %v4091 = vunpack.c.h.b16 %v2819
    %v4092 = vunpack.c.l.b16 %v2820
    %v4093 = vunpack.c.h.b16 %v2820
    %v4094 = vunpack.c.l.b16 %v2821
    %v4095 = vunpack.c.h.b16 %v2821
    %v4096 = vunpack.c.l.b16 %v2822
    %v4097 = vunpack.c.h.b16 %v2822
    %v4098 = vunpack.c.l.b16 %v2823
    %v4099 = vunpack.c.h.b16 %v2823
    %v4100 = vunpack.c.l.b16 %v2824
    %v4101 = vunpack.c.h.b16 %v2824
    %v4102 = vunpack.c.l.b16 %v2825
    %v4103 = vunpack.c.h.b16 %v2825
    %v4104 = vunpack.c.l.b16 %v2826
    %v4105 = vunpack.c.h.b16 %v2826
    %v4106 = vunpack.c.l.b16 %v2827
    %v4107 = vunpack.c.h.b16 %v2827
    %v4108 = vunpack.c.l.b16 %v2828
    %v4109 = vunpack.c.h.b16 %v2828
    %v4110 = vunpack.c.l.b16 %v2829
    %v4111 = vunpack.c.h.b16 %v2829
    %v4112 = vunpack.c.l.b16 %v2830
    %v4113 = vunpack.c.h.b16 %v2830
    %v4114 = vunpack.c.l.b16 %v2831
    %v4115 = vunpack.c.h.b16 %v2831
    %v4116 = vunpack.c.l.b16 %v2832
    %v4117 = vunpack.c.h.b16 %v2832
    %v4118 = vunpack.c.l.b16 %v2833
    %v4119 = vunpack.c.h.b16 %v2833
    %v4120 = vunpack.c.l.b16 %v2834
    %v4121 = vunpack.c.h.b16 %v2834
    %v4122 = vunpack.c.l.b16 %v2835
    %v4123 = vunpack.c.h.b16 %v2835
    %v4124 = vunpack.c.l.b16 %v2836
    %v4125 = vunpack.c.h.b16 %v2836
    %v4126 = vunpack.c.l.b16 %v2837
    %v4127 = vunpack.c.h.b16 %v2837
    %v4128 = vunpack.c.l.b16 %v2838
    %v4129 = vunpack.c.h.b16 %v2838
    %v4130 = vunpack.c.l.b16 %v2839
    %v4131 = vunpack.c.h.b16 %v2839
    %v4132 = vunpack.c.l.b16 %v2840
    %v4133 = vunpack.c.h.b16 %v2840
    %v4134 = vunpack.c.l.b16 %v2841
    %v4135 = vunpack.c.h.b16 %v2841
    %v4136 = vunpack.c.l.b16 %v2842
    %v4137 = vunpack.c.h.b16 %v2842
    %v4138 = vunpack.c.l.b16 %v2843
    %v4139 = vunpack.c.h.b16 %v2843
    %v4140 = vunpack.c.l.b16 %v2844
    %v4141 = vunpack.c.h.b16 %v2844
    %v4142 = vunpack.c.l.b16 %v2845
    %v4143 = vunpack.c.h.b16 %v2845
    %v4144 = vunpack.c.l.b16 %v2846
    %v4145 = vunpack.c.h.b16 %v2846
    %v4146 = vunpack.c.l.b16 %v2847
    %v4147 = vunpack.c.h.b16 %v2847
    %v4148 = vunpack.c.l.b16 %v2848
    %v4149 = vunpack.c.h.b16 %v2848
    %v4150 = vunpack.c.l.b16 %v2849
    %v4151 = vunpack.c.h.b16 %v2849
    %v4152 = vunpack.c.l.b16 %v2850
    %v4153 = vunpack.c.h.b16 %v2850
    %v4154 = vunpack.c.l.b16 %v2851
    %v4155 = vunpack.c.h.b16 %v2851
    %v4156 = vunpack.c.l.b16 %v2852
    %v4157 = vunpack.c.h.b16 %v2852
    %v4158 = vunpack.c.l.b16 %v2853
    %v4159 = vunpack.c.h.b16 %v2853
    %v4160 = vunpack.c.l.b16 %v2854
    %v4161 = vunpack.c.h.b16 %v2854
    %v4162 = vunpack.c.l.b16 %v2855
    %v4163 = vunpack.c.h.b16 %v2855
    %v4164 = vunpack.c.l.b16 %v2856
    %v4165 = vunpack.c.h.b16 %v2856
    %v4166 = vunpack.c.l.b16 %v2857
    %v4167 = vunpack.c.h.b16 %v2857
    %v4168 = vunpack.c.l.b16 %v2858
    %v4169 = vunpack.c.h.b16 %v2858
    %v4170 = vunpack.c.l.b16 %v2859
    %v4171 = vunpack.c.h.b16 %v2859
    %v4172 = vunpack.c.l.b16 %v2860
    %v4173 = vunpack.c.h.b16 %v2860
    %v4174 = vunpack.c.l.b16 %v2861
    %v4175 = vunpack.c.h.b16 %v2861
    %v4176 = vunpack.c.l.b16 %v2862
    %v4177 = vunpack.c.h.b16 %v2862
    %v4178 = vunpack.c.l.b16 %v2863
    %v4179 = vunpack.c.h.b16 %v2863
    %v4180 = vunpack.c.l.b16 %v2864
    %v4181 = vunpack.c.h.b16 %v2864
    %v4182 = vunpack.c.l.b16 %v2865
    %v4183 = vunpack.c.h.b16 %v2865
    %v4184 = vunpack.c.l.b16 %v2866
    %v4185 = vunpack.c.h.b16 %v2866
    %v4186 = vunpack.c.l.b16 %v2867
    %v4187 = vunpack.c.h.b16 %v2867
    %v4188 = vunpack.c.l.b16 %v2868
    %v4189 = vunpack.c.h.b16 %v2868
    %v4190 = vunpack.c.l.b16 %v2869
    %v4191 = vunpack.c.h.b16 %v2869
    %v4192 = vunpack.c.l.b16 %v2870
    %v4193 = vunpack.c.h.b16 %v2870
    %v4194 = vunpack.c.l.b16 %v2871
    %v4195 = vunpack.c.h.b16 %v2871
    %v4196 = vunpack.c.l.b16 %v2872
    %v4197 = vunpack.c.h.b16 %v2872
    %v4198 = vunpack.c.l.b16 %v2873
    %v4199 = vunpack.c.h.b16 %v2873
    %v4200 = vunpack.c.l.b16 %v2874
    %v4201 = vunpack.c.h.b16 %v2874
    %v4202 = vunpack.c.l.b16 %v2875
    %v4203 = vunpack.c.h.b16 %v2875
    %v4204 = vunpack.c.l.b16 %v2876
    %v4205 = vunpack.c.h.b16 %v2876
    %v4206 = vunpack.c.l.b16 %v2877
    %v4207 = vunpack.c.h.b16 %v2877
    %v4208 = vunpack.c.l.b16 %v2878
    %v4209 = vunpack.c.h.b16 %v2878
    %v4210 = vunpack.c.l.b16 %v2879
    %v4211 = vunpack.c.h.b16 %v2879
    %v4212 = vunpack.c.l.b16 %v2880
    %v4213 = vunpack.c.h.b16 %v2880
    %v4214 = vunpack.c.l.b16 %v2881
    %v4215 = vunpack.c.h.b16 %v2881
    %v4216 = vunpack.c.l.b16 %v2882
    %v4217 = vunpack.c.h.b16 %v2882
    %v4218 = vunpack.c.l.b16 %v2883
    %v4219 = vunpack.c.h.b16 %v2883
    %v4220 = vunpack.c.l.b16 %v2884
    %v4221 = vunpack.c.h.b16 %v2884
    %v4222 = vunpack.c.l.b16 %v2885
    %v4223 = vunpack.c.h.b16 %v2885
    %v4224 = vunpack.c.l.b16 %v2886
    %v4225 = vunpack.c.h.b16 %v2886
    %v4226 = vunpack.c.l.b16 %v2887
    %v4227 = vunpack.c.h.b16 %v2887
    %v4228 = vunpack.c.l.b16 %v2888
    %v4229 = vunpack.c.h.b16 %v2888
    %v4230 = vunpack.c.l.b16 %v2889
    %v4231 = vunpack.c.h.b16 %v2889
    %v4232 = vunpack.c.l.b16 %v2890
    %v4233 = vunpack.c.h.b16 %v2890
    %v4234 = vunpack.c.l.b16 %v2891
    %v4235 = vunpack.c.h.b16 %v2891
    %v4236 = vunpack.c.l.b16 %v2892
    %v4237 = vunpack.c.h.b16 %v2892
    %v4238 = vunpack.c.l.b16 %v2893
    %v4239 = vunpack.c.h.b16 %v2893
    %v4240 = vunpack.c.l.b16 %v2894
    %v4241 = vunpack.c.h.b16 %v2894
    %v4242 = vunpack.c.l.b16 %v2895
    %v4243 = vunpack.c.h.b16 %v2895
    %v4244 = vunpack.c.l.b16 %v2896
    %v4245 = vunpack.c.h.b16 %v2896
    %v4246 = vunpack.c.l.b16 %v2897
    %v4247 = vunpack.c.h.b16 %v2897
    %v4248 = vunpack.c.l.b16 %v2898
    %v4249 = vunpack.c.h.b16 %v2898
    %v4250 = vunpack.c.l.b16 %v2899
    %v4251 = vunpack.c.h.b16 %v2899
    %v4252 = vunpack.c.l.b16 %v2900
    %v4253 = vunpack.c.h.b16 %v2900
    %v4254 = vunpack.c.l.b16 %v2901
    %v4255 = vunpack.c.h.b16 %v2901
    %v4256 = vunpack.c.l.b16 %v2902
    %v4257 = vunpack.c.h.b16 %v2902
    %v4258 = vunpack.c.l.b16 %v2903
    %v4259 = vunpack.c.h.b16 %v2903
    %v4260 = vunpack.c.l.b16 %v2904
    %v4261 = vunpack.c.h.b16 %v2904
    %v4262 = vunpack.c.l.b16 %v2905
    %v4263 = vunpack.c.h.b16 %v2905
    %v4264 = vunpack.c.l.b16 %v2906
    %v4265 = vunpack.c.h.b16 %v2906
    %v4266 = vunpack.c.l.b16 %v2907
    %v4267 = vunpack.c.h.b16 %v2907
    %v4268 = vunpack.c.l.b16 %v2908
    %v4269 = vunpack.c.h.b16 %v2908
    %v4270 = vunpack.c.l.b16 %v2909
    %v4271 = vunpack.c.h.b16 %v2909
    %v4272 = vunpack.c.l.b16 %v2910
    %v4273 = vunpack.c.h.b16 %v2910
    %v4274 = vunpack.c.l.b16 %v2911
    %v4275 = vunpack.c.h.b16 %v2911
    %v4276 = vunpack.c.l.b16 %v2912
    %v4277 = vunpack.c.h.b16 %v2912
    %v4278 = vunpack.c.l.b16 %v2913
    %v4279 = vunpack.c.h.b16 %v2913
    %v4280 = vunpack.c.l.b16 %v2914
    %v4281 = vunpack.c.h.b16 %v2914
    %v4282 = vunpack.c.l.b16 %v2915
    %v4283 = vunpack.c.h.b16 %v2915
    %v4284 = vunpack.c.l.b16 %v2916
    %v4285 = vunpack.c.h.b16 %v2916
    %v4286 = vunpack.c.l.b16 %v2917
    %v4287 = vunpack.c.h.b16 %v2917
    %v4288 = vunpack.c.l.b16 %v2918
    %v4289 = vunpack.c.h.b16 %v2918
    %v4290 = vunpack.c.l.b16 %v2919
    %v4291 = vunpack.c.h.b16 %v2919
    %v4292 = vunpack.c.l.b16 %v2920
    %v4293 = vunpack.c.h.b16 %v2920
    %v4294 = vunpack.c.l.b16 %v2921
    %v4295 = vunpack.c.h.b16 %v2921
    %v4296 = vunpack.c.l.b16 %v2922
    %v4297 = vunpack.c.h.b16 %v2922
    %v4298 = vunpack.c.l.b16 %v2923
    %v4299 = vunpack.c.h.b16 %v2923
    %v4300 = vunpack.c.l.b16 %v2924
    %v4301 = vunpack.c.h.b16 %v2924
    %v4302 = vunpack.c.l.b16 %v2925
    %v4303 = vunpack.c.h.b16 %v2925
    %v4304 = vunpack.c.l.b16 %v2926
    %v4305 = vunpack.c.h.b16 %v2926
    %v4306 = vunpack.c.l.b16 %v2927
    %v4307 = vunpack.c.h.b16 %v2927
    %v4308 = vunpack.c.l.b16 %v2928
    %v4309 = vunpack.c.h.b16 %v2928
    %v4310 = vunpack.c.l.b16 %v2929
    %v4311 = vunpack.c.h.b16 %v2929
    %v4312 = vunpack.c.l.b16 %v2930
    %v4313 = vunpack.c.h.b16 %v2930
    %v4314 = vunpack.c.l.b16 %v2931
    %v4315 = vunpack.c.h.b16 %v2931
    %v4316 = vunpack.c.l.b16 %v2932
    %v4317 = vunpack.c.h.b16 %v2932
    %v4318 = vunpack.c.l.b16 %v2933
    %v4319 = vunpack.c.h.b16 %v2933
    %v4320 = vunpack.c.l.b16 %v2934
    %v4321 = vunpack.c.h.b16 %v2934
    %v4322 = vunpack.c.l.b16 %v2935
    %v4323 = vunpack.c.h.b16 %v2935
    %v4324 = vunpack.c.l.b16 %v2936
    %v4325 = vunpack.c.h.b16 %v2936
    %v4326 = vunpack.c.l.b16 %v2937
    %v4327 = vunpack.c.h.b16 %v2937
    %v4328 = vunpack.c.l.b16 %v2938
    %v4329 = vunpack.c.h.b16 %v2938
    %v4330 = vunpack.c.l.b16 %v2939
    %v4331 = vunpack.c.h.b16 %v2939
    %v4332 = vunpack.c.l.b16 %v2940
    %v4333 = vunpack.c.h.b16 %v2940
    %v4334 = vunpack.c.l.b16 %v2941
    %v4335 = vunpack.c.h.b16 %v2941
    %v4336 = vunpack.c.l.b16 %v2942
    %v4337 = vunpack.c.h.b16 %v2942
    %v4338 = vunpack.c.l.b16 %v2943
    %v4339 = vunpack.c.h.b16 %v2943
    %v4340 = vunpack.c.l.b16 %v2944
    %v4341 = vunpack.c.h.b16 %v2944
    %v4342 = vunpack.c.l.b16 %v2945
    %v4343 = vunpack.c.h.b16 %v2945
    %v4344 = vunpack.c.l.b16 %v2946
    %v4345 = vunpack.c.h.b16 %v2946
    %v4346 = vunpack.c.l.b16 %v2947
    %v4347 = vunpack.c.h.b16 %v2947
    %v4348 = vunpack.c.l.b16 %v2948
    %v4349 = vunpack.c.h.b16 %v2948
    %v4350 = vunpack.c.l.b16 %v2949
    %v4351 = vunpack.c.h.b16 %v2949
    %v4352 = vunpack.c.l.b16 %v2950
    %v4353 = vunpack.c.h.b16 %v2950
    %v4354 = vunpack.c.l.b16 %v2951
    %v4355 = vunpack.c.h.b16 %v2951
    %v4356 = vunpack.c.l.b16 %v2952
    %v4357 = vunpack.c.h.b16 %v2952
    %v4358 = vunpack.c.l.b16 %v2953
    %v4359 = vunpack.c.h.b16 %v2953
    %v4360 = vunpack.c.l.b16 %v2954
    %v4361 = vunpack.c.h.b16 %v2954
    %v4362 = vunpack.c.l.b16 %v2955
    %v4363 = vunpack.c.h.b16 %v2955
    %v4364 = vunpack.c.l.b16 %v2956
    %v4365 = vunpack.c.h.b16 %v2956
    %v4366 = vunpack.c.l.b16 %v2957
    %v4367 = vunpack.c.h.b16 %v2957
    %v4368 = vunpack.c.l.b16 %v2958
    %v4369 = vunpack.c.h.b16 %v2958
    %v4370 = vunpack.c.l.b16 %v2959
    %v4371 = vunpack.c.h.b16 %v2959
    %v4372 = vunpack.c.l.b16 %v2960
    %v4373 = vunpack.c.h.b16 %v2960
    %v4374 = vunpack.c.l.b16 %v2961
    %v4375 = vunpack.c.h.b16 %v2961
    %v4376 = vunpack.c.l.b16 %v2962
    %v4377 = vunpack.c.h.b16 %v2962
    %v4378 = vunpack.c.l.b16 %v2963
    %v4379 = vunpack.c.h.b16 %v2963
    %v4380 = vunpack.c.l.b16 %v2964
    %v4381 = vunpack.c.h.b16 %v2964
    %v4382 = vunpack.c.l.b16 %v2965
    %v4383 = vunpack.c.h.b16 %v2965
    %v4384 = vunpack.c.l.b16 %v2966
    %v4385 = vunpack.c.h.b16 %v2966
    %v4386 = vunpack.c.l.b16 %v2967
    %v4387 = vunpack.c.h.b16 %v2967
    %v4388 = vunpack.c.l.b16 %v2968
    %v4389 = vunpack.c.h.b16 %v2968
    %v4390 = vunpack.c.l.b16 %v2969
    %v4391 = vunpack.c.h.b16 %v2969
    %v4392 = vunpack.c.l.b16 %v2970
    %v4393 = vunpack.c.h.b16 %v2970
    %v4394 = vunpack.c.l.b16 %v2971
    %v4395 = vunpack.c.h.b16 %v2971
    %v4396 = vunpack.c.l.b16 %v2972
    %v4397 = vunpack.c.h.b16 %v2972
    %v4398 = vunpack.c.l.b16 %v2973
    %v4399 = vunpack.c.h.b16 %v2973
    %v4400 = vunpack.c.l.b16 %v2974
    %v4401 = vunpack.c.h.b16 %v2974
    %v4402 = vunpack.c.l.b16 %v2975
    %v4403 = vunpack.c.h.b16 %v2975
    %v4404 = vunpack.c.l.b16 %v2976
    %v4405 = vunpack.c.h.b16 %v2976
    %v4406 = vunpack.c.l.b16 %v2977
    %v4407 = vunpack.c.h.b16 %v2977
    %v4408 = vunpack.c.l.b16 %v2978
    %v4409 = vunpack.c.h.b16 %v2978
    %v4410 = vunpack.c.l.b16 %v2979
    %v4411 = vunpack.c.h.b16 %v2979
    %v4412 = vunpack.c.l.b16 %v2980
    %v4413 = vunpack.c.h.b16 %v2980
    %v4414 = vunpack.c.l.b16 %v2981
    %v4415 = vunpack.c.h.b16 %v2981
    %v4416 = vunpack.c.l.b16 %v2982
    %v4417 = vunpack.c.h.b16 %v2982
    %v4418 = vunpack.c.l.b16 %v2983
    %v4419 = vunpack.c.h.b16 %v2983
    %v4420 = vunpack.c.l.b16 %v2984
    %v4421 = vunpack.c.h.b16 %v2984
    %v4422 = vunpack.c.l.b16 %v2985
    %v4423 = vunpack.c.h.b16 %v2985
    %v4424 = vunpack.c.l.b16 %v2986
    %v4425 = vunpack.c.h.b16 %v2986
    %v4426 = vunpack.c.l.b16 %v2987
    %v4427 = vunpack.c.h.b16 %v2987
    %v4428 = vunpack.c.l.b16 %v2988
    %v4429 = vunpack.c.h.b16 %v2988
    %v4430 = vunpack.c.l.b16 %v2989
    %v4431 = vunpack.c.h.b16 %v2989
    %v4432 = vunpack.c.l.b16 %v2990
    %v4433 = vunpack.c.h.b16 %v2990
    %v4434 = vunpack.c.l.b16 %v2991
    %v4435 = vunpack.c.h.b16 %v2991
    %v4436 = vunpack.c.l.b16 %v2992
    %v4437 = vunpack.c.h.b16 %v2992
    %v4438 = vunpack.c.l.b16 %v2993
    %v4439 = vunpack.c.h.b16 %v2993
    %v4440 = vunpack.c.l.b16 %v2994
    %v4441 = vunpack.c.h.b16 %v2994
    %v4442 = vunpack.c.l.b16 %v2995
    %v4443 = vunpack.c.h.b16 %v2995
    %v4444 = vunpack.c.l.b16 %v2996
    %v4445 = vunpack.c.h.b16 %v2996
    %v4446 = vunpack.c.l.b16 %v2997
    %v4447 = vunpack.c.h.b16 %v2997
    %v4448 = vunpack.c.l.b16 %v2998
    %v4449 = vunpack.c.h.b16 %v2998
    %v4450 = vunpack.c.l.b16 %v2999
    %v4451 = vunpack.c.h.b16 %v2999
    %v4452 = vunpack.c.l.b16 %v3000
    %v4453 = vunpack.c.h.b16 %v3000
    %v4454 = vunpack.c.l.b16 %v3001
    %v4455 = vunpack.c.h.b16 %v3001
    %v4456 = vunpack.c.l.b16 %v3002
    %v4457 = vunpack.c.h.b16 %v3002
    %v4458 = vunpack.c.l.b16 %v3003
    %v4459 = vunpack.c.h.b16 %v3003
    %v4460 = vunpack.c.l.b16 %v3004
    %v4461 = vunpack.c.h.b16 %v3004
    %v4462 = vunpack.c.l.b16 %v3005
    %v4463 = vunpack.c.h.b16 %v3005
    %v4464 = vunpack.c.l.b16 %v3006
    %v4465 = vunpack.c.h.b16 %v3006
    %v4466 = vunpack.c.l.b16 %v3007
    %v4467 = vunpack.c.h.b16 %v3007
    %v4468 = vunpack.c.l.b16 %v3008
    %v4469 = vunpack.c.h.b16 %v3008
    %v4470 = vunpack.c.l.b16 %v3009
    %v4471 = vunpack.c.h.b16 %v3009
    %v4472 = vunpack.c.l.b16 %v3010
    %v4473 = vunpack.c.h.b16 %v3010
    %v4474 = vunpack.c.l.b16 %v3011
    %v4475 = vunpack.c.h.b16 %v3011
    %v4476 = vunpack.c.l.b16 %v3012
    %v4477 = vunpack.c.h.b16 %v3012
    %v4478 = vunpack.c.l.b16 %v3013
    %v4479 = vunpack.c.h.b16 %v3013
    %v4480 = vunpack.c.l.b16 %v3014
    %v4481 = vunpack.c.h.b16 %v3014
    %v4482 = vunpack.c.l.b16 %v3015
    %v4483 = vunpack.c.h.b16 %v3015
    %v4484 = vunpack.c.l.b16 %v3016
    %v4485 = vunpack.c.h.b16 %v3016
    %v4486 = vunpack.c.l.b16 %v3017
    %v4487 = vunpack.c.h.b16 %v3017
    %v4488 = vunpack.c.l.b16 %v3018
    %v4489 = vunpack.c.h.b16 %v3018
    %v4490 = vunpack.c.l.b16 %v3019
    %v4491 = vunpack.c.h.b16 %v3019
    %v4492 = vunpack.c.l.b16 %v3020
    %v4493 = vunpack.c.h.b16 %v3020
    %v4494 = vunpack.c.l.b16 %v3021
    %v4495 = vunpack.c.h.b16 %v3021
    %v4496 = vunpack.c.l.b16 %v3022
    %v4497 = vunpack.c.h.b16 %v3022
    %v4498 = vunpack.c.l.b16 %v3023
    %v4499 = vunpack.c.h.b16 %v3023
    %v4500 = vunpack.c.l.b16 %v3024
    %v4501 = vunpack.c.h.b16 %v3024
    %v4502 = vunpack.c.l.b16 %v3025
    %v4503 = vunpack.c.h.b16 %v3025
    %v4504 = vunpack.c.l.b16 %v3026
    %v4505 = vunpack.c.h.b16 %v3026
    %v4506 = vunpack.c.l.b16 %v3027
    %v4507 = vunpack.c.h.b16 %v3027
    %v4508 = vunpack.c.l.b16 %v3028
    %v4509 = vunpack.c.h.b16 %v3028
    %v4510 = vunpack.c.l.b16 %v3029
    %v4511 = vunpack.c.h.b16 %v3029
    %v4512 = vunpack.c.l.b16 %v3030
    %v4513 = vunpack.c.h.b16 %v3030
    %v4514 = vunpack.c.l.b16 %v3031
    %v4515 = vunpack.c.h.b16 %v3031
    %v4516 = vunpack.c.l.b16 %v3032
    %v4517 = vunpack.c.h.b16 %v3032
    %v4518 = vunpack.c.l.b16 %v3033
    %v4519 = vunpack.c.h.b16 %v3033
    %v4520 = vunpack.c.l.b16 %v3034
    %v4521 = vunpack.c.h.b16 %v3034
    %v4522 = vunpack.c.l.b16 %v3035
    %v4523 = vunpack.c.h.b16 %v3035
    %v4524 = vunpack.c.l.b16 %v3036
    %v4525 = vunpack.c.h.b16 %v3036
    %v4526 = vunpack.c.l.b16 %v3037
    %v4527 = vunpack.c.h.b16 %v3037
    %v4528 = vunpack.c.l.b16 %v3038
    %v4529 = vunpack.c.h.b16 %v3038
    %v4530 = vunpack.c.l.b16 %v3039
    %v4531 = vunpack.c.h.b16 %v3039
    %v4532 = vunpack.c.l.b16 %v3040
    %v4533 = vunpack.c.h.b16 %v3040
    %v4534 = vunpack.c.l.b16 %v3041
    %v4535 = vunpack.c.h.b16 %v3041
    %v4536 = vunpack.c.l.b16 %v3042
    %v4537 = vunpack.c.h.b16 %v3042
    %v4538 = vunpack.c.l.b16 %v3043
    %v4539 = vunpack.c.h.b16 %v3043
    %v4540 = vunpack.c.l.b16 %v3044
    %v4541 = vunpack.c.h.b16 %v3044
    %v4542 = vunpack.c.l.b16 %v3045
    %v4543 = vunpack.c.h.b16 %v3045
    %v4544 = vunpack.c.l.b16 %v3046
    %v4545 = vunpack.c.h.b16 %v3046
    %v4546 = vunpack.c.l.b16 %v3047
    %v4547 = vunpack.c.h.b16 %v3047
    %v4548 = vunpack.c.l.b16 %v3048
    %v4549 = vunpack.c.h.b16 %v3048
    %v4550 = vunpack.c.l.b16 %v3049
    %v4551 = vunpack.c.h.b16 %v3049
    %v4552 = vunpack.c.l.b16 %v3050
    %v4553 = vunpack.c.h.b16 %v3050
    %v4554 = vunpack.c.l.b16 %v3051
    %v4555 = vunpack.c.h.b16 %v3051
    %v4556 = vunpack.c.l.b16 %v3052
    %v4557 = vunpack.c.h.b16 %v3052
    %v4558 = vunpack.c.l.b16 %v3053
    %v4559 = vunpack.c.h.b16 %v3053
    %v4560 = vunpack.c.l.b16 %v3054
    %v4561 = vunpack.c.h.b16 %v3054
    %v4562 = vunpack.c.l.b16 %v3055
    %v4563 = vunpack.c.h.b16 %v3055
    %v4564 = vunpack.c.l.b16 %v3056
    %v4565 = vunpack.c.h.b16 %v3056
    %v4566 = vunpack.c.l.b16 %v3057
    %v4567 = vunpack.c.h.b16 %v3057
    %v4568 = vunpack.c.l.b16 %v3058
    %v4569 = vunpack.c.h.b16 %v3058
    %v4570 = vunpack.c.l.b16 %v3059
    %v4571 = vunpack.c.h.b16 %v3059
    %v4572 = vunpack.c.l.b16 %v3060
    %v4573 = vunpack.c.h.b16 %v3060
    %v4574 = vunpack.c.l.b16 %v3061
    %v4575 = vunpack.c.h.b16 %v3061
    %v4576 = vunpack.c.l.b16 %v3062
    %v4577 = vunpack.c.h.b16 %v3062
    %v4578 = vunpack.c.l.b16 %v3063
    %v4579 = vunpack.c.h.b16 %v3063
    %v4580 = vunpack.c.l.b16 %v3064
    %v4581 = vunpack.c.h.b16 %v3064
    %v4582 = vunpack.c.l.b16 %v3065
    %v4583 = vunpack.c.h.b16 %v3065
    %v4584 = vunpack.c.l.b16 %v3066
    %v4585 = vunpack.c.h.b16 %v3066
    %v4586 = vunpack.c.l.b16 %v3067
    %v4587 = vunpack.c.h.b16 %v3067
    %v4588 = vunpack.c.l.b16 %v3068
    %v4589 = vunpack.c.h.b16 %v3068
    %v4590 = vunpack.c.l.b16 %v3069
    %v4591 = vunpack.c.h.b16 %v3069
    %v4592 = vunpack.c.l.b16 %v3070
    %v4593 = vunpack.c.h.b16 %v3070
    %v4594 = vunpack.c.l.b16 %v3071
    %v4595 = vunpack.c.h.b16 %v3071
    %v4596 = vunpack.c.l.b16 %v3072
    %v4597 = vunpack.c.h.b16 %v3072
    %v4598 = vunpack.c.l.b16 %v3073
    %v4599 = vunpack.c.h.b16 %v3073
    %v4600 = vunpack.c.l.b16 %v3074
    %v4601 = vunpack.c.h.b16 %v3074
    %v4602 = vunpack.c.l.b16 %v3075
    %v4603 = vunpack.c.h.b16 %v3075
    %v4604 = vunpack.c.l.b16 %v3076
    %v4605 = vunpack.c.h.b16 %v3076
    %v4606 = vunpack.c.l.b16 %v3077
    %v4607 = vunpack.c.h.b16 %v3077
    %v4608 = vunpack.c.l.b16 %v3078
    %v4609 = vunpack.c.h.b16 %v3078
    %v4610 = vunpack.c.l.b16 %v3079
    %v4611 = vunpack.c.h.b16 %v3079
    %v4612 = vunpack.c.l.b16 %v3080
    %v4613 = vunpack.c.h.b16 %v3080
    %v4614 = vunpack.c.l.b16 %v3081
    %v4615 = vunpack.c.h.b16 %v3081
    %v4616 = vunpack.c.l.b16 %v3082
    %v4617 = vunpack.c.h.b16 %v3082
    %v4618 = vunpack.c.l.b16 %v3083
    %v4619 = vunpack.c.h.b16 %v3083
    %v4620 = vunpack.c.l.b16 %v3084
    %v4621 = vunpack.c.h.b16 %v3084
    %v4622 = vunpack.c.l.b16 %v3085
    %v4623 = vunpack.c.h.b16 %v3085
    %v4624 = vunpack.c.l.b16 %v3086
    %v4625 = vunpack.c.h.b16 %v3086
    %v4626 = vunpack.c.l.b16 %v3087
    %v4627 = vunpack.c.h.b16 %v3087
    %v4628 = vunpack.c.l.b16 %v3088
    %v4629 = vunpack.c.h.b16 %v3088
    %v4630 = vunpack.c.l.b16 %v3089
    %v4631 = vunpack.c.h.b16 %v3089
    %v4632 = vunpack.c.l.b16 %v3090
    %v4633 = vunpack.c.h.b16 %v3090
    %v4634 = vunpack.c.l.b16 %v3091
    %v4635 = vunpack.c.h.b16 %v3091
    %v4636 = vunpack.c.l.b16 %v3092
    %v4637 = vunpack.c.h.b16 %v3092
    %v4638 = vunpack.c.l.b16 %v3093
    %v4639 = vunpack.c.h.b16 %v3093
    %v4640 = vunpack.c.l.b16 %v3094
    %v4641 = vunpack.c.h.b16 %v3094
    %v4642 = vunpack.c.l.b16 %v3095
    %v4643 = vunpack.c.h.b16 %v3095
    %v4644 = vunpack.c.l.b16 %v3096
    %v4645 = vunpack.c.h.b16 %v3096
    %v4646 = vunpack.c.l.b16 %v3097
    %v4647 = vunpack.c.h.b16 %v3097
    %v4648 = vunpack.c.l.b16 %v3098
    %v4649 = vunpack.c.h.b16 %v3098
    %v4650 = vunpack.c.l.b16 %v3099
    %v4651 = vunpack.c.h.b16 %v3099
    %v4652 = vunpack.c.l.b16 %v3100
    %v4653 = vunpack.c.h.b16 %v3100
    %v4654 = vunpack.c.l.b16 %v3101
    %v4655 = vunpack.c.h.b16 %v3101
    %v4656 = vunpack.c.l.b16 %v3102
    %v4657 = vunpack.c.h.b16 %v3102
    %v4658 = vunpack.c.l.b16 %v3103
    %v4659 = vunpack.c.h.b16 %v3103
    %v4660 = vunpack.c.l.b16 %v3104
    %v4661 = vunpack.c.h.b16 %v3104
    %v4662 = vunpack.c.l.b16 %v3105
    %v4663 = vunpack.c.h.b16 %v3105
    %v4664 = vunpack.c.l.b16 %v3106
    %v4665 = vunpack.c.h.b16 %v3106
    %v4666 = vunpack.c.l.b16 %v3107
    %v4667 = vunpack.c.h.b16 %v3107
    %v4668 = vunpack.c.l.b16 %v3108
    %v4669 = vunpack.c.h.b16 %v3108
    %v4670 = vunpack.c.l.b16 %v3109
    %v4671 = vunpack.c.h.b16 %v3109
    %v4672 = vunpack.c.l.b16 %v3110
    %v4673 = vunpack.c.h.b16 %v3110
    %v4674 = vunpack.c.l.b16 %v3111
    %v4675 = vunpack.c.h.b16 %v3111
    %v4676 = vunpack.c.l.b16 %v3112
    %v4677 = vunpack.c.h.b16 %v3112
    %v4678 = vunpack.c.l.b16 %v3113
    %v4679 = vunpack.c.h.b16 %v3113
    %v4680 = vunpack.c.l.b16 %v3114
    %v4681 = vunpack.c.h.b16 %v3114
    %v4682 = vunpack.c.l.b16 %v3115
    %v4683 = vunpack.c.h.b16 %v3115
    %v4684 = vunpack.c.l.b16 %v3116
    %v4685 = vunpack.c.h.b16 %v3116
    %v4686 = vunpack.c.l.b16 %v3117
    %v4687 = vunpack.c.h.b16 %v3117
    %v4688 = vunpack.c.l.b16 %v3118
    %v4689 = vunpack.c.h.b16 %v3118
    %v4690 = vunpack.c.l.b16 %v3119
    %v4691 = vunpack.c.h.b16 %v3119
    %v4692 = vunpack.c.l.b16 %v3120
    %v4693 = vunpack.c.h.b16 %v3120
    %v4694 = vunpack.c.l.b16 %v3121
    %v4695 = vunpack.c.h.b16 %v3121
    %v4696 = vunpack.c.l.b16 %v3122
    %v4697 = vunpack.c.h.b16 %v3122
    %v4698 = vunpack.c.l.b16 %v3123
    %v4699 = vunpack.c.h.b16 %v3123
    %v4700 = vunpack.c.l.b16 %v3124
    %v4701 = vunpack.c.h.b16 %v3124
    %v4702 = vunpack.c.l.b16 %v3125
    %v4703 = vunpack.c.h.b16 %v3125
    %v4704 = vpack.c.b16 %v3688, %v3680
    %v4705 = vpack.c.b16 %v3689, %v3681
    %v4706 = vpack.c.b16 %v3690, %v3682
    %v4707 = vpack.c.b16 %v3691, %v3683
    %v4708 = vpack.c.b16 %v3692, %v3684
    %v4709 = vpack.c.b16 %v3693, %v3685
    %v4710 = vpack.c.b16 %v3694, %v3686
    %v4711 = vpack.c.b16 %v3695, %v3687
    %v4712 = vpack.c.b16 %v3704, %v3696
    %v4713 = vpack.c.b16 %v3705, %v3697
    %v4714 = vpack.c.b16 %v3706, %v3698
    %v4715 = vpack.c.b16 %v3707, %v3699
    %v4716 = vpack.c.b16 %v3708, %v3700
    %v4717 = vpack.c.b16 %v3709, %v3701
    %v4718 = vpack.c.b16 %v3710, %v3702
    %v4719 = vpack.c.b16 %v3711, %v3703
    %v4720 = vpack.c.b16 %v3720, %v3712
    %v4721 = vpack.c.b16 %v3721, %v3713
    %v4722 = vpack.c.b16 %v3722, %v3714
    %v4723 = vpack.c.b16 %v3723, %v3715
    %v4724 = vpack.c.b16 %v3724, %v3716
    %v4725 = vpack.c.b16 %v3725, %v3717
    %v4726 = vpack.c.b16 %v3726, %v3718
    %v4727 = vpack.c.b16 %v3727, %v3719
    %v4728 = vpack.c.b16 %v3736, %v3728
    %v4729 = vpack.c.b16 %v3737, %v3729
    %v4730 = vpack.c.b16 %v3738, %v3730
    %v4731 = vpack.c.b16 %v3739, %v3731
    %v4732 = vpack.c.b16 %v3740, %v3732
    %v4733 = vpack.c.b16 %v3741, %v3733
    %v4734 = vpack.c.b16 %v3742, %v3734
    %v4735 = vpack.c.b16 %v3743, %v3735
    %v4736 = vpack.c.b16 %v3752, %v3744
    %v4737 = vpack.c.b16 %v3753, %v3745
    %v4738 = vpack.c.b16 %v3754, %v3746
    %v4739 = vpack.c.b16 %v3755, %v3747
    %v4740 = vpack.c.b16 %v3756, %v3748
    %v4741 = vpack.c.b16 %v3757, %v3749
    %v4742 = vpack.c.b16 %v3758, %v3750
    %v4743 = vpack.c.b16 %v3759, %v3751
    %v4744 = vpack.c.b16 %v3768, %v3760
    %v4745 = vpack.c.b16 %v3769, %v3761
    %v4746 = vpack.c.b16 %v3770, %v3762
    %v4747 = vpack.c.b16 %v3771, %v3763
    %v4748 = vpack.c.b16 %v3772, %v3764
    %v4749 = vpack.c.b16 %v3773, %v3765
    %v4750 = vpack.c.b16 %v3774, %v3766
    %v4751 = vpack.c.b16 %v3775, %v3767
    %v4752 = vpack.c.b16 %v3784, %v3776
    %v4753 = vpack.c.b16 %v3785, %v3777
    %v4754 = vpack.c.b16 %v3786, %v3778
    %v4755 = vpack.c.b16 %v3787, %v3779
    %v4756 = vpack.c.b16 %v3788, %v3780
    %v4757 = vpack.c.b16 %v3789, %v3781
    %v4758 = vpack.c.b16 %v3790, %v3782
    %v4759 = vpack.c.b16 %v3791, %v3783
    %v4760 = vpack.c.b16 %v3800, %v3792
    %v4761 = vpack.c.b16 %v3801, %v3793
    %v4762 = vpack.c.b16 %v3802, %v3794
    %v4763 = vpack.c.b16 %v3803, %v3795
    %v4764 = vpack.c.b16 %v3804, %v3796
    %v4765 = vpack.c.b16 %v3805, %v3797
    %v4766 = vpack.c.b16 %v3806, %v3798
    %v4767 = vpack.c.b16 %v3807, %v3799
    %v4768 = vpack.c.b16 %v3816, %v3808
    %v4769 = vpack.c.b16 %v3817, %v3809
    %v4770 = vpack.c.b16 %v3818, %v3810
    %v4771 = vpack.c.b16 %v3819, %v3811
    %v4772 = vpack.c.b16 %v3820, %v3812
    %v4773 = vpack.c.b16 %v3821, %v3813
    %v4774 = vpack.c.b16 %v3822, %v3814
    %v4775 = vpack.c.b16 %v3823, %v3815
    %v4776 = vpack.c.b16 %v3832, %v3824
    %v4777 = vpack.c.b16 %v3833, %v3825
    %v4778 = vpack.c.b16 %v3834, %v3826
    %v4779 = vpack.c.b16 %v3835, %v3827
    %v4780 = vpack.c.b16 %v3836, %v3828
    %v4781 = vpack.c.b16 %v3837, %v3829
    %v4782 = vpack.c.b16 %v3838, %v3830
    %v4783 = vpack.c.b16 %v3839, %v3831
    %v4784 = vpack.c.b16 %v3848, %v3840
    %v4785 = vpack.c.b16 %v3849, %v3841
    %v4786 = vpack.c.b16 %v3850, %v3842
    %v4787 = vpack.c.b16 %v3851, %v3843
    %v4788 = vpack.c.b16 %v3852, %v3844
    %v4789 = vpack.c.b16 %v3853, %v3845
    %v4790 = vpack.c.b16 %v3854, %v3846
    %v4791 = vpack.c.b16 %v3855, %v3847
    %v4792 = vpack.c.b16 %v3864, %v3856
    %v4793 = vpack.c.b16 %v3865, %v3857
    %v4794 = vpack.c.b16 %v3866, %v3858
    %v4795 = vpack.c.b16 %v3867, %v3859
    %v4796 = vpack.c.b16 %v3868, %v3860
    %v4797 = vpack.c.b16 %v3869, %v3861
    %v4798 = vpack.c.b16 %v3870, %v3862
    %v4799 = vpack.c.b16 %v3871, %v3863
    %v4800 = vpack.c.b16 %v3880, %v3872
    %v4801 = vpack.c.b16 %v3881, %v3873
    %v4802 = vpack.c.b16 %v3882, %v3874
    %v4803 = vpack.c.b16 %v3883, %v3875
    %v4804 = vpack.c.b16 %v3884, %v3876
    %v4805 = vpack.c.b16 %v3885, %v3877
    %v4806 = vpack.c.b16 %v3886, %v3878
    %v4807 = vpack.c.b16 %v3887, %v3879
    %v4808 = vpack.c.b16 %v3896, %v3888
    %v4809 = vpack.c.b16 %v3897, %v3889
    %v4810 = vpack.c.b16 %v3898, %v3890
    %v4811 = vpack.c.b16 %v3899, %v3891
    %v4812 = vpack.c.b16 %v3900, %v3892
    %v4813 = vpack.c.b16 %v3901, %v3893
    %v4814 = vpack.c.b16 %v3902, %v3894
    %v4815 = vpack.c.b16 %v3903, %v3895
    %v4816 = vpack.c.b16 %v3912, %v3904
    %v4817 = vpack.c.b16 %v3913, %v3905
    %v4818 = vpack.c.b16 %v3914, %v3906
    %v4819 = vpack.c.b16 %v3915, %v3907
    %v4820 = vpack.c.b16 %v3916, %v3908
    %v4821 = vpack.c.b16 %v3917, %v3909
    %v4822 = vpack.c.b16 %v3918, %v3910
    %v4823 = vpack.c.b16 %v3919, %v3911
    %v4824 = vpack.c.b16 %v3928, %v3920
    %v4825 = vpack.c.b16 %v3929, %v3921
    %v4826 = vpack.c.b16 %v3930, %v3922
    %v4827 = vpack.c.b16 %v3931, %v3923
    %v4828 = vpack.c.b16 %v3932, %v3924
    %v4829 = vpack.c.b16 %v3933, %v3925
    %v4830 = vpack.c.b16 %v3934, %v3926
    %v4831 = vpack.c.b16 %v3935, %v3927
    %v4832 = vpack.c.b16 %v3944, %v3936
    %v4833 = vpack.c.b16 %v3945, %v3937
    %v4834 = vpack.c.b16 %v3946, %v3938
    %v4835 = vpack.c.b16 %v3947, %v3939
    %v4836 = vpack.c.b16 %v3948, %v3940
    %v4837 = vpack.c.b16 %v3949, %v3941
    %v4838 = vpack.c.b16 %v3950, %v3942
    %v4839 = vpack.c.b16 %v3951, %v3943
    %v4840 = vpack.c.b16 %v3960, %v3952
    %v4841 = vpack.c.b16 %v3961, %v3953
    %v4842 = vpack.c.b16 %v3962, %v3954
    %v4843 = vpack.c.b16 %v3963, %v3955
    %v4844 = vpack.c.b16 %v3964, %v3956
    %v4845 = vpack.c.b16 %v3965, %v3957
    %v4846 = vpack.c.b16 %v3966, %v3958
    %v4847 = vpack.c.b16 %v3967, %v3959
    %v4848 = vpack.c.b16 %v3976, %v3968
    %v4849 = vpack.c.b16 %v3977, %v3969
    %v4850 = vpack.c.b16 %v3978, %v3970
    %v4851 = vpack.c.b16 %v3979, %v3971
    %v4852 = vpack.c.b16 %v3980, %v3972
    %v4853 = vpack.c.b16 %v3981, %v3973
    %v4854 = vpack.c.b16 %v3982, %v3974
    %v4855 = vpack.c.b16 %v3983, %v3975
    %v4856 = vpack.c.b16 %v3992, %v3984
    %v4857 = vpack.c.b16 %v3993, %v3985
    %v4858 = vpack.c.b16 %v3994, %v3986
    %v4859 = vpack.c.b16 %v3995, %v3987
    %v4860 = vpack.c.b16 %v3996, %v3988
    %v4861 = vpack.c.b16 %v3997, %v3989
    %v4862 = vpack.c.b16 %v3998, %v3990
    %v4863 = vpack.c.b16 %v3999, %v3991
    %v4864 = vpack.c.b16 %v4008, %v4000
    %v4865 = vpack.c.b16 %v4009, %v4001
    %v4866 = vpack.c.b16 %v4010, %v4002
    %v4867 = vpack.c.b16 %v4011, %v4003
    %v4868 = vpack.c.b16 %v4012, %v4004
    %v4869 = vpack.c.b16 %v4013, %v4005
    %v4870 = vpack.c.b16 %v4014, %v4006
    %v4871 = vpack.c.b16 %v4015, %v4007
    %v4872 = vpack.c.b16 %v4024, %v4016
    %v4873 = vpack.c.b16 %v4025, %v4017
    %v4874 = vpack.c.b16 %v4026, %v4018
    %v4875 = vpack.c.b16 %v4027, %v4019
    %v4876 = vpack.c.b16 %v4028, %v4020
    %v4877 = vpack.c.b16 %v4029, %v4021
    %v4878 = vpack.c.b16 %v4030, %v4022
    %v4879 = vpack.c.b16 %v4031, %v4023
    %v4880 = vpack.c.b16 %v4040, %v4032
    %v4881 = vpack.c.b16 %v4041, %v4033
    %v4882 = vpack.c.b16 %v4042, %v4034
    %v4883 = vpack.c.b16 %v4043, %v4035
    %v4884 = vpack.c.b16 %v4044, %v4036
    %v4885 = vpack.c.b16 %v4045, %v4037
    %v4886 = vpack.c.b16 %v4046, %v4038
    %v4887 = vpack.c.b16 %v4047, %v4039
    %v4888 = vpack.c.b16 %v4056, %v4048
    %v4889 = vpack.c.b16 %v4057, %v4049
    %v4890 = vpack.c.b16 %v4058, %v4050
    %v4891 = vpack.c.b16 %v4059, %v4051
    %v4892 = vpack.c.b16 %v4060, %v4052
    %v4893 = vpack.c.b16 %v4061, %v4053
    %v4894 = vpack.c.b16 %v4062, %v4054
    %v4895 = vpack.c.b16 %v4063, %v4055
    %v4896 = vpack.c.b16 %v4072, %v4064
    %v4897 = vpack.c.b16 %v4073, %v4065
    %v4898 = vpack.c.b16 %v4074, %v4066
    %v4899 = vpack.c.b16 %v4075, %v4067
    %v4900 = vpack.c.b16 %v4076, %v4068
    %v4901 = vpack.c.b16 %v4077, %v4069
    %v4902 = vpack.c.b16 %v4078, %v4070
    %v4903 = vpack.c.b16 %v4079, %v4071
    %v4904 = vpack.c.b16 %v4088, %v4080
    %v4905 = vpack.c.b16 %v4089, %v4081
    %v4906 = vpack.c.b16 %v4090, %v4082
    %v4907 = vpack.c.b16 %v4091, %v4083
    %v4908 = vpack.c.b16 %v4092, %v4084
    %v4909 = vpack.c.b16 %v4093, %v4085
    %v4910 = vpack.c.b16 %v4094, %v4086
    %v4911 = vpack.c.b16 %v4095, %v4087
    %v4912 = vpack.c.b16 %v4104, %v4096
    %v4913 = vpack.c.b16 %v4105, %v4097
    %v4914 = vpack.c.b16 %v4106, %v4098
    %v4915 = vpack.c.b16 %v4107, %v4099
    %v4916 = vpack.c.b16 %v4108, %v4100
    %v4917 = vpack.c.b16 %v4109, %v4101
    %v4918 = vpack.c.b16 %v4110, %v4102
    %v4919 = vpack.c.b16 %v4111, %v4103
    %v4920 = vpack.c.b16 %v4120, %v4112
    %v4921 = vpack.c.b16 %v4121, %v4113
    %v4922 = vpack.c.b16 %v4122, %v4114
    %v4923 = vpack.c.b16 %v4123, %v4115
    %v4924 = vpack.c.b16 %v4124, %v4116
    %v4925 = vpack.c.b16 %v4125, %v4117
    %v4926 = vpack.c.b16 %v4126, %v4118
    %v4927 = vpack.c.b16 %v4127, %v4119
    %v4928 = vpack.c.b16 %v4136, %v4128
    %v4929 = vpack.c.b16 %v4137, %v4129
    %v4930 = vpack.c.b16 %v4138, %v4130
    %v4931 = vpack.c.b16 %v4139, %v4131
    %v4932 = vpack.c.b16 %v4140, %v4132
    %v4933 = vpack.c.b16 %v4141, %v4133
    %v4934 = vpack.c.b16 %v4142, %v4134
    %v4935 = vpack.c.b16 %v4143, %v4135
    %v4936 = vpack.c.b16 %v4152, %v4144
    %v4937 = vpack.c.b16 %v4153, %v4145
    %v4938 = vpack.c.b16 %v4154, %v4146
    %v4939 = vpack.c.b16 %v4155, %v4147
    %v4940 = vpack.c.b16 %v4156, %v4148
    %v4941 = vpack.c.b16 %v4157, %v4149
    %v4942 = vpack.c.b16 %v4158, %v4150
    %v4943 = vpack.c.b16 %v4159, %v4151
    %v4944 = vpack.c.b16 %v4168, %v4160
    %v4945 = vpack.c.b16 %v4169, %v4161
    %v4946 = vpack.c.b16 %v4170, %v4162
    %v4947 = vpack.c.b16 %v4171, %v4163
    %v4948 = vpack.c.b16 %v4172, %v4164
    %v4949 = vpack.c.b16 %v4173, %v4165
    %v4950 = vpack.c.b16 %v4174, %v4166
    %v4951 = vpack.c.b16 %v4175, %v4167
    %v4952 = vpack.c.b16 %v4184, %v4176
    %v4953 = vpack.c.b16 %v4185, %v4177
    %v4954 = vpack.c.b16 %v4186, %v4178
    %v4955 = vpack.c.b16 %v4187, %v4179
    %v4956 = vpack.c.b16 %v4188, %v4180
    %v4957 = vpack.c.b16 %v4189, %v4181
    %v4958 = vpack.c.b16 %v4190, %v4182
    %v4959 = vpack.c.b16 %v4191, %v4183
    %v4960 = vpack.c.b16 %v4200, %v4192
    %v4961 = vpack.c.b16 %v4201, %v4193
    %v4962 = vpack.c.b16 %v4202, %v4194
    %v4963 = vpack.c.b16 %v4203, %v4195
    %v4964 = vpack.c.b16 %v4204, %v4196
    %v4965 = vpack.c.b16 %v4205, %v4197
    %v4966 = vpack.c.b16 %v4206, %v4198
    %v4967 = vpack.c.b16 %v4207, %v4199
    %v4968 = vpack.c.b16 %v4216, %v4208
    %v4969 = vpack.c.b16 %v4217, %v4209
    %v4970 = vpack.c.b16 %v4218, %v4210
    %v4971 = vpack.c.b16 %v4219, %v4211
    %v4972 = vpack.c.b16 %v4220, %v4212
    %v4973 = vpack.c.b16 %v4221, %v4213
    %v4974 = vpack.c.b16 %v4222, %v4214
    %v4975 = vpack.c.b16 %v4223, %v4215
    %v4976 = vpack.c.b16 %v4232, %v4224
    %v4977 = vpack.c.b16 %v4233, %v4225
    %v4978 = vpack.c.b16 %v4234, %v4226
    %v4979 = vpack.c.b16 %v4235, %v4227
    %v4980 = vpack.c.b16 %v4236, %v4228
    %v4981 = vpack.c.b16 %v4237, %v4229
    %v4982 = vpack.c.b16 %v4238, %v4230
    %v4983 = vpack.c.b16 %v4239, %v4231
    %v4984 = vpack.c.b16 %v4248, %v4240
    %v4985 = vpack.c.b16 %v4249, %v4241
    %v4986 = vpack.c.b16 %v4250, %v4242
    %v4987 = vpack.c.b16 %v4251, %v4243
    %v4988 = vpack.c.b16 %v4252, %v4244
    %v4989 = vpack.c.b16 %v4253, %v4245
    %v4990 = vpack.c.b16 %v4254, %v4246
    %v4991 = vpack.c.b16 %v4255, %v4247
    %v4992 = vpack.c.b16 %v4264, %v4256
    %v4993 = vpack.c.b16 %v4265, %v4257
    %v4994 = vpack.c.b16 %v4266, %v4258
    %v4995 = vpack.c.b16 %v4267, %v4259
    %v4996 = vpack.c.b16 %v4268, %v4260
    %v4997 = vpack.c.b16 %v4269, %v4261
    %v4998 = vpack.c.b16 %v4270, %v4262
    %v4999 = vpack.c.b16 %v4271, %v4263
    %v5000 = vpack.c.b16 %v4280, %v4272
    %v5001 = vpack.c.b16 %v4281, %v4273
    %v5002 = vpack.c.b16 %v4282, %v4274
    %v5003 = vpack.c.b16 %v4283, %v4275
    %v5004 = vpack.c.b16 %v4284, %v4276
    %v5005 = vpack.c.b16 %v4285, %v4277
    %v5006 = vpack.c.b16 %v4286, %v4278
    %v5007 = vpack.c.b16 %v4287, %v4279
    %v5008 = vpack.c.b16 %v4296, %v4288
    %v5009 = vpack.c.b16 %v4297, %v4289
    %v5010 = vpack.c.b16 %v4298, %v4290
    %v5011 = vpack.c.b16 %v4299, %v4291
    %v5012 = vpack.c.b16 %v4300, %v4292
    %v5013 = vpack.c.b16 %v4301, %v4293
    %v5014 = vpack.c.b16 %v4302, %v4294
    %v5015 = vpack.c.b16 %v4303, %v4295
    %v5016 = vpack.c.b16 %v4312, %v4304
    %v5017 = vpack.c.b16 %v4313, %v4305
    %v5018 = vpack.c.b16 %v4314, %v4306
    %v5019 = vpack.c.b16 %v4315, %v4307
    %v5020 = vpack.c.b16 %v4316, %v4308
    %v5021 = vpack.c.b16 %v4317, %v4309
    %v5022 = vpack.c.b16 %v4318, %v4310
    %v5023 = vpack.c.b16 %v4319, %v4311
    %v5024 = vpack.c.b16 %v4328, %v4320
    %v5025 = vpack.c.b16 %v4329, %v4321
    %v5026 = vpack.c.b16 %v4330, %v4322
    %v5027 = vpack.c.b16 %v4331, %v4323
    %v5028 = vpack.c.b16 %v4332, %v4324
    %v5029 = vpack.c.b16 %v4333, %v4325
    %v5030 = vpack.c.b16 %v4334, %v4326
    %v5031 = vpack.c.b16 %v4335, %v4327
    %v5032 = vpack.c.b16 %v4344, %v4336
    %v5033 = vpack.c.b16 %v4345, %v4337
    %v5034 = vpack.c.b16 %v4346, %v4338
    %v5035 = vpack.c.b16 %v4347, %v4339
    %v5036 = vpack.c.b16 %v4348, %v4340
    %v5037 = vpack.c.b16 %v4349, %v4341
    %v5038 = vpack.c.b16 %v4350, %v4342
    %v5039 = vpack.c.b16 %v4351, %v4343
    %v5040 = vpack.c.b16 %v4360, %v4352
    %v5041 = vpack.c.b16 %v4361, %v4353
    %v5042 = vpack.c.b16 %v4362, %v4354
    %v5043 = vpack.c.b16 %v4363, %v4355
    %v5044 = vpack.c.b16 %v4364, %v4356
    %v5045 = vpack.c.b16 %v4365, %v4357
    %v5046 = vpack.c.b16 %v4366, %v4358
    %v5047 = vpack.c.b16 %v4367, %v4359
    %v5048 = vpack.c.b16 %v4376, %v4368
    %v5049 = vpack.c.b16 %v4377, %v4369
    %v5050 = vpack.c.b16 %v4378, %v4370
    %v5051 = vpack.c.b16 %v4379, %v4371
    %v5052 = vpack.c.b16 %v4380, %v4372
    %v5053 = vpack.c.b16 %v4381, %v4373
    %v5054 = vpack.c.b16 %v4382, %v4374
    %v5055 = vpack.c.b16 %v4383, %v4375
    %v5056 = vpack.c.b16 %v4392, %v4384
    %v5057 = vpack.c.b16 %v4393, %v4385
    %v5058 = vpack.c.b16 %v4394, %v4386
    %v5059 = vpack.c.b16 %v4395, %v4387
    %v5060 = vpack.c.b16 %v4396, %v4388
    %v5061 = vpack.c.b16 %v4397, %v4389
    %v5062 = vpack.c.b16 %v4398, %v4390
    %v5063 = vpack.c.b16 %v4399, %v4391
    %v5064 = vpack.c.b16 %v4408, %v4400
    %v5065 = vpack.c.b16 %v4409, %v4401
    %v5066 = vpack.c.b16 %v4410, %v4402
    %v5067 = vpack.c.b16 %v4411, %v4403
    %v5068 = vpack.c.b16 %v4412, %v4404
    %v5069 = vpack.c.b16 %v4413, %v4405
    %v5070 = vpack.c.b16 %v4414, %v4406
    %v5071 = vpack.c.b16 %v4415, %v4407
    %v5072 = vpack.c.b16 %v4424, %v4416
    %v5073 = vpack.c.b16 %v4425, %v4417
    %v5074 = vpack.c.b16 %v4426, %v4418
    %v5075 = vpack.c.b16 %v4427, %v4419
    %v5076 = vpack.c.b16 %v4428, %v4420
    %v5077 = vpack.c.b16 %v4429, %v4421
    %v5078 = vpack.c.b16 %v4430, %v4422
    %v5079 = vpack.c.b16 %v4431, %v4423
    %v5080 = vpack.c.b16 %v4440, %v4432
    %v5081 = vpack.c.b16 %v4441, %v4433
    %v5082 = vpack.c.b16 %v4442, %v4434
    %v5083 = vpack.c.b16 %v4443, %v4435
    %v5084 = vpack.c.b16 %v4444, %v4436
    %v5085 = vpack.c.b16 %v4445, %v4437
    %v5086 = vpack.c.b16 %v4446, %v4438
    %v5087 = vpack.c.b16 %v4447, %v4439
    %v5088 = vpack.c.b16 %v4456, %v4448
    %v5089 = vpack.c.b16 %v4457, %v4449
    %v5090 = vpack.c.b16 %v4458, %v4450
    %v5091 = vpack.c.b16 %v4459, %v4451
    %v5092 = vpack.c.b16 %v4460, %v4452
    %v5093 = vpack.c.b16 %v4461, %v4453
    %v5094 = vpack.c.b16 %v4462, %v4454
    %v5095 = vpack.c.b16 %v4463, %v4455
    %v5096 = vpack.c.b16 %v4472, %v4464
    %v5097 = vpack.c.b16 %v4473, %v4465
    %v5098 = vpack.c.b16 %v4474, %v4466
    %v5099 = vpack.c.b16 %v4475, %v4467
    %v5100 = vpack.c.b16 %v4476, %v4468
    %v5101 = vpack.c.b16 %v4477, %v4469
    %v5102 = vpack.c.b16 %v4478, %v4470
    %v5103 = vpack.c.b16 %v4479, %v4471
    %v5104 = vpack.c.b16 %v4488, %v4480
    %v5105 = vpack.c.b16 %v4489, %v4481
    %v5106 = vpack.c.b16 %v4490, %v4482
    %v5107 = vpack.c.b16 %v4491, %v4483
    %v5108 = vpack.c.b16 %v4492, %v4484
    %v5109 = vpack.c.b16 %v4493, %v4485
    %v5110 = vpack.c.b16 %v4494, %v4486
    %v5111 = vpack.c.b16 %v4495, %v4487
    %v5112 = vpack.c.b16 %v4504, %v4496
    %v5113 = vpack.c.b16 %v4505, %v4497
    %v5114 = vpack.c.b16 %v4506, %v4498
    %v5115 = vpack.c.b16 %v4507, %v4499
    %v5116 = vpack.c.b16 %v4508, %v4500
    %v5117 = vpack.c.b16 %v4509, %v4501
    %v5118 = vpack.c.b16 %v4510, %v4502
    %v5119 = vpack.c.b16 %v4511, %v4503
    %v5120 = vpack.c.b16 %v4520, %v4512
    %v5121 = vpack.c.b16 %v4521, %v4513
    %v5122 = vpack.c.b16 %v4522, %v4514
    %v5123 = vpack.c.b16 %v4523, %v4515
    %v5124 = vpack.c.b16 %v4524, %v4516
    %v5125 = vpack.c.b16 %v4525, %v4517
    %v5126 = vpack.c.b16 %v4526, %v4518
    %v5127 = vpack.c.b16 %v4527, %v4519
    %v5128 = vpack.c.b16 %v4536, %v4528
    %v5129 = vpack.c.b16 %v4537, %v4529
    %v5130 = vpack.c.b16 %v4538, %v4530
    %v5131 = vpack.c.b16 %v4539, %v4531
    %v5132 = vpack.c.b16 %v4540, %v4532
    %v5133 = vpack.c.b16 %v4541, %v4533
    %v5134 = vpack.c.b16 %v4542, %v4534
    %v5135 = vpack.c.b16 %v4543, %v4535
    %v5136 = vpack.c.b16 %v4552, %v4544
    %v5137 = vpack.c.b16 %v4553, %v4545
    %v5138 = vpack.c.b16 %v4554, %v4546
    %v5139 = vpack.c.b16 %v4555, %v4547
    %v5140 = vpack.c.b16 %v4556, %v4548
    %v5141 = vpack.c.b16 %v4557, %v4549
    %v5142 = vpack.c.b16 %v4558, %v4550
    %v5143 = vpack.c.b16 %v4559, %v4551
    %v5144 = vpack.c.b16 %v4568, %v4560
    %v5145 = vpack.c.b16 %v4569, %v4561
    %v5146 = vpack.c.b16 %v4570, %v4562
    %v5147 = vpack.c.b16 %v4571, %v4563
    %v5148 = vpack.c.b16 %v4572, %v4564
    %v5149 = vpack.c.b16 %v4573, %v4565
    %v5150 = vpack.c.b16 %v4574, %v4566
    %v5151 = vpack.c.b16 %v4575, %v4567
    %v5152 = vpack.c.b16 %v4584, %v4576
    %v5153 = vpack.c.b16 %v4585, %v4577
    %v5154 = vpack.c.b16 %v4586, %v4578
    %v5155 = vpack.c.b16 %v4587, %v4579
    %v5156 = vpack.c.b16 %v4588, %v4580
    %v5157 = vpack.c.b16 %v4589, %v4581
    %v5158 = vpack.c.b16 %v4590, %v4582
    %v5159 = vpack.c.b16 %v4591, %v4583
    %v5160 = vpack.c.b16 %v4600, %v4592
    %v5161 = vpack.c.b16 %v4601, %v4593
    %v5162 = vpack.c.b16 %v4602, %v4594
    %v5163 = vpack.c.b16 %v4603, %v4595
    %v5164 = vpack.c.b16 %v4604, %v4596
    %v5165 = vpack.c.b16 %v4605, %v4597
    %v5166 = vpack.c.b16 %v4606, %v4598
    %v5167 = vpack.c.b16 %v4607, %v4599
    %v5168 = vpack.c.b16 %v4616, %v4608
    %v5169 = vpack.c.b16 %v4617, %v4609
    %v5170 = vpack.c.b16 %v4618, %v4610
    %v5171 = vpack.c.b16 %v4619, %v4611
    %v5172 = vpack.c.b16 %v4620, %v4612
    %v5173 = vpack.c.b16 %v4621, %v4613
    %v5174 = vpack.c.b16 %v4622, %v4614
    %v5175 = vpack.c.b16 %v4623, %v4615
    %v5176 = vpack.c.b16 %v4632, %v4624
    %v5177 = vpack.c.b16 %v4633, %v4625
    %v5178 = vpack.c.b16 %v4634, %v4626
    %v5179 = vpack.c.b16 %v4635, %v4627
    %v5180 = vpack.c.b16 %v4636, %v4628
    %v5181 = vpack.c.b16 %v4637, %v4629
    %v5182 = vpack.c.b16 %v4638, %v4630
    %v5183 = vpack.c.b16 %v4639, %v4631
    %v5184 = vpack.c.b16 %v4648, %v4640
    %v5185 = vpack.c.b16 %v4649, %v4641
    %v5186 = vpack.c.b16 %v4650, %v4642
    %v5187 = vpack.c.b16 %v4651, %v4643
    %v5188 = vpack.c.b16 %v4652, %v4644
    %v5189 = vpack.c.b16 %v4653, %v4645
    %v5190 = vpack.c.b16 %v4654, %v4646
    %v5191 = vpack.c.b16 %v4655, %v4647
    %v5192 = vpack.c.b16 %v4664, %v4656
    %v5193 = vpack.c.b16 %v4665, %v4657
    %v5194 = vpack.c.b16 %v4666, %v4658
    %v5195 = vpack.c.b16 %v4667, %v4659
    %v5196 = vpack.c.b16 %v4668, %v4660
    %v5197 = vpack.c.b16 %v4669, %v4661
    %v5198 = vpack.c.b16 %v4670, %v4662
    %v5199 = vpack.c.b16 %v4671, %v4663
    %v5200 = vpack.c.b16 %v4680, %v4672
    %v5201 = vpack.c.b16 %v4681, %v4673
    %v5202 = vpack.c.b16 %v4682, %v4674
    %v5203 = vpack.c.b16 %v4683, %v4675
    %v5204 = vpack.c.b16 %v4684, %v4676
    %v5205 = vpack.c.b16 %v4685, %v4677
    %v5206 = vpack.c.b16 %v4686, %v4678
    %v5207 = vpack.c.b16 %v4687, %v4679
    %v5208 = vpack.c.b16 %v4696, %v4688
    %v5209 = vpack.c.b16 %v4697, %v4689
    %v5210 = vpack.c.b16 %v4698, %v4690
    %v5211 = vpack.c.b16 %v4699, %v4691
    %v5212 = vpack.c.b16 %v4700, %v4692
    %v5213 = vpack.c.b16 %v4701, %v4693
    %v5214 = vpack.c.b16 %v4702, %v4694
    %v5215 = vpack.c.b16 %v4703, %v4695
    %5728 = vmatprep.subr.bf16.mxu0 %v4705
    %5729 = vmatpush1.bf16.msra.mxu0 %v4704
    %5730 = vmatprep.subr.bf16.mxu0 %v4713
    %5731 = vmatpush1.bf16.msra.mxu0 %v4712
    %5732 = vmatprep.subr.bf16.mxu0 %v4721
    %5733 = vmatpush1.bf16.msra.mxu0 %v4720
    %5734 = vmatprep.subr.bf16.mxu0 %v4729
    %5735 = vmatpush1.bf16.msra.mxu0 %v4728
    %5736 = vmatprep.subr.bf16.mxu0 %v4737
    %5737 = vmatpush1.bf16.msra.mxu0 %v4736
    %5738 = vmatprep.subr.bf16.mxu0 %v4745
    %5739 = vmatpush1.bf16.msra.mxu0 %v4744
    %5740 = vmatprep.subr.bf16.mxu0 %v4753
    %5741 = vmatpush1.bf16.msra.mxu0 %v4752
    %5742 = vmatprep.subr.bf16.mxu0 %v4761
    %5743 = vmatpush1.bf16.msra.mxu0 %v4760
    %5744 = vmatprep.subr.bf16.mxu0 %v4769
    %5745 = vmatpush1.bf16.msra.mxu0 %v4768
    %5746 = vmatprep.subr.bf16.mxu0 %v4777
    %5747 = vmatpush1.bf16.msra.mxu0 %v4776
    %5748 = vmatprep.subr.bf16.mxu0 %v4785
    %5749 = vmatpush1.bf16.msra.mxu0 %v4784
    %5750 = vmatprep.subr.bf16.mxu0 %v4793
    %5751 = vmatpush1.bf16.msra.mxu0 %v4792
    %5752 = vmatprep.subr.bf16.mxu0 %v4801
    %5753 = vmatpush1.bf16.msra.mxu0 %v4800
    %5754 = vmatprep.subr.bf16.mxu0 %v4809
    %5755 = vmatpush1.bf16.msra.mxu0 %v4808
    %5756 = vmatprep.subr.bf16.mxu0 %v4817
    %5757 = vmatpush1.bf16.msra.mxu0 %v4816
    %5758 = vmatprep.subr.bf16.mxu0 %v4825
    %5759 = vmatpush1.bf16.msra.mxu0 %v4824
    %5760 = vmatprep.mubr.bf16.mxu0 %v2607
    %5761 = vmatmul.mubr.bf16.gmra.mrb[0].mxu0 %v2606
    %v5762 = vpop.f32.mrb[0].mxu0
    %v5763 = vadd.f32 %v3131, %v5762
    %v5764 = vpop.f32.mrb[0].mxu0
    %v5765 = vadd.f32 %v3135, %v5764
    %v5766 = vpop.f32.mrb[0].mxu0
    %v5767 = vpop.f32.mrb[0].mxu0
    %5768 = vdwg.mxu0
    %5769 = vmatprep.subr.bf16.mxu0 %v4833
    %5770 = vmatpush1.bf16.msra.mxu0 %v4832
    %5771 = vmatprep.subr.bf16.mxu0 %v4841
    %5772 = vmatpush1.bf16.msra.mxu0 %v4840
    %5773 = vmatprep.subr.bf16.mxu0 %v4849
    %5774 = vmatpush1.bf16.msra.mxu0 %v4848
    %5775 = vmatprep.subr.bf16.mxu0 %v4857
    %5776 = vmatpush1.bf16.msra.mxu0 %v4856
    %5777 = vmatprep.subr.bf16.mxu0 %v4865
    %5778 = vmatpush1.bf16.msra.mxu0 %v4864
    %5779 = vmatprep.subr.bf16.mxu0 %v4873
    %5780 = vmatpush1.bf16.msra.mxu0 %v4872
    %5781 = vmatprep.subr.bf16.mxu0 %v4881
    %5782 = vmatpush1.bf16.msra.mxu0 %v4880
    %5783 = vmatprep.subr.bf16.mxu0 %v4889
    %5784 = vmatpush1.bf16.msra.mxu0 %v4888
    %5785 = vmatprep.subr.bf16.mxu0 %v4897
    %5786 = vmatpush1.bf16.msra.mxu0 %v4896
    %5787 = vmatprep.subr.bf16.mxu0 %v4905
    %5788 = vmatpush1.bf16.msra.mxu0 %v4904
    %5789 = vmatprep.subr.bf16.mxu0 %v4913
    %5790 = vmatpush1.bf16.msra.mxu0 %v4912
    %5791 = vmatprep.subr.bf16.mxu0 %v4921
    %5792 = vmatpush1.bf16.msra.mxu0 %v4920
    %5793 = vmatprep.subr.bf16.mxu0 %v4929
    %5794 = vmatpush1.bf16.msra.mxu0 %v4928
    %5795 = vmatprep.subr.bf16.mxu0 %v4937
    %5796 = vmatpush1.bf16.msra.mxu0 %v4936
    %5797 = vmatprep.subr.bf16.mxu0 %v4945
    %5798 = vmatpush1.bf16.msra.mxu0 %v4944
    %5799 = vmatprep.subr.bf16.mxu0 %v4953
    %5800 = vmatpush1.bf16.msra.mxu0 %v4952
    %5801 = vmatprep.mubr.bf16.mxu0 %v2609
    %5802 = vmatmul.mubr.bf16.gmra.mrb[0].mxu0 %v2608
    %v5803 = vpop.f32.mrb[0].mxu0
    %v5804 = vadd.f32 %v5763, %v5803
    %v5805 = vpop.f32.mrb[0].mxu0
    %v5806 = vadd.f32 %v5765, %v5805
    %v5807 = vpop.f32.mrb[0].mxu0
    %v5808 = vpop.f32.mrb[0].mxu0
    %5809 = vdwg.mxu0
    %5810 = vmatprep.subr.bf16.mxu0 %v4961
    %5811 = vmatpush1.bf16.msra.mxu0 %v4960
    %5812 = vmatprep.subr.bf16.mxu0 %v4969
    %5813 = vmatpush1.bf16.msra.mxu0 %v4968
    %5814 = vmatprep.subr.bf16.mxu0 %v4977
    %5815 = vmatpush1.bf16.msra.mxu0 %v4976
    %5816 = vmatprep.subr.bf16.mxu0 %v4985
    %5817 = vmatpush1.bf16.msra.mxu0 %v4984
    %5818 = vmatprep.subr.bf16.mxu0 %v4993
    %5819 = vmatpush1.bf16.msra.mxu0 %v4992
    %5820 = vmatprep.subr.bf16.mxu0 %v5001
    %5821 = vmatpush1.bf16.msra.mxu0 %v5000
    %5822 = vmatprep.subr.bf16.mxu0 %v5009
    %5823 = vmatpush1.bf16.msra.mxu0 %v5008
    %5824 = vmatprep.subr.bf16.mxu0 %v5017
    %5825 = vmatpush1.bf16.msra.mxu0 %v5016
    %5826 = vmatprep.subr.bf16.mxu0 %v5025
    %5827 = vmatpush1.bf16.msra.mxu0 %v5024
    %5828 = vmatprep.subr.bf16.mxu0 %v5033
    %5829 = vmatpush1.bf16.msra.mxu0 %v5032
    %5830 = vmatprep.subr.bf16.mxu0 %v5041
    %5831 = vmatpush1.bf16.msra.mxu0 %v5040
    %5832 = vmatprep.subr.bf16.mxu0 %v5049
    %5833 = vmatpush1.bf16.msra.mxu0 %v5048
    %5834 = vmatprep.subr.bf16.mxu0 %v5057
    %5835 = vmatpush1.bf16.msra.mxu0 %v5056
    %5836 = vmatprep.subr.bf16.mxu0 %v5065
    %5837 = vmatpush1.bf16.msra.mxu0 %v5064
    %5838 = vmatprep.subr.bf16.mxu0 %v5073
    %5839 = vmatpush1.bf16.msra.mxu0 %v5072
    %5840 = vmatprep.subr.bf16.mxu0 %v5081
    %5841 = vmatpush1.bf16.msra.mxu0 %v5080
    %5842 = vmatprep.mubr.bf16.mxu0 %v2611
    %5843 = vmatmul.mubr.bf16.gmra.mrb[0].mxu0 %v2610
    %v5844 = vpop.f32.mrb[0].mxu0
    %v5845 = vadd.f32 %v5804, %v5844
    %v5846 = vpop.f32.mrb[0].mxu0
    %v5847 = vadd.f32 %v5806, %v5846
    %v5848 = vpop.f32.mrb[0].mxu0
    %v5849 = vpop.f32.mrb[0].mxu0
    %5850 = vdwg.mxu0
    %5851 = vmatprep.subr.bf16.mxu0 %v5089
    %5852 = vmatpush1.bf16.msra.mxu0 %v5088
    %5853 = vmatprep.subr.bf16.mxu0 %v5097
    %5854 = vmatpush1.bf16.msra.mxu0 %v5096
    %5855 = vmatprep.subr.bf16.mxu0 %v5105
    %5856 = vmatpush1.bf16.msra.mxu0 %v5104
    %5857 = vmatprep.subr.bf16.mxu0 %v5113
    %5858 = vmatpush1.bf16.msra.mxu0 %v5112
    %5859 = vmatprep.subr.bf16.mxu0 %v5121
    %5860 = vmatpush1.bf16.msra.mxu0 %v5120
    %5861 = vmatprep.subr.bf16.mxu0 %v5129
    %5862 = vmatpush1.bf16.msra.mxu0 %v5128
    %5863 = vmatprep.subr.bf16.mxu0 %v5137
    %5864 = vmatpush1.bf16.msra.mxu0 %v5136
    %5865 = vmatprep.subr.bf16.mxu0 %v5145
    %5866 = vmatpush1.bf16.msra.mxu0 %v5144
    %5867 = vmatprep.subr.bf16.mxu0 %v5153
    %5868 = vmatpush1.bf16.msra.mxu0 %v5152
    %5869 = vmatprep.subr.bf16.mxu0 %v5161
    %5870 = vmatpush1.bf16.msra.mxu0 %v5160
    %5871 = vmatprep.subr.bf16.mxu0 %v5169
    %5872 = vmatpush1.bf16.msra.mxu0 %v5168
    %5873 = vmatprep.subr.bf16.mxu0 %v5177
    %5874 = vmatpush1.bf16.msra.mxu0 %v5176
    %5875 = vmatprep.subr.bf16.mxu0 %v5185
    %5876 = vmatpush1.bf16.msra.mxu0 %v5184
    %5877 = vmatprep.subr.bf16.mxu0 %v5193
    %5878 = vmatpush1.bf16.msra.mxu0 %v5192
    %5879 = vmatprep.subr.bf16.mxu0 %v5201
    %5880 = vmatpush1.bf16.msra.mxu0 %v5200
    %5881 = vmatprep.subr.bf16.mxu0 %v5209
    %5882 = vmatpush1.bf16.msra.mxu0 %v5208
    %5883 = vmatprep.mubr.bf16.mxu0 %v2613
    %5884 = vmatmul.mubr.bf16.gmra.mrb[0].mxu0 %v2612
    %v5885 = vpop.f32.mrb[0].mxu0
    %v5886 = vadd.f32 %v5845, %v5885
    %v5887 = vpop.f32.mrb[0].mxu0
    %v5888 = vadd.f32 %v5847, %v5887
    %v5889 = vpop.f32.mrb[0].mxu0
    %v5890 = vpop.f32.mrb[0].mxu0
    %5891 = vdwg.mxu0
    %5892 = vmatprep.subr.bf16.mxu0 %v4707
    %5893 = vmatpush1.bf16.msra.mxu0 %v4706
    %5894 = vmatprep.subr.bf16.mxu0 %v4715
    %5895 = vmatpush1.bf16.msra.mxu0 %v4714
    %5896 = vmatprep.subr.bf16.mxu0 %v4723
    %5897 = vmatpush1.bf16.msra.mxu0 %v4722
    %5898 = vmatprep.subr.bf16.mxu0 %v4731
    %5899 = vmatpush1.bf16.msra.mxu0 %v4730
    %5900 = vmatprep.subr.bf16.mxu0 %v4739
    %5901 = vmatpush1.bf16.msra.mxu0 %v4738
    %5902 = vmatprep.subr.bf16.mxu0 %v4747
    %5903 = vmatpush1.bf16.msra.mxu0 %v4746
    %5904 = vmatprep.subr.bf16.mxu0 %v4755
    %5905 = vmatpush1.bf16.msra.mxu0 %v4754
    %5906 = vmatprep.subr.bf16.mxu0 %v4763
    %5907 = vmatpush1.bf16.msra.mxu0 %v4762
    %5908 = vmatprep.subr.bf16.mxu0 %v4771
    %5909 = vmatpush1.bf16.msra.mxu0 %v4770
    %5910 = vmatprep.subr.bf16.mxu0 %v4779
    %5911 = vmatpush1.bf16.msra.mxu0 %v4778
    %5912 = vmatprep.subr.bf16.mxu0 %v4787
    %5913 = vmatpush1.bf16.msra.mxu0 %v4786
    %5914 = vmatprep.subr.bf16.mxu0 %v4795
    %5915 = vmatpush1.bf16.msra.mxu0 %v4794
    %5916 = vmatprep.subr.bf16.mxu0 %v4803
    %5917 = vmatpush1.bf16.msra.mxu0 %v4802
    %5918 = vmatprep.subr.bf16.mxu0 %v4811
    %5919 = vmatpush1.bf16.msra.mxu0 %v4810
    %5920 = vmatprep.subr.bf16.mxu0 %v4819
    %5921 = vmatpush1.bf16.msra.mxu0 %v4818
    %5922 = vmatprep.subr.bf16.mxu0 %v4827
    %5923 = vmatpush1.bf16.msra.mxu0 %v4826
    %5924 = vmatprep.mubr.bf16.mxu0 %v2607
    %5925 = vmatmul.mubr.bf16.gmra.mrb[0].mxu0 %v2606
    %v5926 = vpop.f32.mrb[0].mxu0
    %v5927 = vadd.f32 %v3139, %v5926
    %v5928 = vpop.f32.mrb[0].mxu0
    %v5929 = vadd.f32 %v3143, %v5928
    %v5930 = vpop.f32.mrb[0].mxu0
    %v5931 = vpop.f32.mrb[0].mxu0
    %5932 = vdwg.mxu0
    %5933 = vmatprep.subr.bf16.mxu0 %v4835
    %5934 = vmatpush1.bf16.msra.mxu0 %v4834
    %5935 = vmatprep.subr.bf16.mxu0 %v4843
    %5936 = vmatpush1.bf16.msra.mxu0 %v4842
    %5937 = vmatprep.subr.bf16.mxu0 %v4851
    %5938 = vmatpush1.bf16.msra.mxu0 %v4850
    %5939 = vmatprep.subr.bf16.mxu0 %v4859
    %5940 = vmatpush1.bf16.msra.mxu0 %v4858
    %5941 = vmatprep.subr.bf16.mxu0 %v4867
    %5942 = vmatpush1.bf16.msra.mxu0 %v4866
    %5943 = vmatprep.subr.bf16.mxu0 %v4875
    %5944 = vmatpush1.bf16.msra.mxu0 %v4874
    %5945 = vmatprep.subr.bf16.mxu0 %v4883
    %5946 = vmatpush1.bf16.msra.mxu0 %v4882
    %5947 = vmatprep.subr.bf16.mxu0 %v4891
    %5948 = vmatpush1.bf16.msra.mxu0 %v4890
    %5949 = vmatprep.subr.bf16.mxu0 %v4899
    %5950 = vmatpush1.bf16.msra.mxu0 %v4898
    %5951 = vmatprep.subr.bf16.mxu0 %v4907
    %5952 = vmatpush1.bf16.msra.mxu0 %v4906
    %5953 = vmatprep.subr.bf16.mxu0 %v4915
    %5954 = vmatpush1.bf16.msra.mxu0 %v4914
    %5955 = vmatprep.subr.bf16.mxu0 %v4923
    %5956 = vmatpush1.bf16.msra.mxu0 %v4922
    %5957 = vmatprep.subr.bf16.mxu0 %v4931
    %5958 = vmatpush1.bf16.msra.mxu0 %v4930
    %5959 = vmatprep.subr.bf16.mxu0 %v4939
    %5960 = vmatpush1.bf16.msra.mxu0 %v4938
    %5961 = vmatprep.subr.bf16.mxu0 %v4947
    %5962 = vmatpush1.bf16.msra.mxu0 %v4946
    %5963 = vmatprep.subr.bf16.mxu0 %v4955
    %5964 = vmatpush1.bf16.msra.mxu0 %v4954
    %5965 = vmatprep.mubr.bf16.mxu0 %v2609
    %5966 = vmatmul.mubr.bf16.gmra.mrb[0].mxu0 %v2608
    %v5967 = vpop.f32.mrb[0].mxu0
    %v5968 = vadd.f32 %v5927, %v5967
    %v5969 = vpop.f32.mrb[0].mxu0
    %v5970 = vadd.f32 %v5929, %v5969
    %v5971 = vpop.f32.mrb[0].mxu0
    %v5972 = vpop.f32.mrb[0].mxu0
    %5973 = vdwg.mxu0
    %5974 = vmatprep.subr.bf16.mxu0 %v4963
    %5975 = vmatpush1.bf16.msra.mxu0 %v4962
    %5976 = vmatprep.subr.bf16.mxu0 %v4971
    %5977 = vmatpush1.bf16.msra.mxu0 %v4970
    %5978 = vmatprep.subr.bf16.mxu0 %v4979
    %5979 = vmatpush1.bf16.msra.mxu0 %v4978
    %5980 = vmatprep.subr.bf16.mxu0 %v4987
    %5981 = vmatpush1.bf16.msra.mxu0 %v4986
    %5982 = vmatprep.subr.bf16.mxu0 %v4995
    %5983 = vmatpush1.bf16.msra.mxu0 %v4994
    %5984 = vmatprep.subr.bf16.mxu0 %v5003
    %5985 = vmatpush1.bf16.msra.mxu0 %v5002
    %5986 = vmatprep.subr.bf16.mxu0 %v5011
    %5987 = vmatpush1.bf16.msra.mxu0 %v5010
    %5988 = vmatprep.subr.bf16.mxu0 %v5019
    %5989 = vmatpush1.bf16.msra.mxu0 %v5018
    %5990 = vmatprep.subr.bf16.mxu0 %v5027
    %5991 = vmatpush1.bf16.msra.mxu0 %v5026
    %5992 = vmatprep.subr.bf16.mxu0 %v5035
    %5993 = vmatpush1.bf16.msra.mxu0 %v5034
    %5994 = vmatprep.subr.bf16.mxu0 %v5043
    %5995 = vmatpush1.bf16.msra.mxu0 %v5042
    %5996 = vmatprep.subr.bf16.mxu0 %v5051
    %5997 = vmatpush1.bf16.msra.mxu0 %v5050
    %5998 = vmatprep.subr.bf16.mxu0 %v5059
    %5999 = vmatpush1.bf16.msra.mxu0 %v5058
    %6000 = vmatprep.subr.bf16.mxu0 %v5067
    %6001 = vmatpush1.bf16.msra.mxu0 %v5066
    %6002 = vmatprep.subr.bf16.mxu0 %v5075
    %6003 = vmatpush1.bf16.msra.mxu0 %v5074
    %6004 = vmatprep.subr.bf16.mxu0 %v5083
    %6005 = vmatpush1.bf16.msra.mxu0 %v5082
    %6006 = vmatprep.mubr.bf16.mxu0 %v2611
    %6007 = vmatmul.mubr.bf16.gmra.mrb[0].mxu0 %v2610
    %v6008 = vpop.f32.mrb[0].mxu0
    %v6009 = vadd.f32 %v5968, %v6008
    %v6010 = vpop.f32.mrb[0].mxu0
    %v6011 = vadd.f32 %v5970, %v6010
    %v6012 = vpop.f32.mrb[0].mxu0
    %v6013 = vpop.f32.mrb[0].mxu0
    %6014 = vdwg.mxu0
    %6015 = vmatprep.subr.bf16.mxu0 %v5091
    %6016 = vmatpush1.bf16.msra.mxu0 %v5090
    %6017 = vmatprep.subr.bf16.mxu0 %v5099
    %6018 = vmatpush1.bf16.msra.mxu0 %v5098
    %6019 = vmatprep.subr.bf16.mxu0 %v5107
    %6020 = vmatpush1.bf16.msra.mxu0 %v5106
    %6021 = vmatprep.subr.bf16.mxu0 %v5115
    %6022 = vmatpush1.bf16.msra.mxu0 %v5114
    %6023 = vmatprep.subr.bf16.mxu0 %v5123
    %6024 = vmatpush1.bf16.msra.mxu0 %v5122
    %6025 = vmatprep.subr.bf16.mxu0 %v5131
    %6026 = vmatpush1.bf16.msra.mxu0 %v5130
    %6027 = vmatprep.subr.bf16.mxu0 %v5139
    %6028 = vmatpush1.bf16.msra.mxu0 %v5138
    %6029 = vmatprep.subr.bf16.mxu0 %v5147
    %6030 = vmatpush1.bf16.msra.mxu0 %v5146
    %6031 = vmatprep.subr.bf16.mxu0 %v5155
    %6032 = vmatpush1.bf16.msra.mxu0 %v5154
    %6033 = vmatprep.subr.bf16.mxu0 %v5163
    %6034 = vmatpush1.bf16.msra.mxu0 %v5162
    %6035 = vmatprep.subr.bf16.mxu0 %v5171
    %6036 = vmatpush1.bf16.msra.mxu0 %v5170
    %6037 = vmatprep.subr.bf16.mxu0 %v5179
    %6038 = vmatpush1.bf16.msra.mxu0 %v5178
    %6039 = vmatprep.subr.bf16.mxu0 %v5187
    %6040 = vmatpush1.bf16.msra.mxu0 %v5186
    %6041 = vmatprep.subr.bf16.mxu0 %v5195
    %6042 = vmatpush1.bf16.msra.mxu0 %v5194
    %6043 = vmatprep.subr.bf16.mxu0 %v5203
    %6044 = vmatpush1.bf16.msra.mxu0 %v5202
    %6045 = vmatprep.subr.bf16.mxu0 %v5211
    %6046 = vmatpush1.bf16.msra.mxu0 %v5210
    %6047 = vmatprep.mubr.bf16.mxu0 %v2613
    %6048 = vmatmul.mubr.bf16.gmra.mrb[0].mxu0 %v2612
    %v6049 = vpop.f32.mrb[0].mxu0
    %v6050 = vadd.f32 %v6009, %v6049
    %v6051 = vpop.f32.mrb[0].mxu0
    %v6052 = vadd.f32 %v6011, %v6051
    %v6053 = vpop.f32.mrb[0].mxu0
    %v6054 = vpop.f32.mrb[0].mxu0
    %6055 = vdwg.mxu0
    %6056 = vmatprep.subr.bf16.mxu0 %v4709
    %6057 = vmatpush1.bf16.msra.mxu0 %v4708
    %6058 = vmatprep.subr.bf16.mxu0 %v4717
    %6059 = vmatpush1.bf16.msra.mxu0 %v4716
    %6060 = vmatprep.subr.bf16.mxu0 %v4725
    %6061 = vmatpush1.bf16.msra.mxu0 %v4724
    %6062 = vmatprep.subr.bf16.mxu0 %v4733
    %6063 = vmatpush1.bf16.msra.mxu0 %v4732
    %6064 = vmatprep.subr.bf16.mxu0 %v4741
    %6065 = vmatpush1.bf16.msra.mxu0 %v4740
    %6066 = vmatprep.subr.bf16.mxu0 %v4749
    %6067 = vmatpush1.bf16.msra.mxu0 %v4748
    %6068 = vmatprep.subr.bf16.mxu0 %v4757
    %6069 = vmatpush1.bf16.msra.mxu0 %v4756
    %6070 = vmatprep.subr.bf16.mxu0 %v4765
    %6071 = vmatpush1.bf16.msra.mxu0 %v4764
    %6072 = vmatprep.subr.bf16.mxu0 %v4773
    %6073 = vmatpush1.bf16.msra.mxu0 %v4772
    %6074 = vmatprep.subr.bf16.mxu0 %v4781
    %6075 = vmatpush1.bf16.msra.mxu0 %v4780
    %6076 = vmatprep.subr.bf16.mxu0 %v4789
    %6077 = vmatpush1.bf16.msra.mxu0 %v4788
    %6078 = vmatprep.subr.bf16.mxu0 %v4797
    %6079 = vmatpush1.bf16.msra.mxu0 %v4796
    %6080 = vmatprep.subr.bf16.mxu0 %v4805
    %6081 = vmatpush1.bf16.msra.mxu0 %v4804
    %6082 = vmatprep.subr.bf16.mxu0 %v4813
    %6083 = vmatpush1.bf16.msra.mxu0 %v4812
    %6084 = vmatprep.subr.bf16.mxu0 %v4821
    %6085 = vmatpush1.bf16.msra.mxu0 %v4820
    %6086 = vmatprep.subr.bf16.mxu0 %v4829
    %6087 = vmatpush1.bf16.msra.mxu0 %v4828
    %6088 = vmatprep.mubr.bf16.mxu0 %v2607
    %6089 = vmatmul.mubr.bf16.gmra.mrb[0].mxu0 %v2606
    %v6090 = vpop.f32.mrb[0].mxu0
    %v6091 = vadd.f32 %v3147, %v6090
    %v6092 = vpop.f32.mrb[0].mxu0
    %v6093 = vadd.f32 %v3151, %v6092
    %v6094 = vpop.f32.mrb[0].mxu0
    %v6095 = vpop.f32.mrb[0].mxu0
    %6096 = vdwg.mxu0
    %6097 = vmatprep.subr.bf16.mxu0 %v4837
    %6098 = vmatpush1.bf16.msra.mxu0 %v4836
    %6099 = vmatprep.subr.bf16.mxu0 %v4845
    %6100 = vmatpush1.bf16.msra.mxu0 %v4844
    %6101 = vmatprep.subr.bf16.mxu0 %v4853
    %6102 = vmatpush1.bf16.msra.mxu0 %v4852
    %6103 = vmatprep.subr.bf16.mxu0 %v4861
    %6104 = vmatpush1.bf16.msra.mxu0 %v4860
    %6105 = vmatprep.subr.bf16.mxu0 %v4869
    %6106 = vmatpush1.bf16.msra.mxu0 %v4868
    %6107 = vmatprep.subr.bf16.mxu0 %v4877
    %6108 = vmatpush1.bf16.msra.mxu0 %v4876
    %6109 = vmatprep.subr.bf16.mxu0 %v4885
    %6110 = vmatpush1.bf16.msra.mxu0 %v4884
    %6111 = vmatprep.subr.bf16.mxu0 %v4893
    %6112 = vmatpush1.bf16.msra.mxu0 %v4892
    %6113 = vmatprep.subr.bf16.mxu0 %v4901
    %6114 = vmatpush1.bf16.msra.mxu0 %v4900
    %6115 = vmatprep.subr.bf16.mxu0 %v4909
    %6116 = vmatpush1.bf16.msra.mxu0 %v4908
    %6117 = vmatprep.subr.bf16.mxu0 %v4917
    %6118 = vmatpush1.bf16.msra.mxu0 %v4916
    %6119 = vmatprep.subr.bf16.mxu0 %v4925
    %6120 = vmatpush1.bf16.msra.mxu0 %v4924
    %6121 = vmatprep.subr.bf16.mxu0 %v4933
    %6122 = vmatpush1.bf16.msra.mxu0 %v4932
    %6123 = vmatprep.subr.bf16.mxu0 %v4941
    %6124 = vmatpush1.bf16.msra.mxu0 %v4940
    %6125 = vmatprep.subr.bf16.mxu0 %v4949
    %6126 = vmatpush1.bf16.msra.mxu0 %v4948
    %6127 = vmatprep.subr.bf16.mxu0 %v4957
    %6128 = vmatpush1.bf16.msra.mxu0 %v4956
    %6129 = vmatprep.mubr.bf16.mxu0 %v2609
    %6130 = vmatmul.mubr.bf16.gmra.mrb[0].mxu0 %v2608
    %v6131 = vpop.f32.mrb[0].mxu0
    %v6132 = vadd.f32 %v6091, %v6131
    %v6133 = vpop.f32.mrb[0].mxu0
    %v6134 = vadd.f32 %v6093, %v6133
    %v6135 = vpop.f32.mrb[0].mxu0
    %v6136 = vpop.f32.mrb[0].mxu0
    %6137 = vdwg.mxu0
    %6138 = vmatprep.subr.bf16.mxu0 %v4965
    %6139 = vmatpush1.bf16.msra.mxu0 %v4964
    %6140 = vmatprep.subr.bf16.mxu0 %v4973
    %6141 = vmatpush1.bf16.msra.mxu0 %v4972
    %6142 = vmatprep.subr.bf16.mxu0 %v4981
    %6143 = vmatpush1.bf16.msra.mxu0 %v4980
    %6144 = vmatprep.subr.bf16.mxu0 %v4989
    %6145 = vmatpush1.bf16.msra.mxu0 %v4988
    %6146 = vmatprep.subr.bf16.mxu0 %v4997
    %6147 = vmatpush1.bf16.msra.mxu0 %v4996
    %6148 = vmatprep.subr.bf16.mxu0 %v5005
    %6149 = vmatpush1.bf16.msra.mxu0 %v5004
    %6150 = vmatprep.subr.bf16.mxu0 %v5013
    %6151 = vmatpush1.bf16.msra.mxu0 %v5012
    %6152 = vmatprep.subr.bf16.mxu0 %v5021
    %6153 = vmatpush1.bf16.msra.mxu0 %v5020
    %6154 = vmatprep.subr.bf16.mxu0 %v5029
    %6155 = vmatpush1.bf16.msra.mxu0 %v5028
    %6156 = vmatprep.subr.bf16.mxu0 %v5037
    %6157 = vmatpush1.bf16.msra.mxu0 %v5036
    %6158 = vmatprep.subr.bf16.mxu0 %v5045
    %6159 = vmatpush1.bf16.msra.mxu0 %v5044
    %6160 = vmatprep.subr.bf16.mxu0 %v5053
    %6161 = vmatpush1.bf16.msra.mxu0 %v5052
    %6162 = vmatprep.subr.bf16.mxu0 %v5061
    %6163 = vmatpush1.bf16.msra.mxu0 %v5060
    %6164 = vmatprep.subr.bf16.mxu0 %v5069
    %6165 = vmatpush1.bf16.msra.mxu0 %v5068
    %6166 = vmatprep.subr.bf16.mxu0 %v5077
    %6167 = vmatpush1.bf16.msra.mxu0 %v5076
    %6168 = vmatprep.subr.bf16.mxu0 %v5085
    %6169 = vmatpush1.bf16.msra.mxu0 %v5084
    %6170 = vmatprep.mubr.bf16.mxu0 %v2611
    %6171 = vmatmul.mubr.bf16.gmra.mrb[0].mxu0 %v2610
    %v6172 = vpop.f32.mrb[0].mxu0
    %v6173 = vadd.f32 %v6132, %v6172
    %v6174 = vpop.f32.mrb[0].mxu0
    %v6175 = vadd.f32 %v6134, %v6174
    %v6176 = vpop.f32.mrb[0].mxu0
    %v6177 = vpop.f32.mrb[0].mxu0
    %6178 = vdwg.mxu0
    %6179 = vmatprep.subr.bf16.mxu0 %v5093
    %6180 = vmatpush1.bf16.msra.mxu0 %v5092
    %6181 = vmatprep.subr.bf16.mxu0 %v5101
    %6182 = vmatpush1.bf16.msra.mxu0 %v5100
    %6183 = vmatprep.subr.bf16.mxu0 %v5109
    %6184 = vmatpush1.bf16.msra.mxu0 %v5108
    %6185 = vmatprep.subr.bf16.mxu0 %v5117
    %6186 = vmatpush1.bf16.msra.mxu0 %v5116
    %6187 = vmatprep.subr.bf16.mxu0 %v5125
    %6188 = vmatpush1.bf16.msra.mxu0 %v5124
    %6189 = vmatprep.subr.bf16.mxu0 %v5133
    %6190 = vmatpush1.bf16.msra.mxu0 %v5132
    %6191 = vmatprep.subr.bf16.mxu0 %v5141
    %6192 = vmatpush1.bf16.msra.mxu0 %v5140
    %6193 = vmatprep.subr.bf16.mxu0 %v5149
    %6194 = vmatpush1.bf16.msra.mxu0 %v5148
    %6195 = vmatprep.subr.bf16.mxu0 %v5157
    %6196 = vmatpush1.bf16.msra.mxu0 %v5156
    %6197 = vmatprep.subr.bf16.mxu0 %v5165
    %6198 = vmatpush1.bf16.msra.mxu0 %v5164
    %6199 = vmatprep.subr.bf16.mxu0 %v5173
    %6200 = vmatpush1.bf16.msra.mxu0 %v5172
    %6201 = vmatprep.subr.bf16.mxu0 %v5181
    %6202 = vmatpush1.bf16.msra.mxu0 %v5180
    %6203 = vmatprep.subr.bf16.mxu0 %v5189
    %6204 = vmatpush1.bf16.msra.mxu0 %v5188
    %6205 = vmatprep.subr.bf16.mxu0 %v5197
    %6206 = vmatpush1.bf16.msra.mxu0 %v5196
    %6207 = vmatprep.subr.bf16.mxu0 %v5205
    %6208 = vmatpush1.bf16.msra.mxu0 %v5204
    %6209 = vmatprep.subr.bf16.mxu0 %v5213
    %6210 = vmatpush1.bf16.msra.mxu0 %v5212
    %6211 = vmatprep.mubr.bf16.mxu0 %v2613
    %6212 = vmatmul.mubr.bf16.gmra.mrb[0].mxu0 %v2612
    %v6213 = vpop.f32.mrb[0].mxu0
    %v6214 = vadd.f32 %v6173, %v6213
    %v6215 = vpop.f32.mrb[0].mxu0
    %v6216 = vadd.f32 %v6175, %v6215
    %v6217 = vpop.f32.mrb[0].mxu0
    %v6218 = vpop.f32.mrb[0].mxu0
    %6219 = vdwg.mxu0
    %6220 = vmatprep.subr.bf16.mxu0 %v4711
    %6221 = vmatpush1.bf16.msra.mxu0 %v4710
    %6222 = vmatprep.subr.bf16.mxu0 %v4719
    %6223 = vmatpush1.bf16.msra.mxu0 %v4718
    %6224 = vmatprep.subr.bf16.mxu0 %v4727
    %6225 = vmatpush1.bf16.msra.mxu0 %v4726
    %6226 = vmatprep.subr.bf16.mxu0 %v4735
    %6227 = vmatpush1.bf16.msra.mxu0 %v4734
    %6228 = vmatprep.subr.bf16.mxu0 %v4743
    %6229 = vmatpush1.bf16.msra.mxu0 %v4742
    %6230 = vmatprep.subr.bf16.mxu0 %v4751
    %6231 = vmatpush1.bf16.msra.mxu0 %v4750
    %6232 = vmatprep.subr.bf16.mxu0 %v4759
    %6233 = vmatpush1.bf16.msra.mxu0 %v4758
    %6234 = vmatprep.subr.bf16.mxu0 %v4767
    %6235 = vmatpush1.bf16.msra.mxu0 %v4766
    %6236 = vmatprep.subr.bf16.mxu0 %v4775
    %6237 = vmatpush1.bf16.msra.mxu0 %v4774
    %6238 = vmatprep.subr.bf16.mxu0 %v4783
    %6239 = vmatpush1.bf16.msra.mxu0 %v4782
    %6240 = vmatprep.subr.bf16.mxu0 %v4791
    %6241 = vmatpush1.bf16.msra.mxu0 %v4790
    %6242 = vmatprep.subr.bf16.mxu0 %v4799
    %6243 = vmatpush1.bf16.msra.mxu0 %v4798
    %6244 = vmatprep.subr.bf16.mxu0 %v4807
    %6245 = vmatpush1.bf16.msra.mxu0 %v4806
    %6246 = vmatprep.subr.bf16.mxu0 %v4815
    %6247 = vmatpush1.bf16.msra.mxu0 %v4814
    %6248 = vmatprep.subr.bf16.mxu0 %v4823
    %6249 = vmatpush1.bf16.msra.mxu0 %v4822
    %6250 = vmatprep.subr.bf16.mxu0 %v4831
    %6251 = vmatpush1.bf16.msra.mxu0 %v4830
    %6252 = vmatprep.mubr.bf16.mxu0 %v2607
    %6253 = vmatmul.mubr.bf16.gmra.mrb[0].mxu0 %v2606
    %v6254 = vpop.f32.mrb[0].mxu0
    %v6255 = vadd.f32 %v3155, %v6254
    %v6256 = vpop.f32.mrb[0].mxu0
    %v6257 = vadd.f32 %v3159, %v6256
    %v6258 = vpop.f32.mrb[0].mxu0
    %v6259 = vpop.f32.mrb[0].mxu0
    %6260 = vdwg.mxu0
    %6261 = vmatprep.subr.bf16.mxu0 %v4839
    %6262 = vmatpush1.bf16.msra.mxu0 %v4838
    %6263 = vmatprep.subr.bf16.mxu0 %v4847
    %6264 = vmatpush1.bf16.msra.mxu0 %v4846
    %6265 = vmatprep.subr.bf16.mxu0 %v4855
    %6266 = vmatpush1.bf16.msra.mxu0 %v4854
    %6267 = vmatprep.subr.bf16.mxu0 %v4863
    %6268 = vmatpush1.bf16.msra.mxu0 %v4862
    %6269 = vmatprep.subr.bf16.mxu0 %v4871
    %6270 = vmatpush1.bf16.msra.mxu0 %v4870
    %6271 = vmatprep.subr.bf16.mxu0 %v4879
    %6272 = vmatpush1.bf16.msra.mxu0 %v4878
    %6273 = vmatprep.subr.bf16.mxu0 %v4887
    %6274 = vmatpush1.bf16.msra.mxu0 %v4886
    %6275 = vmatprep.subr.bf16.mxu0 %v4895
    %6276 = vmatpush1.bf16.msra.mxu0 %v4894
    %6277 = vmatprep.subr.bf16.mxu0 %v4903
    %6278 = vmatpush1.bf16.msra.mxu0 %v4902
    %6279 = vmatprep.subr.bf16.mxu0 %v4911
    %6280 = vmatpush1.bf16.msra.mxu0 %v4910
    %6281 = vmatprep.subr.bf16.mxu0 %v4919
    %6282 = vmatpush1.bf16.msra.mxu0 %v4918
    %6283 = vmatprep.subr.bf16.mxu0 %v4927
    %6284 = vmatpush1.bf16.msra.mxu0 %v4926
    %6285 = vmatprep.subr.bf16.mxu0 %v4935
    %6286 = vmatpush1.bf16.msra.mxu0 %v4934
    %6287 = vmatprep.subr.bf16.mxu0 %v4943
    %6288 = vmatpush1.bf16.msra.mxu0 %v4942
    %6289 = vmatprep.subr.bf16.mxu0 %v4951
    %6290 = vmatpush1.bf16.msra.mxu0 %v4950
    %6291 = vmatprep.subr.bf16.mxu0 %v4959
    %6292 = vmatpush1.bf16.msra.mxu0 %v4958
    %6293 = vmatprep.mubr.bf16.mxu0 %v2609
    %6294 = vmatmul.mubr.bf16.gmra.mrb[0].mxu0 %v2608
    %v6295 = vpop.f32.mrb[0].mxu0
    %v6296 = vadd.f32 %v6255, %v6295
    %v6297 = vpop.f32.mrb[0].mxu0
    %v6298 = vadd.f32 %v6257, %v6297
    %v6299 = vpop.f32.mrb[0].mxu0
    %v6300 = vpop.f32.mrb[0].mxu0
    %6301 = vdwg.mxu0
    %6302 = vmatprep.subr.bf16.mxu0 %v4967
    %6303 = vmatpush1.bf16.msra.mxu0 %v4966
    %6304 = vmatprep.subr.bf16.mxu0 %v4975
    %6305 = vmatpush1.bf16.msra.mxu0 %v4974
    %6306 = vmatprep.subr.bf16.mxu0 %v4983
    %6307 = vmatpush1.bf16.msra.mxu0 %v4982
    %6308 = vmatprep.subr.bf16.mxu0 %v4991
    %6309 = vmatpush1.bf16.msra.mxu0 %v4990
    %6310 = vmatprep.subr.bf16.mxu0 %v4999
    %6311 = vmatpush1.bf16.msra.mxu0 %v4998
    %6312 = vmatprep.subr.bf16.mxu0 %v5007
    %6313 = vmatpush1.bf16.msra.mxu0 %v5006
    %6314 = vmatprep.subr.bf16.mxu0 %v5015
    %6315 = vmatpush1.bf16.msra.mxu0 %v5014
    %6316 = vmatprep.subr.bf16.mxu0 %v5023
    %6317 = vmatpush1.bf16.msra.mxu0 %v5022
    %6318 = vmatprep.subr.bf16.mxu0 %v5031
    %6319 = vmatpush1.bf16.msra.mxu0 %v5030
    %6320 = vmatprep.subr.bf16.mxu0 %v5039
    %6321 = vmatpush1.bf16.msra.mxu0 %v5038
    %6322 = vmatprep.subr.bf16.mxu0 %v5047
    %6323 = vmatpush1.bf16.msra.mxu0 %v5046
    %6324 = vmatprep.subr.bf16.mxu0 %v5055
    %6325 = vmatpush1.bf16.msra.mxu0 %v5054
    %6326 = vmatprep.subr.bf16.mxu0 %v5063
    %6327 = vmatpush1.bf16.msra.mxu0 %v5062
    %6328 = vmatprep.subr.bf16.mxu0 %v5071
    %6329 = vmatpush1.bf16.msra.mxu0 %v5070
    %6330 = vmatprep.subr.bf16.mxu0 %v5079
    %6331 = vmatpush1.bf16.msra.mxu0 %v5078
    %6332 = vmatprep.subr.bf16.mxu0 %v5087
    %6333 = vmatpush1.bf16.msra.mxu0 %v5086
    %6334 = vmatprep.mubr.bf16.mxu0 %v2611
    %6335 = vmatmul.mubr.bf16.gmra.mrb[0].mxu0 %v2610
    %v6336 = vpop.f32.mrb[0].mxu0
    %v6337 = vadd.f32 %v6296, %v6336
    %v6338 = vpop.f32.mrb[0].mxu0
    %v6339 = vadd.f32 %v6298, %v6338
    %v6340 = vpop.f32.mrb[0].mxu0
    %v6341 = vpop.f32.mrb[0].mxu0
    %6342 = vdwg.mxu0
    %6343 = vmatprep.subr.bf16.mxu0 %v5095
    %6344 = vmatpush1.bf16.msra.mxu0 %v5094
    %6345 = vmatprep.subr.bf16.mxu0 %v5103
    %6346 = vmatpush1.bf16.msra.mxu0 %v5102
    %6347 = vmatprep.subr.bf16.mxu0 %v5111
    %6348 = vmatpush1.bf16.msra.mxu0 %v5110
    %6349 = vmatprep.subr.bf16.mxu0 %v5119
    %6350 = vmatpush1.bf16.msra.mxu0 %v5118
    %6351 = vmatprep.subr.bf16.mxu0 %v5127
    %6352 = vmatpush1.bf16.msra.mxu0 %v5126
    %6353 = vmatprep.subr.bf16.mxu0 %v5135
    %6354 = vmatpush1.bf16.msra.mxu0 %v5134
    %6355 = vmatprep.subr.bf16.mxu0 %v5143
    %6356 = vmatpush1.bf16.msra.mxu0 %v5142
    %6357 = vmatprep.subr.bf16.mxu0 %v5151
    %6358 = vmatpush1.bf16.msra.mxu0 %v5150
    %6359 = vmatprep.subr.bf16.mxu0 %v5159
    %6360 = vmatpush1.bf16.msra.mxu0 %v5158
    %6361 = vmatprep.subr.bf16.mxu0 %v5167
    %6362 = vmatpush1.bf16.msra.mxu0 %v5166
    %6363 = vmatprep.subr.bf16.mxu0 %v5175
    %6364 = vmatpush1.bf16.msra.mxu0 %v5174
    %6365 = vmatprep.subr.bf16.mxu0 %v5183
    %6366 = vmatpush1.bf16.msra.mxu0 %v5182
    %6367 = vmatprep.subr.bf16.mxu0 %v5191
    %6368 = vmatpush1.bf16.msra.mxu0 %v5190
    %6369 = vmatprep.subr.bf16.mxu0 %v5199
    %6370 = vmatpush1.bf16.msra.mxu0 %v5198
    %6371 = vmatprep.subr.bf16.mxu0 %v5207
    %6372 = vmatpush1.bf16.msra.mxu0 %v5206
    %6373 = vmatprep.subr.bf16.mxu0 %v5215
    %6374 = vmatpush1.bf16.msra.mxu0 %v5214
    %6375 = vmatprep.mubr.bf16.mxu0 %v2613
    %6376 = vmatmul.mubr.bf16.gmra.mrb[0].mxu0 %v2612
    %v6377 = vpop.f32.mrb[0].mxu0
    %v6378 = vadd.f32 %v6337, %v6377
    %v6379 = vpop.f32.mrb[0].mxu0
    %v6380 = vadd.f32 %v6339, %v6379
    %v6381 = vpop.f32.mrb[0].mxu0
    %v6382 = vpop.f32.mrb[0].mxu0
    %6383 = vdwg.mxu0
    %v6384 = vmax.f32 %v5886, 0.0
    %v6385 = vmax.f32 %v5888, 0.0
    %v6386 = vmax.f32 %v6050, 0.0
    %v6387 = vmax.f32 %v6052, 0.0
    %v6388 = vmax.f32 %v6214, 0.0
    %v6389 = vmax.f32 %v6216, 0.0
    %v6390 = vmax.f32 %v6378, 0.0
    %v6391 = vmax.f32 %v6380, 0.0
    %v6392 = vpack.c.bf16 %v6384, %v6384
    %v6393 = vpack.c.bf16 %v6385, %v6385
    %v6394 = vpack.c.bf16 %v6386, %v6386
    %v6395 = vpack.c.bf16 %v6387, %v6387
    %v6396 = vpack.c.bf16 %v6388, %v6388
    %v6397 = vpack.c.bf16 %v6389, %v6389
    %v6398 = vpack.c.bf16 %v6390, %v6390
    %v6399 = vpack.c.bf16 %v6391, %v6391
    %v6400 = vld [vmem:[#allocation9] sm:$0xff]
    %v6401 = vld [vmem:[#allocation9 + $0x8] sm:$0xff]
    %v6402 = vld [vmem:[#allocation9 + $0x10] sm:$0xff]
    %v6403 = vld [vmem:[#allocation9 + $0x18] sm:$0xff]
    %v6404 = vld [vmem:[#allocation9 + $0x20] sm:$0xff]
    %v6405 = vld [vmem:[#allocation9 + $0x28] sm:$0xff]
    %v6406 = vld [vmem:[#allocation9 + $0x30] sm:$0xff]
    %v6407 = vld [vmem:[#allocation9 + $0x38] sm:$0xff]
    %v6408 = vld [vmem:[#allocation9 + $0x40] sm:$0xff]
    %v6409 = vld [vmem:[#allocation9 + $0x48] sm:$0xff]
    %v6410 = vld [vmem:[#allocation9 + $0x50] sm:$0xff]
    %v6411 = vld [vmem:[#allocation9 + $0x58] sm:$0xff]
    %v6412 = vld [vmem:[#allocation9 + $0x60] sm:$0xff]
    %v6413 = vld [vmem:[#allocation9 + $0x68] sm:$0xff]
    %v6414 = vld [vmem:[#allocation9 + $0x70] sm:$0xff]
    %v6415 = vld [vmem:[#allocation9 + $0x78] sm:$0xff]
    %v6416 = vld [vmem:[#allocation9 + $0x80] sm:$0xff]
    %v6417 = vld [vmem:[#allocation9 + $0x88] sm:$0xff]
    %v6418 = vld [vmem:[#allocation9 + $0x90] sm:$0xff]
    %v6419 = vld [vmem:[#allocation9 + $0x98] sm:$0xff]
    %v6420 = vld [vmem:[#allocation9 + $0xa0] sm:$0xff]
    %v6421 = vld [vmem:[#allocation9 + $0xa8] sm:$0xff]
    %v6422 = vld [vmem:[#allocation9 + $0xb0] sm:$0xff]
    %v6423 = vld [vmem:[#allocation9 + $0xb8] sm:$0xff]
    %v6424 = vld [vmem:[#allocation9 + $0xc0] sm:$0xff]
    %v6425 = vld [vmem:[#allocation9 + $0xc8] sm:$0xff]
    %v6426 = vld [vmem:[#allocation9 + $0xd0] sm:$0xff]
    %v6427 = vld [vmem:[#allocation9 + $0xd8] sm:$0xff]
    %v6428 = vld [vmem:[#allocation9 + $0xe0] sm:$0xff]
    %v6429 = vld [vmem:[#allocation9 + $0xe8] sm:$0xff]
    %v6430 = vld [vmem:[#allocation9 + $0xf0] sm:$0xff]
    %v6431 = vld [vmem:[#allocation9 + $0xf8] sm:$0xff]
    %v6432 = vld [vmem:[#allocation9 + $0x100] sm:$0xff]
    %v6433 = vld [vmem:[#allocation9 + $0x108] sm:$0xff]
    %v6434 = vld [vmem:[#allocation9 + $0x110] sm:$0xff]
    %v6435 = vld [vmem:[#allocation9 + $0x118] sm:$0xff]
    %v6436 = vld [vmem:[#allocation9 + $0x120] sm:$0xff]
    %v6437 = vld [vmem:[#allocation9 + $0x128] sm:$0xff]
    %v6438 = vld [vmem:[#allocation9 + $0x130] sm:$0xff]
    %v6439 = vld [vmem:[#allocation9 + $0x138] sm:$0xff]
    %v6440 = vld [vmem:[#allocation9 + $0x140] sm:$0xff]
    %v6441 = vld [vmem:[#allocation9 + $0x148] sm:$0xff]
    %v6442 = vld [vmem:[#allocation9 + $0x150] sm:$0xff]
    %v6443 = vld [vmem:[#allocation9 + $0x158] sm:$0xff]
    %v6444 = vld [vmem:[#allocation9 + $0x160] sm:$0xff]
    %v6445 = vld [vmem:[#allocation9 + $0x168] sm:$0xff]
    %v6446 = vld [vmem:[#allocation9 + $0x170] sm:$0xff]
    %v6447 = vld [vmem:[#allocation9 + $0x178] sm:$0xff]
    %v6448 = vld [vmem:[#allocation9 + $0x180] sm:$0xff]
    %v6449 = vld [vmem:[#allocation9 + $0x188] sm:$0xff]
    %v6450 = vld [vmem:[#allocation9 + $0x190] sm:$0xff]
    %v6451 = vld [vmem:[#allocation9 + $0x198] sm:$0xff]
    %v6452 = vld [vmem:[#allocation9 + $0x1a0] sm:$0xff]
    %v6453 = vld [vmem:[#allocation9 + $0x1a8] sm:$0xff]
    %v6454 = vld [vmem:[#allocation9 + $0x1b0] sm:$0xff]
    %v6455 = vld [vmem:[#allocation9 + $0x1b8] sm:$0xff]
    %v6456 = vld [vmem:[#allocation9 + $0x1c0] sm:$0xff]
    %v6457 = vld [vmem:[#allocation9 + $0x1c8] sm:$0xff]
    %v6458 = vld [vmem:[#allocation9 + $0x1d0] sm:$0xff]
    %v6459 = vld [vmem:[#allocation9 + $0x1d8] sm:$0xff]
    %v6460 = vld [vmem:[#allocation9 + $0x1e0] sm:$0xff]
    %v6461 = vld [vmem:[#allocation9 + $0x1e8] sm:$0xff]
    %v6462 = vld [vmem:[#allocation9 + $0x1f0] sm:$0xff]
    %v6463 = vld [vmem:[#allocation9 + $0x1f8] sm:$0xff]
    %v6464 = vld [vmem:[#allocation9 + $0x200] sm:$0xff]
    %v6465 = vld [vmem:[#allocation9 + $0x208] sm:$0xff]
    %v6466 = vld [vmem:[#allocation9 + $0x210] sm:$0xff]
    %v6467 = vld [vmem:[#allocation9 + $0x218] sm:$0xff]
    %v6468 = vld [vmem:[#allocation9 + $0x220] sm:$0xff]
    %v6469 = vld [vmem:[#allocation9 + $0x228] sm:$0xff]
    %v6470 = vld [vmem:[#allocation9 + $0x230] sm:$0xff]
    %v6471 = vld [vmem:[#allocation9 + $0x238] sm:$0xff]
    %v6472 = vld [vmem:[#allocation9 + $0x240] sm:$0xff]
    %v6473 = vld [vmem:[#allocation9 + $0x248] sm:$0xff]
    %v6474 = vld [vmem:[#allocation9 + $0x250] sm:$0xff]
    %v6475 = vld [vmem:[#allocation9 + $0x258] sm:$0xff]
    %v6476 = vld [vmem:[#allocation9 + $0x260] sm:$0xff]
    %v6477 = vld [vmem:[#allocation9 + $0x268] sm:$0xff]
    %v6478 = vld [vmem:[#allocation9 + $0x270] sm:$0xff]
    %v6479 = vld [vmem:[#allocation9 + $0x278] sm:$0xff]
    %v6480 = vld [vmem:[#allocation9 + $0x280] sm:$0xff]
    %v6481 = vld [vmem:[#allocation9 + $0x288] sm:$0xff]
    %v6482 = vld [vmem:[#allocation9 + $0x290] sm:$0xff]
    %v6483 = vld [vmem:[#allocation9 + $0x298] sm:$0xff]
    %v6484 = vld [vmem:[#allocation9 + $0x2a0] sm:$0xff]
    %v6485 = vld [vmem:[#allocation9 + $0x2a8] sm:$0xff]
    %v6486 = vld [vmem:[#allocation9 + $0x2b0] sm:$0xff]
    %v6487 = vld [vmem:[#allocation9 + $0x2b8] sm:$0xff]
    %v6488 = vld [vmem:[#allocation9 + $0x2c0] sm:$0xff]
    %v6489 = vld [vmem:[#allocation9 + $0x2c8] sm:$0xff]
    %v6490 = vld [vmem:[#allocation9 + $0x2d0] sm:$0xff]
    %v6491 = vld [vmem:[#allocation9 + $0x2d8] sm:$0xff]
    %v6492 = vld [vmem:[#allocation9 + $0x2e0] sm:$0xff]
    %v6493 = vld [vmem:[#allocation9 + $0x2e8] sm:$0xff]
    %v6494 = vld [vmem:[#allocation9 + $0x2f0] sm:$0xff]
    %v6495 = vld [vmem:[#allocation9 + $0x2f8] sm:$0xff]
    %v6496 = vld [vmem:[#allocation9 + $0x300] sm:$0xff]
    %v6497 = vld [vmem:[#allocation9 + $0x308] sm:$0xff]
    %v6498 = vld [vmem:[#allocation9 + $0x310] sm:$0xff]
    %v6499 = vld [vmem:[#allocation9 + $0x318] sm:$0xff]
    %v6500 = vld [vmem:[#allocation9 + $0x320] sm:$0xff]
    %v6501 = vld [vmem:[#allocation9 + $0x328] sm:$0xff]
    %v6502 = vld [vmem:[#allocation9 + $0x330] sm:$0xff]
    %v6503 = vld [vmem:[#allocation9 + $0x338] sm:$0xff]
    %v6504 = vld [vmem:[#allocation9 + $0x340] sm:$0xff]
    %v6505 = vld [vmem:[#allocation9 + $0x348] sm:$0xff]
    %v6506 = vld [vmem:[#allocation9 + $0x350] sm:$0xff]
    %v6507 = vld [vmem:[#allocation9 + $0x358] sm:$0xff]
    %v6508 = vld [vmem:[#allocation9 + $0x360] sm:$0xff]
    %v6509 = vld [vmem:[#allocation9 + $0x368] sm:$0xff]
    %v6510 = vld [vmem:[#allocation9 + $0x370] sm:$0xff]
    %v6511 = vld [vmem:[#allocation9 + $0x378] sm:$0xff]
    %v6512 = vld [vmem:[#allocation9 + $0x380] sm:$0xff]
    %v6513 = vld [vmem:[#allocation9 + $0x388] sm:$0xff]
    %v6514 = vld [vmem:[#allocation9 + $0x390] sm:$0xff]
    %v6515 = vld [vmem:[#allocation9 + $0x398] sm:$0xff]
    %v6516 = vld [vmem:[#allocation9 + $0x3a0] sm:$0xff]
    %v6517 = vld [vmem:[#allocation9 + $0x3a8] sm:$0xff]
    %v6518 = vld [vmem:[#allocation9 + $0x3b0] sm:$0xff]
    %v6519 = vld [vmem:[#allocation9 + $0x3b8] sm:$0xff]
    %v6520 = vld [vmem:[#allocation9 + $0x3c0] sm:$0xff]
    %v6521 = vld [vmem:[#allocation9 + $0x3c8] sm:$0xff]
    %v6522 = vld [vmem:[#allocation9 + $0x3d0] sm:$0xff]
    %v6523 = vld [vmem:[#allocation9 + $0x3d8] sm:$0xff]
    %v6524 = vld [vmem:[#allocation9 + $0x3e0] sm:$0xff]
    %v6525 = vld [vmem:[#allocation9 + $0x3e8] sm:$0xff]
    %v6526 = vld [vmem:[#allocation9 + $0x3f0] sm:$0xff]
    %v6527 = vld [vmem:[#allocation9 + $0x3f8] sm:$0xff]
    %v6528 = vld [vmem:[#allocation9 + $0x400] sm:$0xff]
    %v6529 = vld [vmem:[#allocation9 + $0x408] sm:$0xff]
    %v6530 = vld [vmem:[#allocation9 + $0x410] sm:$0xff]
    %v6531 = vld [vmem:[#allocation9 + $0x418] sm:$0xff]
    %v6532 = vld [vmem:[#allocation9 + $0x420] sm:$0xff]
    %v6533 = vld [vmem:[#allocation9 + $0x428] sm:$0xff]
    %v6534 = vld [vmem:[#allocation9 + $0x430] sm:$0xff]
    %v6535 = vld [vmem:[#allocation9 + $0x438] sm:$0xff]
    %v6536 = vld [vmem:[#allocation9 + $0x440] sm:$0xff]
    %v6537 = vld [vmem:[#allocation9 + $0x448] sm:$0xff]
    %v6538 = vld [vmem:[#allocation9 + $0x450] sm:$0xff]
    %v6539 = vld [vmem:[#allocation9 + $0x458] sm:$0xff]
    %v6540 = vld [vmem:[#allocation9 + $0x460] sm:$0xff]
    %v6541 = vld [vmem:[#allocation9 + $0x468] sm:$0xff]
    %v6542 = vld [vmem:[#allocation9 + $0x470] sm:$0xff]
    %v6543 = vld [vmem:[#allocation9 + $0x478] sm:$0xff]
    %v6544 = vld [vmem:[#allocation9 + $0x480] sm:$0xff]
    %v6545 = vld [vmem:[#allocation9 + $0x488] sm:$0xff]
    %v6546 = vld [vmem:[#allocation9 + $0x490] sm:$0xff]
    %v6547 = vld [vmem:[#allocation9 + $0x498] sm:$0xff]
    %v6548 = vld [vmem:[#allocation9 + $0x4a0] sm:$0xff]
    %v6549 = vld [vmem:[#allocation9 + $0x4a8] sm:$0xff]
    %v6550 = vld [vmem:[#allocation9 + $0x4b0] sm:$0xff]
    %v6551 = vld [vmem:[#allocation9 + $0x4b8] sm:$0xff]
    %v6552 = vld [vmem:[#allocation9 + $0x4c0] sm:$0xff]
    %v6553 = vld [vmem:[#allocation9 + $0x4c8] sm:$0xff]
    %v6554 = vld [vmem:[#allocation9 + $0x4d0] sm:$0xff]
    %v6555 = vld [vmem:[#allocation9 + $0x4d8] sm:$0xff]
    %v6556 = vld [vmem:[#allocation9 + $0x4e0] sm:$0xff]
    %v6557 = vld [vmem:[#allocation9 + $0x4e8] sm:$0xff]
    %v6558 = vld [vmem:[#allocation9 + $0x4f0] sm:$0xff]
    %v6559 = vld [vmem:[#allocation9 + $0x4f8] sm:$0xff]
    %v6560 = vld [vmem:[#allocation9 + $0x500] sm:$0xff]
    %v6561 = vld [vmem:[#allocation9 + $0x508] sm:$0xff]
    %v6562 = vld [vmem:[#allocation9 + $0x510] sm:$0xff]
    %v6563 = vld [vmem:[#allocation9 + $0x518] sm:$0xff]
    %v6564 = vld [vmem:[#allocation9 + $0x520] sm:$0xff]
    %v6565 = vld [vmem:[#allocation9 + $0x528] sm:$0xff]
    %v6566 = vld [vmem:[#allocation9 + $0x530] sm:$0xff]
    %v6567 = vld [vmem:[#allocation9 + $0x538] sm:$0xff]
    %v6568 = vld [vmem:[#allocation9 + $0x540] sm:$0xff]
    %v6569 = vld [vmem:[#allocation9 + $0x548] sm:$0xff]
    %v6570 = vld [vmem:[#allocation9 + $0x550] sm:$0xff]
    %v6571 = vld [vmem:[#allocation9 + $0x558] sm:$0xff]
    %v6572 = vld [vmem:[#allocation9 + $0x560] sm:$0xff]
    %v6573 = vld [vmem:[#allocation9 + $0x568] sm:$0xff]
    %v6574 = vld [vmem:[#allocation9 + $0x570] sm:$0xff]
    %v6575 = vld [vmem:[#allocation9 + $0x578] sm:$0xff]
    %v6576 = vld [vmem:[#allocation9 + $0x580] sm:$0xff]
    %v6577 = vld [vmem:[#allocation9 + $0x588] sm:$0xff]
    %v6578 = vld [vmem:[#allocation9 + $0x590] sm:$0xff]
    %v6579 = vld [vmem:[#allocation9 + $0x598] sm:$0xff]
    %v6580 = vld [vmem:[#allocation9 + $0x5a0] sm:$0xff]
    %v6581 = vld [vmem:[#allocation9 + $0x5a8] sm:$0xff]
    %v6582 = vld [vmem:[#allocation9 + $0x5b0] sm:$0xff]
    %v6583 = vld [vmem:[#allocation9 + $0x5b8] sm:$0xff]
    %v6584 = vld [vmem:[#allocation9 + $0x5c0] sm:$0xff]
    %v6585 = vld [vmem:[#allocation9 + $0x5c8] sm:$0xff]
    %v6586 = vld [vmem:[#allocation9 + $0x5d0] sm:$0xff]
    %v6587 = vld [vmem:[#allocation9 + $0x5d8] sm:$0xff]
    %v6588 = vld [vmem:[#allocation9 + $0x5e0] sm:$0xff]
    %v6589 = vld [vmem:[#allocation9 + $0x5e8] sm:$0xff]
    %v6590 = vld [vmem:[#allocation9 + $0x5f0] sm:$0xff]
    %v6591 = vld [vmem:[#allocation9 + $0x5f8] sm:$0xff]
    %v6592 = vld [vmem:[#allocation9 + $0x600] sm:$0xff]
    %v6593 = vld [vmem:[#allocation9 + $0x608] sm:$0xff]
    %v6594 = vld [vmem:[#allocation9 + $0x610] sm:$0xff]
    %v6595 = vld [vmem:[#allocation9 + $0x618] sm:$0xff]
    %v6596 = vld [vmem:[#allocation9 + $0x620] sm:$0xff]
    %v6597 = vld [vmem:[#allocation9 + $0x628] sm:$0xff]
    %v6598 = vld [vmem:[#allocation9 + $0x630] sm:$0xff]
    %v6599 = vld [vmem:[#allocation9 + $0x638] sm:$0xff]
    %v6600 = vld [vmem:[#allocation9 + $0x640] sm:$0xff]
    %v6601 = vld [vmem:[#allocation9 + $0x648] sm:$0xff]
    %v6602 = vld [vmem:[#allocation9 + $0x650] sm:$0xff]
    %v6603 = vld [vmem:[#allocation9 + $0x658] sm:$0xff]
    %v6604 = vld [vmem:[#allocation9 + $0x660] sm:$0xff]
    %v6605 = vld [vmem:[#allocation9 + $0x668] sm:$0xff]
    %v6606 = vld [vmem:[#allocation9 + $0x670] sm:$0xff]
    %v6607 = vld [vmem:[#allocation9 + $0x678] sm:$0xff]
    %v6608 = vld [vmem:[#allocation9 + $0x680] sm:$0xff]
    %v6609 = vld [vmem:[#allocation9 + $0x688] sm:$0xff]
    %v6610 = vld [vmem:[#allocation9 + $0x690] sm:$0xff]
    %v6611 = vld [vmem:[#allocation9 + $0x698] sm:$0xff]
    %v6612 = vld [vmem:[#allocation9 + $0x6a0] sm:$0xff]
    %v6613 = vld [vmem:[#allocation9 + $0x6a8] sm:$0xff]
    %v6614 = vld [vmem:[#allocation9 + $0x6b0] sm:$0xff]
    %v6615 = vld [vmem:[#allocation9 + $0x6b8] sm:$0xff]
    %v6616 = vld [vmem:[#allocation9 + $0x6c0] sm:$0xff]
    %v6617 = vld [vmem:[#allocation9 + $0x6c8] sm:$0xff]
    %v6618 = vld [vmem:[#allocation9 + $0x6d0] sm:$0xff]
    %v6619 = vld [vmem:[#allocation9 + $0x6d8] sm:$0xff]
    %v6620 = vld [vmem:[#allocation9 + $0x6e0] sm:$0xff]
    %v6621 = vld [vmem:[#allocation9 + $0x6e8] sm:$0xff]
    %v6622 = vld [vmem:[#allocation9 + $0x6f0] sm:$0xff]
    %v6623 = vld [vmem:[#allocation9 + $0x6f8] sm:$0xff]
    %v6624 = vld [vmem:[#allocation9 + $0x700] sm:$0xff]
    %v6625 = vld [vmem:[#allocation9 + $0x708] sm:$0xff]
    %v6626 = vld [vmem:[#allocation9 + $0x710] sm:$0xff]
    %v6627 = vld [vmem:[#allocation9 + $0x718] sm:$0xff]
    %v6628 = vld [vmem:[#allocation9 + $0x720] sm:$0xff]
    %v6629 = vld [vmem:[#allocation9 + $0x728] sm:$0xff]
    %v6630 = vld [vmem:[#allocation9 + $0x730] sm:$0xff]
    %v6631 = vld [vmem:[#allocation9 + $0x738] sm:$0xff]
    %v6632 = vld [vmem:[#allocation9 + $0x740] sm:$0xff]
    %v6633 = vld [vmem:[#allocation9 + $0x748] sm:$0xff]
    %v6634 = vld [vmem:[#allocation9 + $0x750] sm:$0xff]
    %v6635 = vld [vmem:[#allocation9 + $0x758] sm:$0xff]
    %v6636 = vld [vmem:[#allocation9 + $0x760] sm:$0xff]
    %v6637 = vld [vmem:[#allocation9 + $0x768] sm:$0xff]
    %v6638 = vld [vmem:[#allocation9 + $0x770] sm:$0xff]
    %v6639 = vld [vmem:[#allocation9 + $0x778] sm:$0xff]
    %v6640 = vld [vmem:[#allocation9 + $0x780] sm:$0xff]
    %v6641 = vld [vmem:[#allocation9 + $0x788] sm:$0xff]
    %v6642 = vld [vmem:[#allocation9 + $0x790] sm:$0xff]
    %v6643 = vld [vmem:[#allocation9 + $0x798] sm:$0xff]
    %v6644 = vld [vmem:[#allocation9 + $0x7a0] sm:$0xff]
    %v6645 = vld [vmem:[#allocation9 + $0x7a8] sm:$0xff]
    %v6646 = vld [vmem:[#allocation9 + $0x7b0] sm:$0xff]
    %v6647 = vld [vmem:[#allocation9 + $0x7b8] sm:$0xff]
    %v6648 = vld [vmem:[#allocation9 + $0x7c0] sm:$0xff]
    %v6649 = vld [vmem:[#allocation9 + $0x7c8] sm:$0xff]
    %v6650 = vld [vmem:[#allocation9 + $0x7d0] sm:$0xff]
    %v6651 = vld [vmem:[#allocation9 + $0x7d8] sm:$0xff]
    %v6652 = vld [vmem:[#allocation9 + $0x7e0] sm:$0xff]
    %v6653 = vld [vmem:[#allocation9 + $0x7e8] sm:$0xff]
    %v6654 = vld [vmem:[#allocation9 + $0x7f0] sm:$0xff]
    %v6655 = vld [vmem:[#allocation9 + $0x7f8] sm:$0xff]
    %v6656 = vld [vmem:[#allocation9 + $0x800] sm:$0xff]
    %v6657 = vld [vmem:[#allocation9 + $0x808] sm:$0xff]
    %v6658 = vld [vmem:[#allocation9 + $0x810] sm:$0xff]
    %v6659 = vld [vmem:[#allocation9 + $0x818] sm:$0xff]
    %v6660 = vld [vmem:[#allocation9 + $0x820] sm:$0xff]
    %v6661 = vld [vmem:[#allocation9 + $0x828] sm:$0xff]
    %v6662 = vld [vmem:[#allocation9 + $0x830] sm:$0xff]
    %v6663 = vld [vmem:[#allocation9 + $0x838] sm:$0xff]
    %v6664 = vld [vmem:[#allocation9 + $0x840] sm:$0xff]
    %v6665 = vld [vmem:[#allocation9 + $0x848] sm:$0xff]
    %v6666 = vld [vmem:[#allocation9 + $0x850] sm:$0xff]
    %v6667 = vld [vmem:[#allocation9 + $0x858] sm:$0xff]
    %v6668 = vld [vmem:[#allocation9 + $0x860] sm:$0xff]
    %v6669 = vld [vmem:[#allocation9 + $0x868] sm:$0xff]
    %v6670 = vld [vmem:[#allocation9 + $0x870] sm:$0xff]
    %v6671 = vld [vmem:[#allocation9 + $0x878] sm:$0xff]
    %v6672 = vld [vmem:[#allocation9 + $0x880] sm:$0xff]
    %v6673 = vld [vmem:[#allocation9 + $0x888] sm:$0xff]
    %v6674 = vld [vmem:[#allocation9 + $0x890] sm:$0xff]
    %v6675 = vld [vmem:[#allocation9 + $0x898] sm:$0xff]
    %v6676 = vld [vmem:[#allocation9 + $0x8a0] sm:$0xff]
    %v6677 = vld [vmem:[#allocation9 + $0x8a8] sm:$0xff]
    %v6678 = vld [vmem:[#allocation9 + $0x8b0] sm:$0xff]
    %v6679 = vld [vmem:[#allocation9 + $0x8b8] sm:$0xff]
    %v6680 = vld [vmem:[#allocation9 + $0x8c0] sm:$0xff]
    %v6681 = vld [vmem:[#allocation9 + $0x8c8] sm:$0xff]
    %v6682 = vld [vmem:[#allocation9 + $0x8d0] sm:$0xff]
    %v6683 = vld [vmem:[#allocation9 + $0x8d8] sm:$0xff]
    %v6684 = vld [vmem:[#allocation9 + $0x8e0] sm:$0xff]
    %v6685 = vld [vmem:[#allocation9 + $0x8e8] sm:$0xff]
    %v6686 = vld [vmem:[#allocation9 + $0x8f0] sm:$0xff]
    %v6687 = vld [vmem:[#allocation9 + $0x8f8] sm:$0xff]
    %v6688 = vld [vmem:[#allocation9 + $0x900] sm:$0xff]
    %v6689 = vld [vmem:[#allocation9 + $0x908] sm:$0xff]
    %v6690 = vld [vmem:[#allocation9 + $0x910] sm:$0xff]
    %v6691 = vld [vmem:[#allocation9 + $0x918] sm:$0xff]
    %v6692 = vld [vmem:[#allocation9 + $0x920] sm:$0xff]
    %v6693 = vld [vmem:[#allocation9 + $0x928] sm:$0xff]
    %v6694 = vld [vmem:[#allocation9 + $0x930] sm:$0xff]
    %v6695 = vld [vmem:[#allocation9 + $0x938] sm:$0xff]
    %v6696 = vld [vmem:[#allocation9 + $0x940] sm:$0xff]
    %v6697 = vld [vmem:[#allocation9 + $0x948] sm:$0xff]
    %v6698 = vld [vmem:[#allocation9 + $0x950] sm:$0xff]
    %v6699 = vld [vmem:[#allocation9 + $0x958] sm:$0xff]
    %v6700 = vld [vmem:[#allocation9 + $0x960] sm:$0xff]
    %v6701 = vld [vmem:[#allocation9 + $0x968] sm:$0xff]
    %v6702 = vld [vmem:[#allocation9 + $0x970] sm:$0xff]
    %v6703 = vld [vmem:[#allocation9 + $0x978] sm:$0xff]
    %v6704 = vld [vmem:[#allocation9 + $0x980] sm:$0xff]
    %v6705 = vld [vmem:[#allocation9 + $0x988] sm:$0xff]
    %v6706 = vld [vmem:[#allocation9 + $0x990] sm:$0xff]
    %v6707 = vld [vmem:[#allocation9 + $0x998] sm:$0xff]
    %v6708 = vld [vmem:[#allocation9 + $0x9a0] sm:$0xff]
    %v6709 = vld [vmem:[#allocation9 + $0x9a8] sm:$0xff]
    %v6710 = vld [vmem:[#allocation9 + $0x9b0] sm:$0xff]
    %v6711 = vld [vmem:[#allocation9 + $0x9b8] sm:$0xff]
    %v6712 = vld [vmem:[#allocation9 + $0x9c0] sm:$0xff]
    %v6713 = vld [vmem:[#allocation9 + $0x9c8] sm:$0xff]
    %v6714 = vld [vmem:[#allocation9 + $0x9d0] sm:$0xff]
    %v6715 = vld [vmem:[#allocation9 + $0x9d8] sm:$0xff]
    %v6716 = vld [vmem:[#allocation9 + $0x9e0] sm:$0xff]
    %v6717 = vld [vmem:[#allocation9 + $0x9e8] sm:$0xff]
    %v6718 = vld [vmem:[#allocation9 + $0x9f0] sm:$0xff]
    %v6719 = vld [vmem:[#allocation9 + $0x9f8] sm:$0xff]
    %v6720 = vld [vmem:[#allocation9 + $0xa00] sm:$0xff]
    %v6721 = vld [vmem:[#allocation9 + $0xa08] sm:$0xff]
    %v6722 = vld [vmem:[#allocation9 + $0xa10] sm:$0xff]
    %v6723 = vld [vmem:[#allocation9 + $0xa18] sm:$0xff]
    %v6724 = vld [vmem:[#allocation9 + $0xa20] sm:$0xff]
    %v6725 = vld [vmem:[#allocation9 + $0xa28] sm:$0xff]
    %v6726 = vld [vmem:[#allocation9 + $0xa30] sm:$0xff]
    %v6727 = vld [vmem:[#allocation9 + $0xa38] sm:$0xff]
    %v6728 = vld [vmem:[#allocation9 + $0xa40] sm:$0xff]
    %v6729 = vld [vmem:[#allocation9 + $0xa48] sm:$0xff]
    %v6730 = vld [vmem:[#allocation9 + $0xa50] sm:$0xff]
    %v6731 = vld [vmem:[#allocation9 + $0xa58] sm:$0xff]
    %v6732 = vld [vmem:[#allocation9 + $0xa60] sm:$0xff]
    %v6733 = vld [vmem:[#allocation9 + $0xa68] sm:$0xff]
    %v6734 = vld [vmem:[#allocation9 + $0xa70] sm:$0xff]
    %v6735 = vld [vmem:[#allocation9 + $0xa78] sm:$0xff]
    %v6736 = vld [vmem:[#allocation9 + $0xa80] sm:$0xff]
    %v6737 = vld [vmem:[#allocation9 + $0xa88] sm:$0xff]
    %v6738 = vld [vmem:[#allocation9 + $0xa90] sm:$0xff]
    %v6739 = vld [vmem:[#allocation9 + $0xa98] sm:$0xff]
    %v6740 = vld [vmem:[#allocation9 + $0xaa0] sm:$0xff]
    %v6741 = vld [vmem:[#allocation9 + $0xaa8] sm:$0xff]
    %v6742 = vld [vmem:[#allocation9 + $0xab0] sm:$0xff]
    %v6743 = vld [vmem:[#allocation9 + $0xab8] sm:$0xff]
    %v6744 = vld [vmem:[#allocation9 + $0xac0] sm:$0xff]
    %v6745 = vld [vmem:[#allocation9 + $0xac8] sm:$0xff]
    %v6746 = vld [vmem:[#allocation9 + $0xad0] sm:$0xff]
    %v6747 = vld [vmem:[#allocation9 + $0xad8] sm:$0xff]
    %v6748 = vld [vmem:[#allocation9 + $0xae0] sm:$0xff]
    %v6749 = vld [vmem:[#allocation9 + $0xae8] sm:$0xff]
    %v6750 = vld [vmem:[#allocation9 + $0xaf0] sm:$0xff]
    %v6751 = vld [vmem:[#allocation9 + $0xaf8] sm:$0xff]
    %v6752 = vld [vmem:[#allocation9 + $0xb00] sm:$0xff]
    %v6753 = vld [vmem:[#allocation9 + $0xb08] sm:$0xff]
    %v6754 = vld [vmem:[#allocation9 + $0xb10] sm:$0xff]
    %v6755 = vld [vmem:[#allocation9 + $0xb18] sm:$0xff]
    %v6756 = vld [vmem:[#allocation9 + $0xb20] sm:$0xff]
    %v6757 = vld [vmem:[#allocation9 + $0xb28] sm:$0xff]
    %v6758 = vld [vmem:[#allocation9 + $0xb30] sm:$0xff]
    %v6759 = vld [vmem:[#allocation9 + $0xb38] sm:$0xff]
    %v6760 = vld [vmem:[#allocation9 + $0xb40] sm:$0xff]
    %v6761 = vld [vmem:[#allocation9 + $0xb48] sm:$0xff]
    %v6762 = vld [vmem:[#allocation9 + $0xb50] sm:$0xff]
    %v6763 = vld [vmem:[#allocation9 + $0xb58] sm:$0xff]
    %v6764 = vld [vmem:[#allocation9 + $0xb60] sm:$0xff]
    %v6765 = vld [vmem:[#allocation9 + $0xb68] sm:$0xff]
    %v6766 = vld [vmem:[#allocation9 + $0xb70] sm:$0xff]
    %v6767 = vld [vmem:[#allocation9 + $0xb78] sm:$0xff]
    %v6768 = vld [vmem:[#allocation9 + $0xb80] sm:$0xff]
    %v6769 = vld [vmem:[#allocation9 + $0xb88] sm:$0xff]
    %v6770 = vld [vmem:[#allocation9 + $0xb90] sm:$0xff]
    %v6771 = vld [vmem:[#allocation9 + $0xb98] sm:$0xff]
    %v6772 = vld [vmem:[#allocation9 + $0xba0] sm:$0xff]
    %v6773 = vld [vmem:[#allocation9 + $0xba8] sm:$0xff]
    %v6774 = vld [vmem:[#allocation9 + $0xbb0] sm:$0xff]
    %v6775 = vld [vmem:[#allocation9 + $0xbb8] sm:$0xff]
    %v6776 = vld [vmem:[#allocation9 + $0xbc0] sm:$0xff]
    %v6777 = vld [vmem:[#allocation9 + $0xbc8] sm:$0xff]
    %v6778 = vld [vmem:[#allocation9 + $0xbd0] sm:$0xff]
    %v6779 = vld [vmem:[#allocation9 + $0xbd8] sm:$0xff]
    %v6780 = vld [vmem:[#allocation9 + $0xbe0] sm:$0xff]
    %v6781 = vld [vmem:[#allocation9 + $0xbe8] sm:$0xff]
    %v6782 = vld [vmem:[#allocation9 + $0xbf0] sm:$0xff]
    %v6783 = vld [vmem:[#allocation9 + $0xbf8] sm:$0xff]
    %v6784 = vld [vmem:[#allocation9 + $0xc00] sm:$0xff]
    %v6785 = vld [vmem:[#allocation9 + $0xc08] sm:$0xff]
    %v6786 = vld [vmem:[#allocation9 + $0xc10] sm:$0xff]
    %v6787 = vld [vmem:[#allocation9 + $0xc18] sm:$0xff]
    %v6788 = vld [vmem:[#allocation9 + $0xc20] sm:$0xff]
    %v6789 = vld [vmem:[#allocation9 + $0xc28] sm:$0xff]
    %v6790 = vld [vmem:[#allocation9 + $0xc30] sm:$0xff]
    %v6791 = vld [vmem:[#allocation9 + $0xc38] sm:$0xff]
    %v6792 = vld [vmem:[#allocation9 + $0xc40] sm:$0xff]
    %v6793 = vld [vmem:[#allocation9 + $0xc48] sm:$0xff]
    %v6794 = vld [vmem:[#allocation9 + $0xc50] sm:$0xff]
    %v6795 = vld [vmem:[#allocation9 + $0xc58] sm:$0xff]
    %v6796 = vld [vmem:[#allocation9 + $0xc60] sm:$0xff]
    %v6797 = vld [vmem:[#allocation9 + $0xc68] sm:$0xff]
    %v6798 = vld [vmem:[#allocation9 + $0xc70] sm:$0xff]
    %v6799 = vld [vmem:[#allocation9 + $0xc78] sm:$0xff]
    %v6800 = vld [vmem:[#allocation9 + $0xc80] sm:$0xff]
    %v6801 = vld [vmem:[#allocation9 + $0xc88] sm:$0xff]
    %v6802 = vld [vmem:[#allocation9 + $0xc90] sm:$0xff]
    %v6803 = vld [vmem:[#allocation9 + $0xc98] sm:$0xff]
    %v6804 = vld [vmem:[#allocation9 + $0xca0] sm:$0xff]
    %v6805 = vld [vmem:[#allocation9 + $0xca8] sm:$0xff]
    %v6806 = vld [vmem:[#allocation9 + $0xcb0] sm:$0xff]
    %v6807 = vld [vmem:[#allocation9 + $0xcb8] sm:$0xff]
    %v6808 = vld [vmem:[#allocation9 + $0xcc0] sm:$0xff]
    %v6809 = vld [vmem:[#allocation9 + $0xcc8] sm:$0xff]
    %v6810 = vld [vmem:[#allocation9 + $0xcd0] sm:$0xff]
    %v6811 = vld [vmem:[#allocation9 + $0xcd8] sm:$0xff]
    %v6812 = vld [vmem:[#allocation9 + $0xce0] sm:$0xff]
    %v6813 = vld [vmem:[#allocation9 + $0xce8] sm:$0xff]
    %v6814 = vld [vmem:[#allocation9 + $0xcf0] sm:$0xff]
    %v6815 = vld [vmem:[#allocation9 + $0xcf8] sm:$0xff]
    %v6816 = vld [vmem:[#allocation9 + $0xd00] sm:$0xff]
    %v6817 = vld [vmem:[#allocation9 + $0xd08] sm:$0xff]
    %v6818 = vld [vmem:[#allocation9 + $0xd10] sm:$0xff]
    %v6819 = vld [vmem:[#allocation9 + $0xd18] sm:$0xff]
    %v6820 = vld [vmem:[#allocation9 + $0xd20] sm:$0xff]
    %v6821 = vld [vmem:[#allocation9 + $0xd28] sm:$0xff]
    %v6822 = vld [vmem:[#allocation9 + $0xd30] sm:$0xff]
    %v6823 = vld [vmem:[#allocation9 + $0xd38] sm:$0xff]
    %v6824 = vld [vmem:[#allocation9 + $0xd40] sm:$0xff]
    %v6825 = vld [vmem:[#allocation9 + $0xd48] sm:$0xff]
    %v6826 = vld [vmem:[#allocation9 + $0xd50] sm:$0xff]
    %v6827 = vld [vmem:[#allocation9 + $0xd58] sm:$0xff]
    %v6828 = vld [vmem:[#allocation9 + $0xd60] sm:$0xff]
    %v6829 = vld [vmem:[#allocation9 + $0xd68] sm:$0xff]
    %v6830 = vld [vmem:[#allocation9 + $0xd70] sm:$0xff]
    %v6831 = vld [vmem:[#allocation9 + $0xd78] sm:$0xff]
    %v6832 = vld [vmem:[#allocation9 + $0xd80] sm:$0xff]
    %v6833 = vld [vmem:[#allocation9 + $0xd88] sm:$0xff]
    %v6834 = vld [vmem:[#allocation9 + $0xd90] sm:$0xff]
    %v6835 = vld [vmem:[#allocation9 + $0xd98] sm:$0xff]
    %v6836 = vld [vmem:[#allocation9 + $0xda0] sm:$0xff]
    %v6837 = vld [vmem:[#allocation9 + $0xda8] sm:$0xff]
    %v6838 = vld [vmem:[#allocation9 + $0xdb0] sm:$0xff]
    %v6839 = vld [vmem:[#allocation9 + $0xdb8] sm:$0xff]
    %v6840 = vld [vmem:[#allocation9 + $0xdc0] sm:$0xff]
    %v6841 = vld [vmem:[#allocation9 + $0xdc8] sm:$0xff]
    %v6842 = vld [vmem:[#allocation9 + $0xdd0] sm:$0xff]
    %v6843 = vld [vmem:[#allocation9 + $0xdd8] sm:$0xff]
    %v6844 = vld [vmem:[#allocation9 + $0xde0] sm:$0xff]
    %v6845 = vld [vmem:[#allocation9 + $0xde8] sm:$0xff]
    %v6846 = vld [vmem:[#allocation9 + $0xdf0] sm:$0xff]
    %v6847 = vld [vmem:[#allocation9 + $0xdf8] sm:$0xff]
    %v6848 = vld [vmem:[#allocation9 + $0xe00] sm:$0xff]
    %v6849 = vld [vmem:[#allocation9 + $0xe08] sm:$0xff]
    %v6850 = vld [vmem:[#allocation9 + $0xe10] sm:$0xff]
    %v6851 = vld [vmem:[#allocation9 + $0xe18] sm:$0xff]
    %v6852 = vld [vmem:[#allocation9 + $0xe20] sm:$0xff]
    %v6853 = vld [vmem:[#allocation9 + $0xe28] sm:$0xff]
    %v6854 = vld [vmem:[#allocation9 + $0xe30] sm:$0xff]
    %v6855 = vld [vmem:[#allocation9 + $0xe38] sm:$0xff]
    %v6856 = vld [vmem:[#allocation9 + $0xe40] sm:$0xff]
    %v6857 = vld [vmem:[#allocation9 + $0xe48] sm:$0xff]
    %v6858 = vld [vmem:[#allocation9 + $0xe50] sm:$0xff]
    %v6859 = vld [vmem:[#allocation9 + $0xe58] sm:$0xff]
    %v6860 = vld [vmem:[#allocation9 + $0xe60] sm:$0xff]
    %v6861 = vld [vmem:[#allocation9 + $0xe68] sm:$0xff]
    %v6862 = vld [vmem:[#allocation9 + $0xe70] sm:$0xff]
    %v6863 = vld [vmem:[#allocation9 + $0xe78] sm:$0xff]
    %v6864 = vld [vmem:[#allocation9 + $0xe80] sm:$0xff]
    %v6865 = vld [vmem:[#allocation9 + $0xe88] sm:$0xff]
    %v6866 = vld [vmem:[#allocation9 + $0xe90] sm:$0xff]
    %v6867 = vld [vmem:[#allocation9 + $0xe98] sm:$0xff]
    %v6868 = vld [vmem:[#allocation9 + $0xea0] sm:$0xff]
    %v6869 = vld [vmem:[#allocation9 + $0xea8] sm:$0xff]
    %v6870 = vld [vmem:[#allocation9 + $0xeb0] sm:$0xff]
    %v6871 = vld [vmem:[#allocation9 + $0xeb8] sm:$0xff]
    %v6872 = vld [vmem:[#allocation9 + $0xec0] sm:$0xff]
    %v6873 = vld [vmem:[#allocation9 + $0xec8] sm:$0xff]
    %v6874 = vld [vmem:[#allocation9 + $0xed0] sm:$0xff]
    %v6875 = vld [vmem:[#allocation9 + $0xed8] sm:$0xff]
    %v6876 = vld [vmem:[#allocation9 + $0xee0] sm:$0xff]
    %v6877 = vld [vmem:[#allocation9 + $0xee8] sm:$0xff]
    %v6878 = vld [vmem:[#allocation9 + $0xef0] sm:$0xff]
    %v6879 = vld [vmem:[#allocation9 + $0xef8] sm:$0xff]
    %v6880 = vld [vmem:[#allocation9 + $0xf00] sm:$0xff]
    %v6881 = vld [vmem:[#allocation9 + $0xf08] sm:$0xff]
    %v6882 = vld [vmem:[#allocation9 + $0xf10] sm:$0xff]
    %v6883 = vld [vmem:[#allocation9 + $0xf18] sm:$0xff]
    %v6884 = vld [vmem:[#allocation9 + $0xf20] sm:$0xff]
    %v6885 = vld [vmem:[#allocation9 + $0xf28] sm:$0xff]
    %v6886 = vld [vmem:[#allocation9 + $0xf30] sm:$0xff]
    %v6887 = vld [vmem:[#allocation9 + $0xf38] sm:$0xff]
    %v6888 = vld [vmem:[#allocation9 + $0xf40] sm:$0xff]
    %v6889 = vld [vmem:[#allocation9 + $0xf48] sm:$0xff]
    %v6890 = vld [vmem:[#allocation9 + $0xf50] sm:$0xff]
    %v6891 = vld [vmem:[#allocation9 + $0xf58] sm:$0xff]
    %v6892 = vld [vmem:[#allocation9 + $0xf60] sm:$0xff]
    %v6893 = vld [vmem:[#allocation9 + $0xf68] sm:$0xff]
    %v6894 = vld [vmem:[#allocation9 + $0xf70] sm:$0xff]
    %v6895 = vld [vmem:[#allocation9 + $0xf78] sm:$0xff]
    %v6896 = vld [vmem:[#allocation9 + $0xf80] sm:$0xff]
    %v6897 = vld [vmem:[#allocation9 + $0xf88] sm:$0xff]
    %v6898 = vld [vmem:[#allocation9 + $0xf90] sm:$0xff]
    %v6899 = vld [vmem:[#allocation9 + $0xf98] sm:$0xff]
    %v6900 = vld [vmem:[#allocation9 + $0xfa0] sm:$0xff]
    %v6901 = vld [vmem:[#allocation9 + $0xfa8] sm:$0xff]
    %v6902 = vld [vmem:[#allocation9 + $0xfb0] sm:$0xff]
    %v6903 = vld [vmem:[#allocation9 + $0xfb8] sm:$0xff]
    %v6904 = vld [vmem:[#allocation9 + $0xfc0] sm:$0xff]
    %v6905 = vld [vmem:[#allocation9 + $0xfc8] sm:$0xff]
    %v6906 = vld [vmem:[#allocation9 + $0xfd0] sm:$0xff]
    %v6907 = vld [vmem:[#allocation9 + $0xfd8] sm:$0xff]
    %v6908 = vld [vmem:[#allocation9 + $0xfe0] sm:$0xff]
    %v6909 = vld [vmem:[#allocation9 + $0xfe8] sm:$0xff]
    %v6910 = vld [vmem:[#allocation9 + $0xff0] sm:$0xff]
    %v6911 = vld [vmem:[#allocation9 + $0xff8] sm:$0xff]
    %v6912 = vld [vmem:[#allocation10] sm:$0xff]
    %v6914 = vlaneseq
    %v6915 = vshrl.u32 %v6914, 7
    %v6916 = vsub.s32 0, %v6915
    %v6917 = vrot.slane %v6912, %v6916
    %v6918 = vlaneseq
    %v6919 = vshrl.u32 %v6918, 7
    %v6920 = vsub.s32 1, %v6919
    %v6921 = vrot.slane %v6912, %v6920
    %v6922 = vlaneseq
    %v6923 = vshrl.u32 %v6922, 7
    %v6924 = vsub.s32 2, %v6923
    %v6925 = vrot.slane %v6912, %v6924
    %v6926 = vlaneseq
    %v6927 = vshrl.u32 %v6926, 7
    %v6928 = vsub.s32 3, %v6927
    %v6929 = vrot.slane %v6912, %v6928
    %v6930 = vlaneseq
    %v6931 = vshrl.u32 %v6930, 7
    %v6932 = vsub.s32 4, %v6931
    %v6933 = vrot.slane %v6912, %v6932
    %v6934 = vlaneseq
    %v6935 = vshrl.u32 %v6934, 7
    %v6936 = vsub.s32 5, %v6935
    %v6937 = vrot.slane %v6912, %v6936
    %v6938 = vlaneseq
    %v6939 = vshrl.u32 %v6938, 7
    %v6940 = vsub.s32 6, %v6939
    %v6941 = vrot.slane %v6912, %v6940
    %v6942 = vlaneseq
    %v6943 = vshrl.u32 %v6942, 7
    %v6944 = vsub.s32 7, %v6943
    %v6945 = vrot.slane %v6912, %v6944
    %v7466 = vunpack.c.l.b16 %v6400
    %v7467 = vunpack.c.h.b16 %v6400
    %v7468 = vunpack.c.l.b16 %v6401
    %v7469 = vunpack.c.h.b16 %v6401
    %v7470 = vunpack.c.l.b16 %v6402
    %v7471 = vunpack.c.h.b16 %v6402
    %v7472 = vunpack.c.l.b16 %v6403
    %v7473 = vunpack.c.h.b16 %v6403
    %v7474 = vunpack.c.l.b16 %v6404
    %v7475 = vunpack.c.h.b16 %v6404
    %v7476 = vunpack.c.l.b16 %v6405
    %v7477 = vunpack.c.h.b16 %v6405
    %v7478 = vunpack.c.l.b16 %v6406
    %v7479 = vunpack.c.h.b16 %v6406
    %v7480 = vunpack.c.l.b16 %v6407
    %v7481 = vunpack.c.h.b16 %v6407
    %v7482 = vunpack.c.l.b16 %v6408
    %v7483 = vunpack.c.h.b16 %v6408
    %v7484 = vunpack.c.l.b16 %v6409
    %v7485 = vunpack.c.h.b16 %v6409
    %v7486 = vunpack.c.l.b16 %v6410
    %v7487 = vunpack.c.h.b16 %v6410
    %v7488 = vunpack.c.l.b16 %v6411
    %v7489 = vunpack.c.h.b16 %v6411
    %v7490 = vunpack.c.l.b16 %v6412
    %v7491 = vunpack.c.h.b16 %v6412
    %v7492 = vunpack.c.l.b16 %v6413
    %v7493 = vunpack.c.h.b16 %v6413
    %v7494 = vunpack.c.l.b16 %v6414
    %v7495 = vunpack.c.h.b16 %v6414
    %v7496 = vunpack.c.l.b16 %v6415
    %v7497 = vunpack.c.h.b16 %v6415
    %v7498 = vunpack.c.l.b16 %v6416
    %v7499 = vunpack.c.h.b16 %v6416
    %v7500 = vunpack.c.l.b16 %v6417
    %v7501 = vunpack.c.h.b16 %v6417
    %v7502 = vunpack.c.l.b16 %v6418
    %v7503 = vunpack.c.h.b16 %v6418
    %v7504 = vunpack.c.l.b16 %v6419
    %v7505 = vunpack.c.h.b16 %v6419
    %v7506 = vunpack.c.l.b16 %v6420
    %v7507 = vunpack.c.h.b16 %v6420
    %v7508 = vunpack.c.l.b16 %v6421
    %v7509 = vunpack.c.h.b16 %v6421
    %v7510 = vunpack.c.l.b16 %v6422
    %v7511 = vunpack.c.h.b16 %v6422
    %v7512 = vunpack.c.l.b16 %v6423
    %v7513 = vunpack.c.h.b16 %v6423
    %v7514 = vunpack.c.l.b16 %v6424
    %v7515 = vunpack.c.h.b16 %v6424
    %v7516 = vunpack.c.l.b16 %v6425
    %v7517 = vunpack.c.h.b16 %v6425
    %v7518 = vunpack.c.l.b16 %v6426
    %v7519 = vunpack.c.h.b16 %v6426
    %v7520 = vunpack.c.l.b16 %v6427
    %v7521 = vunpack.c.h.b16 %v6427
    %v7522 = vunpack.c.l.b16 %v6428
    %v7523 = vunpack.c.h.b16 %v6428
    %v7524 = vunpack.c.l.b16 %v6429
    %v7525 = vunpack.c.h.b16 %v6429
    %v7526 = vunpack.c.l.b16 %v6430
    %v7527 = vunpack.c.h.b16 %v6430
    %v7528 = vunpack.c.l.b16 %v6431
    %v7529 = vunpack.c.h.b16 %v6431
    %v7530 = vunpack.c.l.b16 %v6432
    %v7531 = vunpack.c.h.b16 %v6432
    %v7532 = vunpack.c.l.b16 %v6433
    %v7533 = vunpack.c.h.b16 %v6433
    %v7534 = vunpack.c.l.b16 %v6434
    %v7535 = vunpack.c.h.b16 %v6434
    %v7536 = vunpack.c.l.b16 %v6435
    %v7537 = vunpack.c.h.b16 %v6435
    %v7538 = vunpack.c.l.b16 %v6436
    %v7539 = vunpack.c.h.b16 %v6436
    %v7540 = vunpack.c.l.b16 %v6437
    %v7541 = vunpack.c.h.b16 %v6437
    %v7542 = vunpack.c.l.b16 %v6438
    %v7543 = vunpack.c.h.b16 %v6438
    %v7544 = vunpack.c.l.b16 %v6439
    %v7545 = vunpack.c.h.b16 %v6439
    %v7546 = vunpack.c.l.b16 %v6440
    %v7547 = vunpack.c.h.b16 %v6440
    %v7548 = vunpack.c.l.b16 %v6441
    %v7549 = vunpack.c.h.b16 %v6441
    %v7550 = vunpack.c.l.b16 %v6442
    %v7551 = vunpack.c.h.b16 %v6442
    %v7552 = vunpack.c.l.b16 %v6443
    %v7553 = vunpack.c.h.b16 %v6443
    %v7554 = vunpack.c.l.b16 %v6444
    %v7555 = vunpack.c.h.b16 %v6444
    %v7556 = vunpack.c.l.b16 %v6445
    %v7557 = vunpack.c.h.b16 %v6445
    %v7558 = vunpack.c.l.b16 %v6446
    %v7559 = vunpack.c.h.b16 %v6446
    %v7560 = vunpack.c.l.b16 %v6447
    %v7561 = vunpack.c.h.b16 %v6447
    %v7562 = vunpack.c.l.b16 %v6448
    %v7563 = vunpack.c.h.b16 %v6448
    %v7564 = vunpack.c.l.b16 %v6449
    %v7565 = vunpack.c.h.b16 %v6449
    %v7566 = vunpack.c.l.b16 %v6450
    %v7567 = vunpack.c.h.b16 %v6450
    %v7568 = vunpack.c.l.b16 %v6451
    %v7569 = vunpack.c.h.b16 %v6451
    %v7570 = vunpack.c.l.b16 %v6452
    %v7571 = vunpack.c.h.b16 %v6452
    %v7572 = vunpack.c.l.b16 %v6453
    %v7573 = vunpack.c.h.b16 %v6453
    %v7574 = vunpack.c.l.b16 %v6454
    %v7575 = vunpack.c.h.b16 %v6454
    %v7576 = vunpack.c.l.b16 %v6455
    %v7577 = vunpack.c.h.b16 %v6455
    %v7578 = vunpack.c.l.b16 %v6456
    %v7579 = vunpack.c.h.b16 %v6456
    %v7580 = vunpack.c.l.b16 %v6457
    %v7581 = vunpack.c.h.b16 %v6457
    %v7582 = vunpack.c.l.b16 %v6458
    %v7583 = vunpack.c.h.b16 %v6458
    %v7584 = vunpack.c.l.b16 %v6459
    %v7585 = vunpack.c.h.b16 %v6459
    %v7586 = vunpack.c.l.b16 %v6460
    %v7587 = vunpack.c.h.b16 %v6460
    %v7588 = vunpack.c.l.b16 %v6461
    %v7589 = vunpack.c.h.b16 %v6461
    %v7590 = vunpack.c.l.b16 %v6462
    %v7591 = vunpack.c.h.b16 %v6462
    %v7592 = vunpack.c.l.b16 %v6463
    %v7593 = vunpack.c.h.b16 %v6463
    %v7594 = vunpack.c.l.b16 %v6464
    %v7595 = vunpack.c.h.b16 %v6464
    %v7596 = vunpack.c.l.b16 %v6465
    %v7597 = vunpack.c.h.b16 %v6465
    %v7598 = vunpack.c.l.b16 %v6466
    %v7599 = vunpack.c.h.b16 %v6466
    %v7600 = vunpack.c.l.b16 %v6467
    %v7601 = vunpack.c.h.b16 %v6467
    %v7602 = vunpack.c.l.b16 %v6468
    %v7603 = vunpack.c.h.b16 %v6468
    %v7604 = vunpack.c.l.b16 %v6469
    %v7605 = vunpack.c.h.b16 %v6469
    %v7606 = vunpack.c.l.b16 %v6470
    %v7607 = vunpack.c.h.b16 %v6470
    %v7608 = vunpack.c.l.b16 %v6471
    %v7609 = vunpack.c.h.b16 %v6471
    %v7610 = vunpack.c.l.b16 %v6472
    %v7611 = vunpack.c.h.b16 %v6472
    %v7612 = vunpack.c.l.b16 %v6473
    %v7613 = vunpack.c.h.b16 %v6473
    %v7614 = vunpack.c.l.b16 %v6474
    %v7615 = vunpack.c.h.b16 %v6474
    %v7616 = vunpack.c.l.b16 %v6475
    %v7617 = vunpack.c.h.b16 %v6475
    %v7618 = vunpack.c.l.b16 %v6476
    %v7619 = vunpack.c.h.b16 %v6476
    %v7620 = vunpack.c.l.b16 %v6477
    %v7621 = vunpack.c.h.b16 %v6477
    %v7622 = vunpack.c.l.b16 %v6478
    %v7623 = vunpack.c.h.b16 %v6478
    %v7624 = vunpack.c.l.b16 %v6479
    %v7625 = vunpack.c.h.b16 %v6479
    %v7626 = vunpack.c.l.b16 %v6480
    %v7627 = vunpack.c.h.b16 %v6480
    %v7628 = vunpack.c.l.b16 %v6481
    %v7629 = vunpack.c.h.b16 %v6481
    %v7630 = vunpack.c.l.b16 %v6482
    %v7631 = vunpack.c.h.b16 %v6482
    %v7632 = vunpack.c.l.b16 %v6483
    %v7633 = vunpack.c.h.b16 %v6483
    %v7634 = vunpack.c.l.b16 %v6484
    %v7635 = vunpack.c.h.b16 %v6484
    %v7636 = vunpack.c.l.b16 %v6485
    %v7637 = vunpack.c.h.b16 %v6485
    %v7638 = vunpack.c.l.b16 %v6486
    %v7639 = vunpack.c.h.b16 %v6486
    %v7640 = vunpack.c.l.b16 %v6487
    %v7641 = vunpack.c.h.b16 %v6487
    %v7642 = vunpack.c.l.b16 %v6488
    %v7643 = vunpack.c.h.b16 %v6488
    %v7644 = vunpack.c.l.b16 %v6489
    %v7645 = vunpack.c.h.b16 %v6489
    %v7646 = vunpack.c.l.b16 %v6490
    %v7647 = vunpack.c.h.b16 %v6490
    %v7648 = vunpack.c.l.b16 %v6491
    %v7649 = vunpack.c.h.b16 %v6491
    %v7650 = vunpack.c.l.b16 %v6492
    %v7651 = vunpack.c.h.b16 %v6492
    %v7652 = vunpack.c.l.b16 %v6493
    %v7653 = vunpack.c.h.b16 %v6493
    %v7654 = vunpack.c.l.b16 %v6494
    %v7655 = vunpack.c.h.b16 %v6494
    %v7656 = vunpack.c.l.b16 %v6495
    %v7657 = vunpack.c.h.b16 %v6495
    %v7658 = vunpack.c.l.b16 %v6496
    %v7659 = vunpack.c.h.b16 %v6496
    %v7660 = vunpack.c.l.b16 %v6497
    %v7661 = vunpack.c.h.b16 %v6497
    %v7662 = vunpack.c.l.b16 %v6498
    %v7663 = vunpack.c.h.b16 %v6498
    %v7664 = vunpack.c.l.b16 %v6499
    %v7665 = vunpack.c.h.b16 %v6499
    %v7666 = vunpack.c.l.b16 %v6500
    %v7667 = vunpack.c.h.b16 %v6500
    %v7668 = vunpack.c.l.b16 %v6501
    %v7669 = vunpack.c.h.b16 %v6501
    %v7670 = vunpack.c.l.b16 %v6502
    %v7671 = vunpack.c.h.b16 %v6502
    %v7672 = vunpack.c.l.b16 %v6503
    %v7673 = vunpack.c.h.b16 %v6503
    %v7674 = vunpack.c.l.b16 %v6504
    %v7675 = vunpack.c.h.b16 %v6504
    %v7676 = vunpack.c.l.b16 %v6505
    %v7677 = vunpack.c.h.b16 %v6505
    %v7678 = vunpack.c.l.b16 %v6506
    %v7679 = vunpack.c.h.b16 %v6506
    %v7680 = vunpack.c.l.b16 %v6507
    %v7681 = vunpack.c.h.b16 %v6507
    %v7682 = vunpack.c.l.b16 %v6508
    %v7683 = vunpack.c.h.b16 %v6508
    %v7684 = vunpack.c.l.b16 %v6509
    %v7685 = vunpack.c.h.b16 %v6509
    %v7686 = vunpack.c.l.b16 %v6510
    %v7687 = vunpack.c.h.b16 %v6510
    %v7688 = vunpack.c.l.b16 %v6511
    %v7689 = vunpack.c.h.b16 %v6511
    %v7690 = vunpack.c.l.b16 %v6512
    %v7691 = vunpack.c.h.b16 %v6512
    %v7692 = vunpack.c.l.b16 %v6513
    %v7693 = vunpack.c.h.b16 %v6513
    %v7694 = vunpack.c.l.b16 %v6514
    %v7695 = vunpack.c.h.b16 %v6514
    %v7696 = vunpack.c.l.b16 %v6515
    %v7697 = vunpack.c.h.b16 %v6515
    %v7698 = vunpack.c.l.b16 %v6516
    %v7699 = vunpack.c.h.b16 %v6516
    %v7700 = vunpack.c.l.b16 %v6517
    %v7701 = vunpack.c.h.b16 %v6517
    %v7702 = vunpack.c.l.b16 %v6518
    %v7703 = vunpack.c.h.b16 %v6518
    %v7704 = vunpack.c.l.b16 %v6519
    %v7705 = vunpack.c.h.b16 %v6519
    %v7706 = vunpack.c.l.b16 %v6520
    %v7707 = vunpack.c.h.b16 %v6520
    %v7708 = vunpack.c.l.b16 %v6521
    %v7709 = vunpack.c.h.b16 %v6521
    %v7710 = vunpack.c.l.b16 %v6522
    %v7711 = vunpack.c.h.b16 %v6522
    %v7712 = vunpack.c.l.b16 %v6523
    %v7713 = vunpack.c.h.b16 %v6523
    %v7714 = vunpack.c.l.b16 %v6524
    %v7715 = vunpack.c.h.b16 %v6524
    %v7716 = vunpack.c.l.b16 %v6525
    %v7717 = vunpack.c.h.b16 %v6525
    %v7718 = vunpack.c.l.b16 %v6526
    %v7719 = vunpack.c.h.b16 %v6526
    %v7720 = vunpack.c.l.b16 %v6527
    %v7721 = vunpack.c.h.b16 %v6527
    %v7722 = vunpack.c.l.b16 %v6528
    %v7723 = vunpack.c.h.b16 %v6528
    %v7724 = vunpack.c.l.b16 %v6529
    %v7725 = vunpack.c.h.b16 %v6529
    %v7726 = vunpack.c.l.b16 %v6530
    %v7727 = vunpack.c.h.b16 %v6530
    %v7728 = vunpack.c.l.b16 %v6531
    %v7729 = vunpack.c.h.b16 %v6531
    %v7730 = vunpack.c.l.b16 %v6532
    %v7731 = vunpack.c.h.b16 %v6532
    %v7732 = vunpack.c.l.b16 %v6533
    %v7733 = vunpack.c.h.b16 %v6533
    %v7734 = vunpack.c.l.b16 %v6534
    %v7735 = vunpack.c.h.b16 %v6534
    %v7736 = vunpack.c.l.b16 %v6535
    %v7737 = vunpack.c.h.b16 %v6535
    %v7738 = vunpack.c.l.b16 %v6536
    %v7739 = vunpack.c.h.b16 %v6536
    %v7740 = vunpack.c.l.b16 %v6537
    %v7741 = vunpack.c.h.b16 %v6537
    %v7742 = vunpack.c.l.b16 %v6538
    %v7743 = vunpack.c.h.b16 %v6538
    %v7744 = vunpack.c.l.b16 %v6539
    %v7745 = vunpack.c.h.b16 %v6539
    %v7746 = vunpack.c.l.b16 %v6540
    %v7747 = vunpack.c.h.b16 %v6540
    %v7748 = vunpack.c.l.b16 %v6541
    %v7749 = vunpack.c.h.b16 %v6541
    %v7750 = vunpack.c.l.b16 %v6542
    %v7751 = vunpack.c.h.b16 %v6542
    %v7752 = vunpack.c.l.b16 %v6543
    %v7753 = vunpack.c.h.b16 %v6543
    %v7754 = vunpack.c.l.b16 %v6544
    %v7755 = vunpack.c.h.b16 %v6544
    %v7756 = vunpack.c.l.b16 %v6545
    %v7757 = vunpack.c.h.b16 %v6545
    %v7758 = vunpack.c.l.b16 %v6546
    %v7759 = vunpack.c.h.b16 %v6546
    %v7760 = vunpack.c.l.b16 %v6547
    %v7761 = vunpack.c.h.b16 %v6547
    %v7762 = vunpack.c.l.b16 %v6548
    %v7763 = vunpack.c.h.b16 %v6548
    %v7764 = vunpack.c.l.b16 %v6549
    %v7765 = vunpack.c.h.b16 %v6549
    %v7766 = vunpack.c.l.b16 %v6550
    %v7767 = vunpack.c.h.b16 %v6550
    %v7768 = vunpack.c.l.b16 %v6551
    %v7769 = vunpack.c.h.b16 %v6551
    %v7770 = vunpack.c.l.b16 %v6552
    %v7771 = vunpack.c.h.b16 %v6552
    %v7772 = vunpack.c.l.b16 %v6553
    %v7773 = vunpack.c.h.b16 %v6553
    %v7774 = vunpack.c.l.b16 %v6554
    %v7775 = vunpack.c.h.b16 %v6554
    %v7776 = vunpack.c.l.b16 %v6555
    %v7777 = vunpack.c.h.b16 %v6555
    %v7778 = vunpack.c.l.b16 %v6556
    %v7779 = vunpack.c.h.b16 %v6556
    %v7780 = vunpack.c.l.b16 %v6557
    %v7781 = vunpack.c.h.b16 %v6557
    %v7782 = vunpack.c.l.b16 %v6558
    %v7783 = vunpack.c.h.b16 %v6558
    %v7784 = vunpack.c.l.b16 %v6559
    %v7785 = vunpack.c.h.b16 %v6559
    %v7786 = vunpack.c.l.b16 %v6560
    %v7787 = vunpack.c.h.b16 %v6560
    %v7788 = vunpack.c.l.b16 %v6561
    %v7789 = vunpack.c.h.b16 %v6561
    %v7790 = vunpack.c.l.b16 %v6562
    %v7791 = vunpack.c.h.b16 %v6562
    %v7792 = vunpack.c.l.b16 %v6563
    %v7793 = vunpack.c.h.b16 %v6563
    %v7794 = vunpack.c.l.b16 %v6564
    %v7795 = vunpack.c.h.b16 %v6564
    %v7796 = vunpack.c.l.b16 %v6565
    %v7797 = vunpack.c.h.b16 %v6565
    %v7798 = vunpack.c.l.b16 %v6566
    %v7799 = vunpack.c.h.b16 %v6566
    %v7800 = vunpack.c.l.b16 %v6567
    %v7801 = vunpack.c.h.b16 %v6567
    %v7802 = vunpack.c.l.b16 %v6568
    %v7803 = vunpack.c.h.b16 %v6568
    %v7804 = vunpack.c.l.b16 %v6569
    %v7805 = vunpack.c.h.b16 %v6569
    %v7806 = vunpack.c.l.b16 %v6570
    %v7807 = vunpack.c.h.b16 %v6570
    %v7808 = vunpack.c.l.b16 %v6571
    %v7809 = vunpack.c.h.b16 %v6571
    %v7810 = vunpack.c.l.b16 %v6572
    %v7811 = vunpack.c.h.b16 %v6572
    %v7812 = vunpack.c.l.b16 %v6573
    %v7813 = vunpack.c.h.b16 %v6573
    %v7814 = vunpack.c.l.b16 %v6574
    %v7815 = vunpack.c.h.b16 %v6574
    %v7816 = vunpack.c.l.b16 %v6575
    %v7817 = vunpack.c.h.b16 %v6575
    %v7818 = vunpack.c.l.b16 %v6576
    %v7819 = vunpack.c.h.b16 %v6576
    %v7820 = vunpack.c.l.b16 %v6577
    %v7821 = vunpack.c.h.b16 %v6577
    %v7822 = vunpack.c.l.b16 %v6578
    %v7823 = vunpack.c.h.b16 %v6578
    %v7824 = vunpack.c.l.b16 %v6579
    %v7825 = vunpack.c.h.b16 %v6579
    %v7826 = vunpack.c.l.b16 %v6580
    %v7827 = vunpack.c.h.b16 %v6580
    %v7828 = vunpack.c.l.b16 %v6581
    %v7829 = vunpack.c.h.b16 %v6581
    %v7830 = vunpack.c.l.b16 %v6582
    %v7831 = vunpack.c.h.b16 %v6582
    %v7832 = vunpack.c.l.b16 %v6583
    %v7833 = vunpack.c.h.b16 %v6583
    %v7834 = vunpack.c.l.b16 %v6584
    %v7835 = vunpack.c.h.b16 %v6584
    %v7836 = vunpack.c.l.b16 %v6585
    %v7837 = vunpack.c.h.b16 %v6585
    %v7838 = vunpack.c.l.b16 %v6586
    %v7839 = vunpack.c.h.b16 %v6586
    %v7840 = vunpack.c.l.b16 %v6587
    %v7841 = vunpack.c.h.b16 %v6587
    %v7842 = vunpack.c.l.b16 %v6588
    %v7843 = vunpack.c.h.b16 %v6588
    %v7844 = vunpack.c.l.b16 %v6589
    %v7845 = vunpack.c.h.b16 %v6589
    %v7846 = vunpack.c.l.b16 %v6590
    %v7847 = vunpack.c.h.b16 %v6590
    %v7848 = vunpack.c.l.b16 %v6591
    %v7849 = vunpack.c.h.b16 %v6591
    %v7850 = vunpack.c.l.b16 %v6592
    %v7851 = vunpack.c.h.b16 %v6592
    %v7852 = vunpack.c.l.b16 %v6593
    %v7853 = vunpack.c.h.b16 %v6593
    %v7854 = vunpack.c.l.b16 %v6594
    %v7855 = vunpack.c.h.b16 %v6594
    %v7856 = vunpack.c.l.b16 %v6595
    %v7857 = vunpack.c.h.b16 %v6595
    %v7858 = vunpack.c.l.b16 %v6596
    %v7859 = vunpack.c.h.b16 %v6596
    %v7860 = vunpack.c.l.b16 %v6597
    %v7861 = vunpack.c.h.b16 %v6597
    %v7862 = vunpack.c.l.b16 %v6598
    %v7863 = vunpack.c.h.b16 %v6598
    %v7864 = vunpack.c.l.b16 %v6599
    %v7865 = vunpack.c.h.b16 %v6599
    %v7866 = vunpack.c.l.b16 %v6600
    %v7867 = vunpack.c.h.b16 %v6600
    %v7868 = vunpack.c.l.b16 %v6601
    %v7869 = vunpack.c.h.b16 %v6601
    %v7870 = vunpack.c.l.b16 %v6602
    %v7871 = vunpack.c.h.b16 %v6602
    %v7872 = vunpack.c.l.b16 %v6603
    %v7873 = vunpack.c.h.b16 %v6603
    %v7874 = vunpack.c.l.b16 %v6604
    %v7875 = vunpack.c.h.b16 %v6604
    %v7876 = vunpack.c.l.b16 %v6605
    %v7877 = vunpack.c.h.b16 %v6605
    %v7878 = vunpack.c.l.b16 %v6606
    %v7879 = vunpack.c.h.b16 %v6606
    %v7880 = vunpack.c.l.b16 %v6607
    %v7881 = vunpack.c.h.b16 %v6607
    %v7882 = vunpack.c.l.b16 %v6608
    %v7883 = vunpack.c.h.b16 %v6608
    %v7884 = vunpack.c.l.b16 %v6609
    %v7885 = vunpack.c.h.b16 %v6609
    %v7886 = vunpack.c.l.b16 %v6610
    %v7887 = vunpack.c.h.b16 %v6610
    %v7888 = vunpack.c.l.b16 %v6611
    %v7889 = vunpack.c.h.b16 %v6611
    %v7890 = vunpack.c.l.b16 %v6612
    %v7891 = vunpack.c.h.b16 %v6612
    %v7892 = vunpack.c.l.b16 %v6613
    %v7893 = vunpack.c.h.b16 %v6613
    %v7894 = vunpack.c.l.b16 %v6614
    %v7895 = vunpack.c.h.b16 %v6614
    %v7896 = vunpack.c.l.b16 %v6615
    %v7897 = vunpack.c.h.b16 %v6615
    %v7898 = vunpack.c.l.b16 %v6616
    %v7899 = vunpack.c.h.b16 %v6616
    %v7900 = vunpack.c.l.b16 %v6617
    %v7901 = vunpack.c.h.b16 %v6617
    %v7902 = vunpack.c.l.b16 %v6618
    %v7903 = vunpack.c.h.b16 %v6618
    %v7904 = vunpack.c.l.b16 %v6619
    %v7905 = vunpack.c.h.b16 %v6619
    %v7906 = vunpack.c.l.b16 %v6620
    %v7907 = vunpack.c.h.b16 %v6620
    %v7908 = vunpack.c.l.b16 %v6621
    %v7909 = vunpack.c.h.b16 %v6621
    %v7910 = vunpack.c.l.b16 %v6622
    %v7911 = vunpack.c.h.b16 %v6622
    %v7912 = vunpack.c.l.b16 %v6623
    %v7913 = vunpack.c.h.b16 %v6623
    %v7914 = vunpack.c.l.b16 %v6624
    %v7915 = vunpack.c.h.b16 %v6624
    %v7916 = vunpack.c.l.b16 %v6625
    %v7917 = vunpack.c.h.b16 %v6625
    %v7918 = vunpack.c.l.b16 %v6626
    %v7919 = vunpack.c.h.b16 %v6626
    %v7920 = vunpack.c.l.b16 %v6627
    %v7921 = vunpack.c.h.b16 %v6627
    %v7922 = vunpack.c.l.b16 %v6628
    %v7923 = vunpack.c.h.b16 %v6628
    %v7924 = vunpack.c.l.b16 %v6629
    %v7925 = vunpack.c.h.b16 %v6629
    %v7926 = vunpack.c.l.b16 %v6630
    %v7927 = vunpack.c.h.b16 %v6630
    %v7928 = vunpack.c.l.b16 %v6631
    %v7929 = vunpack.c.h.b16 %v6631
    %v7930 = vunpack.c.l.b16 %v6632
    %v7931 = vunpack.c.h.b16 %v6632
    %v7932 = vunpack.c.l.b16 %v6633
    %v7933 = vunpack.c.h.b16 %v6633
    %v7934 = vunpack.c.l.b16 %v6634
    %v7935 = vunpack.c.h.b16 %v6634
    %v7936 = vunpack.c.l.b16 %v6635
    %v7937 = vunpack.c.h.b16 %v6635
    %v7938 = vunpack.c.l.b16 %v6636
    %v7939 = vunpack.c.h.b16 %v6636
    %v7940 = vunpack.c.l.b16 %v6637
    %v7941 = vunpack.c.h.b16 %v6637
    %v7942 = vunpack.c.l.b16 %v6638
    %v7943 = vunpack.c.h.b16 %v6638
    %v7944 = vunpack.c.l.b16 %v6639
    %v7945 = vunpack.c.h.b16 %v6639
    %v7946 = vunpack.c.l.b16 %v6640
    %v7947 = vunpack.c.h.b16 %v6640
    %v7948 = vunpack.c.l.b16 %v6641
    %v7949 = vunpack.c.h.b16 %v6641
    %v7950 = vunpack.c.l.b16 %v6642
    %v7951 = vunpack.c.h.b16 %v6642
    %v7952 = vunpack.c.l.b16 %v6643
    %v7953 = vunpack.c.h.b16 %v6643
    %v7954 = vunpack.c.l.b16 %v6644
    %v7955 = vunpack.c.h.b16 %v6644
    %v7956 = vunpack.c.l.b16 %v6645
    %v7957 = vunpack.c.h.b16 %v6645
    %v7958 = vunpack.c.l.b16 %v6646
    %v7959 = vunpack.c.h.b16 %v6646
    %v7960 = vunpack.c.l.b16 %v6647
    %v7961 = vunpack.c.h.b16 %v6647
    %v7962 = vunpack.c.l.b16 %v6648
    %v7963 = vunpack.c.h.b16 %v6648
    %v7964 = vunpack.c.l.b16 %v6649
    %v7965 = vunpack.c.h.b16 %v6649
    %v7966 = vunpack.c.l.b16 %v6650
    %v7967 = vunpack.c.h.b16 %v6650
    %v7968 = vunpack.c.l.b16 %v6651
    %v7969 = vunpack.c.h.b16 %v6651
    %v7970 = vunpack.c.l.b16 %v6652
    %v7971 = vunpack.c.h.b16 %v6652
    %v7972 = vunpack.c.l.b16 %v6653
    %v7973 = vunpack.c.h.b16 %v6653
    %v7974 = vunpack.c.l.b16 %v6654
    %v7975 = vunpack.c.h.b16 %v6654
    %v7976 = vunpack.c.l.b16 %v6655
    %v7977 = vunpack.c.h.b16 %v6655
    %v7978 = vunpack.c.l.b16 %v6656
    %v7979 = vunpack.c.h.b16 %v6656
    %v7980 = vunpack.c.l.b16 %v6657
    %v7981 = vunpack.c.h.b16 %v6657
    %v7982 = vunpack.c.l.b16 %v6658
    %v7983 = vunpack.c.h.b16 %v6658
    %v7984 = vunpack.c.l.b16 %v6659
    %v7985 = vunpack.c.h.b16 %v6659
    %v7986 = vunpack.c.l.b16 %v6660
    %v7987 = vunpack.c.h.b16 %v6660
    %v7988 = vunpack.c.l.b16 %v6661
    %v7989 = vunpack.c.h.b16 %v6661
    %v7990 = vunpack.c.l.b16 %v6662
    %v7991 = vunpack.c.h.b16 %v6662
    %v7992 = vunpack.c.l.b16 %v6663
    %v7993 = vunpack.c.h.b16 %v6663
    %v7994 = vunpack.c.l.b16 %v6664
    %v7995 = vunpack.c.h.b16 %v6664
    %v7996 = vunpack.c.l.b16 %v6665
    %v7997 = vunpack.c.h.b16 %v6665
    %v7998 = vunpack.c.l.b16 %v6666
    %v7999 = vunpack.c.h.b16 %v6666
    %v8000 = vunpack.c.l.b16 %v6667
    %v8001 = vunpack.c.h.b16 %v6667
    %v8002 = vunpack.c.l.b16 %v6668
    %v8003 = vunpack.c.h.b16 %v6668
    %v8004 = vunpack.c.l.b16 %v6669
    %v8005 = vunpack.c.h.b16 %v6669
    %v8006 = vunpack.c.l.b16 %v6670
    %v8007 = vunpack.c.h.b16 %v6670
    %v8008 = vunpack.c.l.b16 %v6671
    %v8009 = vunpack.c.h.b16 %v6671
    %v8010 = vunpack.c.l.b16 %v6672
    %v8011 = vunpack.c.h.b16 %v6672
    %v8012 = vunpack.c.l.b16 %v6673
    %v8013 = vunpack.c.h.b16 %v6673
    %v8014 = vunpack.c.l.b16 %v6674
    %v8015 = vunpack.c.h.b16 %v6674
    %v8016 = vunpack.c.l.b16 %v6675
    %v8017 = vunpack.c.h.b16 %v6675
    %v8018 = vunpack.c.l.b16 %v6676
    %v8019 = vunpack.c.h.b16 %v6676
    %v8020 = vunpack.c.l.b16 %v6677
    %v8021 = vunpack.c.h.b16 %v6677
    %v8022 = vunpack.c.l.b16 %v6678
    %v8023 = vunpack.c.h.b16 %v6678
    %v8024 = vunpack.c.l.b16 %v6679
    %v8025 = vunpack.c.h.b16 %v6679
    %v8026 = vunpack.c.l.b16 %v6680
    %v8027 = vunpack.c.h.b16 %v6680
    %v8028 = vunpack.c.l.b16 %v6681
    %v8029 = vunpack.c.h.b16 %v6681
    %v8030 = vunpack.c.l.b16 %v6682
    %v8031 = vunpack.c.h.b16 %v6682
    %v8032 = vunpack.c.l.b16 %v6683
    %v8033 = vunpack.c.h.b16 %v6683
    %v8034 = vunpack.c.l.b16 %v6684
    %v8035 = vunpack.c.h.b16 %v6684
    %v8036 = vunpack.c.l.b16 %v6685
    %v8037 = vunpack.c.h.b16 %v6685
    %v8038 = vunpack.c.l.b16 %v6686
    %v8039 = vunpack.c.h.b16 %v6686
    %v8040 = vunpack.c.l.b16 %v6687
    %v8041 = vunpack.c.h.b16 %v6687
    %v8042 = vunpack.c.l.b16 %v6688
    %v8043 = vunpack.c.h.b16 %v6688
    %v8044 = vunpack.c.l.b16 %v6689
    %v8045 = vunpack.c.h.b16 %v6689
    %v8046 = vunpack.c.l.b16 %v6690
    %v8047 = vunpack.c.h.b16 %v6690
    %v8048 = vunpack.c.l.b16 %v6691
    %v8049 = vunpack.c.h.b16 %v6691
    %v8050 = vunpack.c.l.b16 %v6692
    %v8051 = vunpack.c.h.b16 %v6692
    %v8052 = vunpack.c.l.b16 %v6693
    %v8053 = vunpack.c.h.b16 %v6693
    %v8054 = vunpack.c.l.b16 %v6694
    %v8055 = vunpack.c.h.b16 %v6694
    %v8056 = vunpack.c.l.b16 %v6695
    %v8057 = vunpack.c.h.b16 %v6695
    %v8058 = vunpack.c.l.b16 %v6696
    %v8059 = vunpack.c.h.b16 %v6696
    %v8060 = vunpack.c.l.b16 %v6697
    %v8061 = vunpack.c.h.b16 %v6697
    %v8062 = vunpack.c.l.b16 %v6698
    %v8063 = vunpack.c.h.b16 %v6698
    %v8064 = vunpack.c.l.b16 %v6699
    %v8065 = vunpack.c.h.b16 %v6699
    %v8066 = vunpack.c.l.b16 %v6700
    %v8067 = vunpack.c.h.b16 %v6700
    %v8068 = vunpack.c.l.b16 %v6701
    %v8069 = vunpack.c.h.b16 %v6701
    %v8070 = vunpack.c.l.b16 %v6702
    %v8071 = vunpack.c.h.b16 %v6702
    %v8072 = vunpack.c.l.b16 %v6703
    %v8073 = vunpack.c.h.b16 %v6703
    %v8074 = vunpack.c.l.b16 %v6704
    %v8075 = vunpack.c.h.b16 %v6704
    %v8076 = vunpack.c.l.b16 %v6705
    %v8077 = vunpack.c.h.b16 %v6705
    %v8078 = vunpack.c.l.b16 %v6706
    %v8079 = vunpack.c.h.b16 %v6706
    %v8080 = vunpack.c.l.b16 %v6707
    %v8081 = vunpack.c.h.b16 %v6707
    %v8082 = vunpack.c.l.b16 %v6708
    %v8083 = vunpack.c.h.b16 %v6708
    %v8084 = vunpack.c.l.b16 %v6709
    %v8085 = vunpack.c.h.b16 %v6709
    %v8086 = vunpack.c.l.b16 %v6710
    %v8087 = vunpack.c.h.b16 %v6710
    %v8088 = vunpack.c.l.b16 %v6711
    %v8089 = vunpack.c.h.b16 %v6711
    %v8090 = vunpack.c.l.b16 %v6712
    %v8091 = vunpack.c.h.b16 %v6712
    %v8092 = vunpack.c.l.b16 %v6713
    %v8093 = vunpack.c.h.b16 %v6713
    %v8094 = vunpack.c.l.b16 %v6714
    %v8095 = vunpack.c.h.b16 %v6714
    %v8096 = vunpack.c.l.b16 %v6715
    %v8097 = vunpack.c.h.b16 %v6715
    %v8098 = vunpack.c.l.b16 %v6716
    %v8099 = vunpack.c.h.b16 %v6716
    %v8100 = vunpack.c.l.b16 %v6717
    %v8101 = vunpack.c.h.b16 %v6717
    %v8102 = vunpack.c.l.b16 %v6718
    %v8103 = vunpack.c.h.b16 %v6718
    %v8104 = vunpack.c.l.b16 %v6719
    %v8105 = vunpack.c.h.b16 %v6719
    %v8106 = vunpack.c.l.b16 %v6720
    %v8107 = vunpack.c.h.b16 %v6720
    %v8108 = vunpack.c.l.b16 %v6721
    %v8109 = vunpack.c.h.b16 %v6721
    %v8110 = vunpack.c.l.b16 %v6722
    %v8111 = vunpack.c.h.b16 %v6722
    %v8112 = vunpack.c.l.b16 %v6723
    %v8113 = vunpack.c.h.b16 %v6723
    %v8114 = vunpack.c.l.b16 %v6724
    %v8115 = vunpack.c.h.b16 %v6724
    %v8116 = vunpack.c.l.b16 %v6725
    %v8117 = vunpack.c.h.b16 %v6725
    %v8118 = vunpack.c.l.b16 %v6726
    %v8119 = vunpack.c.h.b16 %v6726
    %v8120 = vunpack.c.l.b16 %v6727
    %v8121 = vunpack.c.h.b16 %v6727
    %v8122 = vunpack.c.l.b16 %v6728
    %v8123 = vunpack.c.h.b16 %v6728
    %v8124 = vunpack.c.l.b16 %v6729
    %v8125 = vunpack.c.h.b16 %v6729
    %v8126 = vunpack.c.l.b16 %v6730
    %v8127 = vunpack.c.h.b16 %v6730
    %v8128 = vunpack.c.l.b16 %v6731
    %v8129 = vunpack.c.h.b16 %v6731
    %v8130 = vunpack.c.l.b16 %v6732
    %v8131 = vunpack.c.h.b16 %v6732
    %v8132 = vunpack.c.l.b16 %v6733
    %v8133 = vunpack.c.h.b16 %v6733
    %v8134 = vunpack.c.l.b16 %v6734
    %v8135 = vunpack.c.h.b16 %v6734
    %v8136 = vunpack.c.l.b16 %v6735
    %v8137 = vunpack.c.h.b16 %v6735
    %v8138 = vunpack.c.l.b16 %v6736
    %v8139 = vunpack.c.h.b16 %v6736
    %v8140 = vunpack.c.l.b16 %v6737
    %v8141 = vunpack.c.h.b16 %v6737
    %v8142 = vunpack.c.l.b16 %v6738
    %v8143 = vunpack.c.h.b16 %v6738
    %v8144 = vunpack.c.l.b16 %v6739
    %v8145 = vunpack.c.h.b16 %v6739
    %v8146 = vunpack.c.l.b16 %v6740
    %v8147 = vunpack.c.h.b16 %v6740
    %v8148 = vunpack.c.l.b16 %v6741
    %v8149 = vunpack.c.h.b16 %v6741
    %v8150 = vunpack.c.l.b16 %v6742
    %v8151 = vunpack.c.h.b16 %v6742
    %v8152 = vunpack.c.l.b16 %v6743
    %v8153 = vunpack.c.h.b16 %v6743
    %v8154 = vunpack.c.l.b16 %v6744
    %v8155 = vunpack.c.h.b16 %v6744
    %v8156 = vunpack.c.l.b16 %v6745
    %v8157 = vunpack.c.h.b16 %v6745
    %v8158 = vunpack.c.l.b16 %v6746
    %v8159 = vunpack.c.h.b16 %v6746
    %v8160 = vunpack.c.l.b16 %v6747
    %v8161 = vunpack.c.h.b16 %v6747
    %v8162 = vunpack.c.l.b16 %v6748
    %v8163 = vunpack.c.h.b16 %v6748
    %v8164 = vunpack.c.l.b16 %v6749
    %v8165 = vunpack.c.h.b16 %v6749
    %v8166 = vunpack.c.l.b16 %v6750
    %v8167 = vunpack.c.h.b16 %v6750
    %v8168 = vunpack.c.l.b16 %v6751
    %v8169 = vunpack.c.h.b16 %v6751
    %v8170 = vunpack.c.l.b16 %v6752
    %v8171 = vunpack.c.h.b16 %v6752
    %v8172 = vunpack.c.l.b16 %v6753
    %v8173 = vunpack.c.h.b16 %v6753
    %v8174 = vunpack.c.l.b16 %v6754
    %v8175 = vunpack.c.h.b16 %v6754
    %v8176 = vunpack.c.l.b16 %v6755
    %v8177 = vunpack.c.h.b16 %v6755
    %v8178 = vunpack.c.l.b16 %v6756
    %v8179 = vunpack.c.h.b16 %v6756
    %v8180 = vunpack.c.l.b16 %v6757
    %v8181 = vunpack.c.h.b16 %v6757
    %v8182 = vunpack.c.l.b16 %v6758
    %v8183 = vunpack.c.h.b16 %v6758
    %v8184 = vunpack.c.l.b16 %v6759
    %v8185 = vunpack.c.h.b16 %v6759
    %v8186 = vunpack.c.l.b16 %v6760
    %v8187 = vunpack.c.h.b16 %v6760
    %v8188 = vunpack.c.l.b16 %v6761
    %v8189 = vunpack.c.h.b16 %v6761
    %v8190 = vunpack.c.l.b16 %v6762
    %v8191 = vunpack.c.h.b16 %v6762
    %v8192 = vunpack.c.l.b16 %v6763
    %v8193 = vunpack.c.h.b16 %v6763
    %v8194 = vunpack.c.l.b16 %v6764
    %v8195 = vunpack.c.h.b16 %v6764
    %v8196 = vunpack.c.l.b16 %v6765
    %v8197 = vunpack.c.h.b16 %v6765
    %v8198 = vunpack.c.l.b16 %v6766
    %v8199 = vunpack.c.h.b16 %v6766
    %v8200 = vunpack.c.l.b16 %v6767
    %v8201 = vunpack.c.h.b16 %v6767
    %v8202 = vunpack.c.l.b16 %v6768
    %v8203 = vunpack.c.h.b16 %v6768
    %v8204 = vunpack.c.l.b16 %v6769
    %v8205 = vunpack.c.h.b16 %v6769
    %v8206 = vunpack.c.l.b16 %v6770
    %v8207 = vunpack.c.h.b16 %v6770
    %v8208 = vunpack.c.l.b16 %v6771
    %v8209 = vunpack.c.h.b16 %v6771
    %v8210 = vunpack.c.l.b16 %v6772
    %v8211 = vunpack.c.h.b16 %v6772
    %v8212 = vunpack.c.l.b16 %v6773
    %v8213 = vunpack.c.h.b16 %v6773
    %v8214 = vunpack.c.l.b16 %v6774
    %v8215 = vunpack.c.h.b16 %v6774
    %v8216 = vunpack.c.l.b16 %v6775
    %v8217 = vunpack.c.h.b16 %v6775
    %v8218 = vunpack.c.l.b16 %v6776
    %v8219 = vunpack.c.h.b16 %v6776
    %v8220 = vunpack.c.l.b16 %v6777
    %v8221 = vunpack.c.h.b16 %v6777
    %v8222 = vunpack.c.l.b16 %v6778
    %v8223 = vunpack.c.h.b16 %v6778
    %v8224 = vunpack.c.l.b16 %v6779
    %v8225 = vunpack.c.h.b16 %v6779
    %v8226 = vunpack.c.l.b16 %v6780
    %v8227 = vunpack.c.h.b16 %v6780
    %v8228 = vunpack.c.l.b16 %v6781
    %v8229 = vunpack.c.h.b16 %v6781
    %v8230 = vunpack.c.l.b16 %v6782
    %v8231 = vunpack.c.h.b16 %v6782
    %v8232 = vunpack.c.l.b16 %v6783
    %v8233 = vunpack.c.h.b16 %v6783
    %v8234 = vunpack.c.l.b16 %v6784
    %v8235 = vunpack.c.h.b16 %v6784
    %v8236 = vunpack.c.l.b16 %v6785
    %v8237 = vunpack.c.h.b16 %v6785
    %v8238 = vunpack.c.l.b16 %v6786
    %v8239 = vunpack.c.h.b16 %v6786
    %v8240 = vunpack.c.l.b16 %v6787
    %v8241 = vunpack.c.h.b16 %v6787
    %v8242 = vunpack.c.l.b16 %v6788
    %v8243 = vunpack.c.h.b16 %v6788
    %v8244 = vunpack.c.l.b16 %v6789
    %v8245 = vunpack.c.h.b16 %v6789
    %v8246 = vunpack.c.l.b16 %v6790
    %v8247 = vunpack.c.h.b16 %v6790
    %v8248 = vunpack.c.l.b16 %v6791
    %v8249 = vunpack.c.h.b16 %v6791
    %v8250 = vunpack.c.l.b16 %v6792
    %v8251 = vunpack.c.h.b16 %v6792
    %v8252 = vunpack.c.l.b16 %v6793
    %v8253 = vunpack.c.h.b16 %v6793
    %v8254 = vunpack.c.l.b16 %v6794
    %v8255 = vunpack.c.h.b16 %v6794
    %v8256 = vunpack.c.l.b16 %v6795
    %v8257 = vunpack.c.h.b16 %v6795
    %v8258 = vunpack.c.l.b16 %v6796
    %v8259 = vunpack.c.h.b16 %v6796
    %v8260 = vunpack.c.l.b16 %v6797
    %v8261 = vunpack.c.h.b16 %v6797
    %v8262 = vunpack.c.l.b16 %v6798
    %v8263 = vunpack.c.h.b16 %v6798
    %v8264 = vunpack.c.l.b16 %v6799
    %v8265 = vunpack.c.h.b16 %v6799
    %v8266 = vunpack.c.l.b16 %v6800
    %v8267 = vunpack.c.h.b16 %v6800
    %v8268 = vunpack.c.l.b16 %v6801
    %v8269 = vunpack.c.h.b16 %v6801
    %v8270 = vunpack.c.l.b16 %v6802
    %v8271 = vunpack.c.h.b16 %v6802
    %v8272 = vunpack.c.l.b16 %v6803
    %v8273 = vunpack.c.h.b16 %v6803
    %v8274 = vunpack.c.l.b16 %v6804
    %v8275 = vunpack.c.h.b16 %v6804
    %v8276 = vunpack.c.l.b16 %v6805
    %v8277 = vunpack.c.h.b16 %v6805
    %v8278 = vunpack.c.l.b16 %v6806
    %v8279 = vunpack.c.h.b16 %v6806
    %v8280 = vunpack.c.l.b16 %v6807
    %v8281 = vunpack.c.h.b16 %v6807
    %v8282 = vunpack.c.l.b16 %v6808
    %v8283 = vunpack.c.h.b16 %v6808
    %v8284 = vunpack.c.l.b16 %v6809
    %v8285 = vunpack.c.h.b16 %v6809
    %v8286 = vunpack.c.l.b16 %v6810
    %v8287 = vunpack.c.h.b16 %v6810
    %v8288 = vunpack.c.l.b16 %v6811
    %v8289 = vunpack.c.h.b16 %v6811
    %v8290 = vunpack.c.l.b16 %v6812
    %v8291 = vunpack.c.h.b16 %v6812
    %v8292 = vunpack.c.l.b16 %v6813
    %v8293 = vunpack.c.h.b16 %v6813
    %v8294 = vunpack.c.l.b16 %v6814
    %v8295 = vunpack.c.h.b16 %v6814
    %v8296 = vunpack.c.l.b16 %v6815
    %v8297 = vunpack.c.h.b16 %v6815
    %v8298 = vunpack.c.l.b16 %v6816
    %v8299 = vunpack.c.h.b16 %v6816
    %v8300 = vunpack.c.l.b16 %v6817
    %v8301 = vunpack.c.h.b16 %v6817
    %v8302 = vunpack.c.l.b16 %v6818
    %v8303 = vunpack.c.h.b16 %v6818
    %v8304 = vunpack.c.l.b16 %v6819
    %v8305 = vunpack.c.h.b16 %v6819
    %v8306 = vunpack.c.l.b16 %v6820
    %v8307 = vunpack.c.h.b16 %v6820
    %v8308 = vunpack.c.l.b16 %v6821
    %v8309 = vunpack.c.h.b16 %v6821
    %v8310 = vunpack.c.l.b16 %v6822
    %v8311 = vunpack.c.h.b16 %v6822
    %v8312 = vunpack.c.l.b16 %v6823
    %v8313 = vunpack.c.h.b16 %v6823
    %v8314 = vunpack.c.l.b16 %v6824
    %v8315 = vunpack.c.h.b16 %v6824
    %v8316 = vunpack.c.l.b16 %v6825
    %v8317 = vunpack.c.h.b16 %v6825
    %v8318 = vunpack.c.l.b16 %v6826
    %v8319 = vunpack.c.h.b16 %v6826
    %v8320 = vunpack.c.l.b16 %v6827
    %v8321 = vunpack.c.h.b16 %v6827
    %v8322 = vunpack.c.l.b16 %v6828
    %v8323 = vunpack.c.h.b16 %v6828
    %v8324 = vunpack.c.l.b16 %v6829
    %v8325 = vunpack.c.h.b16 %v6829
    %v8326 = vunpack.c.l.b16 %v6830
    %v8327 = vunpack.c.h.b16 %v6830
    %v8328 = vunpack.c.l.b16 %v6831
    %v8329 = vunpack.c.h.b16 %v6831
    %v8330 = vunpack.c.l.b16 %v6832
    %v8331 = vunpack.c.h.b16 %v6832
    %v8332 = vunpack.c.l.b16 %v6833
    %v8333 = vunpack.c.h.b16 %v6833
    %v8334 = vunpack.c.l.b16 %v6834
    %v8335 = vunpack.c.h.b16 %v6834
    %v8336 = vunpack.c.l.b16 %v6835
    %v8337 = vunpack.c.h.b16 %v6835
    %v8338 = vunpack.c.l.b16 %v6836
    %v8339 = vunpack.c.h.b16 %v6836
    %v8340 = vunpack.c.l.b16 %v6837
    %v8341 = vunpack.c.h.b16 %v6837
    %v8342 = vunpack.c.l.b16 %v6838
    %v8343 = vunpack.c.h.b16 %v6838
    %v8344 = vunpack.c.l.b16 %v6839
    %v8345 = vunpack.c.h.b16 %v6839
    %v8346 = vunpack.c.l.b16 %v6840
    %v8347 = vunpack.c.h.b16 %v6840
    %v8348 = vunpack.c.l.b16 %v6841
    %v8349 = vunpack.c.h.b16 %v6841
    %v8350 = vunpack.c.l.b16 %v6842
    %v8351 = vunpack.c.h.b16 %v6842
    %v8352 = vunpack.c.l.b16 %v6843
    %v8353 = vunpack.c.h.b16 %v6843
    %v8354 = vunpack.c.l.b16 %v6844
    %v8355 = vunpack.c.h.b16 %v6844
    %v8356 = vunpack.c.l.b16 %v6845
    %v8357 = vunpack.c.h.b16 %v6845
    %v8358 = vunpack.c.l.b16 %v6846
    %v8359 = vunpack.c.h.b16 %v6846
    %v8360 = vunpack.c.l.b16 %v6847
    %v8361 = vunpack.c.h.b16 %v6847
    %v8362 = vunpack.c.l.b16 %v6848
    %v8363 = vunpack.c.h.b16 %v6848
    %v8364 = vunpack.c.l.b16 %v6849
    %v8365 = vunpack.c.h.b16 %v6849
    %v8366 = vunpack.c.l.b16 %v6850
    %v8367 = vunpack.c.h.b16 %v6850
    %v8368 = vunpack.c.l.b16 %v6851
    %v8369 = vunpack.c.h.b16 %v6851
    %v8370 = vunpack.c.l.b16 %v6852
    %v8371 = vunpack.c.h.b16 %v6852
    %v8372 = vunpack.c.l.b16 %v6853
    %v8373 = vunpack.c.h.b16 %v6853
    %v8374 = vunpack.c.l.b16 %v6854
    %v8375 = vunpack.c.h.b16 %v6854
    %v8376 = vunpack.c.l.b16 %v6855
    %v8377 = vunpack.c.h.b16 %v6855
    %v8378 = vunpack.c.l.b16 %v6856
    %v8379 = vunpack.c.h.b16 %v6856
    %v8380 = vunpack.c.l.b16 %v6857
    %v8381 = vunpack.c.h.b16 %v6857
    %v8382 = vunpack.c.l.b16 %v6858
    %v8383 = vunpack.c.h.b16 %v6858
    %v8384 = vunpack.c.l.b16 %v6859
    %v8385 = vunpack.c.h.b16 %v6859
    %v8386 = vunpack.c.l.b16 %v6860
    %v8387 = vunpack.c.h.b16 %v6860
    %v8388 = vunpack.c.l.b16 %v6861
    %v8389 = vunpack.c.h.b16 %v6861
    %v8390 = vunpack.c.l.b16 %v6862
    %v8391 = vunpack.c.h.b16 %v6862
    %v8392 = vunpack.c.l.b16 %v6863
    %v8393 = vunpack.c.h.b16 %v6863
    %v8394 = vunpack.c.l.b16 %v6864
    %v8395 = vunpack.c.h.b16 %v6864
    %v8396 = vunpack.c.l.b16 %v6865
    %v8397 = vunpack.c.h.b16 %v6865
    %v8398 = vunpack.c.l.b16 %v6866
    %v8399 = vunpack.c.h.b16 %v6866
    %v8400 = vunpack.c.l.b16 %v6867
    %v8401 = vunpack.c.h.b16 %v6867
    %v8402 = vunpack.c.l.b16 %v6868
    %v8403 = vunpack.c.h.b16 %v6868
    %v8404 = vunpack.c.l.b16 %v6869
    %v8405 = vunpack.c.h.b16 %v6869
    %v8406 = vunpack.c.l.b16 %v6870
    %v8407 = vunpack.c.h.b16 %v6870
    %v8408 = vunpack.c.l.b16 %v6871
    %v8409 = vunpack.c.h.b16 %v6871
    %v8410 = vunpack.c.l.b16 %v6872
    %v8411 = vunpack.c.h.b16 %v6872
    %v8412 = vunpack.c.l.b16 %v6873
    %v8413 = vunpack.c.h.b16 %v6873
    %v8414 = vunpack.c.l.b16 %v6874
    %v8415 = vunpack.c.h.b16 %v6874
    %v8416 = vunpack.c.l.b16 %v6875
    %v8417 = vunpack.c.h.b16 %v6875
    %v8418 = vunpack.c.l.b16 %v6876
    %v8419 = vunpack.c.h.b16 %v6876
    %v8420 = vunpack.c.l.b16 %v6877
    %v8421 = vunpack.c.h.b16 %v6877
    %v8422 = vunpack.c.l.b16 %v6878
    %v8423 = vunpack.c.h.b16 %v6878
    %v8424 = vunpack.c.l.b16 %v6879
    %v8425 = vunpack.c.h.b16 %v6879
    %v8426 = vunpack.c.l.b16 %v6880
    %v8427 = vunpack.c.h.b16 %v6880
    %v8428 = vunpack.c.l.b16 %v6881
    %v8429 = vunpack.c.h.b16 %v6881
    %v8430 = vunpack.c.l.b16 %v6882
    %v8431 = vunpack.c.h.b16 %v6882
    %v8432 = vunpack.c.l.b16 %v6883
    %v8433 = vunpack.c.h.b16 %v6883
    %v8434 = vunpack.c.l.b16 %v6884
    %v8435 = vunpack.c.h.b16 %v6884
    %v8436 = vunpack.c.l.b16 %v6885
    %v8437 = vunpack.c.h.b16 %v6885
    %v8438 = vunpack.c.l.b16 %v6886
    %v8439 = vunpack.c.h.b16 %v6886
    %v8440 = vunpack.c.l.b16 %v6887
    %v8441 = vunpack.c.h.b16 %v6887
    %v8442 = vunpack.c.l.b16 %v6888
    %v8443 = vunpack.c.h.b16 %v6888
    %v8444 = vunpack.c.l.b16 %v6889
    %v8445 = vunpack.c.h.b16 %v6889
    %v8446 = vunpack.c.l.b16 %v6890
    %v8447 = vunpack.c.h.b16 %v6890
    %v8448 = vunpack.c.l.b16 %v6891
    %v8449 = vunpack.c.h.b16 %v6891
    %v8450 = vunpack.c.l.b16 %v6892
    %v8451 = vunpack.c.h.b16 %v6892
    %v8452 = vunpack.c.l.b16 %v6893
    %v8453 = vunpack.c.h.b16 %v6893
    %v8454 = vunpack.c.l.b16 %v6894
    %v8455 = vunpack.c.h.b16 %v6894
    %v8456 = vunpack.c.l.b16 %v6895
    %v8457 = vunpack.c.h.b16 %v6895
    %v8458 = vunpack.c.l.b16 %v6896
    %v8459 = vunpack.c.h.b16 %v6896
    %v8460 = vunpack.c.l.b16 %v6897
    %v8461 = vunpack.c.h.b16 %v6897
    %v8462 = vunpack.c.l.b16 %v6898
    %v8463 = vunpack.c.h.b16 %v6898
    %v8464 = vunpack.c.l.b16 %v6899
    %v8465 = vunpack.c.h.b16 %v6899
    %v8466 = vunpack.c.l.b16 %v6900
    %v8467 = vunpack.c.h.b16 %v6900
    %v8468 = vunpack.c.l.b16 %v6901
    %v8469 = vunpack.c.h.b16 %v6901
    %v8470 = vunpack.c.l.b16 %v6902
    %v8471 = vunpack.c.h.b16 %v6902
    %v8472 = vunpack.c.l.b16 %v6903
    %v8473 = vunpack.c.h.b16 %v6903
    %v8474 = vunpack.c.l.b16 %v6904
    %v8475 = vunpack.c.h.b16 %v6904
    %v8476 = vunpack.c.l.b16 %v6905
    %v8477 = vunpack.c.h.b16 %v6905
    %v8478 = vunpack.c.l.b16 %v6906
    %v8479 = vunpack.c.h.b16 %v6906
    %v8480 = vunpack.c.l.b16 %v6907
    %v8481 = vunpack.c.h.b16 %v6907
    %v8482 = vunpack.c.l.b16 %v6908
    %v8483 = vunpack.c.h.b16 %v6908
    %v8484 = vunpack.c.l.b16 %v6909
    %v8485 = vunpack.c.h.b16 %v6909
    %v8486 = vunpack.c.l.b16 %v6910
    %v8487 = vunpack.c.h.b16 %v6910
    %v8488 = vunpack.c.l.b16 %v6911
    %v8489 = vunpack.c.h.b16 %v6911
    %v8490 = vpack.c.b16 %v7474, %v7466
    %v8491 = vpack.c.b16 %v7475, %v7467
    %v8492 = vpack.c.b16 %v7476, %v7468
    %v8493 = vpack.c.b16 %v7477, %v7469
    %v8494 = vpack.c.b16 %v7478, %v7470
    %v8495 = vpack.c.b16 %v7479, %v7471
    %v8496 = vpack.c.b16 %v7480, %v7472
    %v8497 = vpack.c.b16 %v7481, %v7473
    %v8498 = vpack.c.b16 %v7490, %v7482
    %v8499 = vpack.c.b16 %v7491, %v7483
    %v8500 = vpack.c.b16 %v7492, %v7484
    %v8501 = vpack.c.b16 %v7493, %v7485
    %v8502 = vpack.c.b16 %v7494, %v7486
    %v8503 = vpack.c.b16 %v7495, %v7487
    %v8504 = vpack.c.b16 %v7496, %v7488
    %v8505 = vpack.c.b16 %v7497, %v7489
    %v8506 = vpack.c.b16 %v7506, %v7498
    %v8507 = vpack.c.b16 %v7507, %v7499
    %v8508 = vpack.c.b16 %v7508, %v7500
    %v8509 = vpack.c.b16 %v7509, %v7501
    %v8510 = vpack.c.b16 %v7510, %v7502
    %v8511 = vpack.c.b16 %v7511, %v7503
    %v8512 = vpack.c.b16 %v7512, %v7504
    %v8513 = vpack.c.b16 %v7513, %v7505
    %v8514 = vpack.c.b16 %v7522, %v7514
    %v8515 = vpack.c.b16 %v7523, %v7515
    %v8516 = vpack.c.b16 %v7524, %v7516
    %v8517 = vpack.c.b16 %v7525, %v7517
    %v8518 = vpack.c.b16 %v7526, %v7518
    %v8519 = vpack.c.b16 %v7527, %v7519
    %v8520 = vpack.c.b16 %v7528, %v7520
    %v8521 = vpack.c.b16 %v7529, %v7521
    %v8522 = vpack.c.b16 %v7538, %v7530
    %v8523 = vpack.c.b16 %v7539, %v7531
    %v8524 = vpack.c.b16 %v7540, %v7532
    %v8525 = vpack.c.b16 %v7541, %v7533
    %v8526 = vpack.c.b16 %v7542, %v7534
    %v8527 = vpack.c.b16 %v7543, %v7535
    %v8528 = vpack.c.b16 %v7544, %v7536
    %v8529 = vpack.c.b16 %v7545, %v7537
    %v8530 = vpack.c.b16 %v7554, %v7546
    %v8531 = vpack.c.b16 %v7555, %v7547
    %v8532 = vpack.c.b16 %v7556, %v7548
    %v8533 = vpack.c.b16 %v7557, %v7549
    %v8534 = vpack.c.b16 %v7558, %v7550
    %v8535 = vpack.c.b16 %v7559, %v7551
    %v8536 = vpack.c.b16 %v7560, %v7552
    %v8537 = vpack.c.b16 %v7561, %v7553
    %v8538 = vpack.c.b16 %v7570, %v7562
    %v8539 = vpack.c.b16 %v7571, %v7563
    %v8540 = vpack.c.b16 %v7572, %v7564
    %v8541 = vpack.c.b16 %v7573, %v7565
    %v8542 = vpack.c.b16 %v7574, %v7566
    %v8543 = vpack.c.b16 %v7575, %v7567
    %v8544 = vpack.c.b16 %v7576, %v7568
    %v8545 = vpack.c.b16 %v7577, %v7569
    %v8546 = vpack.c.b16 %v7586, %v7578
    %v8547 = vpack.c.b16 %v7587, %v7579
    %v8548 = vpack.c.b16 %v7588, %v7580
    %v8549 = vpack.c.b16 %v7589, %v7581
    %v8550 = vpack.c.b16 %v7590, %v7582
    %v8551 = vpack.c.b16 %v7591, %v7583
    %v8552 = vpack.c.b16 %v7592, %v7584
    %v8553 = vpack.c.b16 %v7593, %v7585
    %v8554 = vpack.c.b16 %v7602, %v7594
    %v8555 = vpack.c.b16 %v7603, %v7595
    %v8556 = vpack.c.b16 %v7604, %v7596
    %v8557 = vpack.c.b16 %v7605, %v7597
    %v8558 = vpack.c.b16 %v7606, %v7598
    %v8559 = vpack.c.b16 %v7607, %v7599
    %v8560 = vpack.c.b16 %v7608, %v7600
    %v8561 = vpack.c.b16 %v7609, %v7601
    %v8562 = vpack.c.b16 %v7618, %v7610
    %v8563 = vpack.c.b16 %v7619, %v7611
    %v8564 = vpack.c.b16 %v7620, %v7612
    %v8565 = vpack.c.b16 %v7621, %v7613
    %v8566 = vpack.c.b16 %v7622, %v7614
    %v8567 = vpack.c.b16 %v7623, %v7615
    %v8568 = vpack.c.b16 %v7624, %v7616
    %v8569 = vpack.c.b16 %v7625, %v7617
    %v8570 = vpack.c.b16 %v7634, %v7626
    %v8571 = vpack.c.b16 %v7635, %v7627
    %v8572 = vpack.c.b16 %v7636, %v7628
    %v8573 = vpack.c.b16 %v7637, %v7629
    %v8574 = vpack.c.b16 %v7638, %v7630
    %v8575 = vpack.c.b16 %v7639, %v7631
    %v8576 = vpack.c.b16 %v7640, %v7632
    %v8577 = vpack.c.b16 %v7641, %v7633
    %v8578 = vpack.c.b16 %v7650, %v7642
    %v8579 = vpack.c.b16 %v7651, %v7643
    %v8580 = vpack.c.b16 %v7652, %v7644
    %v8581 = vpack.c.b16 %v7653, %v7645
    %v8582 = vpack.c.b16 %v7654, %v7646
    %v8583 = vpack.c.b16 %v7655, %v7647
    %v8584 = vpack.c.b16 %v7656, %v7648
    %v8585 = vpack.c.b16 %v7657, %v7649
    %v8586 = vpack.c.b16 %v7666, %v7658
    %v8587 = vpack.c.b16 %v7667, %v7659
    %v8588 = vpack.c.b16 %v7668, %v7660
    %v8589 = vpack.c.b16 %v7669, %v7661
    %v8590 = vpack.c.b16 %v7670, %v7662
    %v8591 = vpack.c.b16 %v7671, %v7663
    %v8592 = vpack.c.b16 %v7672, %v7664
    %v8593 = vpack.c.b16 %v7673, %v7665
    %v8594 = vpack.c.b16 %v7682, %v7674
    %v8595 = vpack.c.b16 %v7683, %v7675
    %v8596 = vpack.c.b16 %v7684, %v7676
    %v8597 = vpack.c.b16 %v7685, %v7677
    %v8598 = vpack.c.b16 %v7686, %v7678
    %v8599 = vpack.c.b16 %v7687, %v7679
    %v8600 = vpack.c.b16 %v7688, %v7680
    %v8601 = vpack.c.b16 %v7689, %v7681
    %v8602 = vpack.c.b16 %v7698, %v7690
    %v8603 = vpack.c.b16 %v7699, %v7691
    %v8604 = vpack.c.b16 %v7700, %v7692
    %v8605 = vpack.c.b16 %v7701, %v7693
    %v8606 = vpack.c.b16 %v7702, %v7694
    %v8607 = vpack.c.b16 %v7703, %v7695
    %v8608 = vpack.c.b16 %v7704, %v7696
    %v8609 = vpack.c.b16 %v7705, %v7697
    %v8610 = vpack.c.b16 %v7714, %v7706
    %v8611 = vpack.c.b16 %v7715, %v7707
    %v8612 = vpack.c.b16 %v7716, %v7708
    %v8613 = vpack.c.b16 %v7717, %v7709
    %v8614 = vpack.c.b16 %v7718, %v7710
    %v8615 = vpack.c.b16 %v7719, %v7711
    %v8616 = vpack.c.b16 %v7720, %v7712
    %v8617 = vpack.c.b16 %v7721, %v7713
    %v8618 = vpack.c.b16 %v7730, %v7722
    %v8619 = vpack.c.b16 %v7731, %v7723
    %v8620 = vpack.c.b16 %v7732, %v7724
    %v8621 = vpack.c.b16 %v7733, %v7725
    %v8622 = vpack.c.b16 %v7734, %v7726
    %v8623 = vpack.c.b16 %v7735, %v7727
    %v8624 = vpack.c.b16 %v7736, %v7728
    %v8625 = vpack.c.b16 %v7737, %v7729
    %v8626 = vpack.c.b16 %v7746, %v7738
    %v8627 = vpack.c.b16 %v7747, %v7739
    %v8628 = vpack.c.b16 %v7748, %v7740
    %v8629 = vpack.c.b16 %v7749, %v7741
    %v8630 = vpack.c.b16 %v7750, %v7742
    %v8631 = vpack.c.b16 %v7751, %v7743
    %v8632 = vpack.c.b16 %v7752, %v7744
    %v8633 = vpack.c.b16 %v7753, %v7745
    %v8634 = vpack.c.b16 %v7762, %v7754
    %v8635 = vpack.c.b16 %v7763, %v7755
    %v8636 = vpack.c.b16 %v7764, %v7756
    %v8637 = vpack.c.b16 %v7765, %v7757
    %v8638 = vpack.c.b16 %v7766, %v7758
    %v8639 = vpack.c.b16 %v7767, %v7759
    %v8640 = vpack.c.b16 %v7768, %v7760
    %v8641 = vpack.c.b16 %v7769, %v7761
    %v8642 = vpack.c.b16 %v7778, %v7770
    %v8643 = vpack.c.b16 %v7779, %v7771
    %v8644 = vpack.c.b16 %v7780, %v7772
    %v8645 = vpack.c.b16 %v7781, %v7773
    %v8646 = vpack.c.b16 %v7782, %v7774
    %v8647 = vpack.c.b16 %v7783, %v7775
    %v8648 = vpack.c.b16 %v7784, %v7776
    %v8649 = vpack.c.b16 %v7785, %v7777
    %v8650 = vpack.c.b16 %v7794, %v7786
    %v8651 = vpack.c.b16 %v7795, %v7787
    %v8652 = vpack.c.b16 %v7796, %v7788
    %v8653 = vpack.c.b16 %v7797, %v7789
    %v8654 = vpack.c.b16 %v7798, %v7790
    %v8655 = vpack.c.b16 %v7799, %v7791
    %v8656 = vpack.c.b16 %v7800, %v7792
    %v8657 = vpack.c.b16 %v7801, %v7793
    %v8658 = vpack.c.b16 %v7810, %v7802
    %v8659 = vpack.c.b16 %v7811, %v7803
    %v8660 = vpack.c.b16 %v7812, %v7804
    %v8661 = vpack.c.b16 %v7813, %v7805
    %v8662 = vpack.c.b16 %v7814, %v7806
    %v8663 = vpack.c.b16 %v7815, %v7807
    %v8664 = vpack.c.b16 %v7816, %v7808
    %v8665 = vpack.c.b16 %v7817, %v7809
    %v8666 = vpack.c.b16 %v7826, %v7818
    %v8667 = vpack.c.b16 %v7827, %v7819
    %v8668 = vpack.c.b16 %v7828, %v7820
    %v8669 = vpack.c.b16 %v7829, %v7821
    %v8670 = vpack.c.b16 %v7830, %v7822
    %v8671 = vpack.c.b16 %v7831, %v7823
    %v8672 = vpack.c.b16 %v7832, %v7824
    %v8673 = vpack.c.b16 %v7833, %v7825
    %v8674 = vpack.c.b16 %v7842, %v7834
    %v8675 = vpack.c.b16 %v7843, %v7835
    %v8676 = vpack.c.b16 %v7844, %v7836
    %v8677 = vpack.c.b16 %v7845, %v7837
    %v8678 = vpack.c.b16 %v7846, %v7838
    %v8679 = vpack.c.b16 %v7847, %v7839
    %v8680 = vpack.c.b16 %v7848, %v7840
    %v8681 = vpack.c.b16 %v7849, %v7841
    %v8682 = vpack.c.b16 %v7858, %v7850
    %v8683 = vpack.c.b16 %v7859, %v7851
    %v8684 = vpack.c.b16 %v7860, %v7852
    %v8685 = vpack.c.b16 %v7861, %v7853
    %v8686 = vpack.c.b16 %v7862, %v7854
    %v8687 = vpack.c.b16 %v7863, %v7855
    %v8688 = vpack.c.b16 %v7864, %v7856
    %v8689 = vpack.c.b16 %v7865, %v7857
    %v8690 = vpack.c.b16 %v7874, %v7866
    %v8691 = vpack.c.b16 %v7875, %v7867
    %v8692 = vpack.c.b16 %v7876, %v7868
    %v8693 = vpack.c.b16 %v7877, %v7869
    %v8694 = vpack.c.b16 %v7878, %v7870
    %v8695 = vpack.c.b16 %v7879, %v7871
    %v8696 = vpack.c.b16 %v7880, %v7872
    %v8697 = vpack.c.b16 %v7881, %v7873
    %v8698 = vpack.c.b16 %v7890, %v7882
    %v8699 = vpack.c.b16 %v7891, %v7883
    %v8700 = vpack.c.b16 %v7892, %v7884
    %v8701 = vpack.c.b16 %v7893, %v7885
    %v8702 = vpack.c.b16 %v7894, %v7886
    %v8703 = vpack.c.b16 %v7895, %v7887
    %v8704 = vpack.c.b16 %v7896, %v7888
    %v8705 = vpack.c.b16 %v7897, %v7889
    %v8706 = vpack.c.b16 %v7906, %v7898
    %v8707 = vpack.c.b16 %v7907, %v7899
    %v8708 = vpack.c.b16 %v7908, %v7900
    %v8709 = vpack.c.b16 %v7909, %v7901
    %v8710 = vpack.c.b16 %v7910, %v7902
    %v8711 = vpack.c.b16 %v7911, %v7903
    %v8712 = vpack.c.b16 %v7912, %v7904
    %v8713 = vpack.c.b16 %v7913, %v7905
    %v8714 = vpack.c.b16 %v7922, %v7914
    %v8715 = vpack.c.b16 %v7923, %v7915
    %v8716 = vpack.c.b16 %v7924, %v7916
    %v8717 = vpack.c.b16 %v7925, %v7917
    %v8718 = vpack.c.b16 %v7926, %v7918
    %v8719 = vpack.c.b16 %v7927, %v7919
    %v8720 = vpack.c.b16 %v7928, %v7920
    %v8721 = vpack.c.b16 %v7929, %v7921
    %v8722 = vpack.c.b16 %v7938, %v7930
    %v8723 = vpack.c.b16 %v7939, %v7931
    %v8724 = vpack.c.b16 %v7940, %v7932
    %v8725 = vpack.c.b16 %v7941, %v7933
    %v8726 = vpack.c.b16 %v7942, %v7934
    %v8727 = vpack.c.b16 %v7943, %v7935
    %v8728 = vpack.c.b16 %v7944, %v7936
    %v8729 = vpack.c.b16 %v7945, %v7937
    %v8730 = vpack.c.b16 %v7954, %v7946
    %v8731 = vpack.c.b16 %v7955, %v7947
    %v8732 = vpack.c.b16 %v7956, %v7948
    %v8733 = vpack.c.b16 %v7957, %v7949
    %v8734 = vpack.c.b16 %v7958, %v7950
    %v8735 = vpack.c.b16 %v7959, %v7951
    %v8736 = vpack.c.b16 %v7960, %v7952
    %v8737 = vpack.c.b16 %v7961, %v7953
    %v8738 = vpack.c.b16 %v7970, %v7962
    %v8739 = vpack.c.b16 %v7971, %v7963
    %v8740 = vpack.c.b16 %v7972, %v7964
    %v8741 = vpack.c.b16 %v7973, %v7965
    %v8742 = vpack.c.b16 %v7974, %v7966
    %v8743 = vpack.c.b16 %v7975, %v7967
    %v8744 = vpack.c.b16 %v7976, %v7968
    %v8745 = vpack.c.b16 %v7977, %v7969
    %v8746 = vpack.c.b16 %v7986, %v7978
    %v8747 = vpack.c.b16 %v7987, %v7979
    %v8748 = vpack.c.b16 %v7988, %v7980
    %v8749 = vpack.c.b16 %v7989, %v7981
    %v8750 = vpack.c.b16 %v7990, %v7982
    %v8751 = vpack.c.b16 %v7991, %v7983
    %v8752 = vpack.c.b16 %v7992, %v7984
    %v8753 = vpack.c.b16 %v7993, %v7985
    %v8754 = vpack.c.b16 %v8002, %v7994
    %v8755 = vpack.c.b16 %v8003, %v7995
    %v8756 = vpack.c.b16 %v8004, %v7996
    %v8757 = vpack.c.b16 %v8005, %v7997
    %v8758 = vpack.c.b16 %v8006, %v7998
    %v8759 = vpack.c.b16 %v8007, %v7999
    %v8760 = vpack.c.b16 %v8008, %v8000
    %v8761 = vpack.c.b16 %v8009, %v8001
    %v8762 = vpack.c.b16 %v8018, %v8010
    %v8763 = vpack.c.b16 %v8019, %v8011
    %v8764 = vpack.c.b16 %v8020, %v8012
    %v8765 = vpack.c.b16 %v8021, %v8013
    %v8766 = vpack.c.b16 %v8022, %v8014
    %v8767 = vpack.c.b16 %v8023, %v8015
    %v8768 = vpack.c.b16 %v8024, %v8016
    %v8769 = vpack.c.b16 %v8025, %v8017
    %v8770 = vpack.c.b16 %v8034, %v8026
    %v8771 = vpack.c.b16 %v8035, %v8027
    %v8772 = vpack.c.b16 %v8036, %v8028
    %v8773 = vpack.c.b16 %v8037, %v8029
    %v8774 = vpack.c.b16 %v8038, %v8030
    %v8775 = vpack.c.b16 %v8039, %v8031
    %v8776 = vpack.c.b16 %v8040, %v8032
    %v8777 = vpack.c.b16 %v8041, %v8033
    %v8778 = vpack.c.b16 %v8050, %v8042
    %v8779 = vpack.c.b16 %v8051, %v8043
    %v8780 = vpack.c.b16 %v8052, %v8044
    %v8781 = vpack.c.b16 %v8053, %v8045
    %v8782 = vpack.c.b16 %v8054, %v8046
    %v8783 = vpack.c.b16 %v8055, %v8047
    %v8784 = vpack.c.b16 %v8056, %v8048
    %v8785 = vpack.c.b16 %v8057, %v8049
    %v8786 = vpack.c.b16 %v8066, %v8058
    %v8787 = vpack.c.b16 %v8067, %v8059
    %v8788 = vpack.c.b16 %v8068, %v8060
    %v8789 = vpack.c.b16 %v8069, %v8061
    %v8790 = vpack.c.b16 %v8070, %v8062
    %v8791 = vpack.c.b16 %v8071, %v8063
    %v8792 = vpack.c.b16 %v8072, %v8064
    %v8793 = vpack.c.b16 %v8073, %v8065
    %v8794 = vpack.c.b16 %v8082, %v8074
    %v8795 = vpack.c.b16 %v8083, %v8075
    %v8796 = vpack.c.b16 %v8084, %v8076
    %v8797 = vpack.c.b16 %v8085, %v8077
    %v8798 = vpack.c.b16 %v8086, %v8078
    %v8799 = vpack.c.b16 %v8087, %v8079
    %v8800 = vpack.c.b16 %v8088, %v8080
    %v8801 = vpack.c.b16 %v8089, %v8081
    %v8802 = vpack.c.b16 %v8098, %v8090
    %v8803 = vpack.c.b16 %v8099, %v8091
    %v8804 = vpack.c.b16 %v8100, %v8092
    %v8805 = vpack.c.b16 %v8101, %v8093
    %v8806 = vpack.c.b16 %v8102, %v8094
    %v8807 = vpack.c.b16 %v8103, %v8095
    %v8808 = vpack.c.b16 %v8104, %v8096
    %v8809 = vpack.c.b16 %v8105, %v8097
    %v8810 = vpack.c.b16 %v8114, %v8106
    %v8811 = vpack.c.b16 %v8115, %v8107
    %v8812 = vpack.c.b16 %v8116, %v8108
    %v8813 = vpack.c.b16 %v8117, %v8109
    %v8814 = vpack.c.b16 %v8118, %v8110
    %v8815 = vpack.c.b16 %v8119, %v8111
    %v8816 = vpack.c.b16 %v8120, %v8112
    %v8817 = vpack.c.b16 %v8121, %v8113
    %v8818 = vpack.c.b16 %v8130, %v8122
    %v8819 = vpack.c.b16 %v8131, %v8123
    %v8820 = vpack.c.b16 %v8132, %v8124
    %v8821 = vpack.c.b16 %v8133, %v8125
    %v8822 = vpack.c.b16 %v8134, %v8126
    %v8823 = vpack.c.b16 %v8135, %v8127
    %v8824 = vpack.c.b16 %v8136, %v8128
    %v8825 = vpack.c.b16 %v8137, %v8129
    %v8826 = vpack.c.b16 %v8146, %v8138
    %v8827 = vpack.c.b16 %v8147, %v8139
    %v8828 = vpack.c.b16 %v8148, %v8140
    %v8829 = vpack.c.b16 %v8149, %v8141
    %v8830 = vpack.c.b16 %v8150, %v8142
    %v8831 = vpack.c.b16 %v8151, %v8143
    %v8832 = vpack.c.b16 %v8152, %v8144
    %v8833 = vpack.c.b16 %v8153, %v8145
    %v8834 = vpack.c.b16 %v8162, %v8154
    %v8835 = vpack.c.b16 %v8163, %v8155
    %v8836 = vpack.c.b16 %v8164, %v8156
    %v8837 = vpack.c.b16 %v8165, %v8157
    %v8838 = vpack.c.b16 %v8166, %v8158
    %v8839 = vpack.c.b16 %v8167, %v8159
    %v8840 = vpack.c.b16 %v8168, %v8160
    %v8841 = vpack.c.b16 %v8169, %v8161
    %v8842 = vpack.c.b16 %v8178, %v8170
    %v8843 = vpack.c.b16 %v8179, %v8171
    %v8844 = vpack.c.b16 %v8180, %v8172
    %v8845 = vpack.c.b16 %v8181, %v8173
    %v8846 = vpack.c.b16 %v8182, %v8174
    %v8847 = vpack.c.b16 %v8183, %v8175
    %v8848 = vpack.c.b16 %v8184, %v8176
    %v8849 = vpack.c.b16 %v8185, %v8177
    %v8850 = vpack.c.b16 %v8194, %v8186
    %v8851 = vpack.c.b16 %v8195, %v8187
    %v8852 = vpack.c.b16 %v8196, %v8188
    %v8853 = vpack.c.b16 %v8197, %v8189
    %v8854 = vpack.c.b16 %v8198, %v8190
    %v8855 = vpack.c.b16 %v8199, %v8191
    %v8856 = vpack.c.b16 %v8200, %v8192
    %v8857 = vpack.c.b16 %v8201, %v8193
    %v8858 = vpack.c.b16 %v8210, %v8202
    %v8859 = vpack.c.b16 %v8211, %v8203
    %v8860 = vpack.c.b16 %v8212, %v8204
    %v8861 = vpack.c.b16 %v8213, %v8205
    %v8862 = vpack.c.b16 %v8214, %v8206
    %v8863 = vpack.c.b16 %v8215, %v8207
    %v8864 = vpack.c.b16 %v8216, %v8208
    %v8865 = vpack.c.b16 %v8217, %v8209
    %v8866 = vpack.c.b16 %v8226, %v8218
    %v8867 = vpack.c.b16 %v8227, %v8219
    %v8868 = vpack.c.b16 %v8228, %v8220
    %v8869 = vpack.c.b16 %v8229, %v8221
    %v8870 = vpack.c.b16 %v8230, %v8222
    %v8871 = vpack.c.b16 %v8231, %v8223
    %v8872 = vpack.c.b16 %v8232, %v8224
    %v8873 = vpack.c.b16 %v8233, %v8225
    %v8874 = vpack.c.b16 %v8242, %v8234
    %v8875 = vpack.c.b16 %v8243, %v8235
    %v8876 = vpack.c.b16 %v8244, %v8236
    %v8877 = vpack.c.b16 %v8245, %v8237
    %v8878 = vpack.c.b16 %v8246, %v8238
    %v8879 = vpack.c.b16 %v8247, %v8239
    %v8880 = vpack.c.b16 %v8248, %v8240
    %v8881 = vpack.c.b16 %v8249, %v8241
    %v8882 = vpack.c.b16 %v8258, %v8250
    %v8883 = vpack.c.b16 %v8259, %v8251
    %v8884 = vpack.c.b16 %v8260, %v8252
    %v8885 = vpack.c.b16 %v8261, %v8253
    %v8886 = vpack.c.b16 %v8262, %v8254
    %v8887 = vpack.c.b16 %v8263, %v8255
    %v8888 = vpack.c.b16 %v8264, %v8256
    %v8889 = vpack.c.b16 %v8265, %v8257
    %v8890 = vpack.c.b16 %v8274, %v8266
    %v8891 = vpack.c.b16 %v8275, %v8267
    %v8892 = vpack.c.b16 %v8276, %v8268
    %v8893 = vpack.c.b16 %v8277, %v8269
    %v8894 = vpack.c.b16 %v8278, %v8270
    %v8895 = vpack.c.b16 %v8279, %v8271
    %v8896 = vpack.c.b16 %v8280, %v8272
    %v8897 = vpack.c.b16 %v8281, %v8273
    %v8898 = vpack.c.b16 %v8290, %v8282
    %v8899 = vpack.c.b16 %v8291, %v8283
    %v8900 = vpack.c.b16 %v8292, %v8284
    %v8901 = vpack.c.b16 %v8293, %v8285
    %v8902 = vpack.c.b16 %v8294, %v8286
    %v8903 = vpack.c.b16 %v8295, %v8287
    %v8904 = vpack.c.b16 %v8296, %v8288
    %v8905 = vpack.c.b16 %v8297, %v8289
    %v8906 = vpack.c.b16 %v8306, %v8298
    %v8907 = vpack.c.b16 %v8307, %v8299
    %v8908 = vpack.c.b16 %v8308, %v8300
    %v8909 = vpack.c.b16 %v8309, %v8301
    %v8910 = vpack.c.b16 %v8310, %v8302
    %v8911 = vpack.c.b16 %v8311, %v8303
    %v8912 = vpack.c.b16 %v8312, %v8304
    %v8913 = vpack.c.b16 %v8313, %v8305
    %v8914 = vpack.c.b16 %v8322, %v8314
    %v8915 = vpack.c.b16 %v8323, %v8315
    %v8916 = vpack.c.b16 %v8324, %v8316
    %v8917 = vpack.c.b16 %v8325, %v8317
    %v8918 = vpack.c.b16 %v8326, %v8318
    %v8919 = vpack.c.b16 %v8327, %v8319
    %v8920 = vpack.c.b16 %v8328, %v8320
    %v8921 = vpack.c.b16 %v8329, %v8321
    %v8922 = vpack.c.b16 %v8338, %v8330
    %v8923 = vpack.c.b16 %v8339, %v8331
    %v8924 = vpack.c.b16 %v8340, %v8332
    %v8925 = vpack.c.b16 %v8341, %v8333
    %v8926 = vpack.c.b16 %v8342, %v8334
    %v8927 = vpack.c.b16 %v8343, %v8335
    %v8928 = vpack.c.b16 %v8344, %v8336
    %v8929 = vpack.c.b16 %v8345, %v8337
    %v8930 = vpack.c.b16 %v8354, %v8346
    %v8931 = vpack.c.b16 %v8355, %v8347
    %v8932 = vpack.c.b16 %v8356, %v8348
    %v8933 = vpack.c.b16 %v8357, %v8349
    %v8934 = vpack.c.b16 %v8358, %v8350
    %v8935 = vpack.c.b16 %v8359, %v8351
    %v8936 = vpack.c.b16 %v8360, %v8352
    %v8937 = vpack.c.b16 %v8361, %v8353
    %v8938 = vpack.c.b16 %v8370, %v8362
    %v8939 = vpack.c.b16 %v8371, %v8363
    %v8940 = vpack.c.b16 %v8372, %v8364
    %v8941 = vpack.c.b16 %v8373, %v8365
    %v8942 = vpack.c.b16 %v8374, %v8366
    %v8943 = vpack.c.b16 %v8375, %v8367
    %v8944 = vpack.c.b16 %v8376, %v8368
    %v8945 = vpack.c.b16 %v8377, %v8369
    %v8946 = vpack.c.b16 %v8386, %v8378
    %v8947 = vpack.c.b16 %v8387, %v8379
    %v8948 = vpack.c.b16 %v8388, %v8380
    %v8949 = vpack.c.b16 %v8389, %v8381
    %v8950 = vpack.c.b16 %v8390, %v8382
    %v8951 = vpack.c.b16 %v8391, %v8383
    %v8952 = vpack.c.b16 %v8392, %v8384
    %v8953 = vpack.c.b16 %v8393, %v8385
    %v8954 = vpack.c.b16 %v8402, %v8394
    %v8955 = vpack.c.b16 %v8403, %v8395
    %v8956 = vpack.c.b16 %v8404, %v8396
    %v8957 = vpack.c.b16 %v8405, %v8397
    %v8958 = vpack.c.b16 %v8406, %v8398
    %v8959 = vpack.c.b16 %v8407, %v8399
    %v8960 = vpack.c.b16 %v8408, %v8400
    %v8961 = vpack.c.b16 %v8409, %v8401
    %v8962 = vpack.c.b16 %v8418, %v8410
    %v8963 = vpack.c.b16 %v8419, %v8411
    %v8964 = vpack.c.b16 %v8420, %v8412
    %v8965 = vpack.c.b16 %v8421, %v8413
    %v8966 = vpack.c.b16 %v8422, %v8414
    %v8967 = vpack.c.b16 %v8423, %v8415
    %v8968 = vpack.c.b16 %v8424, %v8416
    %v8969 = vpack.c.b16 %v8425, %v8417
    %v8970 = vpack.c.b16 %v8434, %v8426
    %v8971 = vpack.c.b16 %v8435, %v8427
    %v8972 = vpack.c.b16 %v8436, %v8428
    %v8973 = vpack.c.b16 %v8437, %v8429
    %v8974 = vpack.c.b16 %v8438, %v8430
    %v8975 = vpack.c.b16 %v8439, %v8431
    %v8976 = vpack.c.b16 %v8440, %v8432
    %v8977 = vpack.c.b16 %v8441, %v8433
    %v8978 = vpack.c.b16 %v8450, %v8442
    %v8979 = vpack.c.b16 %v8451, %v8443
    %v8980 = vpack.c.b16 %v8452, %v8444
    %v8981 = vpack.c.b16 %v8453, %v8445
    %v8982 = vpack.c.b16 %v8454, %v8446
    %v8983 = vpack.c.b16 %v8455, %v8447
    %v8984 = vpack.c.b16 %v8456, %v8448
    %v8985 = vpack.c.b16 %v8457, %v8449
    %v8986 = vpack.c.b16 %v8466, %v8458
    %v8987 = vpack.c.b16 %v8467, %v8459
    %v8988 = vpack.c.b16 %v8468, %v8460
    %v8989 = vpack.c.b16 %v8469, %v8461
    %v8990 = vpack.c.b16 %v8470, %v8462
    %v8991 = vpack.c.b16 %v8471, %v8463
    %v8992 = vpack.c.b16 %v8472, %v8464
    %v8993 = vpack.c.b16 %v8473, %v8465
    %v8994 = vpack.c.b16 %v8482, %v8474
    %v8995 = vpack.c.b16 %v8483, %v8475
    %v8996 = vpack.c.b16 %v8484, %v8476
    %v8997 = vpack.c.b16 %v8485, %v8477
    %v8998 = vpack.c.b16 %v8486, %v8478
    %v8999 = vpack.c.b16 %v8487, %v8479
    %v9000 = vpack.c.b16 %v8488, %v8480
    %v9001 = vpack.c.b16 %v8489, %v8481
    %9514 = vmatprep.subr.bf16.mxu0 %v8491
    %9515 = vmatpush1.bf16.msra.mxu0 %v8490
    %9516 = vmatprep.subr.bf16.mxu0 %v8499
    %9517 = vmatpush1.bf16.msra.mxu0 %v8498
    %9518 = vmatprep.subr.bf16.mxu0 %v8507
    %9519 = vmatpush1.bf16.msra.mxu0 %v8506
    %9520 = vmatprep.subr.bf16.mxu0 %v8515
    %9521 = vmatpush1.bf16.msra.mxu0 %v8514
    %9522 = vmatprep.subr.bf16.mxu0 %v8523
    %9523 = vmatpush1.bf16.msra.mxu0 %v8522
    %9524 = vmatprep.subr.bf16.mxu0 %v8531
    %9525 = vmatpush1.bf16.msra.mxu0 %v8530
    %9526 = vmatprep.subr.bf16.mxu0 %v8539
    %9527 = vmatpush1.bf16.msra.mxu0 %v8538
    %9528 = vmatprep.subr.bf16.mxu0 %v8547
    %9529 = vmatpush1.bf16.msra.mxu0 %v8546
    %9530 = vmatprep.subr.bf16.mxu0 %v8555
    %9531 = vmatpush1.bf16.msra.mxu0 %v8554
    %9532 = vmatprep.subr.bf16.mxu0 %v8563
    %9533 = vmatpush1.bf16.msra.mxu0 %v8562
    %9534 = vmatprep.subr.bf16.mxu0 %v8571
    %9535 = vmatpush1.bf16.msra.mxu0 %v8570
    %9536 = vmatprep.subr.bf16.mxu0 %v8579
    %9537 = vmatpush1.bf16.msra.mxu0 %v8578
    %9538 = vmatprep.subr.bf16.mxu0 %v8587
    %9539 = vmatpush1.bf16.msra.mxu0 %v8586
    %9540 = vmatprep.subr.bf16.mxu0 %v8595
    %9541 = vmatpush1.bf16.msra.mxu0 %v8594
    %9542 = vmatprep.subr.bf16.mxu0 %v8603
    %9543 = vmatpush1.bf16.msra.mxu0 %v8602
    %9544 = vmatprep.subr.bf16.mxu0 %v8611
    %9545 = vmatpush1.bf16.msra.mxu0 %v8610
    %9546 = vmatprep.mubr.bf16.mxu0 %v6393
    %9547 = vmatmul.mubr.bf16.gmra.mrb[0].mxu0 %v6392
    %v9548 = vpop.f32.mrb[0].mxu0
    %v9549 = vadd.f32 %v6917, %v9548
    %v9550 = vpop.f32.mrb[0].mxu0
    %v9551 = vadd.f32 %v6921, %v9550
    %v9552 = vpop.f32.mrb[0].mxu0
    %v9553 = vpop.f32.mrb[0].mxu0
    %9554 = vdwg.mxu0
    %9555 = vmatprep.subr.bf16.mxu0 %v8619
    %9556 = vmatpush1.bf16.msra.mxu0 %v8618
    %9557 = vmatprep.subr.bf16.mxu0 %v8627
    %9558 = vmatpush1.bf16.msra.mxu0 %v8626
    %9559 = vmatprep.subr.bf16.mxu0 %v8635
    %9560 = vmatpush1.bf16.msra.mxu0 %v8634
    %9561 = vmatprep.subr.bf16.mxu0 %v8643
    %9562 = vmatpush1.bf16.msra.mxu0 %v8642
    %9563 = vmatprep.subr.bf16.mxu0 %v8651
    %9564 = vmatpush1.bf16.msra.mxu0 %v8650
    %9565 = vmatprep.subr.bf16.mxu0 %v8659
    %9566 = vmatpush1.bf16.msra.mxu0 %v8658
    %9567 = vmatprep.subr.bf16.mxu0 %v8667
    %9568 = vmatpush1.bf16.msra.mxu0 %v8666
    %9569 = vmatprep.subr.bf16.mxu0 %v8675
    %9570 = vmatpush1.bf16.msra.mxu0 %v8674
    %9571 = vmatprep.subr.bf16.mxu0 %v8683
    %9572 = vmatpush1.bf16.msra.mxu0 %v8682
    %9573 = vmatprep.subr.bf16.mxu0 %v8691
    %9574 = vmatpush1.bf16.msra.mxu0 %v8690
    %9575 = vmatprep.subr.bf16.mxu0 %v8699
    %9576 = vmatpush1.bf16.msra.mxu0 %v8698
    %9577 = vmatprep.subr.bf16.mxu0 %v8707
    %9578 = vmatpush1.bf16.msra.mxu0 %v8706
    %9579 = vmatprep.subr.bf16.mxu0 %v8715
    %9580 = vmatpush1.bf16.msra.mxu0 %v8714
    %9581 = vmatprep.subr.bf16.mxu0 %v8723
    %9582 = vmatpush1.bf16.msra.mxu0 %v8722
    %9583 = vmatprep.subr.bf16.mxu0 %v8731
    %9584 = vmatpush1.bf16.msra.mxu0 %v8730
    %9585 = vmatprep.subr.bf16.mxu0 %v8739
    %9586 = vmatpush1.bf16.msra.mxu0 %v8738
    %9587 = vmatprep.mubr.bf16.mxu0 %v6395
    %9588 = vmatmul.mubr.bf16.gmra.mrb[0].mxu0 %v6394
    %v9589 = vpop.f32.mrb[0].mxu0
    %v9590 = vadd.f32 %v9549, %v9589
    %v9591 = vpop.f32.mrb[0].mxu0
    %v9592 = vadd.f32 %v9551, %v9591
    %v9593 = vpop.f32.mrb[0].mxu0
    %v9594 = vpop.f32.mrb[0].mxu0
    %9595 = vdwg.mxu0
    %9596 = vmatprep.subr.bf16.mxu0 %v8747
    %9597 = vmatpush1.bf16.msra.mxu0 %v8746
    %9598 = vmatprep.subr.bf16.mxu0 %v8755
    %9599 = vmatpush1.bf16.msra.mxu0 %v8754
    %9600 = vmatprep.subr.bf16.mxu0 %v8763
    %9601 = vmatpush1.bf16.msra.mxu0 %v8762
    %9602 = vmatprep.subr.bf16.mxu0 %v8771
    %9603 = vmatpush1.bf16.msra.mxu0 %v8770
    %9604 = vmatprep.subr.bf16.mxu0 %v8779
    %9605 = vmatpush1.bf16.msra.mxu0 %v8778
    %9606 = vmatprep.subr.bf16.mxu0 %v8787
    %9607 = vmatpush1.bf16.msra.mxu0 %v8786
    %9608 = vmatprep.subr.bf16.mxu0 %v8795
    %9609 = vmatpush1.bf16.msra.mxu0 %v8794
    %9610 = vmatprep.subr.bf16.mxu0 %v8803
    %9611 = vmatpush1.bf16.msra.mxu0 %v8802
    %9612 = vmatprep.subr.bf16.mxu0 %v8811
    %9613 = vmatpush1.bf16.msra.mxu0 %v8810
    %9614 = vmatprep.subr.bf16.mxu0 %v8819
    %9615 = vmatpush1.bf16.msra.mxu0 %v8818
    %9616 = vmatprep.subr.bf16.mxu0 %v8827
    %9617 = vmatpush1.bf16.msra.mxu0 %v8826
    %9618 = vmatprep.subr.bf16.mxu0 %v8835
    %9619 = vmatpush1.bf16.msra.mxu0 %v8834
    %9620 = vmatprep.subr.bf16.mxu0 %v8843
    %9621 = vmatpush1.bf16.msra.mxu0 %v8842
    %9622 = vmatprep.subr.bf16.mxu0 %v8851
    %9623 = vmatpush1.bf16.msra.mxu0 %v8850
    %9624 = vmatprep.subr.bf16.mxu0 %v8859
    %9625 = vmatpush1.bf16.msra.mxu0 %v8858
    %9626 = vmatprep.subr.bf16.mxu0 %v8867
    %9627 = vmatpush1.bf16.msra.mxu0 %v8866
    %9628 = vmatprep.mubr.bf16.mxu0 %v6397
    %9629 = vmatmul.mubr.bf16.gmra.mrb[0].mxu0 %v6396
    %v9630 = vpop.f32.mrb[0].mxu0
    %v9631 = vadd.f32 %v9590, %v9630
    %v9632 = vpop.f32.mrb[0].mxu0
    %v9633 = vadd.f32 %v9592, %v9632
    %v9634 = vpop.f32.mrb[0].mxu0
    %v9635 = vpop.f32.mrb[0].mxu0
    %9636 = vdwg.mxu0
    %9637 = vmatprep.subr.bf16.mxu0 %v8875
    %9638 = vmatpush1.bf16.msra.mxu0 %v8874
    %9639 = vmatprep.subr.bf16.mxu0 %v8883
    %9640 = vmatpush1.bf16.msra.mxu0 %v8882
    %9641 = vmatprep.subr.bf16.mxu0 %v8891
    %9642 = vmatpush1.bf16.msra.mxu0 %v8890
    %9643 = vmatprep.subr.bf16.mxu0 %v8899
    %9644 = vmatpush1.bf16.msra.mxu0 %v8898
    %9645 = vmatprep.subr.bf16.mxu0 %v8907
    %9646 = vmatpush1.bf16.msra.mxu0 %v8906
    %9647 = vmatprep.subr.bf16.mxu0 %v8915
    %9648 = vmatpush1.bf16.msra.mxu0 %v8914
    %9649 = vmatprep.subr.bf16.mxu0 %v8923
    %9650 = vmatpush1.bf16.msra.mxu0 %v8922
    %9651 = vmatprep.subr.bf16.mxu0 %v8931
    %9652 = vmatpush1.bf16.msra.mxu0 %v8930
    %9653 = vmatprep.subr.bf16.mxu0 %v8939
    %9654 = vmatpush1.bf16.msra.mxu0 %v8938
    %9655 = vmatprep.subr.bf16.mxu0 %v8947
    %9656 = vmatpush1.bf16.msra.mxu0 %v8946
    %9657 = vmatprep.subr.bf16.mxu0 %v8955
    %9658 = vmatpush1.bf16.msra.mxu0 %v8954
    %9659 = vmatprep.subr.bf16.mxu0 %v8963
    %9660 = vmatpush1.bf16.msra.mxu0 %v8962
    %9661 = vmatprep.subr.bf16.mxu0 %v8971
    %9662 = vmatpush1.bf16.msra.mxu0 %v8970
    %9663 = vmatprep.subr.bf16.mxu0 %v8979
    %9664 = vmatpush1.bf16.msra.mxu0 %v8978
    %9665 = vmatprep.subr.bf16.mxu0 %v8987
    %9666 = vmatpush1.bf16.msra.mxu0 %v8986
    %9667 = vmatprep.subr.bf16.mxu0 %v8995
    %9668 = vmatpush1.bf16.msra.mxu0 %v8994
    %9669 = vmatprep.mubr.bf16.mxu0 %v6399
    %9670 = vmatmul.mubr.bf16.gmra.mrb[0].mxu0 %v6398
    %v9671 = vpop.f32.mrb[0].mxu0
    %v9672 = vadd.f32 %v9631, %v9671
    %v9673 = vpop.f32.mrb[0].mxu0
    %v9674 = vadd.f32 %v9633, %v9673
    %v9675 = vpop.f32.mrb[0].mxu0
    %v9676 = vpop.f32.mrb[0].mxu0
    %9677 = vdwg.mxu0
    %9678 = vmatprep.subr.bf16.mxu0 %v8493
    %9679 = vmatpush1.bf16.msra.mxu0 %v8492
    %9680 = vmatprep.subr.bf16.mxu0 %v8501
    %9681 = vmatpush1.bf16.msra.mxu0 %v8500
    %9682 = vmatprep.subr.bf16.mxu0 %v8509
    %9683 = vmatpush1.bf16.msra.mxu0 %v8508
    %9684 = vmatprep.subr.bf16.mxu0 %v8517
    %9685 = vmatpush1.bf16.msra.mxu0 %v8516
    %9686 = vmatprep.subr.bf16.mxu0 %v8525
    %9687 = vmatpush1.bf16.msra.mxu0 %v8524
    %9688 = vmatprep.subr.bf16.mxu0 %v8533
    %9689 = vmatpush1.bf16.msra.mxu0 %v8532
    %9690 = vmatprep.subr.bf16.mxu0 %v8541
    %9691 = vmatpush1.bf16.msra.mxu0 %v8540
    %9692 = vmatprep.subr.bf16.mxu0 %v8549
    %9693 = vmatpush1.bf16.msra.mxu0 %v8548
    %9694 = vmatprep.subr.bf16.mxu0 %v8557
    %9695 = vmatpush1.bf16.msra.mxu0 %v8556
    %9696 = vmatprep.subr.bf16.mxu0 %v8565
    %9697 = vmatpush1.bf16.msra.mxu0 %v8564
    %9698 = vmatprep.subr.bf16.mxu0 %v8573
    %9699 = vmatpush1.bf16.msra.mxu0 %v8572
    %9700 = vmatprep.subr.bf16.mxu0 %v8581
    %9701 = vmatpush1.bf16.msra.mxu0 %v8580
    %9702 = vmatprep.subr.bf16.mxu0 %v8589
    %9703 = vmatpush1.bf16.msra.mxu0 %v8588
    %9704 = vmatprep.subr.bf16.mxu0 %v8597
    %9705 = vmatpush1.bf16.msra.mxu0 %v8596
    %9706 = vmatprep.subr.bf16.mxu0 %v8605
    %9707 = vmatpush1.bf16.msra.mxu0 %v8604
    %9708 = vmatprep.subr.bf16.mxu0 %v8613
    %9709 = vmatpush1.bf16.msra.mxu0 %v8612
    %9710 = vmatprep.mubr.bf16.mxu0 %v6393
    %9711 = vmatmul.mubr.bf16.gmra.mrb[0].mxu0 %v6392
    %v9712 = vpop.f32.mrb[0].mxu0
    %v9713 = vadd.f32 %v6925, %v9712
    %v9714 = vpop.f32.mrb[0].mxu0
    %v9715 = vadd.f32 %v6929, %v9714
    %v9716 = vpop.f32.mrb[0].mxu0
    %v9717 = vpop.f32.mrb[0].mxu0
    %9718 = vdwg.mxu0
    %9719 = vmatprep.subr.bf16.mxu0 %v8621
    %9720 = vmatpush1.bf16.msra.mxu0 %v8620
    %9721 = vmatprep.subr.bf16.mxu0 %v8629
    %9722 = vmatpush1.bf16.msra.mxu0 %v8628
    %9723 = vmatprep.subr.bf16.mxu0 %v8637
    %9724 = vmatpush1.bf16.msra.mxu0 %v8636
    %9725 = vmatprep.subr.bf16.mxu0 %v8645
    %9726 = vmatpush1.bf16.msra.mxu0 %v8644
    %9727 = vmatprep.subr.bf16.mxu0 %v8653
    %9728 = vmatpush1.bf16.msra.mxu0 %v8652
    %9729 = vmatprep.subr.bf16.mxu0 %v8661
    %9730 = vmatpush1.bf16.msra.mxu0 %v8660
    %9731 = vmatprep.subr.bf16.mxu0 %v8669
    %9732 = vmatpush1.bf16.msra.mxu0 %v8668
    %9733 = vmatprep.subr.bf16.mxu0 %v8677
    %9734 = vmatpush1.bf16.msra.mxu0 %v8676
    %9735 = vmatprep.subr.bf16.mxu0 %v8685
    %9736 = vmatpush1.bf16.msra.mxu0 %v8684
    %9737 = vmatprep.subr.bf16.mxu0 %v8693
    %9738 = vmatpush1.bf16.msra.mxu0 %v8692
    %9739 = vmatprep.subr.bf16.mxu0 %v8701
    %9740 = vmatpush1.bf16.msra.mxu0 %v8700
    %9741 = vmatprep.subr.bf16.mxu0 %v8709
    %9742 = vmatpush1.bf16.msra.mxu0 %v8708
    %9743 = vmatprep.subr.bf16.mxu0 %v8717
    %9744 = vmatpush1.bf16.msra.mxu0 %v8716
    %9745 = vmatprep.subr.bf16.mxu0 %v8725
    %9746 = vmatpush1.bf16.msra.mxu0 %v8724
    %9747 = vmatprep.subr.bf16.mxu0 %v8733
    %9748 = vmatpush1.bf16.msra.mxu0 %v8732
    %9749 = vmatprep.subr.bf16.mxu0 %v8741
    %9750 = vmatpush1.bf16.msra.mxu0 %v8740
    %9751 = vmatprep.mubr.bf16.mxu0 %v6395
    %9752 = vmatmul.mubr.bf16.gmra.mrb[0].mxu0 %v6394
    %v9753 = vpop.f32.mrb[0].mxu0
    %v9754 = vadd.f32 %v9713, %v9753
    %v9755 = vpop.f32.mrb[0].mxu0
    %v9756 = vadd.f32 %v9715, %v9755
    %v9757 = vpop.f32.mrb[0].mxu0
    %v9758 = vpop.f32.mrb[0].mxu0
    %9759 = vdwg.mxu0
    %9760 = vmatprep.subr.bf16.mxu0 %v8749
    %9761 = vmatpush1.bf16.msra.mxu0 %v8748
    %9762 = vmatprep.subr.bf16.mxu0 %v8757
    %9763 = vmatpush1.bf16.msra.mxu0 %v8756
    %9764 = vmatprep.subr.bf16.mxu0 %v8765
    %9765 = vmatpush1.bf16.msra.mxu0 %v8764
    %9766 = vmatprep.subr.bf16.mxu0 %v8773
    %9767 = vmatpush1.bf16.msra.mxu0 %v8772
    %9768 = vmatprep.subr.bf16.mxu0 %v8781
    %9769 = vmatpush1.bf16.msra.mxu0 %v8780
    %9770 = vmatprep.subr.bf16.mxu0 %v8789
    %9771 = vmatpush1.bf16.msra.mxu0 %v8788
    %9772 = vmatprep.subr.bf16.mxu0 %v8797
    %9773 = vmatpush1.bf16.msra.mxu0 %v8796
    %9774 = vmatprep.subr.bf16.mxu0 %v8805
    %9775 = vmatpush1.bf16.msra.mxu0 %v8804
    %9776 = vmatprep.subr.bf16.mxu0 %v8813
    %9777 = vmatpush1.bf16.msra.mxu0 %v8812
    %9778 = vmatprep.subr.bf16.mxu0 %v8821
    %9779 = vmatpush1.bf16.msra.mxu0 %v8820
    %9780 = vmatprep.subr.bf16.mxu0 %v8829
    %9781 = vmatpush1.bf16.msra.mxu0 %v8828
    %9782 = vmatprep.subr.bf16.mxu0 %v8837
    %9783 = vmatpush1.bf16.msra.mxu0 %v8836
    %9784 = vmatprep.subr.bf16.mxu0 %v8845
    %9785 = vmatpush1.bf16.msra.mxu0 %v8844
    %9786 = vmatprep.subr.bf16.mxu0 %v8853
    %9787 = vmatpush1.bf16.msra.mxu0 %v8852
    %9788 = vmatprep.subr.bf16.mxu0 %v8861
    %9789 = vmatpush1.bf16.msra.mxu0 %v8860
    %9790 = vmatprep.subr.bf16.mxu0 %v8869
    %9791 = vmatpush1.bf16.msra.mxu0 %v8868
    %9792 = vmatprep.mubr.bf16.mxu0 %v6397
    %9793 = vmatmul.mubr.bf16.gmra.mrb[0].mxu0 %v6396
    %v9794 = vpop.f32.mrb[0].mxu0
    %v9795 = vadd.f32 %v9754, %v9794
    %v9796 = vpop.f32.mrb[0].mxu0
    %v9797 = vadd.f32 %v9756, %v9796
    %v9798 = vpop.f32.mrb[0].mxu0
    %v9799 = vpop.f32.mrb[0].mxu0
    %9800 = vdwg.mxu0
    %9801 = vmatprep.subr.bf16.mxu0 %v8877
    %9802 = vmatpush1.bf16.msra.mxu0 %v8876
    %9803 = vmatprep.subr.bf16.mxu0 %v8885
    %9804 = vmatpush1.bf16.msra.mxu0 %v8884
    %9805 = vmatprep.subr.bf16.mxu0 %v8893
    %9806 = vmatpush1.bf16.msra.mxu0 %v8892
    %9807 = vmatprep.subr.bf16.mxu0 %v8901
    %9808 = vmatpush1.bf16.msra.mxu0 %v8900
    %9809 = vmatprep.subr.bf16.mxu0 %v8909
    %9810 = vmatpush1.bf16.msra.mxu0 %v8908
    %9811 = vmatprep.subr.bf16.mxu0 %v8917
    %9812 = vmatpush1.bf16.msra.mxu0 %v8916
    %9813 = vmatprep.subr.bf16.mxu0 %v8925
    %9814 = vmatpush1.bf16.msra.mxu0 %v8924
    %9815 = vmatprep.subr.bf16.mxu0 %v8933
    %9816 = vmatpush1.bf16.msra.mxu0 %v8932
    %9817 = vmatprep.subr.bf16.mxu0 %v8941
    %9818 = vmatpush1.bf16.msra.mxu0 %v8940
    %9819 = vmatprep.subr.bf16.mxu0 %v8949
    %9820 = vmatpush1.bf16.msra.mxu0 %v8948
    %9821 = vmatprep.subr.bf16.mxu0 %v8957
    %9822 = vmatpush1.bf16.msra.mxu0 %v8956
    %9823 = vmatprep.subr.bf16.mxu0 %v8965
    %9824 = vmatpush1.bf16.msra.mxu0 %v8964
    %9825 = vmatprep.subr.bf16.mxu0 %v8973
    %9826 = vmatpush1.bf16.msra.mxu0 %v8972
    %9827 = vmatprep.subr.bf16.mxu0 %v8981
    %9828 = vmatpush1.bf16.msra.mxu0 %v8980
    %9829 = vmatprep.subr.bf16.mxu0 %v8989
    %9830 = vmatpush1.bf16.msra.mxu0 %v8988
    %9831 = vmatprep.subr.bf16.mxu0 %v8997
    %9832 = vmatpush1.bf16.msra.mxu0 %v8996
    %9833 = vmatprep.mubr.bf16.mxu0 %v6399
    %9834 = vmatmul.mubr.bf16.gmra.mrb[0].mxu0 %v6398
    %v9835 = vpop.f32.mrb[0].mxu0
    %v9836 = vadd.f32 %v9795, %v9835
    %v9837 = vpop.f32.mrb[0].mxu0
    %v9838 = vadd.f32 %v9797, %v9837
    %v9839 = vpop.f32.mrb[0].mxu0
    %v9840 = vpop.f32.mrb[0].mxu0
    %9841 = vdwg.mxu0
    %9842 = vmatprep.subr.bf16.mxu0 %v8495
    %9843 = vmatpush1.bf16.msra.mxu0 %v8494
    %9844 = vmatprep.subr.bf16.mxu0 %v8503
    %9845 = vmatpush1.bf16.msra.mxu0 %v8502
    %9846 = vmatprep.subr.bf16.mxu0 %v8511
    %9847 = vmatpush1.bf16.msra.mxu0 %v8510
    %9848 = vmatprep.subr.bf16.mxu0 %v8519
    %9849 = vmatpush1.bf16.msra.mxu0 %v8518
    %9850 = vmatprep.subr.bf16.mxu0 %v8527
    %9851 = vmatpush1.bf16.msra.mxu0 %v8526
    %9852 = vmatprep.subr.bf16.mxu0 %v8535
    %9853 = vmatpush1.bf16.msra.mxu0 %v8534
    %9854 = vmatprep.subr.bf16.mxu0 %v8543
    %9855 = vmatpush1.bf16.msra.mxu0 %v8542
    %9856 = vmatprep.subr.bf16.mxu0 %v8551
    %9857 = vmatpush1.bf16.msra.mxu0 %v8550
    %9858 = vmatprep.subr.bf16.mxu0 %v8559
    %9859 = vmatpush1.bf16.msra.mxu0 %v8558
    %9860 = vmatprep.subr.bf16.mxu0 %v8567
    %9861 = vmatpush1.bf16.msra.mxu0 %v8566
    %9862 = vmatprep.subr.bf16.mxu0 %v8575
    %9863 = vmatpush1.bf16.msra.mxu0 %v8574
    %9864 = vmatprep.subr.bf16.mxu0 %v8583
    %9865 = vmatpush1.bf16.msra.mxu0 %v8582
    %9866 = vmatprep.subr.bf16.mxu0 %v8591
    %9867 = vmatpush1.bf16.msra.mxu0 %v8590
    %9868 = vmatprep.subr.bf16.mxu0 %v8599
    %9869 = vmatpush1.bf16.msra.mxu0 %v8598
    %9870 = vmatprep.subr.bf16.mxu0 %v8607
    %9871 = vmatpush1.bf16.msra.mxu0 %v8606
    %9872 = vmatprep.subr.bf16.mxu0 %v8615
    %9873 = vmatpush1.bf16.msra.mxu0 %v8614
    %9874 = vmatprep.mubr.bf16.mxu0 %v6393
    %9875 = vmatmul.mubr.bf16.gmra.mrb[0].mxu0 %v6392
    %v9876 = vpop.f32.mrb[0].mxu0
    %v9877 = vadd.f32 %v6933, %v9876
    %v9878 = vpop.f32.mrb[0].mxu0
    %v9879 = vadd.f32 %v6937, %v9878
    %v9880 = vpop.f32.mrb[0].mxu0
    %v9881 = vpop.f32.mrb[0].mxu0
    %9882 = vdwg.mxu0
    %9883 = vmatprep.subr.bf16.mxu0 %v8623
    %9884 = vmatpush1.bf16.msra.mxu0 %v8622
    %9885 = vmatprep.subr.bf16.mxu0 %v8631
    %9886 = vmatpush1.bf16.msra.mxu0 %v8630
    %9887 = vmatprep.subr.bf16.mxu0 %v8639
    %9888 = vmatpush1.bf16.msra.mxu0 %v8638
    %9889 = vmatprep.subr.bf16.mxu0 %v8647
    %9890 = vmatpush1.bf16.msra.mxu0 %v8646
    %9891 = vmatprep.subr.bf16.mxu0 %v8655
    %9892 = vmatpush1.bf16.msra.mxu0 %v8654
    %9893 = vmatprep.subr.bf16.mxu0 %v8663
    %9894 = vmatpush1.bf16.msra.mxu0 %v8662
    %9895 = vmatprep.subr.bf16.mxu0 %v8671
    %9896 = vmatpush1.bf16.msra.mxu0 %v8670
    %9897 = vmatprep.subr.bf16.mxu0 %v8679
    %9898 = vmatpush1.bf16.msra.mxu0 %v8678
    %9899 = vmatprep.subr.bf16.mxu0 %v8687
    %9900 = vmatpush1.bf16.msra.mxu0 %v8686
    %9901 = vmatprep.subr.bf16.mxu0 %v8695
    %9902 = vmatpush1.bf16.msra.mxu0 %v8694
    %9903 = vmatprep.subr.bf16.mxu0 %v8703
    %9904 = vmatpush1.bf16.msra.mxu0 %v8702
    %9905 = vmatprep.subr.bf16.mxu0 %v8711
    %9906 = vmatpush1.bf16.msra.mxu0 %v8710
    %9907 = vmatprep.subr.bf16.mxu0 %v8719
    %9908 = vmatpush1.bf16.msra.mxu0 %v8718
    %9909 = vmatprep.subr.bf16.mxu0 %v8727
    %9910 = vmatpush1.bf16.msra.mxu0 %v8726
    %9911 = vmatprep.subr.bf16.mxu0 %v8735
    %9912 = vmatpush1.bf16.msra.mxu0 %v8734
    %9913 = vmatprep.subr.bf16.mxu0 %v8743
    %9914 = vmatpush1.bf16.msra.mxu0 %v8742
    %9915 = vmatprep.mubr.bf16.mxu0 %v6395
    %9916 = vmatmul.mubr.bf16.gmra.mrb[0].mxu0 %v6394
    %v9917 = vpop.f32.mrb[0].mxu0
    %v9918 = vadd.f32 %v9877, %v9917
    %v9919 = vpop.f32.mrb[0].mxu0
    %v9920 = vadd.f32 %v9879, %v9919
    %v9921 = vpop.f32.mrb[0].mxu0
    %v9922 = vpop.f32.mrb[0].mxu0
    %9923 = vdwg.mxu0
    %9924 = vmatprep.subr.bf16.mxu0 %v8751
    %9925 = vmatpush1.bf16.msra.mxu0 %v8750
    %9926 = vmatprep.subr.bf16.mxu0 %v8759
    %9927 = vmatpush1.bf16.msra.mxu0 %v8758
    %9928 = vmatprep.subr.bf16.mxu0 %v8767
    %9929 = vmatpush1.bf16.msra.mxu0 %v8766
    %9930 = vmatprep.subr.bf16.mxu0 %v8775
    %9931 = vmatpush1.bf16.msra.mxu0 %v8774
    %9932 = vmatprep.subr.bf16.mxu0 %v8783
    %9933 = vmatpush1.bf16.msra.mxu0 %v8782
    %9934 = vmatprep.subr.bf16.mxu0 %v8791
    %9935 = vmatpush1.bf16.msra.mxu0 %v8790
    %9936 = vmatprep.subr.bf16.mxu0 %v8799
    %9937 = vmatpush1.bf16.msra.mxu0 %v8798
    %9938 = vmatprep.subr.bf16.mxu0 %v8807
    %9939 = vmatpush1.bf16.msra.mxu0 %v8806
    %9940 = vmatprep.subr.bf16.mxu0 %v8815
    %9941 = vmatpush1.bf16.msra.mxu0 %v8814
    %9942 = vmatprep.subr.bf16.mxu0 %v8823
    %9943 = vmatpush1.bf16.msra.mxu0 %v8822
    %9944 = vmatprep.subr.bf16.mxu0 %v8831
    %9945 = vmatpush1.bf16.msra.mxu0 %v8830
    %9946 = vmatprep.subr.bf16.mxu0 %v8839
    %9947 = vmatpush1.bf16.msra.mxu0 %v8838
    %9948 = vmatprep.subr.bf16.mxu0 %v8847
    %9949 = vmatpush1.bf16.msra.mxu0 %v8846
    %9950 = vmatprep.subr.bf16.mxu0 %v8855
    %9951 = vmatpush1.bf16.msra.mxu0 %v8854
    %9952 = vmatprep.subr.bf16.mxu0 %v8863
    %9953 = vmatpush1.bf16.msra.mxu0 %v8862
    %9954 = vmatprep.subr.bf16.mxu0 %v8871
    %9955 = vmatpush1.bf16.msra.mxu0 %v8870
    %9956 = vmatprep.mubr.bf16.mxu0 %v6397
    %9957 = vmatmul.mubr.bf16.gmra.mrb[0].mxu0 %v6396
    %v9958 = vpop.f32.mrb[0].mxu0
    %v9959 = vadd.f32 %v9918, %v9958
    %v9960 = vpop.f32.mrb[0].mxu0
    %v9961 = vadd.f32 %v9920, %v9960
    %v9962 = vpop.f32.mrb[0].mxu0
    %v9963 = vpop.f32.mrb[0].mxu0
    %9964 = vdwg.mxu0
    %9965 = vmatprep.subr.bf16.mxu0 %v8879
    %9966 = vmatpush1.bf16.msra.mxu0 %v8878
    %9967 = vmatprep.subr.bf16.mxu0 %v8887
    %9968 = vmatpush1.bf16.msra.mxu0 %v8886
    %9969 = vmatprep.subr.bf16.mxu0 %v8895
    %9970 = vmatpush1.bf16.msra.mxu0 %v8894
    %9971 = vmatprep.subr.bf16.mxu0 %v8903
    %9972 = vmatpush1.bf16.msra.mxu0 %v8902
    %9973 = vmatprep.subr.bf16.mxu0 %v8911
    %9974 = vmatpush1.bf16.msra.mxu0 %v8910
    %9975 = vmatprep.subr.bf16.mxu0 %v8919
    %9976 = vmatpush1.bf16.msra.mxu0 %v8918
    %9977 = vmatprep.subr.bf16.mxu0 %v8927
    %9978 = vmatpush1.bf16.msra.mxu0 %v8926
    %9979 = vmatprep.subr.bf16.mxu0 %v8935
    %9980 = vmatpush1.bf16.msra.mxu0 %v8934
    %9981 = vmatprep.subr.bf16.mxu0 %v8943
    %9982 = vmatpush1.bf16.msra.mxu0 %v8942
    %9983 = vmatprep.subr.bf16.mxu0 %v8951
    %9984 = vmatpush1.bf16.msra.mxu0 %v8950
    %9985 = vmatprep.subr.bf16.mxu0 %v8959
    %9986 = vmatpush1.bf16.msra.mxu0 %v8958
    %9987 = vmatprep.subr.bf16.mxu0 %v8967
    %9988 = vmatpush1.bf16.msra.mxu0 %v8966
    %9989 = vmatprep.subr.bf16.mxu0 %v8975
    %9990 = vmatpush1.bf16.msra.mxu0 %v8974
    %9991 = vmatprep.subr.bf16.mxu0 %v8983
    %9992 = vmatpush1.bf16.msra.mxu0 %v8982
    %9993 = vmatprep.subr.bf16.mxu0 %v8991
    %9994 = vmatpush1.bf16.msra.mxu0 %v8990
    %9995 = vmatprep.subr.bf16.mxu0 %v8999
    %9996 = vmatpush1.bf16.msra.mxu0 %v8998
    %9997 = vmatprep.mubr.bf16.mxu0 %v6399
    %9998 = vmatmul.mubr.bf16.gmra.mrb[0].mxu0 %v6398
    %v9999 = vpop.f32.mrb[0].mxu0
    %v10000 = vadd.f32 %v9959, %v9999
    %v10001 = vpop.f32.mrb[0].mxu0
    %v10002 = vadd.f32 %v9961, %v10001
    %v10003 = vpop.f32.mrb[0].mxu0
    %v10004 = vpop.f32.mrb[0].mxu0
    %10005 = vdwg.mxu0
    %10006 = vmatprep.subr.bf16.mxu0 %v8497
    %10007 = vmatpush1.bf16.msra.mxu0 %v8496
    %10008 = vmatprep.subr.bf16.mxu0 %v8505
    %10009 = vmatpush1.bf16.msra.mxu0 %v8504
    %10010 = vmatprep.subr.bf16.mxu0 %v8513
    %10011 = vmatpush1.bf16.msra.mxu0 %v8512
    %10012 = vmatprep.subr.bf16.mxu0 %v8521
    %10013 = vmatpush1.bf16.msra.mxu0 %v8520
    %10014 = vmatprep.subr.bf16.mxu0 %v8529
    %10015 = vmatpush1.bf16.msra.mxu0 %v8528
    %10016 = vmatprep.subr.bf16.mxu0 %v8537
    %10017 = vmatpush1.bf16.msra.mxu0 %v8536
    %10018 = vmatprep.subr.bf16.mxu0 %v8545
    %10019 = vmatpush1.bf16.msra.mxu0 %v8544
    %10020 = vmatprep.subr.bf16.mxu0 %v8553
    %10021 = vmatpush1.bf16.msra.mxu0 %v8552
    %10022 = vmatprep.subr.bf16.mxu0 %v8561
    %10023 = vmatpush1.bf16.msra.mxu0 %v8560
    %10024 = vmatprep.subr.bf16.mxu0 %v8569
    %10025 = vmatpush1.bf16.msra.mxu0 %v8568
    %10026 = vmatprep.subr.bf16.mxu0 %v8577
    %10027 = vmatpush1.bf16.msra.mxu0 %v8576
    %10028 = vmatprep.subr.bf16.mxu0 %v8585
    %10029 = vmatpush1.bf16.msra.mxu0 %v8584
    %10030 = vmatprep.subr.bf16.mxu0 %v8593
    %10031 = vmatpush1.bf16.msra.mxu0 %v8592
    %10032 = vmatprep.subr.bf16.mxu0 %v8601
    %10033 = vmatpush1.bf16.msra.mxu0 %v8600
    %10034 = vmatprep.subr.bf16.mxu0 %v8609
    %10035 = vmatpush1.bf16.msra.mxu0 %v8608
    %10036 = vmatprep.subr.bf16.mxu0 %v8617
    %10037 = vmatpush1.bf16.msra.mxu0 %v8616
    %10038 = vmatprep.mubr.bf16.mxu0 %v6393
    %10039 = vmatmul.mubr.bf16.gmra.mrb[0].mxu0 %v6392
    %v10040 = vpop.f32.mrb[0].mxu0
    %v10041 = vadd.f32 %v6941, %v10040
    %v10042 = vpop.f32.mrb[0].mxu0
    %v10043 = vadd.f32 %v6945, %v10042
    %v10044 = vpop.f32.mrb[0].mxu0
    %v10045 = vpop.f32.mrb[0].mxu0
    %10046 = vdwg.mxu0
    %10047 = vmatprep.subr.bf16.mxu0 %v8625
    %10048 = vmatpush1.bf16.msra.mxu0 %v8624
    %10049 = vmatprep.subr.bf16.mxu0 %v8633
    %10050 = vmatpush1.bf16.msra.mxu0 %v8632
    %10051 = vmatprep.subr.bf16.mxu0 %v8641
    %10052 = vmatpush1.bf16.msra.mxu0 %v8640
    %10053 = vmatprep.subr.bf16.mxu0 %v8649
    %10054 = vmatpush1.bf16.msra.mxu0 %v8648
    %10055 = vmatprep.subr.bf16.mxu0 %v8657
    %10056 = vmatpush1.bf16.msra.mxu0 %v8656
    %10057 = vmatprep.subr.bf16.mxu0 %v8665
    %10058 = vmatpush1.bf16.msra.mxu0 %v8664
    %10059 = vmatprep.subr.bf16.mxu0 %v8673
    %10060 = vmatpush1.bf16.msra.mxu0 %v8672
    %10061 = vmatprep.subr.bf16.mxu0 %v8681
    %10062 = vmatpush1.bf16.msra.mxu0 %v8680
    %10063 = vmatprep.subr.bf16.mxu0 %v8689
    %10064 = vmatpush1.bf16.msra.mxu0 %v8688
    %10065 = vmatprep.subr.bf16.mxu0 %v8697
    %10066 = vmatpush1.bf16.msra.mxu0 %v8696
    %10067 = vmatprep.subr.bf16.mxu0 %v8705
    %10068 = vmatpush1.bf16.msra.mxu0 %v8704
    %10069 = vmatprep.subr.bf16.mxu0 %v8713
    %10070 = vmatpush1.bf16.msra.mxu0 %v8712
    %10071 = vmatprep.subr.bf16.mxu0 %v8721
    %10072 = vmatpush1.bf16.msra.mxu0 %v8720
    %10073 = vmatprep.subr.bf16.mxu0 %v8729
    %10074 = vmatpush1.bf16.msra.mxu0 %v8728
    %10075 = vmatprep.subr.bf16.mxu0 %v8737
    %10076 = vmatpush1.bf16.msra.mxu0 %v8736
    %10077 = vmatprep.subr.bf16.mxu0 %v8745
    %10078 = vmatpush1.bf16.msra.mxu0 %v8744
    %10079 = vmatprep.mubr.bf16.mxu0 %v6395
    %10080 = vmatmul.mubr.bf16.gmra.mrb[0].mxu0 %v6394
    %v10081 = vpop.f32.mrb[0].mxu0
    %v10082 = vadd.f32 %v10041, %v10081
    %v10083 = vpop.f32.mrb[0].mxu0
    %v10084 = vadd.f32 %v10043, %v10083
    %v10085 = vpop.f32.mrb[0].mxu0
    %v10086 = vpop.f32.mrb[0].mxu0
    %10087 = vdwg.mxu0
    %10088 = vmatprep.subr.bf16.mxu0 %v8753
    %10089 = vmatpush1.bf16.msra.mxu0 %v8752
    %10090 = vmatprep.subr.bf16.mxu0 %v8761
    %10091 = vmatpush1.bf16.msra.mxu0 %v8760
    %10092 = vmatprep.subr.bf16.mxu0 %v8769
    %10093 = vmatpush1.bf16.msra.mxu0 %v8768
    %10094 = vmatprep.subr.bf16.mxu0 %v8777
    %10095 = vmatpush1.bf16.msra.mxu0 %v8776
    %10096 = vmatprep.subr.bf16.mxu0 %v8785
    %10097 = vmatpush1.bf16.msra.mxu0 %v8784
    %10098 = vmatprep.subr.bf16.mxu0 %v8793
    %10099 = vmatpush1.bf16.msra.mxu0 %v8792
    %10100 = vmatprep.subr.bf16.mxu0 %v8801
    %10101 = vmatpush1.bf16.msra.mxu0 %v8800
    %10102 = vmatprep.subr.bf16.mxu0 %v8809
    %10103 = vmatpush1.bf16.msra.mxu0 %v8808
    %10104 = vmatprep.subr.bf16.mxu0 %v8817
    %10105 = vmatpush1.bf16.msra.mxu0 %v8816
    %10106 = vmatprep.subr.bf16.mxu0 %v8825
    %10107 = vmatpush1.bf16.msra.mxu0 %v8824
    %10108 = vmatprep.subr.bf16.mxu0 %v8833
    %10109 = vmatpush1.bf16.msra.mxu0 %v8832
    %10110 = vmatprep.subr.bf16.mxu0 %v8841
    %10111 = vmatpush1.bf16.msra.mxu0 %v8840
    %10112 = vmatprep.subr.bf16.mxu0 %v8849
    %10113 = vmatpush1.bf16.msra.mxu0 %v8848
    %10114 = vmatprep.subr.bf16.mxu0 %v8857
    %10115 = vmatpush1.bf16.msra.mxu0 %v8856
    %10116 = vmatprep.subr.bf16.mxu0 %v8865
    %10117 = vmatpush1.bf16.msra.mxu0 %v8864
    %10118 = vmatprep.subr.bf16.mxu0 %v8873
    %10119 = vmatpush1.bf16.msra.mxu0 %v8872
    %10120 = vmatprep.mubr.bf16.mxu0 %v6397
    %10121 = vmatmul.mubr.bf16.gmra.mrb[0].mxu0 %v6396
    %v10122 = vpop.f32.mrb[0].mxu0
    %v10123 = vadd.f32 %v10082, %v10122
    %v10124 = vpop.f32.mrb[0].mxu0
    %v10125 = vadd.f32 %v10084, %v10124
    %v10126 = vpop.f32.mrb[0].mxu0
    %v10127 = vpop.f32.mrb[0].mxu0
    %10128 = vdwg.mxu0
    %10129 = vmatprep.subr.bf16.mxu0 %v8881
    %10130 = vmatpush1.bf16.msra.mxu0 %v8880
    %10131 = vmatprep.subr.bf16.mxu0 %v8889
    %10132 = vmatpush1.bf16.msra.mxu0 %v8888
    %10133 = vmatprep.subr.bf16.mxu0 %v8897
    %10134 = vmatpush1.bf16.msra.mxu0 %v8896
    %10135 = vmatprep.subr.bf16.mxu0 %v8905
    %10136 = vmatpush1.bf16.msra.mxu0 %v8904
    %10137 = vmatprep.subr.bf16.mxu0 %v8913
    %10138 = vmatpush1.bf16.msra.mxu0 %v8912
    %10139 = vmatprep.subr.bf16.mxu0 %v8921
    %10140 = vmatpush1.bf16.msra.mxu0 %v8920
    %10141 = vmatprep.subr.bf16.mxu0 %v8929
    %10142 = vmatpush1.bf16.msra.mxu0 %v8928
    %10143 = vmatprep.subr.bf16.mxu0 %v8937
    %10144 = vmatpush1.bf16.msra.mxu0 %v8936
    %10145 = vmatprep.subr.bf16.mxu0 %v8945
    %10146 = vmatpush1.bf16.msra.mxu0 %v8944
    %10147 = vmatprep.subr.bf16.mxu0 %v8953
    %10148 = vmatpush1.bf16.msra.mxu0 %v8952
    %10149 = vmatprep.subr.bf16.mxu0 %v8961
    %10150 = vmatpush1.bf16.msra.mxu0 %v8960
    %10151 = vmatprep.subr.bf16.mxu0 %v8969
    %10152 = vmatpush1.bf16.msra.mxu0 %v8968
    %10153 = vmatprep.subr.bf16.mxu0 %v8977
    %10154 = vmatpush1.bf16.msra.mxu0 %v8976
    %10155 = vmatprep.subr.bf16.mxu0 %v8985
    %10156 = vmatpush1.bf16.msra.mxu0 %v8984
    %10157 = vmatprep.subr.bf16.mxu0 %v8993
    %10158 = vmatpush1.bf16.msra.mxu0 %v8992
    %10159 = vmatprep.subr.bf16.mxu0 %v9001
    %10160 = vmatpush1.bf16.msra.mxu0 %v9000
    %10161 = vmatprep.mubr.bf16.mxu0 %v6399
    %10162 = vmatmul.mubr.bf16.gmra.mrb[0].mxu0 %v6398
    %v10163 = vpop.f32.mrb[0].mxu0
    %v10164 = vadd.f32 %v10123, %v10163
    %v10165 = vpop.f32.mrb[0].mxu0
    %v10166 = vadd.f32 %v10125, %v10165
    %v10167 = vpop.f32.mrb[0].mxu0
    %v10168 = vpop.f32.mrb[0].mxu0
    %10169 = vdwg.mxu0
    %v10170 = vmax.f32 %v9672, 0.0
    %v10171 = vmax.f32 %v9674, 0.0
    %v10172 = vmax.f32 %v9836, 0.0
    %v10173 = vmax.f32 %v9838, 0.0
    %v10174 = vmax.f32 %v10000, 0.0
    %v10175 = vmax.f32 %v10002, 0.0
    %v10176 = vmax.f32 %v10164, 0.0
    %v10177 = vmax.f32 %v10166, 0.0
    %v10178 = vpack.c.bf16 %v10170, %v10170
    %v10179 = vpack.c.bf16 %v10171, %v10171
    %v10180 = vpack.c.bf16 %v10172, %v10172
    %v10181 = vpack.c.bf16 %v10173, %v10173
    %v10182 = vpack.c.bf16 %v10174, %v10174
    %v10183 = vpack.c.bf16 %v10175, %v10175
    %v10184 = vpack.c.bf16 %v10176, %v10176
    %v10185 = vpack.c.bf16 %v10177, %v10177
    %v10186 = vld [vmem:[#allocation12] sm:$0xff]
    %v10187 = vld [vmem:[#allocation12 + $0x8] sm:$0xff]
    %v10188 = vld [vmem:[#allocation12 + $0x10] sm:$0xf]
    %v10189 = vld [vmem:[#allocation12 + $0x14] sm:$0xff]
    %v10190 = vld [vmem:[#allocation12 + $0x1c] sm:$0xff]
    %v10191 = vld [vmem:[#allocation12 + $0x24] sm:$0xf]
    %v10192 = vld [vmem:[#allocation12 + $0x28] sm:$0xff]
    %v10193 = vld [vmem:[#allocation12 + $0x30] sm:$0xff]
    %v10194 = vld [vmem:[#allocation12 + $0x38] sm:$0xf]
    %v10195 = vld [vmem:[#allocation12 + $0x3c] sm:$0xff]
    %v10196 = vld [vmem:[#allocation12 + $0x44] sm:$0xff]
    %v10197 = vld [vmem:[#allocation12 + $0x4c] sm:$0xf]
    %v10198 = vld [vmem:[#allocation12 + $0x50] sm:$0xff]
    %v10199 = vld [vmem:[#allocation12 + $0x58] sm:$0xff]
    %v10200 = vld [vmem:[#allocation12 + $0x60] sm:$0xf]
    %v10201 = vld [vmem:[#allocation12 + $0x64] sm:$0xff]
    %v10202 = vld [vmem:[#allocation12 + $0x6c] sm:$0xff]
    %v10203 = vld [vmem:[#allocation12 + $0x74] sm:$0xf]
    %v10204 = vld [vmem:[#allocation12 + $0x78] sm:$0xff]
    %v10205 = vld [vmem:[#allocation12 + $0x80] sm:$0xff]
    %v10206 = vld [vmem:[#allocation12 + $0x88] sm:$0xf]
    %v10207 = vld [vmem:[#allocation12 + $0x8c] sm:$0xff]
    %v10208 = vld [vmem:[#allocation12 + $0x94] sm:$0xff]
    %v10209 = vld [vmem:[#allocation12 + $0x9c] sm:$0xf]
    %v10210 = vld [vmem:[#allocation12 + $0xa0] sm:$0xff]
    %v10211 = vld [vmem:[#allocation12 + $0xa8] sm:$0xff]
    %v10212 = vld [vmem:[#allocation12 + $0xb0] sm:$0xf]
    %v10213 = vld [vmem:[#allocation12 + $0xb4] sm:$0xff]
    %v10214 = vld [vmem:[#allocation12 + $0xbc] sm:$0xff]
    %v10215 = vld [vmem:[#allocation12 + $0xc4] sm:$0xf]
    %v10216 = vld [vmem:[#allocation12 + $0xc8] sm:$0xff]
    %v10217 = vld [vmem:[#allocation12 + $0xd0] sm:$0xff]
    %v10218 = vld [vmem:[#allocation12 + $0xd8] sm:$0xf]
    %v10219 = vld [vmem:[#allocation12 + $0xdc] sm:$0xff]
    %v10220 = vld [vmem:[#allocation12 + $0xe4] sm:$0xff]
    %v10221 = vld [vmem:[#allocation12 + $0xec] sm:$0xf]
    %v10222 = vld [vmem:[#allocation12 + $0xf0] sm:$0xff]
    %v10223 = vld [vmem:[#allocation12 + $0xf8] sm:$0xff]
    %v10224 = vld [vmem:[#allocation12 + $0x100] sm:$0xf]
    %v10225 = vld [vmem:[#allocation12 + $0x104] sm:$0xff]
    %v10226 = vld [vmem:[#allocation12 + $0x10c] sm:$0xff]
    %v10227 = vld [vmem:[#allocation12 + $0x114] sm:$0xf]
    %v10228 = vld [vmem:[#allocation12 + $0x118] sm:$0xff]
    %v10229 = vld [vmem:[#allocation12 + $0x120] sm:$0xff]
    %v10230 = vld [vmem:[#allocation12 + $0x128] sm:$0xf]
    %v10231 = vld [vmem:[#allocation12 + $0x12c] sm:$0xff]
    %v10232 = vld [vmem:[#allocation12 + $0x134] sm:$0xff]
    %v10233 = vld [vmem:[#allocation12 + $0x13c] sm:$0xf]
    %v10234 = vld [vmem:[#allocation12 + $0x140] sm:$0xff]
    %v10235 = vld [vmem:[#allocation12 + $0x148] sm:$0xff]
    %v10236 = vld [vmem:[#allocation12 + $0x150] sm:$0xf]
    %v10237 = vld [vmem:[#allocation12 + $0x154] sm:$0xff]
    %v10238 = vld [vmem:[#allocation12 + $0x15c] sm:$0xff]
    %v10239 = vld [vmem:[#allocation12 + $0x164] sm:$0xf]
    %v10240 = vld [vmem:[#allocation12 + $0x168] sm:$0xff]
    %v10241 = vld [vmem:[#allocation12 + $0x170] sm:$0xff]
    %v10242 = vld [vmem:[#allocation12 + $0x178] sm:$0xf]
    %v10243 = vld [vmem:[#allocation12 + $0x17c] sm:$0xff]
    %v10244 = vld [vmem:[#allocation12 + $0x184] sm:$0xff]
    %v10245 = vld [vmem:[#allocation12 + $0x18c] sm:$0xf]
    %v10246 = vld [vmem:[#allocation12 + $0x190] sm:$0xff]
    %v10247 = vld [vmem:[#allocation12 + $0x198] sm:$0xff]
    %v10248 = vld [vmem:[#allocation12 + $0x1a0] sm:$0xf]
    %v10249 = vld [vmem:[#allocation12 + $0x1a4] sm:$0xff]
    %v10250 = vld [vmem:[#allocation12 + $0x1ac] sm:$0xff]
    %v10251 = vld [vmem:[#allocation12 + $0x1b4] sm:$0xf]
    %v10252 = vld [vmem:[#allocation12 + $0x1b8] sm:$0xff]
    %v10253 = vld [vmem:[#allocation12 + $0x1c0] sm:$0xff]
    %v10254 = vld [vmem:[#allocation12 + $0x1c8] sm:$0xf]
    %v10255 = vld [vmem:[#allocation12 + $0x1cc] sm:$0xff]
    %v10256 = vld [vmem:[#allocation12 + $0x1d4] sm:$0xff]
    %v10257 = vld [vmem:[#allocation12 + $0x1dc] sm:$0xf]
    %v10258 = vld [vmem:[#allocation12 + $0x1e0] sm:$0xff]
    %v10259 = vld [vmem:[#allocation12 + $0x1e8] sm:$0xff]
    %v10260 = vld [vmem:[#allocation12 + $0x1f0] sm:$0xf]
    %v10261 = vld [vmem:[#allocation12 + $0x1f4] sm:$0xff]
    %v10262 = vld [vmem:[#allocation12 + $0x1fc] sm:$0xff]
    %v10263 = vld [vmem:[#allocation12 + $0x204] sm:$0xf]
    %v10264 = vld [vmem:[#allocation12 + $0x208] sm:$0xff]
    %v10265 = vld [vmem:[#allocation12 + $0x210] sm:$0xff]
    %v10266 = vld [vmem:[#allocation12 + $0x218] sm:$0xf]
    %v10267 = vld [vmem:[#allocation12 + $0x21c] sm:$0xff]
    %v10268 = vld [vmem:[#allocation12 + $0x224] sm:$0xff]
    %v10269 = vld [vmem:[#allocation12 + $0x22c] sm:$0xf]
    %v10270 = vld [vmem:[#allocation12 + $0x230] sm:$0xff]
    %v10271 = vld [vmem:[#allocation12 + $0x238] sm:$0xff]
    %v10272 = vld [vmem:[#allocation12 + $0x240] sm:$0xf]
    %v10273 = vld [vmem:[#allocation12 + $0x244] sm:$0xff]
    %v10274 = vld [vmem:[#allocation12 + $0x24c] sm:$0xff]
    %v10275 = vld [vmem:[#allocation12 + $0x254] sm:$0xf]
    %v10276 = vld [vmem:[#allocation12 + $0x258] sm:$0xff]
    %v10277 = vld [vmem:[#allocation12 + $0x260] sm:$0xff]
    %v10278 = vld [vmem:[#allocation12 + $0x268] sm:$0xf]
    %v10279 = vld [vmem:[#allocation12 + $0x26c] sm:$0xff]
    %v10280 = vld [vmem:[#allocation12 + $0x274] sm:$0xff]
    %v10281 = vld [vmem:[#allocation12 + $0x27c] sm:$0xf]
    %v10282 = vld [vmem:[#allocation12 + $0x280] sm:$0xff]
    %v10283 = vld [vmem:[#allocation12 + $0x288] sm:$0xff]
    %v10284 = vld [vmem:[#allocation12 + $0x290] sm:$0xf]
    %v10285 = vld [vmem:[#allocation12 + $0x294] sm:$0xff]
    %v10286 = vld [vmem:[#allocation12 + $0x29c] sm:$0xff]
    %v10287 = vld [vmem:[#allocation12 + $0x2a4] sm:$0xf]
    %v10288 = vld [vmem:[#allocation12 + $0x2a8] sm:$0xff]
    %v10289 = vld [vmem:[#allocation12 + $0x2b0] sm:$0xff]
    %v10290 = vld [vmem:[#allocation12 + $0x2b8] sm:$0xf]
    %v10291 = vld [vmem:[#allocation12 + $0x2bc] sm:$0xff]
    %v10292 = vld [vmem:[#allocation12 + $0x2c4] sm:$0xff]
    %v10293 = vld [vmem:[#allocation12 + $0x2cc] sm:$0xf]
    %v10294 = vld [vmem:[#allocation12 + $0x2d0] sm:$0xff]
    %v10295 = vld [vmem:[#allocation12 + $0x2d8] sm:$0xff]
    %v10296 = vld [vmem:[#allocation12 + $0x2e0] sm:$0xf]
    %v10297 = vld [vmem:[#allocation12 + $0x2e4] sm:$0xff]
    %v10298 = vld [vmem:[#allocation12 + $0x2ec] sm:$0xff]
    %v10299 = vld [vmem:[#allocation12 + $0x2f4] sm:$0xf]
    %v10300 = vld [vmem:[#allocation12 + $0x2f8] sm:$0xff]
    %v10301 = vld [vmem:[#allocation12 + $0x300] sm:$0xff]
    %v10302 = vld [vmem:[#allocation12 + $0x308] sm:$0xf]
    %v10303 = vld [vmem:[#allocation12 + $0x30c] sm:$0xff]
    %v10304 = vld [vmem:[#allocation12 + $0x314] sm:$0xff]
    %v10305 = vld [vmem:[#allocation12 + $0x31c] sm:$0xf]
    %v10306 = vld [vmem:[#allocation12 + $0x320] sm:$0xff]
    %v10307 = vld [vmem:[#allocation12 + $0x328] sm:$0xff]
    %v10308 = vld [vmem:[#allocation12 + $0x330] sm:$0xf]
    %v10309 = vld [vmem:[#allocation12 + $0x334] sm:$0xff]
    %v10310 = vld [vmem:[#allocation12 + $0x33c] sm:$0xff]
    %v10311 = vld [vmem:[#allocation12 + $0x344] sm:$0xf]
    %v10312 = vld [vmem:[#allocation12 + $0x348] sm:$0xff]
    %v10313 = vld [vmem:[#allocation12 + $0x350] sm:$0xff]
    %v10314 = vld [vmem:[#allocation12 + $0x358] sm:$0xf]
    %v10315 = vld [vmem:[#allocation12 + $0x35c] sm:$0xff]
    %v10316 = vld [vmem:[#allocation12 + $0x364] sm:$0xff]
    %v10317 = vld [vmem:[#allocation12 + $0x36c] sm:$0xf]
    %v10318 = vld [vmem:[#allocation12 + $0x370] sm:$0xff]
    %v10319 = vld [vmem:[#allocation12 + $0x378] sm:$0xff]
    %v10320 = vld [vmem:[#allocation12 + $0x380] sm:$0xf]
    %v10321 = vld [vmem:[#allocation12 + $0x384] sm:$0xff]
    %v10322 = vld [vmem:[#allocation12 + $0x38c] sm:$0xff]
    %v10323 = vld [vmem:[#allocation12 + $0x394] sm:$0xf]
    %v10324 = vld [vmem:[#allocation12 + $0x398] sm:$0xff]
    %v10325 = vld [vmem:[#allocation12 + $0x3a0] sm:$0xff]
    %v10326 = vld [vmem:[#allocation12 + $0x3a8] sm:$0xf]
    %v10327 = vld [vmem:[#allocation12 + $0x3ac] sm:$0xff]
    %v10328 = vld [vmem:[#allocation12 + $0x3b4] sm:$0xff]
    %v10329 = vld [vmem:[#allocation12 + $0x3bc] sm:$0xf]
    %v10330 = vld [vmem:[#allocation12 + $0x3c0] sm:$0xff]
    %v10331 = vld [vmem:[#allocation12 + $0x3c8] sm:$0xff]
    %v10332 = vld [vmem:[#allocation12 + $0x3d0] sm:$0xf]
    %v10333 = vld [vmem:[#allocation12 + $0x3d4] sm:$0xff]
    %v10334 = vld [vmem:[#allocation12 + $0x3dc] sm:$0xff]
    %v10335 = vld [vmem:[#allocation12 + $0x3e4] sm:$0xf]
    %v10336 = vld [vmem:[#allocation12 + $0x3e8] sm:$0xff]
    %v10337 = vld [vmem:[#allocation12 + $0x3f0] sm:$0xff]
    %v10338 = vld [vmem:[#allocation12 + $0x3f8] sm:$0xf]
    %v10339 = vld [vmem:[#allocation12 + $0x3fc] sm:$0xff]
    %v10340 = vld [vmem:[#allocation12 + $0x404] sm:$0xff]
    %v10341 = vld [vmem:[#allocation12 + $0x40c] sm:$0xf]
    %v10342 = vld [vmem:[#allocation12 + $0x410] sm:$0xff]
    %v10343 = vld [vmem:[#allocation12 + $0x418] sm:$0xff]
    %v10344 = vld [vmem:[#allocation12 + $0x420] sm:$0xf]
    %v10345 = vld [vmem:[#allocation12 + $0x424] sm:$0xff]
    %v10346 = vld [vmem:[#allocation12 + $0x42c] sm:$0xff]
    %v10347 = vld [vmem:[#allocation12 + $0x434] sm:$0xf]
    %v10348 = vld [vmem:[#allocation12 + $0x438] sm:$0xff]
    %v10349 = vld [vmem:[#allocation12 + $0x440] sm:$0xff]
    %v10350 = vld [vmem:[#allocation12 + $0x448] sm:$0xf]
    %v10351 = vld [vmem:[#allocation12 + $0x44c] sm:$0xff]
    %v10352 = vld [vmem:[#allocation12 + $0x454] sm:$0xff]
    %v10353 = vld [vmem:[#allocation12 + $0x45c] sm:$0xf]
    %v10354 = vld [vmem:[#allocation12 + $0x460] sm:$0xff]
    %v10355 = vld [vmem:[#allocation12 + $0x468] sm:$0xff]
    %v10356 = vld [vmem:[#allocation12 + $0x470] sm:$0xf]
    %v10357 = vld [vmem:[#allocation12 + $0x474] sm:$0xff]
    %v10358 = vld [vmem:[#allocation12 + $0x47c] sm:$0xff]
    %v10359 = vld [vmem:[#allocation12 + $0x484] sm:$0xf]
    %v10360 = vld [vmem:[#allocation12 + $0x488] sm:$0xff]
    %v10361 = vld [vmem:[#allocation12 + $0x490] sm:$0xff]
    %v10362 = vld [vmem:[#allocation12 + $0x498] sm:$0xf]
    %v10363 = vld [vmem:[#allocation12 + $0x49c] sm:$0xff]
    %v10364 = vld [vmem:[#allocation12 + $0x4a4] sm:$0xff]
    %v10365 = vld [vmem:[#allocation12 + $0x4ac] sm:$0xf]
    %v10366 = vld [vmem:[#allocation12 + $0x4b0] sm:$0xff]
    %v10367 = vld [vmem:[#allocation12 + $0x4b8] sm:$0xff]
    %v10368 = vld [vmem:[#allocation12 + $0x4c0] sm:$0xf]
    %v10369 = vld [vmem:[#allocation12 + $0x4c4] sm:$0xff]
    %v10370 = vld [vmem:[#allocation12 + $0x4cc] sm:$0xff]
    %v10371 = vld [vmem:[#allocation12 + $0x4d4] sm:$0xf]
    %v10372 = vld [vmem:[#allocation12 + $0x4d8] sm:$0xff]
    %v10373 = vld [vmem:[#allocation12 + $0x4e0] sm:$0xff]
    %v10374 = vld [vmem:[#allocation12 + $0x4e8] sm:$0xf]
    %v10375 = vld [vmem:[#allocation12 + $0x4ec] sm:$0xff]
    %v10376 = vld [vmem:[#allocation12 + $0x4f4] sm:$0xff]
    %v10377 = vld [vmem:[#allocation12 + $0x4fc] sm:$0xf]
    %v10378 = vld [vmem:[#allocation12 + $0x500] sm:$0xff]
    %v10379 = vld [vmem:[#allocation12 + $0x508] sm:$0xff]
    %v10380 = vld [vmem:[#allocation12 + $0x510] sm:$0xf]
    %v10381 = vld [vmem:[#allocation12 + $0x514] sm:$0xff]
    %v10382 = vld [vmem:[#allocation12 + $0x51c] sm:$0xff]
    %v10383 = vld [vmem:[#allocation12 + $0x524] sm:$0xf]
    %v10384 = vld [vmem:[#allocation12 + $0x528] sm:$0xff]
    %v10385 = vld [vmem:[#allocation12 + $0x530] sm:$0xff]
    %v10386 = vld [vmem:[#allocation12 + $0x538] sm:$0xf]
    %v10387 = vld [vmem:[#allocation12 + $0x53c] sm:$0xff]
    %v10388 = vld [vmem:[#allocation12 + $0x544] sm:$0xff]
    %v10389 = vld [vmem:[#allocation12 + $0x54c] sm:$0xf]
    %v10390 = vld [vmem:[#allocation12 + $0x550] sm:$0xff]
    %v10391 = vld [vmem:[#allocation12 + $0x558] sm:$0xff]
    %v10392 = vld [vmem:[#allocation12 + $0x560] sm:$0xf]
    %v10393 = vld [vmem:[#allocation12 + $0x564] sm:$0xff]
    %v10394 = vld [vmem:[#allocation12 + $0x56c] sm:$0xff]
    %v10395 = vld [vmem:[#allocation12 + $0x574] sm:$0xf]
    %v10396 = vld [vmem:[#allocation12 + $0x578] sm:$0xff]
    %v10397 = vld [vmem:[#allocation12 + $0x580] sm:$0xff]
    %v10398 = vld [vmem:[#allocation12 + $0x588] sm:$0xf]
    %v10399 = vld [vmem:[#allocation12 + $0x58c] sm:$0xff]
    %v10400 = vld [vmem:[#allocation12 + $0x594] sm:$0xff]
    %v10401 = vld [vmem:[#allocation12 + $0x59c] sm:$0xf]
    %v10402 = vld [vmem:[#allocation12 + $0x5a0] sm:$0xff]
    %v10403 = vld [vmem:[#allocation12 + $0x5a8] sm:$0xff]
    %v10404 = vld [vmem:[#allocation12 + $0x5b0] sm:$0xf]
    %v10405 = vld [vmem:[#allocation12 + $0x5b4] sm:$0xff]
    %v10406 = vld [vmem:[#allocation12 + $0x5bc] sm:$0xff]
    %v10407 = vld [vmem:[#allocation12 + $0x5c4] sm:$0xf]
    %v10408 = vld [vmem:[#allocation12 + $0x5c8] sm:$0xff]
    %v10409 = vld [vmem:[#allocation12 + $0x5d0] sm:$0xff]
    %v10410 = vld [vmem:[#allocation12 + $0x5d8] sm:$0xf]
    %v10411 = vld [vmem:[#allocation12 + $0x5dc] sm:$0xff]
    %v10412 = vld [vmem:[#allocation12 + $0x5e4] sm:$0xff]
    %v10413 = vld [vmem:[#allocation12 + $0x5ec] sm:$0xf]
    %v10414 = vld [vmem:[#allocation12 + $0x5f0] sm:$0xff]
    %v10415 = vld [vmem:[#allocation12 + $0x5f8] sm:$0xff]
    %v10416 = vld [vmem:[#allocation12 + $0x600] sm:$0xf]
    %v10417 = vld [vmem:[#allocation12 + $0x604] sm:$0xff]
    %v10418 = vld [vmem:[#allocation12 + $0x60c] sm:$0xff]
    %v10419 = vld [vmem:[#allocation12 + $0x614] sm:$0xf]
    %v10420 = vld [vmem:[#allocation12 + $0x618] sm:$0xff]
    %v10421 = vld [vmem:[#allocation12 + $0x620] sm:$0xff]
    %v10422 = vld [vmem:[#allocation12 + $0x628] sm:$0xf]
    %v10423 = vld [vmem:[#allocation12 + $0x62c] sm:$0xff]
    %v10424 = vld [vmem:[#allocation12 + $0x634] sm:$0xff]
    %v10425 = vld [vmem:[#allocation12 + $0x63c] sm:$0xf]
    %v10426 = vld [vmem:[#allocation12 + $0x640] sm:$0xff]
    %v10427 = vld [vmem:[#allocation12 + $0x648] sm:$0xff]
    %v10428 = vld [vmem:[#allocation12 + $0x650] sm:$0xf]
    %v10429 = vld [vmem:[#allocation12 + $0x654] sm:$0xff]
    %v10430 = vld [vmem:[#allocation12 + $0x65c] sm:$0xff]
    %v10431 = vld [vmem:[#allocation12 + $0x664] sm:$0xf]
    %v10432 = vld [vmem:[#allocation12 + $0x668] sm:$0xff]
    %v10433 = vld [vmem:[#allocation12 + $0x670] sm:$0xff]
    %v10434 = vld [vmem:[#allocation12 + $0x678] sm:$0xf]
    %v10435 = vld [vmem:[#allocation12 + $0x67c] sm:$0xff]
    %v10436 = vld [vmem:[#allocation12 + $0x684] sm:$0xff]
    %v10437 = vld [vmem:[#allocation12 + $0x68c] sm:$0xf]
    %v10438 = vld [vmem:[#allocation12 + $0x690] sm:$0xff]
    %v10439 = vld [vmem:[#allocation12 + $0x698] sm:$0xff]
    %v10440 = vld [vmem:[#allocation12 + $0x6a0] sm:$0xf]
    %v10441 = vld [vmem:[#allocation12 + $0x6a4] sm:$0xff]
    %v10442 = vld [vmem:[#allocation12 + $0x6ac] sm:$0xff]
    %v10443 = vld [vmem:[#allocation12 + $0x6b4] sm:$0xf]
    %v10444 = vld [vmem:[#allocation12 + $0x6b8] sm:$0xff]
    %v10445 = vld [vmem:[#allocation12 + $0x6c0] sm:$0xff]
    %v10446 = vld [vmem:[#allocation12 + $0x6c8] sm:$0xf]
    %v10447 = vld [vmem:[#allocation12 + $0x6cc] sm:$0xff]
    %v10448 = vld [vmem:[#allocation12 + $0x6d4] sm:$0xff]
    %v10449 = vld [vmem:[#allocation12 + $0x6dc] sm:$0xf]
    %v10450 = vld [vmem:[#allocation12 + $0x6e0] sm:$0xff]
    %v10451 = vld [vmem:[#allocation12 + $0x6e8] sm:$0xff]
    %v10452 = vld [vmem:[#allocation12 + $0x6f0] sm:$0xf]
    %v10453 = vld [vmem:[#allocation12 + $0x6f4] sm:$0xff]
    %v10454 = vld [vmem:[#allocation12 + $0x6fc] sm:$0xff]
    %v10455 = vld [vmem:[#allocation12 + $0x704] sm:$0xf]
    %v10456 = vld [vmem:[#allocation12 + $0x708] sm:$0xff]
    %v10457 = vld [vmem:[#allocation12 + $0x710] sm:$0xff]
    %v10458 = vld [vmem:[#allocation12 + $0x718] sm:$0xf]
    %v10459 = vld [vmem:[#allocation12 + $0x71c] sm:$0xff]
    %v10460 = vld [vmem:[#allocation12 + $0x724] sm:$0xff]
    %v10461 = vld [vmem:[#allocation12 + $0x72c] sm:$0xf]
    %v10462 = vld [vmem:[#allocation12 + $0x730] sm:$0xff]
    %v10463 = vld [vmem:[#allocation12 + $0x738] sm:$0xff]
    %v10464 = vld [vmem:[#allocation12 + $0x740] sm:$0xf]
    %v10465 = vld [vmem:[#allocation12 + $0x744] sm:$0xff]
    %v10466 = vld [vmem:[#allocation12 + $0x74c] sm:$0xff]
    %v10467 = vld [vmem:[#allocation12 + $0x754] sm:$0xf]
    %v10468 = vld [vmem:[#allocation12 + $0x758] sm:$0xff]
    %v10469 = vld [vmem:[#allocation12 + $0x760] sm:$0xff]
    %v10470 = vld [vmem:[#allocation12 + $0x768] sm:$0xf]
    %v10471 = vld [vmem:[#allocation12 + $0x76c] sm:$0xff]
    %v10472 = vld [vmem:[#allocation12 + $0x774] sm:$0xff]
    %v10473 = vld [vmem:[#allocation12 + $0x77c] sm:$0xf]
    %v10474 = vld [vmem:[#allocation12 + $0x780] sm:$0xff]
    %v10475 = vld [vmem:[#allocation12 + $0x788] sm:$0xff]
    %v10476 = vld [vmem:[#allocation12 + $0x790] sm:$0xf]
    %v10477 = vld [vmem:[#allocation12 + $0x794] sm:$0xff]
    %v10478 = vld [vmem:[#allocation12 + $0x79c] sm:$0xff]
    %v10479 = vld [vmem:[#allocation12 + $0x7a4] sm:$0xf]
    %v10480 = vld [vmem:[#allocation12 + $0x7a8] sm:$0xff]
    %v10481 = vld [vmem:[#allocation12 + $0x7b0] sm:$0xff]
    %v10482 = vld [vmem:[#allocation12 + $0x7b8] sm:$0xf]
    %v10483 = vld [vmem:[#allocation12 + $0x7bc] sm:$0xff]
    %v10484 = vld [vmem:[#allocation12 + $0x7c4] sm:$0xff]
    %v10485 = vld [vmem:[#allocation12 + $0x7cc] sm:$0xf]
    %v10486 = vld [vmem:[#allocation12 + $0x7d0] sm:$0xff]
    %v10487 = vld [vmem:[#allocation12 + $0x7d8] sm:$0xff]
    %v10488 = vld [vmem:[#allocation12 + $0x7e0] sm:$0xf]
    %v10489 = vld [vmem:[#allocation12 + $0x7e4] sm:$0xff]
    %v10490 = vld [vmem:[#allocation12 + $0x7ec] sm:$0xff]
    %v10491 = vld [vmem:[#allocation12 + $0x7f4] sm:$0xf]
    %v10492 = vld [vmem:[#allocation12 + $0x7f8] sm:$0xff]
    %v10493 = vld [vmem:[#allocation12 + $0x800] sm:$0xff]
    %v10494 = vld [vmem:[#allocation12 + $0x808] sm:$0xf]
    %v10495 = vld [vmem:[#allocation12 + $0x80c] sm:$0xff]
    %v10496 = vld [vmem:[#allocation12 + $0x814] sm:$0xff]
    %v10497 = vld [vmem:[#allocation12 + $0x81c] sm:$0xf]
    %v10498 = vld [vmem:[#allocation12 + $0x820] sm:$0xff]
    %v10499 = vld [vmem:[#allocation12 + $0x828] sm:$0xff]
    %v10500 = vld [vmem:[#allocation12 + $0x830] sm:$0xf]
    %v10501 = vld [vmem:[#allocation12 + $0x834] sm:$0xff]
    %v10502 = vld [vmem:[#allocation12 + $0x83c] sm:$0xff]
    %v10503 = vld [vmem:[#allocation12 + $0x844] sm:$0xf]
    %v10504 = vld [vmem:[#allocation12 + $0x848] sm:$0xff]
    %v10505 = vld [vmem:[#allocation12 + $0x850] sm:$0xff]
    %v10506 = vld [vmem:[#allocation12 + $0x858] sm:$0xf]
    %v10507 = vld [vmem:[#allocation12 + $0x85c] sm:$0xff]
    %v10508 = vld [vmem:[#allocation12 + $0x864] sm:$0xff]
    %v10509 = vld [vmem:[#allocation12 + $0x86c] sm:$0xf]
    %v10510 = vld [vmem:[#allocation12 + $0x870] sm:$0xff]
    %v10511 = vld [vmem:[#allocation12 + $0x878] sm:$0xff]
    %v10512 = vld [vmem:[#allocation12 + $0x880] sm:$0xf]
    %v10513 = vld [vmem:[#allocation12 + $0x884] sm:$0xff]
    %v10514 = vld [vmem:[#allocation12 + $0x88c] sm:$0xff]
    %v10515 = vld [vmem:[#allocation12 + $0x894] sm:$0xf]
    %v10516 = vld [vmem:[#allocation12 + $0x898] sm:$0xff]
    %v10517 = vld [vmem:[#allocation12 + $0x8a0] sm:$0xff]
    %v10518 = vld [vmem:[#allocation12 + $0x8a8] sm:$0xf]
    %v10519 = vld [vmem:[#allocation12 + $0x8ac] sm:$0xff]
    %v10520 = vld [vmem:[#allocation12 + $0x8b4] sm:$0xff]
    %v10521 = vld [vmem:[#allocation12 + $0x8bc] sm:$0xf]
    %v10522 = vld [vmem:[#allocation12 + $0x8c0] sm:$0xff]
    %v10523 = vld [vmem:[#allocation12 + $0x8c8] sm:$0xff]
    %v10524 = vld [vmem:[#allocation12 + $0x8d0] sm:$0xf]
    %v10525 = vld [vmem:[#allocation12 + $0x8d4] sm:$0xff]
    %v10526 = vld [vmem:[#allocation12 + $0x8dc] sm:$0xff]
    %v10527 = vld [vmem:[#allocation12 + $0x8e4] sm:$0xf]
    %v10528 = vld [vmem:[#allocation12 + $0x8e8] sm:$0xff]
    %v10529 = vld [vmem:[#allocation12 + $0x8f0] sm:$0xff]
    %v10530 = vld [vmem:[#allocation12 + $0x8f8] sm:$0xf]
    %v10531 = vld [vmem:[#allocation12 + $0x8fc] sm:$0xff]
    %v10532 = vld [vmem:[#allocation12 + $0x904] sm:$0xff]
    %v10533 = vld [vmem:[#allocation12 + $0x90c] sm:$0xf]
    %v10534 = vld [vmem:[#allocation12 + $0x910] sm:$0xff]
    %v10535 = vld [vmem:[#allocation12 + $0x918] sm:$0xff]
    %v10536 = vld [vmem:[#allocation12 + $0x920] sm:$0xf]
    %v10537 = vld [vmem:[#allocation12 + $0x924] sm:$0xff]
    %v10538 = vld [vmem:[#allocation12 + $0x92c] sm:$0xff]
    %v10539 = vld [vmem:[#allocation12 + $0x934] sm:$0xf]
    %v10540 = vld [vmem:[#allocation12 + $0x938] sm:$0xff]
    %v10541 = vld [vmem:[#allocation12 + $0x940] sm:$0xff]
    %v10542 = vld [vmem:[#allocation12 + $0x948] sm:$0xf]
    %v10543 = vld [vmem:[#allocation12 + $0x94c] sm:$0xff]
    %v10544 = vld [vmem:[#allocation12 + $0x954] sm:$0xff]
    %v10545 = vld [vmem:[#allocation12 + $0x95c] sm:$0xf]
    %v10546 = vld [vmem:[#allocation12 + $0x960] sm:$0xff]
    %v10547 = vld [vmem:[#allocation12 + $0x968] sm:$0xff]
    %v10548 = vld [vmem:[#allocation12 + $0x970] sm:$0xf]
    %v10549 = vld [vmem:[#allocation12 + $0x974] sm:$0xff]
    %v10550 = vld [vmem:[#allocation12 + $0x97c] sm:$0xff]
    %v10551 = vld [vmem:[#allocation12 + $0x984] sm:$0xf]
    %v10552 = vld [vmem:[#allocation12 + $0x988] sm:$0xff]
    %v10553 = vld [vmem:[#allocation12 + $0x990] sm:$0xff]
    %v10554 = vld [vmem:[#allocation12 + $0x998] sm:$0xf]
    %v10555 = vld [vmem:[#allocation12 + $0x99c] sm:$0xff]
    %v10556 = vld [vmem:[#allocation12 + $0x9a4] sm:$0xff]
    %v10557 = vld [vmem:[#allocation12 + $0x9ac] sm:$0xf]
    %v10558 = vld [vmem:[#allocation12 + $0x9b0] sm:$0xff]
    %v10559 = vld [vmem:[#allocation12 + $0x9b8] sm:$0xff]
    %v10560 = vld [vmem:[#allocation12 + $0x9c0] sm:$0xf]
    %v10561 = vld [vmem:[#allocation12 + $0x9c4] sm:$0xff]
    %v10562 = vld [vmem:[#allocation12 + $0x9cc] sm:$0xff]
    %v10563 = vld [vmem:[#allocation12 + $0x9d4] sm:$0xf]
    %v10564 = vld [vmem:[#allocation12 + $0x9d8] sm:$0xff]
    %v10565 = vld [vmem:[#allocation12 + $0x9e0] sm:$0xff]
    %v10566 = vld [vmem:[#allocation12 + $0x9e8] sm:$0xf]
    %v10567 = vld [vmem:[#allocation12 + $0x9ec] sm:$0xff]
    %v10568 = vld [vmem:[#allocation12 + $0x9f4] sm:$0xff]
    %v10569 = vld [vmem:[#allocation12 + $0x9fc] sm:$0xf]
    %v10570 = vld [vmem:[#allocation13] sm:$0x1f]
    %v10572 = vlaneseq
    %v10573 = vshrl.u32 %v10572, 7
    %v10574 = vsub.s32 0, %v10573
    %v10575 = vrot.slane %v10570, %v10574
    %v10576 = vlaneseq
    %v10577 = vshrl.u32 %v10576, 7
    %v10578 = vsub.s32 1, %v10577
    %v10579 = vrot.slane %v10570, %v10578
    %v10580 = vlaneseq
    %v10581 = vshrl.u32 %v10580, 7
    %v10582 = vsub.s32 2, %v10581
    %v10583 = vrot.slane %v10570, %v10582
    %v10584 = vlaneseq
    %v10585 = vshrl.u32 %v10584, 7
    %v10586 = vsub.s32 3, %v10585
    %v10587 = vrot.slane %v10570, %v10586
    %v10588 = vlaneseq
    %v10589 = vshrl.u32 %v10588, 7
    %v10590 = vsub.s32 4, %v10589
    %v10591 = vrot.slane %v10570, %v10590
    %v10981 = vunpack.c.l.b16 %v10186
    %v10982 = vunpack.c.h.b16 %v10186
    %v10983 = vunpack.c.l.b16 %v10187
    %v10984 = vunpack.c.h.b16 %v10187
    %v10985 = vunpack.c.l.b16 %v10188
    %v10986 = vunpack.c.l.b16 %v10189
    %v10987 = vunpack.c.h.b16 %v10189
    %v10988 = vunpack.c.l.b16 %v10190
    %v10989 = vunpack.c.h.b16 %v10190
    %v10990 = vunpack.c.l.b16 %v10191
    %v10991 = vunpack.c.l.b16 %v10192
    %v10992 = vunpack.c.h.b16 %v10192
    %v10993 = vunpack.c.l.b16 %v10193
    %v10994 = vunpack.c.h.b16 %v10193
    %v10995 = vunpack.c.l.b16 %v10194
    %v10996 = vunpack.c.l.b16 %v10195
    %v10997 = vunpack.c.h.b16 %v10195
    %v10998 = vunpack.c.l.b16 %v10196
    %v10999 = vunpack.c.h.b16 %v10196
    %v11000 = vunpack.c.l.b16 %v10197
    %v11001 = vunpack.c.l.b16 %v10198
    %v11002 = vunpack.c.h.b16 %v10198
    %v11003 = vunpack.c.l.b16 %v10199
    %v11004 = vunpack.c.h.b16 %v10199
    %v11005 = vunpack.c.l.b16 %v10200
    %v11006 = vunpack.c.l.b16 %v10201
    %v11007 = vunpack.c.h.b16 %v10201
    %v11008 = vunpack.c.l.b16 %v10202
    %v11009 = vunpack.c.h.b16 %v10202
    %v11010 = vunpack.c.l.b16 %v10203
    %v11011 = vunpack.c.l.b16 %v10204
    %v11012 = vunpack.c.h.b16 %v10204
    %v11013 = vunpack.c.l.b16 %v10205
    %v11014 = vunpack.c.h.b16 %v10205
    %v11015 = vunpack.c.l.b16 %v10206
    %v11016 = vunpack.c.l.b16 %v10207
    %v11017 = vunpack.c.h.b16 %v10207
    %v11018 = vunpack.c.l.b16 %v10208
    %v11019 = vunpack.c.h.b16 %v10208
    %v11020 = vunpack.c.l.b16 %v10209
    %v11021 = vunpack.c.l.b16 %v10210
    %v11022 = vunpack.c.h.b16 %v10210
    %v11023 = vunpack.c.l.b16 %v10211
    %v11024 = vunpack.c.h.b16 %v10211
    %v11025 = vunpack.c.l.b16 %v10212
    %v11026 = vunpack.c.l.b16 %v10213
    %v11027 = vunpack.c.h.b16 %v10213
    %v11028 = vunpack.c.l.b16 %v10214
    %v11029 = vunpack.c.h.b16 %v10214
    %v11030 = vunpack.c.l.b16 %v10215
    %v11031 = vunpack.c.l.b16 %v10216
    %v11032 = vunpack.c.h.b16 %v10216
    %v11033 = vunpack.c.l.b16 %v10217
    %v11034 = vunpack.c.h.b16 %v10217
    %v11035 = vunpack.c.l.b16 %v10218
    %v11036 = vunpack.c.l.b16 %v10219
    %v11037 = vunpack.c.h.b16 %v10219
    %v11038 = vunpack.c.l.b16 %v10220
    %v11039 = vunpack.c.h.b16 %v10220
    %v11040 = vunpack.c.l.b16 %v10221
    %v11041 = vunpack.c.l.b16 %v10222
    %v11042 = vunpack.c.h.b16 %v10222
    %v11043 = vunpack.c.l.b16 %v10223
    %v11044 = vunpack.c.h.b16 %v10223
    %v11045 = vunpack.c.l.b16 %v10224
    %v11046 = vunpack.c.l.b16 %v10225
    %v11047 = vunpack.c.h.b16 %v10225
    %v11048 = vunpack.c.l.b16 %v10226
    %v11049 = vunpack.c.h.b16 %v10226
    %v11050 = vunpack.c.l.b16 %v10227
    %v11051 = vunpack.c.l.b16 %v10228
    %v11052 = vunpack.c.h.b16 %v10228
    %v11053 = vunpack.c.l.b16 %v10229
    %v11054 = vunpack.c.h.b16 %v10229
    %v11055 = vunpack.c.l.b16 %v10230
    %v11056 = vunpack.c.l.b16 %v10231
    %v11057 = vunpack.c.h.b16 %v10231
    %v11058 = vunpack.c.l.b16 %v10232
    %v11059 = vunpack.c.h.b16 %v10232
    %v11060 = vunpack.c.l.b16 %v10233
    %v11061 = vunpack.c.l.b16 %v10234
    %v11062 = vunpack.c.h.b16 %v10234
    %v11063 = vunpack.c.l.b16 %v10235
    %v11064 = vunpack.c.h.b16 %v10235
    %v11065 = vunpack.c.l.b16 %v10236
    %v11066 = vunpack.c.l.b16 %v10237
    %v11067 = vunpack.c.h.b16 %v10237
    %v11068 = vunpack.c.l.b16 %v10238
    %v11069 = vunpack.c.h.b16 %v10238
    %v11070 = vunpack.c.l.b16 %v10239
    %v11071 = vunpack.c.l.b16 %v10240
    %v11072 = vunpack.c.h.b16 %v10240
    %v11073 = vunpack.c.l.b16 %v10241
    %v11074 = vunpack.c.h.b16 %v10241
    %v11075 = vunpack.c.l.b16 %v10242
    %v11076 = vunpack.c.l.b16 %v10243
    %v11077 = vunpack.c.h.b16 %v10243
    %v11078 = vunpack.c.l.b16 %v10244
    %v11079 = vunpack.c.h.b16 %v10244
    %v11080 = vunpack.c.l.b16 %v10245
    %v11081 = vunpack.c.l.b16 %v10246
    %v11082 = vunpack.c.h.b16 %v10246
    %v11083 = vunpack.c.l.b16 %v10247
    %v11084 = vunpack.c.h.b16 %v10247
    %v11085 = vunpack.c.l.b16 %v10248
    %v11086 = vunpack.c.l.b16 %v10249
    %v11087 = vunpack.c.h.b16 %v10249
    %v11088 = vunpack.c.l.b16 %v10250
    %v11089 = vunpack.c.h.b16 %v10250
    %v11090 = vunpack.c.l.b16 %v10251
    %v11091 = vunpack.c.l.b16 %v10252
    %v11092 = vunpack.c.h.b16 %v10252
    %v11093 = vunpack.c.l.b16 %v10253
    %v11094 = vunpack.c.h.b16 %v10253
    %v11095 = vunpack.c.l.b16 %v10254
    %v11096 = vunpack.c.l.b16 %v10255
    %v11097 = vunpack.c.h.b16 %v10255
    %v11098 = vunpack.c.l.b16 %v10256
    %v11099 = vunpack.c.h.b16 %v10256
    %v11100 = vunpack.c.l.b16 %v10257
    %v11101 = vunpack.c.l.b16 %v10258
    %v11102 = vunpack.c.h.b16 %v10258
    %v11103 = vunpack.c.l.b16 %v10259
    %v11104 = vunpack.c.h.b16 %v10259
    %v11105 = vunpack.c.l.b16 %v10260
    %v11106 = vunpack.c.l.b16 %v10261
    %v11107 = vunpack.c.h.b16 %v10261
    %v11108 = vunpack.c.l.b16 %v10262
    %v11109 = vunpack.c.h.b16 %v10262
    %v11110 = vunpack.c.l.b16 %v10263
    %v11111 = vunpack.c.l.b16 %v10264
    %v11112 = vunpack.c.h.b16 %v10264
    %v11113 = vunpack.c.l.b16 %v10265
    %v11114 = vunpack.c.h.b16 %v10265
    %v11115 = vunpack.c.l.b16 %v10266
    %v11116 = vunpack.c.l.b16 %v10267
    %v11117 = vunpack.c.h.b16 %v10267
    %v11118 = vunpack.c.l.b16 %v10268
    %v11119 = vunpack.c.h.b16 %v10268
    %v11120 = vunpack.c.l.b16 %v10269
    %v11121 = vunpack.c.l.b16 %v10270
    %v11122 = vunpack.c.h.b16 %v10270
    %v11123 = vunpack.c.l.b16 %v10271
    %v11124 = vunpack.c.h.b16 %v10271
    %v11125 = vunpack.c.l.b16 %v10272
    %v11126 = vunpack.c.l.b16 %v10273
    %v11127 = vunpack.c.h.b16 %v10273
    %v11128 = vunpack.c.l.b16 %v10274
    %v11129 = vunpack.c.h.b16 %v10274
    %v11130 = vunpack.c.l.b16 %v10275
    %v11131 = vunpack.c.l.b16 %v10276
    %v11132 = vunpack.c.h.b16 %v10276
    %v11133 = vunpack.c.l.b16 %v10277
    %v11134 = vunpack.c.h.b16 %v10277
    %v11135 = vunpack.c.l.b16 %v10278
    %v11136 = vunpack.c.l.b16 %v10279
    %v11137 = vunpack.c.h.b16 %v10279
    %v11138 = vunpack.c.l.b16 %v10280
    %v11139 = vunpack.c.h.b16 %v10280
    %v11140 = vunpack.c.l.b16 %v10281
    %v11141 = vunpack.c.l.b16 %v10282
    %v11142 = vunpack.c.h.b16 %v10282
    %v11143 = vunpack.c.l.b16 %v10283
    %v11144 = vunpack.c.h.b16 %v10283
    %v11145 = vunpack.c.l.b16 %v10284
    %v11146 = vunpack.c.l.b16 %v10285
    %v11147 = vunpack.c.h.b16 %v10285
    %v11148 = vunpack.c.l.b16 %v10286
    %v11149 = vunpack.c.h.b16 %v10286
    %v11150 = vunpack.c.l.b16 %v10287
    %v11151 = vunpack.c.l.b16 %v10288
    %v11152 = vunpack.c.h.b16 %v10288
    %v11153 = vunpack.c.l.b16 %v10289
    %v11154 = vunpack.c.h.b16 %v10289
    %v11155 = vunpack.c.l.b16 %v10290
    %v11156 = vunpack.c.l.b16 %v10291
    %v11157 = vunpack.c.h.b16 %v10291
    %v11158 = vunpack.c.l.b16 %v10292
    %v11159 = vunpack.c.h.b16 %v10292
    %v11160 = vunpack.c.l.b16 %v10293
    %v11161 = vunpack.c.l.b16 %v10294
    %v11162 = vunpack.c.h.b16 %v10294
    %v11163 = vunpack.c.l.b16 %v10295
    %v11164 = vunpack.c.h.b16 %v10295
    %v11165 = vunpack.c.l.b16 %v10296
    %v11166 = vunpack.c.l.b16 %v10297
    %v11167 = vunpack.c.h.b16 %v10297
    %v11168 = vunpack.c.l.b16 %v10298
    %v11169 = vunpack.c.h.b16 %v10298
    %v11170 = vunpack.c.l.b16 %v10299
    %v11171 = vunpack.c.l.b16 %v10300
    %v11172 = vunpack.c.h.b16 %v10300
    %v11173 = vunpack.c.l.b16 %v10301
    %v11174 = vunpack.c.h.b16 %v10301
    %v11175 = vunpack.c.l.b16 %v10302
    %v11176 = vunpack.c.l.b16 %v10303
    %v11177 = vunpack.c.h.b16 %v10303
    %v11178 = vunpack.c.l.b16 %v10304
    %v11179 = vunpack.c.h.b16 %v10304
    %v11180 = vunpack.c.l.b16 %v10305
    %v11181 = vunpack.c.l.b16 %v10306
    %v11182 = vunpack.c.h.b16 %v10306
    %v11183 = vunpack.c.l.b16 %v10307
    %v11184 = vunpack.c.h.b16 %v10307
    %v11185 = vunpack.c.l.b16 %v10308
    %v11186 = vunpack.c.l.b16 %v10309
    %v11187 = vunpack.c.h.b16 %v10309
    %v11188 = vunpack.c.l.b16 %v10310
    %v11189 = vunpack.c.h.b16 %v10310
    %v11190 = vunpack.c.l.b16 %v10311
    %v11191 = vunpack.c.l.b16 %v10312
    %v11192 = vunpack.c.h.b16 %v10312
    %v11193 = vunpack.c.l.b16 %v10313
    %v11194 = vunpack.c.h.b16 %v10313
    %v11195 = vunpack.c.l.b16 %v10314
    %v11196 = vunpack.c.l.b16 %v10315
    %v11197 = vunpack.c.h.b16 %v10315
    %v11198 = vunpack.c.l.b16 %v10316
    %v11199 = vunpack.c.h.b16 %v10316
    %v11200 = vunpack.c.l.b16 %v10317
    %v11201 = vunpack.c.l.b16 %v10318
    %v11202 = vunpack.c.h.b16 %v10318
    %v11203 = vunpack.c.l.b16 %v10319
    %v11204 = vunpack.c.h.b16 %v10319
    %v11205 = vunpack.c.l.b16 %v10320
    %v11206 = vunpack.c.l.b16 %v10321
    %v11207 = vunpack.c.h.b16 %v10321
    %v11208 = vunpack.c.l.b16 %v10322
    %v11209 = vunpack.c.h.b16 %v10322
    %v11210 = vunpack.c.l.b16 %v10323
    %v11211 = vunpack.c.l.b16 %v10324
    %v11212 = vunpack.c.h.b16 %v10324
    %v11213 = vunpack.c.l.b16 %v10325
    %v11214 = vunpack.c.h.b16 %v10325
    %v11215 = vunpack.c.l.b16 %v10326
    %v11216 = vunpack.c.l.b16 %v10327
    %v11217 = vunpack.c.h.b16 %v10327
    %v11218 = vunpack.c.l.b16 %v10328
    %v11219 = vunpack.c.h.b16 %v10328
    %v11220 = vunpack.c.l.b16 %v10329
    %v11221 = vunpack.c.l.b16 %v10330
    %v11222 = vunpack.c.h.b16 %v10330
    %v11223 = vunpack.c.l.b16 %v10331
    %v11224 = vunpack.c.h.b16 %v10331
    %v11225 = vunpack.c.l.b16 %v10332
    %v11226 = vunpack.c.l.b16 %v10333
    %v11227 = vunpack.c.h.b16 %v10333
    %v11228 = vunpack.c.l.b16 %v10334
    %v11229 = vunpack.c.h.b16 %v10334
    %v11230 = vunpack.c.l.b16 %v10335
    %v11231 = vunpack.c.l.b16 %v10336
    %v11232 = vunpack.c.h.b16 %v10336
    %v11233 = vunpack.c.l.b16 %v10337
    %v11234 = vunpack.c.h.b16 %v10337
    %v11235 = vunpack.c.l.b16 %v10338
    %v11236 = vunpack.c.l.b16 %v10339
    %v11237 = vunpack.c.h.b16 %v10339
    %v11238 = vunpack.c.l.b16 %v10340
    %v11239 = vunpack.c.h.b16 %v10340
    %v11240 = vunpack.c.l.b16 %v10341
    %v11241 = vunpack.c.l.b16 %v10342
    %v11242 = vunpack.c.h.b16 %v10342
    %v11243 = vunpack.c.l.b16 %v10343
    %v11244 = vunpack.c.h.b16 %v10343
    %v11245 = vunpack.c.l.b16 %v10344
    %v11246 = vunpack.c.l.b16 %v10345
    %v11247 = vunpack.c.h.b16 %v10345
    %v11248 = vunpack.c.l.b16 %v10346
    %v11249 = vunpack.c.h.b16 %v10346
    %v11250 = vunpack.c.l.b16 %v10347
    %v11251 = vunpack.c.l.b16 %v10348
    %v11252 = vunpack.c.h.b16 %v10348
    %v11253 = vunpack.c.l.b16 %v10349
    %v11254 = vunpack.c.h.b16 %v10349
    %v11255 = vunpack.c.l.b16 %v10350
    %v11256 = vunpack.c.l.b16 %v10351
    %v11257 = vunpack.c.h.b16 %v10351
    %v11258 = vunpack.c.l.b16 %v10352
    %v11259 = vunpack.c.h.b16 %v10352
    %v11260 = vunpack.c.l.b16 %v10353
    %v11261 = vunpack.c.l.b16 %v10354
    %v11262 = vunpack.c.h.b16 %v10354
    %v11263 = vunpack.c.l.b16 %v10355
    %v11264 = vunpack.c.h.b16 %v10355
    %v11265 = vunpack.c.l.b16 %v10356
    %v11266 = vunpack.c.l.b16 %v10357
    %v11267 = vunpack.c.h.b16 %v10357
    %v11268 = vunpack.c.l.b16 %v10358
    %v11269 = vunpack.c.h.b16 %v10358
    %v11270 = vunpack.c.l.b16 %v10359
    %v11271 = vunpack.c.l.b16 %v10360
    %v11272 = vunpack.c.h.b16 %v10360
    %v11273 = vunpack.c.l.b16 %v10361
    %v11274 = vunpack.c.h.b16 %v10361
    %v11275 = vunpack.c.l.b16 %v10362
    %v11276 = vunpack.c.l.b16 %v10363
    %v11277 = vunpack.c.h.b16 %v10363
    %v11278 = vunpack.c.l.b16 %v10364
    %v11279 = vunpack.c.h.b16 %v10364
    %v11280 = vunpack.c.l.b16 %v10365
    %v11281 = vunpack.c.l.b16 %v10366
    %v11282 = vunpack.c.h.b16 %v10366
    %v11283 = vunpack.c.l.b16 %v10367
    %v11284 = vunpack.c.h.b16 %v10367
    %v11285 = vunpack.c.l.b16 %v10368
    %v11286 = vunpack.c.l.b16 %v10369
    %v11287 = vunpack.c.h.b16 %v10369
    %v11288 = vunpack.c.l.b16 %v10370
    %v11289 = vunpack.c.h.b16 %v10370
    %v11290 = vunpack.c.l.b16 %v10371
    %v11291 = vunpack.c.l.b16 %v10372
    %v11292 = vunpack.c.h.b16 %v10372
    %v11293 = vunpack.c.l.b16 %v10373
    %v11294 = vunpack.c.h.b16 %v10373
    %v11295 = vunpack.c.l.b16 %v10374
    %v11296 = vunpack.c.l.b16 %v10375
    %v11297 = vunpack.c.h.b16 %v10375
    %v11298 = vunpack.c.l.b16 %v10376
    %v11299 = vunpack.c.h.b16 %v10376
    %v11300 = vunpack.c.l.b16 %v10377
    %v11301 = vunpack.c.l.b16 %v10378
    %v11302 = vunpack.c.h.b16 %v10378
    %v11303 = vunpack.c.l.b16 %v10379
    %v11304 = vunpack.c.h.b16 %v10379
    %v11305 = vunpack.c.l.b16 %v10380
    %v11306 = vunpack.c.l.b16 %v10381
    %v11307 = vunpack.c.h.b16 %v10381
    %v11308 = vunpack.c.l.b16 %v10382
    %v11309 = vunpack.c.h.b16 %v10382
    %v11310 = vunpack.c.l.b16 %v10383
    %v11311 = vunpack.c.l.b16 %v10384
    %v11312 = vunpack.c.h.b16 %v10384
    %v11313 = vunpack.c.l.b16 %v10385
    %v11314 = vunpack.c.h.b16 %v10385
    %v11315 = vunpack.c.l.b16 %v10386
    %v11316 = vunpack.c.l.b16 %v10387
    %v11317 = vunpack.c.h.b16 %v10387
    %v11318 = vunpack.c.l.b16 %v10388
    %v11319 = vunpack.c.h.b16 %v10388
    %v11320 = vunpack.c.l.b16 %v10389
    %v11321 = vunpack.c.l.b16 %v10390
    %v11322 = vunpack.c.h.b16 %v10390
    %v11323 = vunpack.c.l.b16 %v10391
    %v11324 = vunpack.c.h.b16 %v10391
    %v11325 = vunpack.c.l.b16 %v10392
    %v11326 = vunpack.c.l.b16 %v10393
    %v11327 = vunpack.c.h.b16 %v10393
    %v11328 = vunpack.c.l.b16 %v10394
    %v11329 = vunpack.c.h.b16 %v10394
    %v11330 = vunpack.c.l.b16 %v10395
    %v11331 = vunpack.c.l.b16 %v10396
    %v11332 = vunpack.c.h.b16 %v10396
    %v11333 = vunpack.c.l.b16 %v10397
    %v11334 = vunpack.c.h.b16 %v10397
    %v11335 = vunpack.c.l.b16 %v10398
    %v11336 = vunpack.c.l.b16 %v10399
    %v11337 = vunpack.c.h.b16 %v10399
    %v11338 = vunpack.c.l.b16 %v10400
    %v11339 = vunpack.c.h.b16 %v10400
    %v11340 = vunpack.c.l.b16 %v10401
    %v11341 = vunpack.c.l.b16 %v10402
    %v11342 = vunpack.c.h.b16 %v10402
    %v11343 = vunpack.c.l.b16 %v10403
    %v11344 = vunpack.c.h.b16 %v10403
    %v11345 = vunpack.c.l.b16 %v10404
    %v11346 = vunpack.c.l.b16 %v10405
    %v11347 = vunpack.c.h.b16 %v10405
    %v11348 = vunpack.c.l.b16 %v10406
    %v11349 = vunpack.c.h.b16 %v10406
    %v11350 = vunpack.c.l.b16 %v10407
    %v11351 = vunpack.c.l.b16 %v10408
    %v11352 = vunpack.c.h.b16 %v10408
    %v11353 = vunpack.c.l.b16 %v10409
    %v11354 = vunpack.c.h.b16 %v10409
    %v11355 = vunpack.c.l.b16 %v10410
    %v11356 = vunpack.c.l.b16 %v10411
    %v11357 = vunpack.c.h.b16 %v10411
    %v11358 = vunpack.c.l.b16 %v10412
    %v11359 = vunpack.c.h.b16 %v10412
    %v11360 = vunpack.c.l.b16 %v10413
    %v11361 = vunpack.c.l.b16 %v10414
    %v11362 = vunpack.c.h.b16 %v10414
    %v11363 = vunpack.c.l.b16 %v10415
    %v11364 = vunpack.c.h.b16 %v10415
    %v11365 = vunpack.c.l.b16 %v10416
    %v11366 = vunpack.c.l.b16 %v10417
    %v11367 = vunpack.c.h.b16 %v10417
    %v11368 = vunpack.c.l.b16 %v10418
    %v11369 = vunpack.c.h.b16 %v10418
    %v11370 = vunpack.c.l.b16 %v10419
    %v11371 = vunpack.c.l.b16 %v10420
    %v11372 = vunpack.c.h.b16 %v10420
    %v11373 = vunpack.c.l.b16 %v10421
    %v11374 = vunpack.c.h.b16 %v10421
    %v11375 = vunpack.c.l.b16 %v10422
    %v11376 = vunpack.c.l.b16 %v10423
    %v11377 = vunpack.c.h.b16 %v10423
    %v11378 = vunpack.c.l.b16 %v10424
    %v11379 = vunpack.c.h.b16 %v10424
    %v11380 = vunpack.c.l.b16 %v10425
    %v11381 = vunpack.c.l.b16 %v10426
    %v11382 = vunpack.c.h.b16 %v10426
    %v11383 = vunpack.c.l.b16 %v10427
    %v11384 = vunpack.c.h.b16 %v10427
    %v11385 = vunpack.c.l.b16 %v10428
    %v11386 = vunpack.c.l.b16 %v10429
    %v11387 = vunpack.c.h.b16 %v10429
    %v11388 = vunpack.c.l.b16 %v10430
    %v11389 = vunpack.c.h.b16 %v10430
    %v11390 = vunpack.c.l.b16 %v10431
    %v11391 = vunpack.c.l.b16 %v10432
    %v11392 = vunpack.c.h.b16 %v10432
    %v11393 = vunpack.c.l.b16 %v10433
    %v11394 = vunpack.c.h.b16 %v10433
    %v11395 = vunpack.c.l.b16 %v10434
    %v11396 = vunpack.c.l.b16 %v10435
    %v11397 = vunpack.c.h.b16 %v10435
    %v11398 = vunpack.c.l.b16 %v10436
    %v11399 = vunpack.c.h.b16 %v10436
    %v11400 = vunpack.c.l.b16 %v10437
    %v11401 = vunpack.c.l.b16 %v10438
    %v11402 = vunpack.c.h.b16 %v10438
    %v11403 = vunpack.c.l.b16 %v10439
    %v11404 = vunpack.c.h.b16 %v10439
    %v11405 = vunpack.c.l.b16 %v10440
    %v11406 = vunpack.c.l.b16 %v10441
    %v11407 = vunpack.c.h.b16 %v10441
    %v11408 = vunpack.c.l.b16 %v10442
    %v11409 = vunpack.c.h.b16 %v10442
    %v11410 = vunpack.c.l.b16 %v10443
    %v11411 = vunpack.c.l.b16 %v10444
    %v11412 = vunpack.c.h.b16 %v10444
    %v11413 = vunpack.c.l.b16 %v10445
    %v11414 = vunpack.c.h.b16 %v10445
    %v11415 = vunpack.c.l.b16 %v10446
    %v11416 = vunpack.c.l.b16 %v10447
    %v11417 = vunpack.c.h.b16 %v10447
    %v11418 = vunpack.c.l.b16 %v10448
    %v11419 = vunpack.c.h.b16 %v10448
    %v11420 = vunpack.c.l.b16 %v10449
    %v11421 = vunpack.c.l.b16 %v10450
    %v11422 = vunpack.c.h.b16 %v10450
    %v11423 = vunpack.c.l.b16 %v10451
    %v11424 = vunpack.c.h.b16 %v10451
    %v11425 = vunpack.c.l.b16 %v10452
    %v11426 = vunpack.c.l.b16 %v10453
    %v11427 = vunpack.c.h.b16 %v10453
    %v11428 = vunpack.c.l.b16 %v10454
    %v11429 = vunpack.c.h.b16 %v10454
    %v11430 = vunpack.c.l.b16 %v10455
    %v11431 = vunpack.c.l.b16 %v10456
    %v11432 = vunpack.c.h.b16 %v10456
    %v11433 = vunpack.c.l.b16 %v10457
    %v11434 = vunpack.c.h.b16 %v10457
    %v11435 = vunpack.c.l.b16 %v10458
    %v11436 = vunpack.c.l.b16 %v10459
    %v11437 = vunpack.c.h.b16 %v10459
    %v11438 = vunpack.c.l.b16 %v10460
    %v11439 = vunpack.c.h.b16 %v10460
    %v11440 = vunpack.c.l.b16 %v10461
    %v11441 = vunpack.c.l.b16 %v10462
    %v11442 = vunpack.c.h.b16 %v10462
    %v11443 = vunpack.c.l.b16 %v10463
    %v11444 = vunpack.c.h.b16 %v10463
    %v11445 = vunpack.c.l.b16 %v10464
    %v11446 = vunpack.c.l.b16 %v10465
    %v11447 = vunpack.c.h.b16 %v10465
    %v11448 = vunpack.c.l.b16 %v10466
    %v11449 = vunpack.c.h.b16 %v10466
    %v11450 = vunpack.c.l.b16 %v10467
    %v11451 = vunpack.c.l.b16 %v10468
    %v11452 = vunpack.c.h.b16 %v10468
    %v11453 = vunpack.c.l.b16 %v10469
    %v11454 = vunpack.c.h.b16 %v10469
    %v11455 = vunpack.c.l.b16 %v10470
    %v11456 = vunpack.c.l.b16 %v10471
    %v11457 = vunpack.c.h.b16 %v10471
    %v11458 = vunpack.c.l.b16 %v10472
    %v11459 = vunpack.c.h.b16 %v10472
    %v11460 = vunpack.c.l.b16 %v10473
    %v11461 = vunpack.c.l.b16 %v10474
    %v11462 = vunpack.c.h.b16 %v10474
    %v11463 = vunpack.c.l.b16 %v10475
    %v11464 = vunpack.c.h.b16 %v10475
    %v11465 = vunpack.c.l.b16 %v10476
    %v11466 = vunpack.c.l.b16 %v10477
    %v11467 = vunpack.c.h.b16 %v10477
    %v11468 = vunpack.c.l.b16 %v10478
    %v11469 = vunpack.c.h.b16 %v10478
    %v11470 = vunpack.c.l.b16 %v10479
    %v11471 = vunpack.c.l.b16 %v10480
    %v11472 = vunpack.c.h.b16 %v10480
    %v11473 = vunpack.c.l.b16 %v10481
    %v11474 = vunpack.c.h.b16 %v10481
    %v11475 = vunpack.c.l.b16 %v10482
    %v11476 = vunpack.c.l.b16 %v10483
    %v11477 = vunpack.c.h.b16 %v10483
    %v11478 = vunpack.c.l.b16 %v10484
    %v11479 = vunpack.c.h.b16 %v10484
    %v11480 = vunpack.c.l.b16 %v10485
    %v11481 = vunpack.c.l.b16 %v10486
    %v11482 = vunpack.c.h.b16 %v10486
    %v11483 = vunpack.c.l.b16 %v10487
    %v11484 = vunpack.c.h.b16 %v10487
    %v11485 = vunpack.c.l.b16 %v10488
    %v11486 = vunpack.c.l.b16 %v10489
    %v11487 = vunpack.c.h.b16 %v10489
    %v11488 = vunpack.c.l.b16 %v10490
    %v11489 = vunpack.c.h.b16 %v10490
    %v11490 = vunpack.c.l.b16 %v10491
    %v11491 = vunpack.c.l.b16 %v10492
    %v11492 = vunpack.c.h.b16 %v10492
    %v11493 = vunpack.c.l.b16 %v10493
    %v11494 = vunpack.c.h.b16 %v10493
    %v11495 = vunpack.c.l.b16 %v10494
    %v11496 = vunpack.c.l.b16 %v10495
    %v11497 = vunpack.c.h.b16 %v10495
    %v11498 = vunpack.c.l.b16 %v10496
    %v11499 = vunpack.c.h.b16 %v10496
    %v11500 = vunpack.c.l.b16 %v10497
    %v11501 = vunpack.c.l.b16 %v10498
    %v11502 = vunpack.c.h.b16 %v10498
    %v11503 = vunpack.c.l.b16 %v10499
    %v11504 = vunpack.c.h.b16 %v10499
    %v11505 = vunpack.c.l.b16 %v10500
    %v11506 = vunpack.c.l.b16 %v10501
    %v11507 = vunpack.c.h.b16 %v10501
    %v11508 = vunpack.c.l.b16 %v10502
    %v11509 = vunpack.c.h.b16 %v10502
    %v11510 = vunpack.c.l.b16 %v10503
    %v11511 = vunpack.c.l.b16 %v10504
    %v11512 = vunpack.c.h.b16 %v10504
    %v11513 = vunpack.c.l.b16 %v10505
    %v11514 = vunpack.c.h.b16 %v10505
    %v11515 = vunpack.c.l.b16 %v10506
    %v11516 = vunpack.c.l.b16 %v10507
    %v11517 = vunpack.c.h.b16 %v10507
    %v11518 = vunpack.c.l.b16 %v10508
    %v11519 = vunpack.c.h.b16 %v10508
    %v11520 = vunpack.c.l.b16 %v10509
    %v11521 = vunpack.c.l.b16 %v10510
    %v11522 = vunpack.c.h.b16 %v10510
    %v11523 = vunpack.c.l.b16 %v10511
    %v11524 = vunpack.c.h.b16 %v10511
    %v11525 = vunpack.c.l.b16 %v10512
    %v11526 = vunpack.c.l.b16 %v10513
    %v11527 = vunpack.c.h.b16 %v10513
    %v11528 = vunpack.c.l.b16 %v10514
    %v11529 = vunpack.c.h.b16 %v10514
    %v11530 = vunpack.c.l.b16 %v10515
    %v11531 = vunpack.c.l.b16 %v10516
    %v11532 = vunpack.c.h.b16 %v10516
    %v11533 = vunpack.c.l.b16 %v10517
    %v11534 = vunpack.c.h.b16 %v10517
    %v11535 = vunpack.c.l.b16 %v10518
    %v11536 = vunpack.c.l.b16 %v10519
    %v11537 = vunpack.c.h.b16 %v10519
    %v11538 = vunpack.c.l.b16 %v10520
    %v11539 = vunpack.c.h.b16 %v10520
    %v11540 = vunpack.c.l.b16 %v10521
    %v11541 = vunpack.c.l.b16 %v10522
    %v11542 = vunpack.c.h.b16 %v10522
    %v11543 = vunpack.c.l.b16 %v10523
    %v11544 = vunpack.c.h.b16 %v10523
    %v11545 = vunpack.c.l.b16 %v10524
    %v11546 = vunpack.c.l.b16 %v10525
    %v11547 = vunpack.c.h.b16 %v10525
    %v11548 = vunpack.c.l.b16 %v10526
    %v11549 = vunpack.c.h.b16 %v10526
    %v11550 = vunpack.c.l.b16 %v10527
    %v11551 = vunpack.c.l.b16 %v10528
    %v11552 = vunpack.c.h.b16 %v10528
    %v11553 = vunpack.c.l.b16 %v10529
    %v11554 = vunpack.c.h.b16 %v10529
    %v11555 = vunpack.c.l.b16 %v10530
    %v11556 = vunpack.c.l.b16 %v10531
    %v11557 = vunpack.c.h.b16 %v10531
    %v11558 = vunpack.c.l.b16 %v10532
    %v11559 = vunpack.c.h.b16 %v10532
    %v11560 = vunpack.c.l.b16 %v10533
    %v11561 = vunpack.c.l.b16 %v10534
    %v11562 = vunpack.c.h.b16 %v10534
    %v11563 = vunpack.c.l.b16 %v10535
    %v11564 = vunpack.c.h.b16 %v10535
    %v11565 = vunpack.c.l.b16 %v10536
    %v11566 = vunpack.c.l.b16 %v10537
    %v11567 = vunpack.c.h.b16 %v10537
    %v11568 = vunpack.c.l.b16 %v10538
    %v11569 = vunpack.c.h.b16 %v10538
    %v11570 = vunpack.c.l.b16 %v10539
    %v11571 = vunpack.c.l.b16 %v10540
    %v11572 = vunpack.c.h.b16 %v10540
    %v11573 = vunpack.c.l.b16 %v10541
    %v11574 = vunpack.c.h.b16 %v10541
    %v11575 = vunpack.c.l.b16 %v10542
    %v11576 = vunpack.c.l.b16 %v10543
    %v11577 = vunpack.c.h.b16 %v10543
    %v11578 = vunpack.c.l.b16 %v10544
    %v11579 = vunpack.c.h.b16 %v10544
    %v11580 = vunpack.c.l.b16 %v10545
    %v11581 = vunpack.c.l.b16 %v10546
    %v11582 = vunpack.c.h.b16 %v10546
    %v11583 = vunpack.c.l.b16 %v10547
    %v11584 = vunpack.c.h.b16 %v10547
    %v11585 = vunpack.c.l.b16 %v10548
    %v11586 = vunpack.c.l.b16 %v10549
    %v11587 = vunpack.c.h.b16 %v10549
    %v11588 = vunpack.c.l.b16 %v10550
    %v11589 = vunpack.c.h.b16 %v10550
    %v11590 = vunpack.c.l.b16 %v10551
    %v11591 = vunpack.c.l.b16 %v10552
    %v11592 = vunpack.c.h.b16 %v10552
    %v11593 = vunpack.c.l.b16 %v10553
    %v11594 = vunpack.c.h.b16 %v10553
    %v11595 = vunpack.c.l.b16 %v10554
    %v11596 = vunpack.c.l.b16 %v10555
    %v11597 = vunpack.c.h.b16 %v10555
    %v11598 = vunpack.c.l.b16 %v10556
    %v11599 = vunpack.c.h.b16 %v10556
    %v11600 = vunpack.c.l.b16 %v10557
    %v11601 = vunpack.c.l.b16 %v10558
    %v11602 = vunpack.c.h.b16 %v10558
    %v11603 = vunpack.c.l.b16 %v10559
    %v11604 = vunpack.c.h.b16 %v10559
    %v11605 = vunpack.c.l.b16 %v10560
    %v11606 = vunpack.c.l.b16 %v10561
    %v11607 = vunpack.c.h.b16 %v10561
    %v11608 = vunpack.c.l.b16 %v10562
    %v11609 = vunpack.c.h.b16 %v10562
    %v11610 = vunpack.c.l.b16 %v10563
    %v11611 = vunpack.c.l.b16 %v10564
    %v11612 = vunpack.c.h.b16 %v10564
    %v11613 = vunpack.c.l.b16 %v10565
    %v11614 = vunpack.c.h.b16 %v10565
    %v11615 = vunpack.c.l.b16 %v10566
    %v11616 = vunpack.c.l.b16 %v10567
    %v11617 = vunpack.c.h.b16 %v10567
    %v11618 = vunpack.c.l.b16 %v10568
    %v11619 = vunpack.c.h.b16 %v10568
    %v11620 = vunpack.c.l.b16 %v10569
    %v11621 = vpack.c.b16 %v10986, %v10981
    %v11622 = vpack.c.b16 %v10987, %v10982
    %v11623 = vpack.c.b16 %v10988, %v10983
    %v11624 = vpack.c.b16 %v10989, %v10984
    %v11625 = vpack.c.b16 %v10990, %v10985
    %v11626 = vpack.c.b16 %v10996, %v10991
    %v11627 = vpack.c.b16 %v10997, %v10992
    %v11628 = vpack.c.b16 %v10998, %v10993
    %v11629 = vpack.c.b16 %v10999, %v10994
    %v11630 = vpack.c.b16 %v11000, %v10995
    %v11631 = vpack.c.b16 %v11006, %v11001
    %v11632 = vpack.c.b16 %v11007, %v11002
    %v11633 = vpack.c.b16 %v11008, %v11003
    %v11634 = vpack.c.b16 %v11009, %v11004
    %v11635 = vpack.c.b16 %v11010, %v11005
    %v11636 = vpack.c.b16 %v11016, %v11011
    %v11637 = vpack.c.b16 %v11017, %v11012
    %v11638 = vpack.c.b16 %v11018, %v11013
    %v11639 = vpack.c.b16 %v11019, %v11014
    %v11640 = vpack.c.b16 %v11020, %v11015
    %v11641 = vpack.c.b16 %v11026, %v11021
    %v11642 = vpack.c.b16 %v11027, %v11022
    %v11643 = vpack.c.b16 %v11028, %v11023
    %v11644 = vpack.c.b16 %v11029, %v11024
    %v11645 = vpack.c.b16 %v11030, %v11025
    %v11646 = vpack.c.b16 %v11036, %v11031
    %v11647 = vpack.c.b16 %v11037, %v11032
    %v11648 = vpack.c.b16 %v11038, %v11033
    %v11649 = vpack.c.b16 %v11039, %v11034
    %v11650 = vpack.c.b16 %v11040, %v11035
    %v11651 = vpack.c.b16 %v11046, %v11041
    %v11652 = vpack.c.b16 %v11047, %v11042
    %v11653 = vpack.c.b16 %v11048, %v11043
    %v11654 = vpack.c.b16 %v11049, %v11044
    %v11655 = vpack.c.b16 %v11050, %v11045
    %v11656 = vpack.c.b16 %v11056, %v11051
    %v11657 = vpack.c.b16 %v11057, %v11052
    %v11658 = vpack.c.b16 %v11058, %v11053
    %v11659 = vpack.c.b16 %v11059, %v11054
    %v11660 = vpack.c.b16 %v11060, %v11055
    %v11661 = vpack.c.b16 %v11066, %v11061
    %v11662 = vpack.c.b16 %v11067, %v11062
    %v11663 = vpack.c.b16 %v11068, %v11063
    %v11664 = vpack.c.b16 %v11069, %v11064
    %v11665 = vpack.c.b16 %v11070, %v11065
    %v11666 = vpack.c.b16 %v11076, %v11071
    %v11667 = vpack.c.b16 %v11077, %v11072
    %v11668 = vpack.c.b16 %v11078, %v11073
    %v11669 = vpack.c.b16 %v11079, %v11074
    %v11670 = vpack.c.b16 %v11080, %v11075
    %v11671 = vpack.c.b16 %v11086, %v11081
    %v11672 = vpack.c.b16 %v11087, %v11082
    %v11673 = vpack.c.b16 %v11088, %v11083
    %v11674 = vpack.c.b16 %v11089, %v11084
    %v11675 = vpack.c.b16 %v11090, %v11085
    %v11676 = vpack.c.b16 %v11096, %v11091
    %v11677 = vpack.c.b16 %v11097, %v11092
    %v11678 = vpack.c.b16 %v11098, %v11093
    %v11679 = vpack.c.b16 %v11099, %v11094
    %v11680 = vpack.c.b16 %v11100, %v11095
    %v11681 = vpack.c.b16 %v11106, %v11101
    %v11682 = vpack.c.b16 %v11107, %v11102
    %v11683 = vpack.c.b16 %v11108, %v11103
    %v11684 = vpack.c.b16 %v11109, %v11104
    %v11685 = vpack.c.b16 %v11110, %v11105
    %v11686 = vpack.c.b16 %v11116, %v11111
    %v11687 = vpack.c.b16 %v11117, %v11112
    %v11688 = vpack.c.b16 %v11118, %v11113
    %v11689 = vpack.c.b16 %v11119, %v11114
    %v11690 = vpack.c.b16 %v11120, %v11115
    %v11691 = vpack.c.b16 %v11126, %v11121
    %v11692 = vpack.c.b16 %v11127, %v11122
    %v11693 = vpack.c.b16 %v11128, %v11123
    %v11694 = vpack.c.b16 %v11129, %v11124
    %v11695 = vpack.c.b16 %v11130, %v11125
    %v11696 = vpack.c.b16 %v11136, %v11131
    %v11697 = vpack.c.b16 %v11137, %v11132
    %v11698 = vpack.c.b16 %v11138, %v11133
    %v11699 = vpack.c.b16 %v11139, %v11134
    %v11700 = vpack.c.b16 %v11140, %v11135
    %v11701 = vpack.c.b16 %v11146, %v11141
    %v11702 = vpack.c.b16 %v11147, %v11142
    %v11703 = vpack.c.b16 %v11148, %v11143
    %v11704 = vpack.c.b16 %v11149, %v11144
    %v11705 = vpack.c.b16 %v11150, %v11145
    %v11706 = vpack.c.b16 %v11156, %v11151
    %v11707 = vpack.c.b16 %v11157, %v11152
    %v11708 = vpack.c.b16 %v11158, %v11153
    %v11709 = vpack.c.b16 %v11159, %v11154
    %v11710 = vpack.c.b16 %v11160, %v11155
    %v11711 = vpack.c.b16 %v11166, %v11161
    %v11712 = vpack.c.b16 %v11167, %v11162
    %v11713 = vpack.c.b16 %v11168, %v11163
    %v11714 = vpack.c.b16 %v11169, %v11164
    %v11715 = vpack.c.b16 %v11170, %v11165
    %v11716 = vpack.c.b16 %v11176, %v11171
    %v11717 = vpack.c.b16 %v11177, %v11172
    %v11718 = vpack.c.b16 %v11178, %v11173
    %v11719 = vpack.c.b16 %v11179, %v11174
    %v11720 = vpack.c.b16 %v11180, %v11175
    %v11721 = vpack.c.b16 %v11186, %v11181
    %v11722 = vpack.c.b16 %v11187, %v11182
    %v11723 = vpack.c.b16 %v11188, %v11183
    %v11724 = vpack.c.b16 %v11189, %v11184
    %v11725 = vpack.c.b16 %v11190, %v11185
    %v11726 = vpack.c.b16 %v11196, %v11191
    %v11727 = vpack.c.b16 %v11197, %v11192
    %v11728 = vpack.c.b16 %v11198, %v11193
    %v11729 = vpack.c.b16 %v11199, %v11194
    %v11730 = vpack.c.b16 %v11200, %v11195
    %v11731 = vpack.c.b16 %v11206, %v11201
    %v11732 = vpack.c.b16 %v11207, %v11202
    %v11733 = vpack.c.b16 %v11208, %v11203
    %v11734 = vpack.c.b16 %v11209, %v11204
    %v11735 = vpack.c.b16 %v11210, %v11205
    %v11736 = vpack.c.b16 %v11216, %v11211
    %v11737 = vpack.c.b16 %v11217, %v11212
    %v11738 = vpack.c.b16 %v11218, %v11213
    %v11739 = vpack.c.b16 %v11219, %v11214
    %v11740 = vpack.c.b16 %v11220, %v11215
    %v11741 = vpack.c.b16 %v11226, %v11221
    %v11742 = vpack.c.b16 %v11227, %v11222
    %v11743 = vpack.c.b16 %v11228, %v11223
    %v11744 = vpack.c.b16 %v11229, %v11224
    %v11745 = vpack.c.b16 %v11230, %v11225
    %v11746 = vpack.c.b16 %v11236, %v11231
    %v11747 = vpack.c.b16 %v11237, %v11232
    %v11748 = vpack.c.b16 %v11238, %v11233
    %v11749 = vpack.c.b16 %v11239, %v11234
    %v11750 = vpack.c.b16 %v11240, %v11235
    %v11751 = vpack.c.b16 %v11246, %v11241
    %v11752 = vpack.c.b16 %v11247, %v11242
    %v11753 = vpack.c.b16 %v11248, %v11243
    %v11754 = vpack.c.b16 %v11249, %v11244
    %v11755 = vpack.c.b16 %v11250, %v11245
    %v11756 = vpack.c.b16 %v11256, %v11251
    %v11757 = vpack.c.b16 %v11257, %v11252
    %v11758 = vpack.c.b16 %v11258, %v11253
    %v11759 = vpack.c.b16 %v11259, %v11254
    %v11760 = vpack.c.b16 %v11260, %v11255
    %v11761 = vpack.c.b16 %v11266, %v11261
    %v11762 = vpack.c.b16 %v11267, %v11262
    %v11763 = vpack.c.b16 %v11268, %v11263
    %v11764 = vpack.c.b16 %v11269, %v11264
    %v11765 = vpack.c.b16 %v11270, %v11265
    %v11766 = vpack.c.b16 %v11276, %v11271
    %v11767 = vpack.c.b16 %v11277, %v11272
    %v11768 = vpack.c.b16 %v11278, %v11273
    %v11769 = vpack.c.b16 %v11279, %v11274
    %v11770 = vpack.c.b16 %v11280, %v11275
    %v11771 = vpack.c.b16 %v11286, %v11281
    %v11772 = vpack.c.b16 %v11287, %v11282
    %v11773 = vpack.c.b16 %v11288, %v11283
    %v11774 = vpack.c.b16 %v11289, %v11284
    %v11775 = vpack.c.b16 %v11290, %v11285
    %v11776 = vpack.c.b16 %v11296, %v11291
    %v11777 = vpack.c.b16 %v11297, %v11292
    %v11778 = vpack.c.b16 %v11298, %v11293
    %v11779 = vpack.c.b16 %v11299, %v11294
    %v11780 = vpack.c.b16 %v11300, %v11295
    %v11781 = vpack.c.b16 %v11306, %v11301
    %v11782 = vpack.c.b16 %v11307, %v11302
    %v11783 = vpack.c.b16 %v11308, %v11303
    %v11784 = vpack.c.b16 %v11309, %v11304
    %v11785 = vpack.c.b16 %v11310, %v11305
    %v11786 = vpack.c.b16 %v11316, %v11311
    %v11787 = vpack.c.b16 %v11317, %v11312
    %v11788 = vpack.c.b16 %v11318, %v11313
    %v11789 = vpack.c.b16 %v11319, %v11314
    %v11790 = vpack.c.b16 %v11320, %v11315
    %v11791 = vpack.c.b16 %v11326, %v11321
    %v11792 = vpack.c.b16 %v11327, %v11322
    %v11793 = vpack.c.b16 %v11328, %v11323
    %v11794 = vpack.c.b16 %v11329, %v11324
    %v11795 = vpack.c.b16 %v11330, %v11325
    %v11796 = vpack.c.b16 %v11336, %v11331
    %v11797 = vpack.c.b16 %v11337, %v11332
    %v11798 = vpack.c.b16 %v11338, %v11333
    %v11799 = vpack.c.b16 %v11339, %v11334
    %v11800 = vpack.c.b16 %v11340, %v11335
    %v11801 = vpack.c.b16 %v11346, %v11341
    %v11802 = vpack.c.b16 %v11347, %v11342
    %v11803 = vpack.c.b16 %v11348, %v11343
    %v11804 = vpack.c.b16 %v11349, %v11344
    %v11805 = vpack.c.b16 %v11350, %v11345
    %v11806 = vpack.c.b16 %v11356, %v11351
    %v11807 = vpack.c.b16 %v11357, %v11352
    %v11808 = vpack.c.b16 %v11358, %v11353
    %v11809 = vpack.c.b16 %v11359, %v11354
    %v11810 = vpack.c.b16 %v11360, %v11355
    %v11811 = vpack.c.b16 %v11366, %v11361
    %v11812 = vpack.c.b16 %v11367, %v11362
    %v11813 = vpack.c.b16 %v11368, %v11363
    %v11814 = vpack.c.b16 %v11369, %v11364
    %v11815 = vpack.c.b16 %v11370, %v11365
    %v11816 = vpack.c.b16 %v11376, %v11371
    %v11817 = vpack.c.b16 %v11377, %v11372
    %v11818 = vpack.c.b16 %v11378, %v11373
    %v11819 = vpack.c.b16 %v11379, %v11374
    %v11820 = vpack.c.b16 %v11380, %v11375
    %v11821 = vpack.c.b16 %v11386, %v11381
    %v11822 = vpack.c.b16 %v11387, %v11382
    %v11823 = vpack.c.b16 %v11388, %v11383
    %v11824 = vpack.c.b16 %v11389, %v11384
    %v11825 = vpack.c.b16 %v11390, %v11385
    %v11826 = vpack.c.b16 %v11396, %v11391
    %v11827 = vpack.c.b16 %v11397, %v11392
    %v11828 = vpack.c.b16 %v11398, %v11393
    %v11829 = vpack.c.b16 %v11399, %v11394
    %v11830 = vpack.c.b16 %v11400, %v11395
    %v11831 = vpack.c.b16 %v11406, %v11401
    %v11832 = vpack.c.b16 %v11407, %v11402
    %v11833 = vpack.c.b16 %v11408, %v11403
    %v11834 = vpack.c.b16 %v11409, %v11404
    %v11835 = vpack.c.b16 %v11410, %v11405
    %v11836 = vpack.c.b16 %v11416, %v11411
    %v11837 = vpack.c.b16 %v11417, %v11412
    %v11838 = vpack.c.b16 %v11418, %v11413
    %v11839 = vpack.c.b16 %v11419, %v11414
    %v11840 = vpack.c.b16 %v11420, %v11415
    %v11841 = vpack.c.b16 %v11426, %v11421
    %v11842 = vpack.c.b16 %v11427, %v11422
    %v11843 = vpack.c.b16 %v11428, %v11423
    %v11844 = vpack.c.b16 %v11429, %v11424
    %v11845 = vpack.c.b16 %v11430, %v11425
    %v11846 = vpack.c.b16 %v11436, %v11431
    %v11847 = vpack.c.b16 %v11437, %v11432
    %v11848 = vpack.c.b16 %v11438, %v11433
    %v11849 = vpack.c.b16 %v11439, %v11434
    %v11850 = vpack.c.b16 %v11440, %v11435
    %v11851 = vpack.c.b16 %v11446, %v11441
    %v11852 = vpack.c.b16 %v11447, %v11442
    %v11853 = vpack.c.b16 %v11448, %v11443
    %v11854 = vpack.c.b16 %v11449, %v11444
    %v11855 = vpack.c.b16 %v11450, %v11445
    %v11856 = vpack.c.b16 %v11456, %v11451
    %v11857 = vpack.c.b16 %v11457, %v11452
    %v11858 = vpack.c.b16 %v11458, %v11453
    %v11859 = vpack.c.b16 %v11459, %v11454
    %v11860 = vpack.c.b16 %v11460, %v11455
    %v11861 = vpack.c.b16 %v11466, %v11461
    %v11862 = vpack.c.b16 %v11467, %v11462
    %v11863 = vpack.c.b16 %v11468, %v11463
    %v11864 = vpack.c.b16 %v11469, %v11464
    %v11865 = vpack.c.b16 %v11470, %v11465
    %v11866 = vpack.c.b16 %v11476, %v11471
    %v11867 = vpack.c.b16 %v11477, %v11472
    %v11868 = vpack.c.b16 %v11478, %v11473
    %v11869 = vpack.c.b16 %v11479, %v11474
    %v11870 = vpack.c.b16 %v11480, %v11475
    %v11871 = vpack.c.b16 %v11486, %v11481
    %v11872 = vpack.c.b16 %v11487, %v11482
    %v11873 = vpack.c.b16 %v11488, %v11483
    %v11874 = vpack.c.b16 %v11489, %v11484
    %v11875 = vpack.c.b16 %v11490, %v11485
    %v11876 = vpack.c.b16 %v11496, %v11491
    %v11877 = vpack.c.b16 %v11497, %v11492
    %v11878 = vpack.c.b16 %v11498, %v11493
    %v11879 = vpack.c.b16 %v11499, %v11494
    %v11880 = vpack.c.b16 %v11500, %v11495
    %v11881 = vpack.c.b16 %v11506, %v11501
    %v11882 = vpack.c.b16 %v11507, %v11502
    %v11883 = vpack.c.b16 %v11508, %v11503
    %v11884 = vpack.c.b16 %v11509, %v11504
    %v11885 = vpack.c.b16 %v11510, %v11505
    %v11886 = vpack.c.b16 %v11516, %v11511
    %v11887 = vpack.c.b16 %v11517, %v11512
    %v11888 = vpack.c.b16 %v11518, %v11513
    %v11889 = vpack.c.b16 %v11519, %v11514
    %v11890 = vpack.c.b16 %v11520, %v11515
    %v11891 = vpack.c.b16 %v11526, %v11521
    %v11892 = vpack.c.b16 %v11527, %v11522
    %v11893 = vpack.c.b16 %v11528, %v11523
    %v11894 = vpack.c.b16 %v11529, %v11524
    %v11895 = vpack.c.b16 %v11530, %v11525
    %v11896 = vpack.c.b16 %v11536, %v11531
    %v11897 = vpack.c.b16 %v11537, %v11532
    %v11898 = vpack.c.b16 %v11538, %v11533
    %v11899 = vpack.c.b16 %v11539, %v11534
    %v11900 = vpack.c.b16 %v11540, %v11535
    %v11901 = vpack.c.b16 %v11546, %v11541
    %v11902 = vpack.c.b16 %v11547, %v11542
    %v11903 = vpack.c.b16 %v11548, %v11543
    %v11904 = vpack.c.b16 %v11549, %v11544
    %v11905 = vpack.c.b16 %v11550, %v11545
    %v11906 = vpack.c.b16 %v11556, %v11551
    %v11907 = vpack.c.b16 %v11557, %v11552
    %v11908 = vpack.c.b16 %v11558, %v11553
    %v11909 = vpack.c.b16 %v11559, %v11554
    %v11910 = vpack.c.b16 %v11560, %v11555
    %v11911 = vpack.c.b16 %v11566, %v11561
    %v11912 = vpack.c.b16 %v11567, %v11562
    %v11913 = vpack.c.b16 %v11568, %v11563
    %v11914 = vpack.c.b16 %v11569, %v11564
    %v11915 = vpack.c.b16 %v11570, %v11565
    %v11916 = vpack.c.b16 %v11576, %v11571
    %v11917 = vpack.c.b16 %v11577, %v11572
    %v11918 = vpack.c.b16 %v11578, %v11573
    %v11919 = vpack.c.b16 %v11579, %v11574
    %v11920 = vpack.c.b16 %v11580, %v11575
    %v11921 = vpack.c.b16 %v11586, %v11581
    %v11922 = vpack.c.b16 %v11587, %v11582
    %v11923 = vpack.c.b16 %v11588, %v11583
    %v11924 = vpack.c.b16 %v11589, %v11584
    %v11925 = vpack.c.b16 %v11590, %v11585
    %v11926 = vpack.c.b16 %v11596, %v11591
    %v11927 = vpack.c.b16 %v11597, %v11592
    %v11928 = vpack.c.b16 %v11598, %v11593
    %v11929 = vpack.c.b16 %v11599, %v11594
    %v11930 = vpack.c.b16 %v11600, %v11595
    %v11931 = vpack.c.b16 %v11606, %v11601
    %v11932 = vpack.c.b16 %v11607, %v11602
    %v11933 = vpack.c.b16 %v11608, %v11603
    %v11934 = vpack.c.b16 %v11609, %v11604
    %v11935 = vpack.c.b16 %v11610, %v11605
    %v11936 = vpack.c.b16 %v11616, %v11611
    %v11937 = vpack.c.b16 %v11617, %v11612
    %v11938 = vpack.c.b16 %v11618, %v11613
    %v11939 = vpack.c.b16 %v11619, %v11614
    %v11940 = vpack.c.b16 %v11620, %v11615
    %12261 = vmatprep.subr.bf16.mxu0 %v11622
    %12262 = vmatpush1.bf16.msra.mxu0 %v11621
    %12263 = vmatprep.subr.bf16.mxu0 %v11627
    %12264 = vmatpush1.bf16.msra.mxu0 %v11626
    %12265 = vmatprep.subr.bf16.mxu0 %v11632
    %12266 = vmatpush1.bf16.msra.mxu0 %v11631
    %12267 = vmatprep.subr.bf16.mxu0 %v11637
    %12268 = vmatpush1.bf16.msra.mxu0 %v11636
    %12269 = vmatprep.subr.bf16.mxu0 %v11642
    %12270 = vmatpush1.bf16.msra.mxu0 %v11641
    %12271 = vmatprep.subr.bf16.mxu0 %v11647
    %12272 = vmatpush1.bf16.msra.mxu0 %v11646
    %12273 = vmatprep.subr.bf16.mxu0 %v11652
    %12274 = vmatpush1.bf16.msra.mxu0 %v11651
    %12275 = vmatprep.subr.bf16.mxu0 %v11657
    %12276 = vmatpush1.bf16.msra.mxu0 %v11656
    %12277 = vmatprep.subr.bf16.mxu0 %v11662
    %12278 = vmatpush1.bf16.msra.mxu0 %v11661
    %12279 = vmatprep.subr.bf16.mxu0 %v11667
    %12280 = vmatpush1.bf16.msra.mxu0 %v11666
    %12281 = vmatprep.subr.bf16.mxu0 %v11672
    %12282 = vmatpush1.bf16.msra.mxu0 %v11671
    %12283 = vmatprep.subr.bf16.mxu0 %v11677
    %12284 = vmatpush1.bf16.msra.mxu0 %v11676
    %12285 = vmatprep.subr.bf16.mxu0 %v11682
    %12286 = vmatpush1.bf16.msra.mxu0 %v11681
    %12287 = vmatprep.subr.bf16.mxu0 %v11687
    %12288 = vmatpush1.bf16.msra.mxu0 %v11686
    %12289 = vmatprep.subr.bf16.mxu0 %v11692
    %12290 = vmatpush1.bf16.msra.mxu0 %v11691
    %12291 = vmatprep.subr.bf16.mxu0 %v11697
    %12292 = vmatpush1.bf16.msra.mxu0 %v11696
    %12293 = vmatprep.mubr.bf16.mxu0 %v10179
    %12294 = vmatmul.mubr.bf16.gmra.mrb[0].mxu0 %v10178
    %v12295 = vpop.f32.mrb[0].mxu0
    %v12296 = vadd.f32 %v10575, %v12295
    %v12297 = vpop.f32.mrb[0].mxu0
    %v12298 = vadd.f32 %v10579, %v12297
    %v12299 = vpop.f32.mrb[0].mxu0
    %v12300 = vpop.f32.mrb[0].mxu0
    %12301 = vdwg.mxu0
    %12302 = vmatprep.subr.bf16.mxu0 %v11702
    %12303 = vmatpush1.bf16.msra.mxu0 %v11701
    %12304 = vmatprep.subr.bf16.mxu0 %v11707
    %12305 = vmatpush1.bf16.msra.mxu0 %v11706
    %12306 = vmatprep.subr.bf16.mxu0 %v11712
    %12307 = vmatpush1.bf16.msra.mxu0 %v11711
    %12308 = vmatprep.subr.bf16.mxu0 %v11717
    %12309 = vmatpush1.bf16.msra.mxu0 %v11716
    %12310 = vmatprep.subr.bf16.mxu0 %v11722
    %12311 = vmatpush1.bf16.msra.mxu0 %v11721
    %12312 = vmatprep.subr.bf16.mxu0 %v11727
    %12313 = vmatpush1.bf16.msra.mxu0 %v11726
    %12314 = vmatprep.subr.bf16.mxu0 %v11732
    %12315 = vmatpush1.bf16.msra.mxu0 %v11731
    %12316 = vmatprep.subr.bf16.mxu0 %v11737
    %12317 = vmatpush1.bf16.msra.mxu0 %v11736
    %12318 = vmatprep.subr.bf16.mxu0 %v11742
    %12319 = vmatpush1.bf16.msra.mxu0 %v11741
    %12320 = vmatprep.subr.bf16.mxu0 %v11747
    %12321 = vmatpush1.bf16.msra.mxu0 %v11746
    %12322 = vmatprep.subr.bf16.mxu0 %v11752
    %12323 = vmatpush1.bf16.msra.mxu0 %v11751
    %12324 = vmatprep.subr.bf16.mxu0 %v11757
    %12325 = vmatpush1.bf16.msra.mxu0 %v11756
    %12326 = vmatprep.subr.bf16.mxu0 %v11762
    %12327 = vmatpush1.bf16.msra.mxu0 %v11761
    %12328 = vmatprep.subr.bf16.mxu0 %v11767
    %12329 = vmatpush1.bf16.msra.mxu0 %v11766
    %12330 = vmatprep.subr.bf16.mxu0 %v11772
    %12331 = vmatpush1.bf16.msra.mxu0 %v11771
    %12332 = vmatprep.subr.bf16.mxu0 %v11777
    %12333 = vmatpush1.bf16.msra.mxu0 %v11776
    %12334 = vmatprep.mubr.bf16.mxu0 %v10181
    %12335 = vmatmul.mubr.bf16.gmra.mrb[0].mxu0 %v10180
    %v12336 = vpop.f32.mrb[0].mxu0
    %v12337 = vadd.f32 %v12296, %v12336
    %v12338 = vpop.f32.mrb[0].mxu0
    %v12339 = vadd.f32 %v12298, %v12338
    %v12340 = vpop.f32.mrb[0].mxu0
    %v12341 = vpop.f32.mrb[0].mxu0
    %12342 = vdwg.mxu0
    %12343 = vmatprep.subr.bf16.mxu0 %v11782
    %12344 = vmatpush1.bf16.msra.mxu0 %v11781
    %12345 = vmatprep.subr.bf16.mxu0 %v11787
    %12346 = vmatpush1.bf16.msra.mxu0 %v11786
    %12347 = vmatprep.subr.bf16.mxu0 %v11792
    %12348 = vmatpush1.bf16.msra.mxu0 %v11791
    %12349 = vmatprep.subr.bf16.mxu0 %v11797
    %12350 = vmatpush1.bf16.msra.mxu0 %v11796
    %12351 = vmatprep.subr.bf16.mxu0 %v11802
    %12352 = vmatpush1.bf16.msra.mxu0 %v11801
    %12353 = vmatprep.subr.bf16.mxu0 %v11807
    %12354 = vmatpush1.bf16.msra.mxu0 %v11806
    %12355 = vmatprep.subr.bf16.mxu0 %v11812
    %12356 = vmatpush1.bf16.msra.mxu0 %v11811
    %12357 = vmatprep.subr.bf16.mxu0 %v11817
    %12358 = vmatpush1.bf16.msra.mxu0 %v11816
    %12359 = vmatprep.subr.bf16.mxu0 %v11822
    %12360 = vmatpush1.bf16.msra.mxu0 %v11821
    %12361 = vmatprep.subr.bf16.mxu0 %v11827
    %12362 = vmatpush1.bf16.msra.mxu0 %v11826
    %12363 = vmatprep.subr.bf16.mxu0 %v11832
    %12364 = vmatpush1.bf16.msra.mxu0 %v11831
    %12365 = vmatprep.subr.bf16.mxu0 %v11837
    %12366 = vmatpush1.bf16.msra.mxu0 %v11836
    %12367 = vmatprep.subr.bf16.mxu0 %v11842
    %12368 = vmatpush1.bf16.msra.mxu0 %v11841
    %12369 = vmatprep.subr.bf16.mxu0 %v11847
    %12370 = vmatpush1.bf16.msra.mxu0 %v11846
    %12371 = vmatprep.subr.bf16.mxu0 %v11852
    %12372 = vmatpush1.bf16.msra.mxu0 %v11851
    %12373 = vmatprep.subr.bf16.mxu0 %v11857
    %12374 = vmatpush1.bf16.msra.mxu0 %v11856
    %12375 = vmatprep.mubr.bf16.mxu0 %v10183
    %12376 = vmatmul.mubr.bf16.gmra.mrb[0].mxu0 %v10182
    %v12377 = vpop.f32.mrb[0].mxu0
    %v12378 = vadd.f32 %v12337, %v12377
    %v12379 = vpop.f32.mrb[0].mxu0
    %v12380 = vadd.f32 %v12339, %v12379
    %v12381 = vpop.f32.mrb[0].mxu0
    %v12382 = vpop.f32.mrb[0].mxu0
    %12383 = vdwg.mxu0
    %12384 = vmatprep.subr.bf16.mxu0 %v11862
    %12385 = vmatpush1.bf16.msra.mxu0 %v11861
    %12386 = vmatprep.subr.bf16.mxu0 %v11867
    %12387 = vmatpush1.bf16.msra.mxu0 %v11866
    %12388 = vmatprep.subr.bf16.mxu0 %v11872
    %12389 = vmatpush1.bf16.msra.mxu0 %v11871
    %12390 = vmatprep.subr.bf16.mxu0 %v11877
    %12391 = vmatpush1.bf16.msra.mxu0 %v11876
    %12392 = vmatprep.subr.bf16.mxu0 %v11882
    %12393 = vmatpush1.bf16.msra.mxu0 %v11881
    %12394 = vmatprep.subr.bf16.mxu0 %v11887
    %12395 = vmatpush1.bf16.msra.mxu0 %v11886
    %12396 = vmatprep.subr.bf16.mxu0 %v11892
    %12397 = vmatpush1.bf16.msra.mxu0 %v11891
    %12398 = vmatprep.subr.bf16.mxu0 %v11897
    %12399 = vmatpush1.bf16.msra.mxu0 %v11896
    %12400 = vmatprep.subr.bf16.mxu0 %v11902
    %12401 = vmatpush1.bf16.msra.mxu0 %v11901
    %12402 = vmatprep.subr.bf16.mxu0 %v11907
    %12403 = vmatpush1.bf16.msra.mxu0 %v11906
    %12404 = vmatprep.subr.bf16.mxu0 %v11912
    %12405 = vmatpush1.bf16.msra.mxu0 %v11911
    %12406 = vmatprep.subr.bf16.mxu0 %v11917
    %12407 = vmatpush1.bf16.msra.mxu0 %v11916
    %12408 = vmatprep.subr.bf16.mxu0 %v11922
    %12409 = vmatpush1.bf16.msra.mxu0 %v11921
    %12410 = vmatprep.subr.bf16.mxu0 %v11927
    %12411 = vmatpush1.bf16.msra.mxu0 %v11926
    %12412 = vmatprep.subr.bf16.mxu0 %v11932
    %12413 = vmatpush1.bf16.msra.mxu0 %v11931
    %12414 = vmatprep.subr.bf16.mxu0 %v11937
    %12415 = vmatpush1.bf16.msra.mxu0 %v11936
    %12416 = vmatprep.mubr.bf16.mxu0 %v10185
    %12417 = vmatmul.mubr.bf16.gmra.mrb[0].mxu0 %v10184
    %v12418 = vpop.f32.mrb[0].mxu0
    %v12419 = vadd.f32 %v12378, %v12418
    %v12420 = vpop.f32.mrb[0].mxu0
    %v12421 = vadd.f32 %v12380, %v12420
    %v12422 = vpop.f32.mrb[0].mxu0
    %v12423 = vpop.f32.mrb[0].mxu0
    %12424 = vdwg.mxu0
    %12425 = vmatprep.subr.bf16.mxu0 %v11624
    %12426 = vmatpush1.bf16.msra.mxu0 %v11623
    %12427 = vmatprep.subr.bf16.mxu0 %v11629
    %12428 = vmatpush1.bf16.msra.mxu0 %v11628
    %12429 = vmatprep.subr.bf16.mxu0 %v11634
    %12430 = vmatpush1.bf16.msra.mxu0 %v11633
    %12431 = vmatprep.subr.bf16.mxu0 %v11639
    %12432 = vmatpush1.bf16.msra.mxu0 %v11638
    %12433 = vmatprep.subr.bf16.mxu0 %v11644
    %12434 = vmatpush1.bf16.msra.mxu0 %v11643
    %12435 = vmatprep.subr.bf16.mxu0 %v11649
    %12436 = vmatpush1.bf16.msra.mxu0 %v11648
    %12437 = vmatprep.subr.bf16.mxu0 %v11654
    %12438 = vmatpush1.bf16.msra.mxu0 %v11653
    %12439 = vmatprep.subr.bf16.mxu0 %v11659
    %12440 = vmatpush1.bf16.msra.mxu0 %v11658
    %12441 = vmatprep.subr.bf16.mxu0 %v11664
    %12442 = vmatpush1.bf16.msra.mxu0 %v11663
    %12443 = vmatprep.subr.bf16.mxu0 %v11669
    %12444 = vmatpush1.bf16.msra.mxu0 %v11668
    %12445 = vmatprep.subr.bf16.mxu0 %v11674
    %12446 = vmatpush1.bf16.msra.mxu0 %v11673
    %12447 = vmatprep.subr.bf16.mxu0 %v11679
    %12448 = vmatpush1.bf16.msra.mxu0 %v11678
    %12449 = vmatprep.subr.bf16.mxu0 %v11684
    %12450 = vmatpush1.bf16.msra.mxu0 %v11683
    %12451 = vmatprep.subr.bf16.mxu0 %v11689
    %12452 = vmatpush1.bf16.msra.mxu0 %v11688
    %12453 = vmatprep.subr.bf16.mxu0 %v11694
    %12454 = vmatpush1.bf16.msra.mxu0 %v11693
    %12455 = vmatprep.subr.bf16.mxu0 %v11699
    %12456 = vmatpush1.bf16.msra.mxu0 %v11698
    %12457 = vmatprep.mubr.bf16.mxu0 %v10179
    %12458 = vmatmul.mubr.bf16.gmra.mrb[0].mxu0 %v10178
    %v12459 = vpop.f32.mrb[0].mxu0
    %v12460 = vadd.f32 %v10583, %v12459
    %v12461 = vpop.f32.mrb[0].mxu0
    %v12462 = vadd.f32 %v10587, %v12461
    %v12463 = vpop.f32.mrb[0].mxu0
    %v12464 = vpop.f32.mrb[0].mxu0
    %12465 = vdwg.mxu0
    %12466 = vmatprep.subr.bf16.mxu0 %v11704
    %12467 = vmatpush1.bf16.msra.mxu0 %v11703
    %12468 = vmatprep.subr.bf16.mxu0 %v11709
    %12469 = vmatpush1.bf16.msra.mxu0 %v11708
    %12470 = vmatprep.subr.bf16.mxu0 %v11714
    %12471 = vmatpush1.bf16.msra.mxu0 %v11713
    %12472 = vmatprep.subr.bf16.mxu0 %v11719
    %12473 = vmatpush1.bf16.msra.mxu0 %v11718
    %12474 = vmatprep.subr.bf16.mxu0 %v11724
    %12475 = vmatpush1.bf16.msra.mxu0 %v11723
    %12476 = vmatprep.subr.bf16.mxu0 %v11729
    %12477 = vmatpush1.bf16.msra.mxu0 %v11728
    %12478 = vmatprep.subr.bf16.mxu0 %v11734
    %12479 = vmatpush1.bf16.msra.mxu0 %v11733
    %12480 = vmatprep.subr.bf16.mxu0 %v11739
    %12481 = vmatpush1.bf16.msra.mxu0 %v11738
    %12482 = vmatprep.subr.bf16.mxu0 %v11744
    %12483 = vmatpush1.bf16.msra.mxu0 %v11743
    %12484 = vmatprep.subr.bf16.mxu0 %v11749
    %12485 = vmatpush1.bf16.msra.mxu0 %v11748
    %12486 = vmatprep.subr.bf16.mxu0 %v11754
    %12487 = vmatpush1.bf16.msra.mxu0 %v11753
    %12488 = vmatprep.subr.bf16.mxu0 %v11759
    %12489 = vmatpush1.bf16.msra.mxu0 %v11758
    %12490 = vmatprep.subr.bf16.mxu0 %v11764
    %12491 = vmatpush1.bf16.msra.mxu0 %v11763
    %12492 = vmatprep.subr.bf16.mxu0 %v11769
    %12493 = vmatpush1.bf16.msra.mxu0 %v11768
    %12494 = vmatprep.subr.bf16.mxu0 %v11774
    %12495 = vmatpush1.bf16.msra.mxu0 %v11773
    %12496 = vmatprep.subr.bf16.mxu0 %v11779
    %12497 = vmatpush1.bf16.msra.mxu0 %v11778
    %12498 = vmatprep.mubr.bf16.mxu0 %v10181
    %12499 = vmatmul.mubr.bf16.gmra.mrb[0].mxu0 %v10180
    %v12500 = vpop.f32.mrb[0].mxu0
    %v12501 = vadd.f32 %v12460, %v12500
    %v12502 = vpop.f32.mrb[0].mxu0
    %v12503 = vadd.f32 %v12462, %v12502
    %v12504 = vpop.f32.mrb[0].mxu0
    %v12505 = vpop.f32.mrb[0].mxu0
    %12506 = vdwg.mxu0
    %12507 = vmatprep.subr.bf16.mxu0 %v11784
    %12508 = vmatpush1.bf16.msra.mxu0 %v11783
    %12509 = vmatprep.subr.bf16.mxu0 %v11789
    %12510 = vmatpush1.bf16.msra.mxu0 %v11788
    %12511 = vmatprep.subr.bf16.mxu0 %v11794
    %12512 = vmatpush1.bf16.msra.mxu0 %v11793
    %12513 = vmatprep.subr.bf16.mxu0 %v11799
    %12514 = vmatpush1.bf16.msra.mxu0 %v11798
    %12515 = vmatprep.subr.bf16.mxu0 %v11804
    %12516 = vmatpush1.bf16.msra.mxu0 %v11803
    %12517 = vmatprep.subr.bf16.mxu0 %v11809
    %12518 = vmatpush1.bf16.msra.mxu0 %v11808
    %12519 = vmatprep.subr.bf16.mxu0 %v11814
    %12520 = vmatpush1.bf16.msra.mxu0 %v11813
    %12521 = vmatprep.subr.bf16.mxu0 %v11819
    %12522 = vmatpush1.bf16.msra.mxu0 %v11818
    %12523 = vmatprep.subr.bf16.mxu0 %v11824
    %12524 = vmatpush1.bf16.msra.mxu0 %v11823
    %12525 = vmatprep.subr.bf16.mxu0 %v11829
    %12526 = vmatpush1.bf16.msra.mxu0 %v11828
    %12527 = vmatprep.subr.bf16.mxu0 %v11834
    %12528 = vmatpush1.bf16.msra.mxu0 %v11833
    %12529 = vmatprep.subr.bf16.mxu0 %v11839
    %12530 = vmatpush1.bf16.msra.mxu0 %v11838
    %12531 = vmatprep.subr.bf16.mxu0 %v11844
    %12532 = vmatpush1.bf16.msra.mxu0 %v11843
    %12533 = vmatprep.subr.bf16.mxu0 %v11849
    %12534 = vmatpush1.bf16.msra.mxu0 %v11848
    %12535 = vmatprep.subr.bf16.mxu0 %v11854
    %12536 = vmatpush1.bf16.msra.mxu0 %v11853
    %12537 = vmatprep.subr.bf16.mxu0 %v11859
    %12538 = vmatpush1.bf16.msra.mxu0 %v11858
    %12539 = vmatprep.mubr.bf16.mxu0 %v10183
    %12540 = vmatmul.mubr.bf16.gmra.mrb[0].mxu0 %v10182
    %v12541 = vpop.f32.mrb[0].mxu0
    %v12542 = vadd.f32 %v12501, %v12541
    %v12543 = vpop.f32.mrb[0].mxu0
    %v12544 = vadd.f32 %v12503, %v12543
    %v12545 = vpop.f32.mrb[0].mxu0
    %v12546 = vpop.f32.mrb[0].mxu0
    %12547 = vdwg.mxu0
    %12548 = vmatprep.subr.bf16.mxu0 %v11864
    %12549 = vmatpush1.bf16.msra.mxu0 %v11863
    %12550 = vmatprep.subr.bf16.mxu0 %v11869
    %12551 = vmatpush1.bf16.msra.mxu0 %v11868
    %12552 = vmatprep.subr.bf16.mxu0 %v11874
    %12553 = vmatpush1.bf16.msra.mxu0 %v11873
    %12554 = vmatprep.subr.bf16.mxu0 %v11879
    %12555 = vmatpush1.bf16.msra.mxu0 %v11878
    %12556 = vmatprep.subr.bf16.mxu0 %v11884
    %12557 = vmatpush1.bf16.msra.mxu0 %v11883
    %12558 = vmatprep.subr.bf16.mxu0 %v11889
    %12559 = vmatpush1.bf16.msra.mxu0 %v11888
    %12560 = vmatprep.subr.bf16.mxu0 %v11894
    %12561 = vmatpush1.bf16.msra.mxu0 %v11893
    %12562 = vmatprep.subr.bf16.mxu0 %v11899
    %12563 = vmatpush1.bf16.msra.mxu0 %v11898
    %12564 = vmatprep.subr.bf16.mxu0 %v11904
    %12565 = vmatpush1.bf16.msra.mxu0 %v11903
    %12566 = vmatprep.subr.bf16.mxu0 %v11909
    %12567 = vmatpush1.bf16.msra.mxu0 %v11908
    %12568 = vmatprep.subr.bf16.mxu0 %v11914
    %12569 = vmatpush1.bf16.msra.mxu0 %v11913
    %12570 = vmatprep.subr.bf16.mxu0 %v11919
    %12571 = vmatpush1.bf16.msra.mxu0 %v11918
    %12572 = vmatprep.subr.bf16.mxu0 %v11924
    %12573 = vmatpush1.bf16.msra.mxu0 %v11923
    %12574 = vmatprep.subr.bf16.mxu0 %v11929
    %12575 = vmatpush1.bf16.msra.mxu0 %v11928
    %12576 = vmatprep.subr.bf16.mxu0 %v11934
    %12577 = vmatpush1.bf16.msra.mxu0 %v11933
    %12578 = vmatprep.subr.bf16.mxu0 %v11939
    %12579 = vmatpush1.bf16.msra.mxu0 %v11938
    %12580 = vmatprep.mubr.bf16.mxu0 %v10185
    %12581 = vmatmul.mubr.bf16.gmra.mrb[0].mxu0 %v10184
    %v12582 = vpop.f32.mrb[0].mxu0
    %v12583 = vadd.f32 %v12542, %v12582
    %v12584 = vpop.f32.mrb[0].mxu0
    %v12585 = vadd.f32 %v12544, %v12584
    %v12586 = vpop.f32.mrb[0].mxu0
    %v12587 = vpop.f32.mrb[0].mxu0
    %12588 = vdwg.mxu0
    %12589 = vmatprep.subr.bf16.mxu0 0
    %12590 = vmatpush1.bf16.msra.mxu0 %v11625
    %12591 = vmatprep.subr.bf16.mxu0 0
    %12592 = vmatpush1.bf16.msra.mxu0 %v11630
    %12593 = vmatprep.subr.bf16.mxu0 0
    %12594 = vmatpush1.bf16.msra.mxu0 %v11635
    %12595 = vmatprep.subr.bf16.mxu0 0
    %12596 = vmatpush1.bf16.msra.mxu0 %v11640
    %12597 = vmatprep.subr.bf16.mxu0 0
    %12598 = vmatpush1.bf16.msra.mxu0 %v11645
    %12599 = vmatprep.subr.bf16.mxu0 0
    %12600 = vmatpush1.bf16.msra.mxu0 %v11650
    %12601 = vmatprep.subr.bf16.mxu0 0
    %12602 = vmatpush1.bf16.msra.mxu0 %v11655
    %12603 = vmatprep.subr.bf16.mxu0 0
    %12604 = vmatpush1.bf16.msra.mxu0 %v11660
    %12605 = vmatprep.subr.bf16.mxu0 0
    %12606 = vmatpush1.bf16.msra.mxu0 %v11665
    %12607 = vmatprep.subr.bf16.mxu0 0
    %12608 = vmatpush1.bf16.msra.mxu0 %v11670
    %12609 = vmatprep.subr.bf16.mxu0 0
    %12610 = vmatpush1.bf16.msra.mxu0 %v11675
    %12611 = vmatprep.subr.bf16.mxu0 0
    %12612 = vmatpush1.bf16.msra.mxu0 %v11680
    %12613 = vmatprep.subr.bf16.mxu0 0
    %12614 = vmatpush1.bf16.msra.mxu0 %v11685
    %12615 = vmatprep.subr.bf16.mxu0 0
    %12616 = vmatpush1.bf16.msra.mxu0 %v11690
    %12617 = vmatprep.subr.bf16.mxu0 0
    %12618 = vmatpush1.bf16.msra.mxu0 %v11695
    %12619 = vmatprep.subr.bf16.mxu0 0
    %12620 = vmatpush1.bf16.msra.mxu0 %v11700
    %12621 = vmatprep.mubr.bf16.mxu0 %v10179
    %12622 = vmatmul.mubr.bf16.gmra.mrb[0].mxu0 %v10178
    %v12623 = vpop.f32.mrb[0].mxu0
    %v12624 = vadd.f32 %v10591, %v12623
    %v12625 = vpop.f32.mrb[0].mxu0
    %v12626 = vpop.f32.mrb[0].mxu0
    %v12627 = vpop.f32.mrb[0].mxu0
    %12628 = vdwg.mxu0
    %12629 = vmatprep.subr.bf16.mxu0 0
    %12630 = vmatpush1.bf16.msra.mxu0 %v11705
    %12631 = vmatprep.subr.bf16.mxu0 0
    %12632 = vmatpush1.bf16.msra.mxu0 %v11710
    %12633 = vmatprep.subr.bf16.mxu0 0
    %12634 = vmatpush1.bf16.msra.mxu0 %v11715
    %12635 = vmatprep.subr.bf16.mxu0 0
    %12636 = vmatpush1.bf16.msra.mxu0 %v11720
    %12637 = vmatprep.subr.bf16.mxu0 0
    %12638 = vmatpush1.bf16.msra.mxu0 %v11725
    %12639 = vmatprep.subr.bf16.mxu0 0
    %12640 = vmatpush1.bf16.msra.mxu0 %v11730
    %12641 = vmatprep.subr.bf16.mxu0 0
    %12642 = vmatpush1.bf16.msra.mxu0 %v11735
    %12643 = vmatprep.subr.bf16.mxu0 0
    %12644 = vmatpush1.bf16.msra.mxu0 %v11740
    %12645 = vmatprep.subr.bf16.mxu0 0
    %12646 = vmatpush1.bf16.msra.mxu0 %v11745
    %12647 = vmatprep.subr.bf16.mxu0 0
    %12648 = vmatpush1.bf16.msra.mxu0 %v11750
    %12649 = vmatprep.subr.bf16.mxu0 0
    %12650 = vmatpush1.bf16.msra.mxu0 %v11755
    %12651 = vmatprep.subr.bf16.mxu0 0
    %12652 = vmatpush1.bf16.msra.mxu0 %v11760
    %12653 = vmatprep.subr.bf16.mxu0 0
    %12654 = vmatpush1.bf16.msra.mxu0 %v11765
    %12655 = vmatprep.subr.bf16.mxu0 0
    %12656 = vmatpush1.bf16.msra.mxu0 %v11770
    %12657 = vmatprep.subr.bf16.mxu0 0
    %12658 = vmatpush1.bf16.msra.mxu0 %v11775
    %12659 = vmatprep.subr.bf16.mxu0 0
    %12660 = vmatpush1.bf16.msra.mxu0 %v11780
    %12661 = vmatprep.mubr.bf16.mxu0 %v10181
    %12662 = vmatmul.mubr.bf16.gmra.mrb[0].mxu0 %v10180
    %v12663 = vpop.f32.mrb[0].mxu0
    %v12664 = vadd.f32 %v12624, %v12663
    %v12665 = vpop.f32.mrb[0].mxu0
    %v12666 = vpop.f32.mrb[0].mxu0
    %v12667 = vpop.f32.mrb[0].mxu0
    %12668 = vdwg.mxu0
    %12669 = vmatprep.subr.bf16.mxu0 0
    %12670 = vmatpush1.bf16.msra.mxu0 %v11785
    %12671 = vmatprep.subr.bf16.mxu0 0
    %12672 = vmatpush1.bf16.msra.mxu0 %v11790
    %12673 = vmatprep.subr.bf16.mxu0 0
    %12674 = vmatpush1.bf16.msra.mxu0 %v11795
    %12675 = vmatprep.subr.bf16.mxu0 0
    %12676 = vmatpush1.bf16.msra.mxu0 %v11800
    %12677 = vmatprep.subr.bf16.mxu0 0
    %12678 = vmatpush1.bf16.msra.mxu0 %v11805
    %12679 = vmatprep.subr.bf16.mxu0 0
    %12680 = vmatpush1.bf16.msra.mxu0 %v11810
    %12681 = vmatprep.subr.bf16.mxu0 0
    %12682 = vmatpush1.bf16.msra.mxu0 %v11815
    %12683 = vmatprep.subr.bf16.mxu0 0
    %12684 = vmatpush1.bf16.msra.mxu0 %v11820
    %12685 = vmatprep.subr.bf16.mxu0 0
    %12686 = vmatpush1.bf16.msra.mxu0 %v11825
    %12687 = vmatprep.subr.bf16.mxu0 0
    %12688 = vmatpush1.bf16.msra.mxu0 %v11830
    %12689 = vmatprep.subr.bf16.mxu0 0
    %12690 = vmatpush1.bf16.msra.mxu0 %v11835
    %12691 = vmatprep.subr.bf16.mxu0 0
    %12692 = vmatpush1.bf16.msra.mxu0 %v11840
    %12693 = vmatprep.subr.bf16.mxu0 0
    %12694 = vmatpush1.bf16.msra.mxu0 %v11845
    %12695 = vmatprep.subr.bf16.mxu0 0
    %12696 = vmatpush1.bf16.msra.mxu0 %v11850
    %12697 = vmatprep.subr.bf16.mxu0 0
    %12698 = vmatpush1.bf16.msra.mxu0 %v11855
    %12699 = vmatprep.subr.bf16.mxu0 0
    %12700 = vmatpush1.bf16.msra.mxu0 %v11860
    %12701 = vmatprep.mubr.bf16.mxu0 %v10183
    %12702 = vmatmul.mubr.bf16.gmra.mrb[0].mxu0 %v10182
    %v12703 = vpop.f32.mrb[0].mxu0
    %v12704 = vadd.f32 %v12664, %v12703
    %v12705 = vpop.f32.mrb[0].mxu0
    %v12706 = vpop.f32.mrb[0].mxu0
    %v12707 = vpop.f32.mrb[0].mxu0
    %12708 = vdwg.mxu0
    %12709 = vmatprep.subr.bf16.mxu0 0
    %12710 = vmatpush1.bf16.msra.mxu0 %v11865
    %12711 = vmatprep.subr.bf16.mxu0 0
    %12712 = vmatpush1.bf16.msra.mxu0 %v11870
    %12713 = vmatprep.subr.bf16.mxu0 0
    %12714 = vmatpush1.bf16.msra.mxu0 %v11875
    %12715 = vmatprep.subr.bf16.mxu0 0
    %12716 = vmatpush1.bf16.msra.mxu0 %v11880
    %12717 = vmatprep.subr.bf16.mxu0 0
    %12718 = vmatpush1.bf16.msra.mxu0 %v11885
    %12719 = vmatprep.subr.bf16.mxu0 0
    %12720 = vmatpush1.bf16.msra.mxu0 %v11890
    %12721 = vmatprep.subr.bf16.mxu0 0
    %12722 = vmatpush1.bf16.msra.mxu0 %v11895
    %12723 = vmatprep.subr.bf16.mxu0 0
    %12724 = vmatpush1.bf16.msra.mxu0 %v11900
    %12725 = vmatprep.subr.bf16.mxu0 0
    %12726 = vmatpush1.bf16.msra.mxu0 %v11905
    %12727 = vmatprep.subr.bf16.mxu0 0
    %12728 = vmatpush1.bf16.msra.mxu0 %v11910
    %12729 = vmatprep.subr.bf16.mxu0 0
    %12730 = vmatpush1.bf16.msra.mxu0 %v11915
    %12731 = vmatprep.subr.bf16.mxu0 0
    %12732 = vmatpush1.bf16.msra.mxu0 %v11920
    %12733 = vmatprep.subr.bf16.mxu0 0
    %12734 = vmatpush1.bf16.msra.mxu0 %v11925
    %12735 = vmatprep.subr.bf16.mxu0 0
    %12736 = vmatpush1.bf16.msra.mxu0 %v11930
    %12737 = vmatprep.subr.bf16.mxu0 0
    %12738 = vmatpush1.bf16.msra.mxu0 %v11935
    %12739 = vmatprep.subr.bf16.mxu0 0
    %12740 = vmatpush1.bf16.msra.mxu0 %v11940
    %12741 = vmatprep.mubr.bf16.mxu0 %v10185
    %12742 = vmatmul.mubr.bf16.gmra.mrb[0].mxu0 %v10184
    %v12743 = vpop.f32.mrb[0].mxu0
    %v12744 = vadd.f32 %v12704, %v12743
    %v12745 = vpop.f32.mrb[0].mxu0
    %v12746 = vpop.f32.mrb[0].mxu0
    %v12747 = vpop.f32.mrb[0].mxu0
    %12748 = vdwg.mxu0
    %v12749 = vmax.f32 %v12419, 0.0
    %v12750 = vmax.f32 %v12421, 0.0
    %v12751 = vmax.f32 %v12583, 0.0
    %v12752 = vmax.f32 %v12585, 0.0
    %v12753 = vmax.f32 %v12744, 0.0
    %12754 = vst [vmem:[%s9] sm:$0xff] %v12749
    %12755 = vst [vmem:[%s9 + $0x8] sm:$0xff] %v12750
    %12756 = vst [vmem:[%s9 + $0x10] sm:$0xff] %v12751
    %12757 = vst [vmem:[%s9 + $0x18] sm:$0xff] %v12752
    %12758 = vst [vmem:[%s9 + $0x20] sm:$0xff] %v12753
    // Predicated region
    $region70: #{bpn_forward.1} parent=1 // pred_check
      _
    $region71: #{bpn_forward.1} parent=1 // pred_check_branch
      %12760 = sbr.rel (0) target = $region73
    $region72: #{bpn_forward.1} parent=1 // pred_region
      _
    $region73: #{bpn_forward.1} parent=1 // pred_fallthru
      _
    // Predicated region
    $region74: #{bpn_forward.1} parent=1 // pred_check
      _
    $region75: #{bpn_forward.1} parent=1 // pred_check_branch
      %12762 = sbr.rel (0) target = $region77
    $region76: #{bpn_forward.1} parent=1 // pred_region
      _
    $region77: #{bpn_forward.1} parent=1 // pred_fallthru
      _
    %12763 = vsyncpa [#allocation3], 1
    %12764 = vsyncpa [#allocation5], 1
    %12765 = vsyncpa [#allocation8], 1
    %12766 = vsyncpa [#allocation11], 1
    %12767 = vsyncpa [#allocation14], 1

</llo_original>
